<compile_context>
chip_gen: v6e
topology: v6e:2x2x1
jax: 0.10.0
libtpu: 0.0.40
codegen_flags: <defaults>
</compile_context>

<pallas_src>
import functools

import jax
import jax.numpy as jnp
from jax import lax
from jax.experimental import pallas as pl
from jax.experimental.pallas import tpu as pltpu


def _round_up(x, m):
    return (x + m - 1) // m * m


# ---------------------------------------------------------------------------
# Kernel 1: fused query+reply bidirectional LSTM recurrence + pooling.
# Layout: features on sublanes, batch on lanes.
# ---------------------------------------------------------------------------
def _bilstm_pool_kernel(x_ref, len_ref, wih_ref, whh_ref, out_ref, *,
                        hidden_dim, pool_type):
    """
    x_ref:   (T, E+1, Bb)  bf16  embedded tokens, time-major, batch in lanes;
                                 row E is the constant 1 (bias folded into W_ih)
    len_ref: (1, Bb)       i32   valid lengths
    wih_ref: (8H, E+1)     bf16  [W_ih_fwd|bias_fwd ; W_ih_bwd|bias_bwd]
    whh_ref: (8H, H)       bf16  [W_hh_fwd ; W_hh_bwd]
    out_ref: (2H, Bb)      f32   pooled embedding (rows [0:H] fwd, [H:2H] bwd)
    """
    T = x_ref.shape[0]
    Bb = x_ref.shape[2]
    H = hidden_dim
    G = 4 * H
    NEG = jnp.float32(-1e9)

    # ---- loop-invariant loads, hoisted once ----
    wih = wih_ref[...]
    whh = whh_ref[...]
    wih_f, wih_b = wih[:G], wih[G:]
    whh_f, whh_b = whh[:G], whh[G:]
    lens = len_ref[...]                               # (1, Bb) int32

    def cell(h_prev, c_prev, x_t, wih_d, whh_d, valid):
        # x_t: (E+1, Bb) bf16; h_prev, c_prev: (H, Bb) f32.
        # bf16 MXU operands, f32 accumulation & elementwise math.
        g = (jnp.dot(wih_d, x_t, preferred_element_type=jnp.float32)
             + jnp.dot(whh_d, h_prev.astype(jnp.bfloat16),
                       preferred_element_type=jnp.float32))          # (4H, Bb)
        i_g = jax.nn.sigmoid(g[0 * H:1 * H])
        f_g = jax.nn.sigmoid(g[1 * H:2 * H])
        g_g = jnp.tanh(g[2 * H:3 * H])
        o_g = jax.nn.sigmoid(g[3 * H:4 * H])
        c_new = f_g * c_prev + i_g * g_g
        h_new = o_g * jnp.tanh(c_new)
        # pack_padded semantics: state only advances on valid steps.
        h = jnp.where(valid, h_new, h_prev)
        c = jnp.where(valid, c_new, c_prev)
        return h, c, h_new

    zeros = jnp.zeros((H, Bb), jnp.float32)
    acc0 = jnp.full((H, Bb), NEG, jnp.float32) if pool_type == "max" else zeros

    def step(s, carry):
        hf, cf, hb, cb, acc_f, acc_b = carry
        tf = s
        tb = T - 1 - s
        valid_f = tf < lens                           # (1, Bb) bool
        valid_b = tb < lens
        # Input projection done per step: no (T*Bb, 8H) pre slab (bounded VMEM);
        # it has no dependence on the recurrence so it overlaps the chain, and
        # the fwd/bwd chains interleave to hide each other's MXU latency.
        hf, cf, hn_f = cell(hf, cf, x_ref[tf], wih_f, whh_f, valid_f)
        hb, cb, hn_b = cell(hb, cb, x_ref[tb], wih_b, whh_b, valid_b)
        if pool_type == "max":
            # PyTorch quirk reproduced intentionally: pad_packed zeros AND
            # genuinely-zero activations at valid steps both become -1e9.
            acc_f = jnp.maximum(acc_f, jnp.where(valid_f & (hn_f != 0.0), hn_f, NEG))
            acc_b = jnp.maximum(acc_b, jnp.where(valid_b & (hn_b != 0.0), hn_b, NEG))
        else:
            acc_f = acc_f + jnp.where(valid_f, hn_f, 0.0)
            acc_b = acc_b + jnp.where(valid_b, hn_b, 0.0)
        return hf, cf, hb, cb, acc_f, acc_b

    carry = (zeros, zeros, zeros, zeros, acc0, acc0)
    if T <= 8:                      # full unroll: max scheduler visibility
        for s in range(T):
            carry = step(s, carry)
    else:                           # bounded vreg pressure at larger T
        carry = lax.fori_loop(0, T, step, carry, unroll=2)
    _, _, _, _, acc_f, acc_b = carry

    if pool_type == "mean":
        inv_len = 1.0 / lens.astype(jnp.float32)       # (1, Bb)
        acc_f = acc_f * inv_len
        acc_b = acc_b * inv_len
    # Write straight into sublane ranges (no concat); lanes fully dense.
    out_ref[:H, :] = acc_f
    out_ref[H:, :] = acc_b


def encode_pair(query_ids, query_len, reply_ids, reply_len, prep,
                pool_type="max", batch_block=128):
    """Runs BOTH BiLSTM encoders in ONE pallas_call.

    Returns ((2, 2H, B_pad) f32 = [query pooled ; reply pooled], batch_block).
    """
    emb = prep["emb_bf16"]                      # (V, E)      bf16
    wih = prep["wih"]                           # (2, 8H, E+1) bf16
    whh = prep["whh"]                           # (2, 8H, H)   bf16
    B, Tq = query_ids.shape
    Tr = reply_ids.shape[1]
    T = max(Tq, Tr)
    E = emb.shape[1]
    H = whh.shape[2]

    # Pad batch to a lane-dense multiple of 128 (padded rows get length 1).
    b_pad = max(_round_up(B, 128), 128)
    bb = min(_round_up(batch_block, 128), b_pad)
    b_pad = _round_up(b_pad, bb)

    # TODO(synk): move the embedding gather into the kernel (scalar-prefetched
    # ids + DMA gather) to avoid one HBM round-trip of the activations.
    def prep_x(ids, t_cur):
        ids = jnp.pad(ids.astype(jnp.int32), ((0, b_pad - B), (0, T - t_cur)))
        x = jnp.take(emb, ids, axis=0)                        # (b_pad, T, E)
        x = jnp.transpose(x, (1, 2, 0))                       # (T, E, b_pad)
        ones = jnp.ones((T, 1, b_pad), jnp.bfloat16)          # folded-bias row
        return jnp.concatenate([x, ones], axis=1)             # (T, E+1, b_pad)

    def prep_len(l):
        return jnp.pad(l.astype(jnp.int32), (0, b_pad - B),
                       constant_values=1)[None, :]            # (1, b_pad)

    x = jnp.stack([prep_x(query_ids, Tq), prep_x(reply_ids, Tr)], axis=0)
    lens = jnp.stack([prep_len(query_len), prep_len(reply_len)], axis=0)

    # VMEM limit derived from the actual (double-buffered) footprint.
    ea = E + 1
    need = 2 * (T * ea * bb * 2            # x tile (bf16)
                + 8 * H * (ea + H) * 2     # weights (bf16)
                + 2 * H * bb * 4           # out tile (f32)
                + bb * 4)                  # lengths tile
    vmem_limit = int(min(max(need + (4 << 20), 16 << 20), 112 << 20))

    kernel = functools.partial(_bilstm_pool_kernel, hidden_dim=H,
                               pool_type=pool_type)
    out = pl.pallas_call(
        kernel,
        out_shape=jax.ShapeDtypeStruct((2, 2 * H, b_pad), jnp.float32),
        grid=(2, b_pad // bb),
        in_specs=[
            pl.BlockSpec((None, T, ea, bb), lambda e, b: (e, 0, 0, b)),  # x
            pl.BlockSpec((None, 1, bb), lambda e, b: (e, 0, b)),         # lens
            pl.BlockSpec((None, 8 * H, ea), lambda e, b: (e, 0, 0)),     # W_ih|b
            pl.BlockSpec((None, 8 * H, H), lambda e, b: (e, 0, 0)),      # W_hh
        ],
        out_specs=pl.BlockSpec((None, 2 * H, bb), lambda e, b: (e, 0, b)),
        compiler_params=pltpu.CompilerParams(
            dimension_semantics=("parallel", "parallel"),
            vmem_limit_bytes=vmem_limit),
    )(x, lens, wih, whh)
    return out, bb


# ---------------------------------------------------------------------------
# Kernel 2: quadratic term + MLP head + sigmoid (batch-in-lanes layout).
# ---------------------------------------------------------------------------
def _head_kernel(q_ref, r_ref, mT_ref, w1q_ref, w1s_ref, w1r_ref, b1_ref,
                 bn_scale_ref, bn_bias_ref, w2_ref, b2_ref, out_ref):
    q = q_ref[...]                                              # (2E, Bb)
    r = r_ref[...]                                              # (2E, Bb)
    # quadratic = q^T M r per batch column = sum_j (M^T q)_j * r_j
    mq = jnp.dot(mT_ref[...], q, preferred_element_type=jnp.float32)
    quad = jnp.sum(mq * r, axis=0, keepdims=True)               # (1, Bb)
    # Linear(4E+1, Hm) with the PyTorch weight split into column blocks
    # (identical math to cat([q, quad, r]) @ W1^T, no 4E+1 concat needed).
    h = (jnp.dot(w1q_ref[...], q, preferred_element_type=jnp.float32)
         + jnp.dot(w1r_ref[...], r, preferred_element_type=jnp.float32)
         + w1s_ref[...] * quad
         + b1_ref[...])                                         # (Hm, Bb)
    h = jnp.maximum(h, 0.0)                                     # ReLU
    # BatchNorm1d folded to scale/bias (inference running stats).
    # TODO(synk): train-mode BatchNorm batch statistics / dropout not modeled.
    h = h * bn_scale_ref[...] + bn_bias_ref[...]
    score = jnp.dot(w2_ref[...], h, preferred_element_type=jnp.float32) \
        + b2_ref[...]                                           # (1, Bb)
    out_ref[...] = jax.nn.sigmoid(score)


def unreferenced_head(qout, rout, prep, batch_block=128):
    two_e, b_pad = qout.shape
    hm = prep["w1q"].shape[0]
    bb = min(_round_up(batch_block, 128), b_pad)
    need = 2 * ((2 * two_e * bb + bb) * 4
                + (two_e * two_e + hm * (2 * two_e + 1) + 4 * hm + 1) * 4)
    vmem_limit = int(min(max(need + (2 << 20), 8 << 20), 64 << 20))
    return pl.pallas_call(
        _head_kernel,
        out_shape=jax.ShapeDtypeStruct((1, b_pad), jnp.float32),
        grid=(b_pad // bb,),
        in_specs=[
            pl.BlockSpec((two_e, bb), lambda b: (0, b)),        # qout tile
            pl.BlockSpec((two_e, bb), lambda b: (0, b)),        # rout tile
            pl.BlockSpec((two_e, two_e), lambda b: (0, 0)),     # M^T
            pl.BlockSpec((hm, two_e), lambda b: (0, 0)),        # W1 (q cols)
            pl.BlockSpec((hm, 1), lambda b: (0, 0)),            # W1 (quad col)
            pl.BlockSpec((hm, two_e), lambda b: (0, 0)),        # W1 (r cols)
            pl.BlockSpec((hm, 1), lambda b: (0, 0)),            # b1
            pl.BlockSpec((hm, 1), lambda b: (0, 0)),            # bn scale
            pl.BlockSpec((hm, 1), lambda b: (0, 0)),            # bn bias
            pl.BlockSpec((1, hm), lambda b: (0, 0)),            # W2
            pl.BlockSpec((1, 1), lambda b: (0, 0)),             # b2
        ],
        out_specs=pl.BlockSpec((1, bb), lambda b: (0, b)),
        compiler_params=pltpu.CompilerParams(
            dimension_semantics=("parallel",),
            vmem_limit_bytes=vmem_limit),
    )(qout, rout, prep["mT"], prep["w1q"], prep["w1s"], prep["w1r"],
      prep["b1"], prep["bn_scale"], prep["bn_bias"], prep["w2"], prep["b2"])


# ---------------------------------------------------------------------------
# Full UnreferencedMetric forward
# ---------------------------------------------------------------------------
def _unreferenced_metric(query_batch, query_length, reply_batch, reply_length,
                         prep, pool_type="max", batch_block=128):
    B = query_batch.shape[0]
    enc_out, _ = encode_pair(query_batch, query_length, reply_batch,
                             reply_length, prep, pool_type, batch_block)
    score = unreferenced_head(enc_out[0], enc_out[1], prep, batch_block)
    return score[0, :B][:, None]                                # (B, 1)


unreferenced_metric = jax.jit(
    _unreferenced_metric, static_argnames=("pool_type", "batch_block"))


# ---------------------------------------------------------------------------
# Deterministic synthetic parameters (PyTorch layout) + one-time kernel repack
# ---------------------------------------------------------------------------
def _make_lstm_params(key, emb_dim, hidden_dim):
    ks = jax.random.split(key, 8)
    s = 0.1
    E, H = emb_dim, hidden_dim
    return {   # nn.LSTM parameter layout, gate order [i, f, g, o]
        "weight_ih_l0": jax.random.normal(ks[0], (4 * H, E), jnp.float32) * s,
        "weight_hh_l0": jax.random.normal(ks[1], (4 * H, H), jnp.float32) * s,
        "bias_ih_l0": jax.random.normal(ks[2], (4 * H,), jnp.float32) * s,
        "bias_hh_l0": jax.random.normal(ks[3], (4 * H,), jnp.float32) * s,
        "weight_ih_l0_reverse": jax.random.normal(ks[4], (4 * H, E), jnp.float32) * s,
        "weight_hh_l0_reverse": jax.random.normal(ks[5], (4 * H, H), jnp.float32) * s,
        "bias_ih_l0_reverse": jax.random.normal(ks[6], (4 * H,), jnp.float32) * s,
        "bias_hh_l0_reverse": jax.random.normal(ks[7], (4 * H,), jnp.float32) * s,
    }


def make_params(key, vocab, emb_dim, lstm_dim, mlp_dim):
    kq, kr, ke, km, k1, kb1, k2, kb2 = jax.random.split(key, 8)
    E = emb_dim
    emb = jax.random.normal(ke, (vocab, E), jnp.float32) * 0.1
    emb = emb.at[0].set(0.0)   # nn.Embedding(padding_idx=0)
    head = {
        "quadratic_M": jax.random.normal(km, (2 * E, 2 * E), jnp.float32)
                       / (2 * E) ** 0.5,
        "w1": jax.random.normal(k1, (mlp_dim, 4 * E + 1), jnp.float32) * 0.05,
        "b1": jax.random.normal(kb1, (mlp_dim,), jnp.float32) * 0.05,
        "bn_gamma": jnp.ones((mlp_dim,), jnp.float32),
        "bn_beta": jnp.zeros((mlp_dim,), jnp.float32),
        "bn_mean": jnp.zeros((mlp_dim,), jnp.float32),
        "bn_var": jnp.ones((mlp_dim,), jnp.float32),
        "w2": jax.random.normal(k2, (1, mlp_dim), jnp.float32) * 0.05,
        "b2": jax.random.normal(kb2, (1,), jnp.float32) * 0.05,
    }
    return {"emb": emb,
            "query_enc": _make_lstm_params(kq, E, lstm_dim),
            "reply_enc": _make_lstm_params(kr, E, lstm_dim),
            "head": head}


def prepare_params(params, eps=1e-5):
    """One-time (outside jit) repack of PyTorch-layout params into kernel
    layout: fwd/bwd weight concat + bias folded into an extra W_ih column,
    query/reply stacking, bf16 cast of MXU operands, BatchNorm folding."""
    def enc_pack(p):
        wih_f = jnp.concatenate(
            [p["weight_ih_l0"], (p["bias_ih_l0"] + p["bias_hh_l0"])[:, None]], axis=1)
        wih_b = jnp.concatenate(
            [p["weight_ih_l0_reverse"],
             (p["bias_ih_l0_reverse"] + p["bias_hh_l0_reverse"])[:, None]], axis=1)
        wih = jnp.concatenate([wih_f, wih_b], axis=0)             # (8H, E+1)
        whh = jnp.concatenate([p["weight_hh_l0"], p["weight_hh_l0_reverse"]],
                              axis=0)                             # (8H, H)
        return wih, whh

    wq, hq = enc_pack(params["query_enc"])
    wr, hr = enc_pack(params["reply_enc"])
    hd = params["head"]
    e2 = hd["quadratic_M"].shape[0]                               # = 2E
    w1 = hd["w1"]                                                 # (Hm, 4E+1)
    bn_scale = hd["bn_gamma"] * lax.rsqrt(hd["bn_var"] + eps)
    bn_bias = hd["bn_beta"] - hd["bn_mean"] * bn_scale
    return {
        "emb_bf16": params["emb"].astype(jnp.bfloat16),
        "wih": jnp.stack([wq, wr], axis=0).astype(jnp.bfloat16),  # (2, 8H, E+1)
        "whh": jnp.stack([hq, hr], axis=0).astype(jnp.bfloat16),  # (2, 8H, H)
        "mT": hd["quadratic_M"].T,                                # (2E, 2E)
        "w1q": w1[:, :e2],
        "w1s": w1[:, e2:e2 + 1],
        "w1r": w1[:, e2 + 1:],
        "b1": hd["b1"][:, None],
        "bn_scale": bn_scale[:, None],
        "bn_bias": bn_bias[:, None],
        "w2": hd["w2"],
        "b2": hd["b2"][:, None],
    }


if __name__ == "__main__":
    key = jax.random.PRNGKey(0)
    k_par, k_q, k_r = jax.random.split(key, 3)

    B, TQ, TR = 2, 8, 8                 # batch, query len, reply len
    VOCAB, E, H, MLP = 50, 32, 32, 128  # vocab, word2vec dim, ruber_lstm_dim, ruber_mlp_dim
    # (the module's quadratic / MLP sizing assumes ruber_lstm_dim == word2vec dim)

    params = make_params(k_par, VOCAB, E, H, MLP)
    prep = prepare_params(params)

    query_batch = jax.random.randint(k_q, (B, TQ), 1, VOCAB, dtype=jnp.int32)
    reply_batch = jax.random.randint(k_r, (B, TR), 1, VOCAB, dtype=jnp.int32)
    query_length = jnp.array([8, 5], dtype=jnp.int32)   # second query is padded
    reply_length = jnp.array([6, 8], dtype=jnp.int32)

    score = unreferenced_metric(query_batch, query_length,
                                reply_batch, reply_length, prep,
                                pool_type="max")
    jax.block_until_ready(score)
    assert score.shape == (B, 1) and score.dtype == jnp.float32
    assert bool(jnp.all(jnp.isfinite(score)))
    assert bool(jnp.all((score >= 0.0) & (score <= 1.0)))

    # also exercise the 'mean' pooling path of the encoders
    score_mean = unreferenced_metric(query_batch, query_length,
                                     reply_batch, reply_length, prep,
                                     pool_type="mean")
    jax.block_until_ready(score_mean)
    assert score_mean.shape == (B, 1)
    assert bool(jnp.all(jnp.isfinite(score_mean)))

    print("KERNEL_OK")
</pallas_src>

<mosaic_0001>
module attributes {stable_mosaic.version = 11 : i64} {
  func.func @_head_kernel(%arg0: i32, %arg1: memref<64x128xf32, #tpu.memory_space<vmem>>, %arg2: memref<64x128xf32, #tpu.memory_space<vmem>>, %arg3: memref<64x64xf32, #tpu.memory_space<vmem>>, %arg4: memref<128x64xf32, #tpu.memory_space<vmem>>, %arg5: memref<128x1xf32, #tpu.memory_space<vmem>>, %arg6: memref<128x64xf32, #tpu.memory_space<vmem>>, %arg7: memref<128x1xf32, #tpu.memory_space<vmem>>, %arg8: memref<128x1xf32, #tpu.memory_space<vmem>>, %arg9: memref<128x1xf32, #tpu.memory_space<vmem>>, %arg10: memref<1x128xf32, #tpu.memory_space<vmem>>, %arg11: memref<1x1xf32, #tpu.memory_space<vmem>>, %arg12: memref<1x128xf32, #tpu.memory_space<vmem>>) attributes {dimension_semantics = [#tpu.dimension_semantics<parallel>], iteration_bounds = array<i64: 1>, scalar_prefetch = 0 : i64, scratch_operands = 0 : i64, tpu.core_type = #tpu.core_type<tc>, window_params = [{transform_indices = @transform_0, window_bounds = array<i64: 64, 128>}, {transform_indices = @transform_1, window_bounds = array<i64: 64, 128>}, {pipeline_mode = #tpu.pipeline_mode<synchronous>, transform_indices = @transform_2, window_bounds = array<i64: 64, 64>}, {pipeline_mode = #tpu.pipeline_mode<synchronous>, transform_indices = @transform_3, window_bounds = array<i64: 128, 64>}, {pipeline_mode = #tpu.pipeline_mode<synchronous>, transform_indices = @transform_4, window_bounds = array<i64: 128, 1>}, {pipeline_mode = #tpu.pipeline_mode<synchronous>, transform_indices = @transform_5, window_bounds = array<i64: 128, 64>}, {pipeline_mode = #tpu.pipeline_mode<synchronous>, transform_indices = @transform_6, window_bounds = array<i64: 128, 1>}, {pipeline_mode = #tpu.pipeline_mode<synchronous>, transform_indices = @transform_7, window_bounds = array<i64: 128, 1>}, {pipeline_mode = #tpu.pipeline_mode<synchronous>, transform_indices = @transform_8, window_bounds = array<i64: 128, 1>}, {pipeline_mode = #tpu.pipeline_mode<synchronous>, transform_indices = @transform_9, window_bounds = array<i64: 1, 128>}, {pipeline_mode = #tpu.pipeline_mode<synchronous>, transform_indices = @transform_10, window_bounds = array<i64: 1, 1>}, {transform_indices = @transform_11, window_bounds = array<i64: 1, 128>}]} {
    %c0 = arith.constant 0 : index
    %c0_0 = arith.constant 0 : index
    %0 = vector.load %arg1[%c0, %c0_0] : memref<64x128xf32, #tpu.memory_space<vmem>>, vector<64x128xf32>
    %c0_1 = arith.constant 0 : index
    %c0_2 = arith.constant 0 : index
    %1 = vector.load %arg2[%c0_1, %c0_2] : memref<64x128xf32, #tpu.memory_space<vmem>>, vector<64x128xf32>
    %c0_3 = arith.constant 0 : index
    %c0_4 = arith.constant 0 : index
    %2 = vector.load %arg3[%c0_3, %c0_4] : memref<64x64xf32, #tpu.memory_space<vmem>>, vector<64x64xf32>
    %cst = arith.constant dense<0.000000e+00> : vector<64x128xf32>
    %3 = tpu.matmul %2, %0, %cst {dimension_numbers = #tpu.dot_dimension_numbers<[1], [0], [0], [1], [0, 0, 1, 1], [], []>} : vector<64x64xf32>, vector<64x128xf32>, vector<64x128xf32> -> vector<64x128xf32>
    %4 = arith.mulf %3, %1 : vector<64x128xf32>
    %cst_5 = arith.constant dense<0.000000e+00> : vector<128xf32>
    %5 = vector.multi_reduction <add>, %4, %cst_5 [0] : vector<64x128xf32> to vector<128xf32>
    %6 = vector.shape_cast %5 : vector<128xf32> to vector<1x128xf32>
    %c0_6 = arith.constant 0 : index
    %c0_7 = arith.constant 0 : index
    %7 = vector.load %arg4[%c0_6, %c0_7] : memref<128x64xf32, #tpu.memory_space<vmem>>, vector<128x64xf32>
    %cst_8 = arith.constant dense<0.000000e+00> : vector<128x128xf32>
    %8 = tpu.matmul %7, %0, %cst_8 {dimension_numbers = #tpu.dot_dimension_numbers<[1], [0], [0], [1], [0, 0, 1, 1], [], []>} : vector<128x64xf32>, vector<64x128xf32>, vector<128x128xf32> -> vector<128x128xf32>
    %c0_9 = arith.constant 0 : index
    %c0_10 = arith.constant 0 : index
    %9 = vector.load %arg6[%c0_9, %c0_10] : memref<128x64xf32, #tpu.memory_space<vmem>>, vector<128x64xf32>
    %cst_11 = arith.constant dense<0.000000e+00> : vector<128x128xf32>
    %10 = tpu.matmul %9, %1, %cst_11 {dimension_numbers = #tpu.dot_dimension_numbers<[1], [0], [0], [1], [0, 0, 1, 1], [], []>} : vector<128x64xf32>, vector<64x128xf32>, vector<128x128xf32> -> vector<128x128xf32>
    %11 = arith.addf %8, %10 : vector<128x128xf32>
    %c0_12 = arith.constant 0 : index
    %c0_13 = arith.constant 0 : index
    %12 = vector.load %arg5[%c0_12, %c0_13] : memref<128x1xf32, #tpu.memory_space<vmem>>, vector<128x1xf32>
    %13 = vector.broadcast %12 : vector<128x1xf32> to vector<128x128xf32>
    %14 = vector.broadcast %6 : vector<1x128xf32> to vector<128x128xf32>
    %15 = arith.mulf %13, %14 : vector<128x128xf32>
    %16 = arith.addf %11, %15 : vector<128x128xf32>
    %c0_14 = arith.constant 0 : index
    %c0_15 = arith.constant 0 : index
    %17 = vector.load %arg7[%c0_14, %c0_15] : memref<128x1xf32, #tpu.memory_space<vmem>>, vector<128x1xf32>
    %18 = vector.broadcast %17 : vector<128x1xf32> to vector<128x128xf32>
    %19 = arith.addf %16, %18 : vector<128x128xf32>
    %cst_16 = arith.constant 0.000000e+00 : f32
    %20 = vector.broadcast %cst_16 : f32 to vector<128x128xf32>
    %21 = arith.maximumf %19, %20 : vector<128x128xf32>
    %c0_17 = arith.constant 0 : index
    %c0_18 = arith.constant 0 : index
    %22 = vector.load %arg8[%c0_17, %c0_18] : memref<128x1xf32, #tpu.memory_space<vmem>>, vector<128x1xf32>
    %23 = vector.broadcast %22 : vector<128x1xf32> to vector<128x128xf32>
    %24 = arith.mulf %21, %23 : vector<128x128xf32>
    %c0_19 = arith.constant 0 : index
    %c0_20 = arith.constant 0 : index
    %25 = vector.load %arg9[%c0_19, %c0_20] : memref<128x1xf32, #tpu.memory_space<vmem>>, vector<128x1xf32>
    %26 = vector.broadcast %25 : vector<128x1xf32> to vector<128x128xf32>
    %27 = arith.addf %24, %26 : vector<128x128xf32>
    %c0_21 = arith.constant 0 : index
    %c0_22 = arith.constant 0 : index
    %28 = vector.load %arg10[%c0_21, %c0_22] : memref<1x128xf32, #tpu.memory_space<vmem>>, vector<1x128xf32>
    %cst_23 = arith.constant dense<0.000000e+00> : vector<1x128xf32>
    %29 = tpu.matmul %28, %27, %cst_23 {dimension_numbers = #tpu.dot_dimension_numbers<[1], [0], [0], [1], [0, 0, 1, 1], [], []>} : vector<1x128xf32>, vector<128x128xf32>, vector<1x128xf32> -> vector<1x128xf32>
    %c0_24 = arith.constant 0 : index
    %c0_25 = arith.constant 0 : index
    %30 = vector.load %arg11[%c0_24, %c0_25] : memref<1x1xf32, #tpu.memory_space<vmem>>, vector<1x1xf32>
    %31 = vector.broadcast %30 : vector<1x1xf32> to vector<1x128xf32>
    %32 = arith.addf %29, %31 : vector<1x128xf32>
    %33 = arith.negf %32 : vector<1x128xf32>
    %34 = math.exp %33 : vector<1x128xf32>
    %cst_26 = arith.constant 1.000000e+00 : f32
    %35 = vector.broadcast %cst_26 : f32 to vector<1x128xf32>
    %36 = arith.addf %35, %34 : vector<1x128xf32>
    %37 = arith.divf %35, %36 : vector<1x128xf32>
    %c0_27 = arith.constant 0 : index
    %c0_28 = arith.constant 0 : index
    %38 = vector.load %arg12[%c0_27, %c0_28] : memref<1x128xf32, #tpu.memory_space<vmem>>, vector<1x128xf32>
    tpu.vector_store %arg12[%c0_27, %c0_28], %37 {strides = array<i32>} : memref<1x128xf32, #tpu.memory_space<vmem>>, vector<1x128xf32>,
    return
  }
  func.func @transform_0(%arg0: i32) -> (i32, i32) {
    %c0_i32 = arith.constant 0 : i32
    %c0_i32_0 = arith.constant 0 : i32
    return %c0_i32, %arg0 : i32, i32
  }
  func.func @transform_1(%arg0: i32) -> (i32, i32) {
    %c0_i32 = arith.constant 0 : i32
    %c0_i32_0 = arith.constant 0 : i32
    return %c0_i32, %arg0 : i32, i32
  }
  func.func @transform_2(%arg0: i32) -> (i32, i32) {
    %c0_i32 = arith.constant 0 : i32
    %c0_i32_0 = arith.constant 0 : i32
    %c0_i32_1 = arith.constant 0 : i32
    return %c0_i32, %c0_i32_0 : i32, i32
  }
  func.func @transform_3(%arg0: i32) -> (i32, i32) {
    %c0_i32 = arith.constant 0 : i32
    %c0_i32_0 = arith.constant 0 : i32
    %c0_i32_1 = arith.constant 0 : i32
    return %c0_i32, %c0_i32_0 : i32, i32
  }
  func.func @transform_4(%arg0: i32) -> (i32, i32) {
    %c0_i32 = arith.constant 0 : i32
    %c0_i32_0 = arith.constant 0 : i32
    %c0_i32_1 = arith.constant 0 : i32
    return %c0_i32, %c0_i32_0 : i32, i32
  }
  func.func @transform_5(%arg0: i32) -> (i32, i32) {
    %c0_i32 = arith.constant 0 : i32
    %c0_i32_0 = arith.constant 0 : i32
    %c0_i32_1 = arith.constant 0 : i32
    return %c0_i32, %c0_i32_0 : i32, i32
  }
  func.func @transform_6(%arg0: i32) -> (i32, i32) {
    %c0_i32 = arith.constant 0 : i32
    %c0_i32_0 = arith.constant 0 : i32
    %c0_i32_1 = arith.constant 0 : i32
    return %c0_i32, %c0_i32_0 : i32, i32
  }
  func.func @transform_7(%arg0: i32) -> (i32, i32) {
    %c0_i32 = arith.constant 0 : i32
    %c0_i32_0 = arith.constant 0 : i32
    %c0_i32_1 = arith.constant 0 : i32
    return %c0_i32, %c0_i32_0 : i32, i32
  }
  func.func @transform_8(%arg0: i32) -> (i32, i32) {
    %c0_i32 = arith.constant 0 : i32
    %c0_i32_0 = arith.constant 0 : i32
    %c0_i32_1 = arith.constant 0 : i32
    return %c0_i32, %c0_i32_0 : i32, i32
  }
  func.func @transform_9(%arg0: i32) -> (i32, i32) {
    %c0_i32 = arith.constant 0 : i32
    %c0_i32_0 = arith.constant 0 : i32
    %c0_i32_1 = arith.constant 0 : i32
    return %c0_i32, %c0_i32_0 : i32, i32
  }
  func.func @transform_10(%arg0: i32) -> (i32, i32) {
    %c0_i32 = arith.constant 0 : i32
    %c0_i32_0 = arith.constant 0 : i32
    %c0_i32_1 = arith.constant 0 : i32
    return %c0_i32, %c0_i32_0 : i32, i32
  }
  func.func @transform_11(%arg0: i32) -> (i32, i32) {
    %c0_i32 = arith.constant 0 : i32
    %c0_i32_0 = arith.constant 0 : i32
    return %c0_i32, %arg0 : i32, i32
  }
}

module attributes {stable_mosaic.version = 11 : i64} {
  func.func @_bilstm_pool_kernel(%arg0: i32, %arg1: i32, %arg2: memref<1x8x33x128xbf16, #tpu.memory_space<vmem>>, %arg3: memref<1x1x128xi32, #tpu.memory_space<vmem>>, %arg4: memref<1x256x33xbf16, #tpu.memory_space<vmem>>, %arg5: memref<1x256x32xbf16, #tpu.memory_space<vmem>>, %arg6: memref<1x64x128xf32, #tpu.memory_space<vmem>>) attributes {dimension_semantics = [#tpu.dimension_semantics<parallel>, #tpu.dimension_semantics<parallel>], iteration_bounds = array<i64: 2, 1>, scalar_prefetch = 0 : i64, scratch_operands = 0 : i64, tpu.core_type = #tpu.core_type<tc>, window_params = [{transform_indices = @transform_0, window_bounds = array<i64: 1, 8, 33, 128>}, {transform_indices = @transform_1, window_bounds = array<i64: 1, 1, 128>}, {transform_indices = @transform_2, window_bounds = array<i64: 1, 256, 33>}, {transform_indices = @transform_3, window_bounds = array<i64: 1, 256, 32>}, {transform_indices = @transform_4, window_bounds = array<i64: 1, 64, 128>}]} {
    %c0 = arith.constant 0 : index
    %c0_0 = arith.constant 0 : index
    %c0_1 = arith.constant 0 : index
    %0 = vector.load %arg4[%c0, %c0_0, %c0_1] : memref<1x256x33xbf16, #tpu.memory_space<vmem>>, vector<1x256x33xbf16>
    %1 = vector.shape_cast %0 : vector<1x256x33xbf16> to vector<256x33xbf16>
    %c0_2 = arith.constant 0 : index
    %c0_3 = arith.constant 0 : index
    %c0_4 = arith.constant 0 : index
    %2 = vector.load %arg5[%c0_2, %c0_3, %c0_4] : memref<1x256x32xbf16, #tpu.memory_space<vmem>>, vector<1x256x32xbf16>
    %3 = vector.shape_cast %2 : vector<1x256x32xbf16> to vector<256x32xbf16>
    %4 = vector.extract_strided_slice %1 {offsets = [0, 0], sizes = [128, 33], strides = [1, 1]} : vector<256x33xbf16> to vector<128x33xbf16>
    %5 = vector.extract_strided_slice %1 {offsets = [128, 0], sizes = [128, 33], strides = [1, 1]} : vector<256x33xbf16> to vector<128x33xbf16>
    %6 = vector.extract_strided_slice %3 {offsets = [0, 0], sizes = [128, 32], strides = [1, 1]} : vector<256x32xbf16> to vector<128x32xbf16>
    %7 = vector.extract_strided_slice %3 {offsets = [128, 0], sizes = [128, 32], strides = [1, 1]} : vector<256x32xbf16> to vector<128x32xbf16>
    %c0_5 = arith.constant 0 : index
    %c0_6 = arith.constant 0 : index
    %c0_7 = arith.constant 0 : index
    %8 = vector.load %arg3[%c0_5, %c0_6, %c0_7] : memref<1x1x128xi32, #tpu.memory_space<vmem>>, vector<1x1x128xi32>
    %9 = vector.shape_cast %8 : vector<1x1x128xi32> to vector<1x128xi32>
    %cst = arith.constant 0.000000e+00 : f32
    %10 = vector.broadcast %cst : f32 to vector<32x128xf32>
    %cst_8 = arith.constant -1.000000e+09 : f32
    %11 = vector.broadcast %cst_8 : f32 to vector<32x128xf32>
    %c0_i32 = arith.constant 0 : i32
    %12 = vector.broadcast %c0_i32 : i32 to vector<1x128xi32>
    %13 = arith.cmpi sgt, %9, %12 : vector<1x128xi32>
    %c7_i32 = arith.constant 7 : i32
    %14 = vector.broadcast %c7_i32 : i32 to vector<1x128xi32>
    %15 = arith.cmpi sgt, %9, %14 : vector<1x128xi32>
    %c0_9 = arith.constant 0 : index
    %c0_10 = arith.constant 0 : index
    %c0_11 = arith.constant 0 : index
    %c0_12 = arith.constant 0 : index
    %16 = vector.load %arg2[%c0_9, %c0_10, %c0_11, %c0_12] : memref<1x8x33x128xbf16, #tpu.memory_space<vmem>>, vector<1x1x33x128xbf16>
    %17 = vector.shape_cast %16 : vector<1x1x33x128xbf16> to vector<33x128xbf16>
    %cst_13 = arith.constant dense<0.000000e+00> : vector<128x128xf32>
    %18 = tpu.matmul %4, %17, %cst_13 {dimension_numbers = #tpu.dot_dimension_numbers<[1], [0], [0], [1], [0, 0, 1, 1], [], []>} : vector<128x33xbf16>, vector<33x128xbf16>, vector<128x128xf32> -> vector<128x128xf32>
    %19 = arith.truncf %10 : vector<32x128xf32> to vector<32x128xbf16>
    %cst_14 = arith.constant dense<0.000000e+00> : vector<128x128xf32>
    %20 = tpu.matmul %6, %19, %cst_14 {dimension_numbers = #tpu.dot_dimension_numbers<[1], [0], [0], [1], [0, 0, 1, 1], [], []>} : vector<128x32xbf16>, vector<32x128xbf16>, vector<128x128xf32> -> vector<128x128xf32>
    %21 = arith.addf %18, %20 : vector<128x128xf32>
    %22 = vector.extract_strided_slice %21 {offsets = [0, 0], sizes = [32, 128], strides = [1, 1]} : vector<128x128xf32> to vector<32x128xf32>
    %23 = arith.negf %22 : vector<32x128xf32>
    %24 = math.exp %23 : vector<32x128xf32>
    %cst_15 = arith.constant 1.000000e+00 : f32
    %25 = vector.broadcast %cst_15 : f32 to vector<32x128xf32>
    %26 = arith.addf %25, %24 : vector<32x128xf32>
    %27 = arith.divf %25, %26 : vector<32x128xf32>
    %28 = vector.extract_strided_slice %21 {offsets = [32, 0], sizes = [32, 128], strides = [1, 1]} : vector<128x128xf32> to vector<32x128xf32>
    %29 = arith.negf %28 : vector<32x128xf32>
    %30 = math.exp %29 : vector<32x128xf32>
    %cst_16 = arith.constant 1.000000e+00 : f32
    %31 = vector.broadcast %cst_16 : f32 to vector<32x128xf32>
    %32 = arith.addf %31, %30 : vector<32x128xf32>
    %33 = arith.divf %31, %32 : vector<32x128xf32>
    %34 = vector.extract_strided_slice %21 {offsets = [64, 0], sizes = [32, 128], strides = [1, 1]} : vector<128x128xf32> to vector<32x128xf32>
    %35 = math.tanh %34 : vector<32x128xf32>
    %36 = vector.extract_strided_slice %21 {offsets = [96, 0], sizes = [32, 128], strides = [1, 1]} : vector<128x128xf32> to vector<32x128xf32>
    %37 = arith.negf %36 : vector<32x128xf32>
    %38 = math.exp %37 : vector<32x128xf32>
    %cst_17 = arith.constant 1.000000e+00 : f32
    %39 = vector.broadcast %cst_17 : f32 to vector<32x128xf32>
    %40 = arith.addf %39, %38 : vector<32x128xf32>
    %41 = arith.divf %39, %40 : vector<32x128xf32>
    %42 = arith.mulf %33, %10 : vector<32x128xf32>
    %43 = arith.mulf %27, %35 : vector<32x128xf32>
    %44 = arith.addf %42, %43 : vector<32x128xf32>
    %45 = math.tanh %44 : vector<32x128xf32>
    %46 = arith.mulf %41, %45 : vector<32x128xf32>
    %47 = vector.shape_cast %13 : vector<1x128xi1> to vector<1x128xi1>
    %48 = vector.broadcast %47 : vector<1x128xi1> to vector<32x128xi1>
    %49 = arith.select %48, %46, %10 : vector<32x128xi1>, vector<32x128xf32>
    %50 = vector.shape_cast %13 : vector<1x128xi1> to vector<1x128xi1>
    %51 = vector.broadcast %50 : vector<1x128xi1> to vector<32x128xi1>
    %52 = arith.select %51, %44, %10 : vector<32x128xi1>, vector<32x128xf32>
    %c0_18 = arith.constant 0 : index
    %c7 = arith.constant 7 : index
    %c0_19 = arith.constant 0 : index
    %c0_20 = arith.constant 0 : index
    %53 = vector.load %arg2[%c0_18, %c7, %c0_19, %c0_20] : memref<1x8x33x128xbf16, #tpu.memory_space<vmem>>, vector<1x1x33x128xbf16>
    %54 = vector.shape_cast %53 : vector<1x1x33x128xbf16> to vector<33x128xbf16>
    %cst_21 = arith.constant dense<0.000000e+00> : vector<128x128xf32>
    %55 = tpu.matmul %5, %54, %cst_21 {dimension_numbers = #tpu.dot_dimension_numbers<[1], [0], [0], [1], [0, 0, 1, 1], [], []>} : vector<128x33xbf16>, vector<33x128xbf16>, vector<128x128xf32> -> vector<128x128xf32>
    %56 = arith.truncf %10 : vector<32x128xf32> to vector<32x128xbf16>
    %cst_22 = arith.constant dense<0.000000e+00> : vector<128x128xf32>
    %57 = tpu.matmul %7, %56, %cst_22 {dimension_numbers = #tpu.dot_dimension_numbers<[1], [0], [0], [1], [0, 0, 1, 1], [], []>} : vector<128x32xbf16>, vector<32x128xbf16>, vector<128x128xf32> -> vector<128x128xf32>
    %58 = arith.addf %55, %57 : vector<128x128xf32>
    %59 = vector.extract_strided_slice %58 {offsets = [0, 0], sizes = [32, 128], strides = [1, 1]} : vector<128x128xf32> to vector<32x128xf32>
    %60 = arith.negf %59 : vector<32x128xf32>
    %61 = math.exp %60 : vector<32x128xf32>
    %cst_23 = arith.constant 1.000000e+00 : f32
    %62 = vector.broadcast %cst_23 : f32 to vector<32x128xf32>
    %63 = arith.addf %62, %61 : vector<32x128xf32>
    %64 = arith.divf %62, %63 : vector<32x128xf32>
    %65 = vector.extract_strided_slice %58 {offsets = [32, 0], sizes = [32, 128], strides = [1, 1]} : vector<128x128xf32> to vector<32x128xf32>
    %66 = arith.negf %65 : vector<32x128xf32>
    %67 = math.exp %66 : vector<32x128xf32>
    %cst_24 = arith.constant 1.000000e+00 : f32
    %68 = vector.broadcast %cst_24 : f32 to vector<32x128xf32>
    %69 = arith.addf %68, %67 : vector<32x128xf32>
    %70 = arith.divf %68, %69 : vector<32x128xf32>
    %71 = vector.extract_strided_slice %58 {offsets = [64, 0], sizes = [32, 128], strides = [1, 1]} : vector<128x128xf32> to vector<32x128xf32>
    %72 = math.tanh %71 : vector<32x128xf32>
    %73 = vector.extract_strided_slice %58 {offsets = [96, 0], sizes = [32, 128], strides = [1, 1]} : vector<128x128xf32> to vector<32x128xf32>
    %74 = arith.negf %73 : vector<32x128xf32>
    %75 = math.exp %74 : vector<32x128xf32>
    %cst_25 = arith.constant 1.000000e+00 : f32
    %76 = vector.broadcast %cst_25 : f32 to vector<32x128xf32>
    %77 = arith.addf %76, %75 : vector<32x128xf32>
    %78 = arith.divf %76, %77 : vector<32x128xf32>
    %79 = arith.mulf %70, %10 : vector<32x128xf32>
    %80 = arith.mulf %64, %72 : vector<32x128xf32>
    %81 = arith.addf %79, %80 : vector<32x128xf32>
    %82 = math.tanh %81 : vector<32x128xf32>
    %83 = arith.mulf %78, %82 : vector<32x128xf32>
    %84 = vector.shape_cast %15 : vector<1x128xi1> to vector<1x128xi1>
    %85 = vector.broadcast %84 : vector<1x128xi1> to vector<32x128xi1>
    %86 = arith.select %85, %83, %10 : vector<32x128xi1>, vector<32x128xf32>
    %87 = vector.shape_cast %15 : vector<1x128xi1> to vector<1x128xi1>
    %88 = vector.broadcast %87 : vector<1x128xi1> to vector<32x128xi1>
    %89 = arith.select %88, %81, %10 : vector<32x128xi1>, vector<32x128xf32>
    %cst_26 = arith.constant 0.000000e+00 : f32
    %90 = vector.broadcast %cst_26 : f32 to vector<32x128xf32>
    %91 = arith.cmpf one, %46, %90 : vector<32x128xf32>
    %92 = vector.broadcast %13 : vector<1x128xi1> to vector<32x128xi1>
    %93 = arith.andi %92, %91 : vector<32x128xi1>
    %cst_27 = arith.constant -1.000000e+09 : f32
    %94 = vector.broadcast %cst_27 : f32 to vector<32x128xf32>
    %95 = arith.select %93, %46, %94 : vector<32x128xi1>, vector<32x128xf32>
    %96 = arith.maximumf %11, %95 : vector<32x128xf32>
    %cst_28 = arith.constant 0.000000e+00 : f32
    %97 = vector.broadcast %cst_28 : f32 to vector<32x128xf32>
    %98 = arith.cmpf one, %83, %97 : vector<32x128xf32>
    %99 = vector.broadcast %15 : vector<1x128xi1> to vector<32x128xi1>
    %100 = arith.andi %99, %98 : vector<32x128xi1>
    %cst_29 = arith.constant -1.000000e+09 : f32
    %101 = vector.broadcast %cst_29 : f32 to vector<32x128xf32>
    %102 = arith.select %100, %83, %101 : vector<32x128xi1>, vector<32x128xf32>
    %103 = arith.maximumf %11, %102 : vector<32x128xf32>
    %c1_i32 = arith.constant 1 : i32
    %104 = vector.broadcast %c1_i32 : i32 to vector<1x128xi32>
    %105 = arith.cmpi sgt, %9, %104 : vector<1x128xi32>
    %c6_i32 = arith.constant 6 : i32
    %106 = vector.broadcast %c6_i32 : i32 to vector<1x128xi32>
    %107 = arith.cmpi sgt, %9, %106 : vector<1x128xi32>
    %c0_30 = arith.constant 0 : index
    %c1 = arith.constant 1 : index
    %c0_31 = arith.constant 0 : index
    %c0_32 = arith.constant 0 : index
    %108 = vector.load %arg2[%c0_30, %c1, %c0_31, %c0_32] : memref<1x8x33x128xbf16, #tpu.memory_space<vmem>>, vector<1x1x33x128xbf16>
    %109 = vector.shape_cast %108 : vector<1x1x33x128xbf16> to vector<33x128xbf16>
    %cst_33 = arith.constant dense<0.000000e+00> : vector<128x128xf32>
    %110 = tpu.matmul %4, %109, %cst_33 {dimension_numbers = #tpu.dot_dimension_numbers<[1], [0], [0], [1], [0, 0, 1, 1], [], []>} : vector<128x33xbf16>, vector<33x128xbf16>, vector<128x128xf32> -> vector<128x128xf32>
    %111 = arith.truncf %49 : vector<32x128xf32> to vector<32x128xbf16>
    %cst_34 = arith.constant dense<0.000000e+00> : vector<128x128xf32>
    %112 = tpu.matmul %6, %111, %cst_34 {dimension_numbers = #tpu.dot_dimension_numbers<[1], [0], [0], [1], [0, 0, 1, 1], [], []>} : vector<128x32xbf16>, vector<32x128xbf16>, vector<128x128xf32> -> vector<128x128xf32>
    %113 = arith.addf %110, %112 : vector<128x128xf32>
    %114 = vector.extract_strided_slice %113 {offsets = [0, 0], sizes = [32, 128], strides = [1, 1]} : vector<128x128xf32> to vector<32x128xf32>
    %115 = arith.negf %114 : vector<32x128xf32>
    %116 = math.exp %115 : vector<32x128xf32>
    %cst_35 = arith.constant 1.000000e+00 : f32
    %117 = vector.broadcast %cst_35 : f32 to vector<32x128xf32>
    %118 = arith.addf %117, %116 : vector<32x128xf32>
    %119 = arith.divf %117, %118 : vector<32x128xf32>
    %120 = vector.extract_strided_slice %113 {offsets = [32, 0], sizes = [32, 128], strides = [1, 1]} : vector<128x128xf32> to vector<32x128xf32>
    %121 = arith.negf %120 : vector<32x128xf32>
    %122 = math.exp %121 : vector<32x128xf32>
    %cst_36 = arith.constant 1.000000e+00 : f32
    %123 = vector.broadcast %cst_36 : f32 to vector<32x128xf32>
    %124 = arith.addf %123, %122 : vector<32x128xf32>
    %125 = arith.divf %123, %124 : vector<32x128xf32>
    %126 = vector.extract_strided_slice %113 {offsets = [64, 0], sizes = [32, 128], strides = [1, 1]} : vector<128x128xf32> to vector<32x128xf32>
    %127 = math.tanh %126 : vector<32x128xf32>
    %128 = vector.extract_strided_slice %113 {offsets = [96, 0], sizes = [32, 128], strides = [1, 1]} : vector<128x128xf32> to vector<32x128xf32>
    %129 = arith.negf %128 : vector<32x128xf32>
    %130 = math.exp %129 : vector<32x128xf32>
    %cst_37 = arith.constant 1.000000e+00 : f32
    %131 = vector.broadcast %cst_37 : f32 to vector<32x128xf32>
    %132 = arith.addf %131, %130 : vector<32x128xf32>
    %133 = arith.divf %131, %132 : vector<32x128xf32>
    %134 = arith.mulf %125, %52 : vector<32x128xf32>
    %135 = arith.mulf %119, %127 : vector<32x128xf32>
    %136 = arith.addf %134, %135 : vector<32x128xf32>
    %137 = math.tanh %136 : vector<32x128xf32>
    %138 = arith.mulf %133, %137 : vector<32x128xf32>
    %139 = vector.shape_cast %105 : vector<1x128xi1> to vector<1x128xi1>
    %140 = vector.broadcast %139 : vector<1x128xi1> to vector<32x128xi1>
    %141 = arith.select %140, %138, %49 : vector<32x128xi1>, vector<32x128xf32>
    %142 = vector.shape_cast %105 : vector<1x128xi1> to vector<1x128xi1>
    %143 = vector.broadcast %142 : vector<1x128xi1> to vector<32x128xi1>
    %144 = arith.select %143, %136, %52 : vector<32x128xi1>, vector<32x128xf32>
    %c0_38 = arith.constant 0 : index
    %c6 = arith.constant 6 : index
    %c0_39 = arith.constant 0 : index
    %c0_40 = arith.constant 0 : index
    %145 = vector.load %arg2[%c0_38, %c6, %c0_39, %c0_40] : memref<1x8x33x128xbf16, #tpu.memory_space<vmem>>, vector<1x1x33x128xbf16>
    %146 = vector.shape_cast %145 : vector<1x1x33x128xbf16> to vector<33x128xbf16>
    %cst_41 = arith.constant dense<0.000000e+00> : vector<128x128xf32>
    %147 = tpu.matmul %5, %146, %cst_41 {dimension_numbers = #tpu.dot_dimension_numbers<[1], [0], [0], [1], [0, 0, 1, 1], [], []>} : vector<128x33xbf16>, vector<33x128xbf16>, vector<128x128xf32> -> vector<128x128xf32>
    %148 = arith.truncf %86 : vector<32x128xf32> to vector<32x128xbf16>
    %cst_42 = arith.constant dense<0.000000e+00> : vector<128x128xf32>
    %149 = tpu.matmul %7, %148, %cst_42 {dimension_numbers = #tpu.dot_dimension_numbers<[1], [0], [0], [1], [0, 0, 1, 1], [], []>} : vector<128x32xbf16>, vector<32x128xbf16>, vector<128x128xf32> -> vector<128x128xf32>
    %150 = arith.addf %147, %149 : vector<128x128xf32>
    %151 = vector.extract_strided_slice %150 {offsets = [0, 0], sizes = [32, 128], strides = [1, 1]} : vector<128x128xf32> to vector<32x128xf32>
    %152 = arith.negf %151 : vector<32x128xf32>
    %153 = math.exp %152 : vector<32x128xf32>
    %cst_43 = arith.constant 1.000000e+00 : f32
    %154 = vector.broadcast %cst_43 : f32 to vector<32x128xf32>
    %155 = arith.addf %154, %153 : vector<32x128xf32>
    %156 = arith.divf %154, %155 : vector<32x128xf32>
    %157 = vector.extract_strided_slice %150 {offsets = [32, 0], sizes = [32, 128], strides = [1, 1]} : vector<128x128xf32> to vector<32x128xf32>
    %158 = arith.negf %157 : vector<32x128xf32>
    %159 = math.exp %158 : vector<32x128xf32>
    %cst_44 = arith.constant 1.000000e+00 : f32
    %160 = vector.broadcast %cst_44 : f32 to vector<32x128xf32>
    %161 = arith.addf %160, %159 : vector<32x128xf32>
    %162 = arith.divf %160, %161 : vector<32x128xf32>
    %163 = vector.extract_strided_slice %150 {offsets = [64, 0], sizes = [32, 128], strides = [1, 1]} : vector<128x128xf32> to vector<32x128xf32>
    %164 = math.tanh %163 : vector<32x128xf32>
    %165 = vector.extract_strided_slice %150 {offsets = [96, 0], sizes = [32, 128], strides = [1, 1]} : vector<128x128xf32> to vector<32x128xf32>
    %166 = arith.negf %165 : vector<32x128xf32>
    %167 = math.exp %166 : vector<32x128xf32>
    %cst_45 = arith.constant 1.000000e+00 : f32
    %168 = vector.broadcast %cst_45 : f32 to vector<32x128xf32>
    %169 = arith.addf %168, %167 : vector<32x128xf32>
    %170 = arith.divf %168, %169 : vector<32x128xf32>
    %171 = arith.mulf %162, %89 : vector<32x128xf32>
    %172 = arith.mulf %156, %164 : vector<32x128xf32>
    %173 = arith.addf %171, %172 : vector<32x128xf32>
    %174 = math.tanh %173 : vector<32x128xf32>
    %175 = arith.mulf %170, %174 : vector<32x128xf32>
    %176 = vector.shape_cast %107 : vector<1x128xi1> to vector<1x128xi1>
    %177 = vector.broadcast %176 : vector<1x128xi1> to vector<32x128xi1>
    %178 = arith.select %177, %175, %86 : vector<32x128xi1>, vector<32x128xf32>
    %179 = vector.shape_cast %107 : vector<1x128xi1> to vector<1x128xi1>
    %180 = vector.broadcast %179 : vector<1x128xi1> to vector<32x128xi1>
    %181 = arith.select %180, %173, %89 : vector<32x128xi1>, vector<32x128xf32>
    %cst_46 = arith.constant 0.000000e+00 : f32
    %182 = vector.broadcast %cst_46 : f32 to vector<32x128xf32>
    %183 = arith.cmpf one, %138, %182 : vector<32x128xf32>
    %184 = vector.broadcast %105 : vector<1x128xi1> to vector<32x128xi1>
    %185 = arith.andi %184, %183 : vector<32x128xi1>
    %cst_47 = arith.constant -1.000000e+09 : f32
    %186 = vector.broadcast %cst_47 : f32 to vector<32x128xf32>
    %187 = arith.select %185, %138, %186 : vector<32x128xi1>, vector<32x128xf32>
    %188 = arith.maximumf %96, %187 : vector<32x128xf32>
    %cst_48 = arith.constant 0.000000e+00 : f32
    %189 = vector.broadcast %cst_48 : f32 to vector<32x128xf32>
    %190 = arith.cmpf one, %175, %189 : vector<32x128xf32>
    %191 = vector.broadcast %107 : vector<1x128xi1> to vector<32x128xi1>
    %192 = arith.andi %191, %190 : vector<32x128xi1>
    %cst_49 = arith.constant -1.000000e+09 : f32
    %193 = vector.broadcast %cst_49 : f32 to vector<32x128xf32>
    %194 = arith.select %192, %175, %193 : vector<32x128xi1>, vector<32x128xf32>
    %195 = arith.maximumf %103, %194 : vector<32x128xf32>
    %c2_i32 = arith.constant 2 : i32
    %196 = vector.broadcast %c2_i32 : i32 to vector<1x128xi32>
    %197 = arith.cmpi sgt, %9, %196 : vector<1x128xi32>
    %c5_i32 = arith.constant 5 : i32
    %198 = vector.broadcast %c5_i32 : i32 to vector<1x128xi32>
    %199 = arith.cmpi sgt, %9, %198 : vector<1x128xi32>
    %c0_50 = arith.constant 0 : index
    %c2 = arith.constant 2 : index
    %c0_51 = arith.constant 0 : index
    %c0_52 = arith.constant 0 : index
    %200 = vector.load %arg2[%c0_50, %c2, %c0_51, %c0_52] : memref<1x8x33x128xbf16, #tpu.memory_space<vmem>>, vector<1x1x33x128xbf16>
    %201 = vector.shape_cast %200 : vector<1x1x33x128xbf16> to vector<33x128xbf16>
    %cst_53 = arith.constant dense<0.000000e+00> : vector<128x128xf32>
    %202 = tpu.matmul %4, %201, %cst_53 {dimension_numbers = #tpu.dot_dimension_numbers<[1], [0], [0], [1], [0, 0, 1, 1], [], []>} : vector<128x33xbf16>, vector<33x128xbf16>, vector<128x128xf32> -> vector<128x128xf32>
    %203 = arith.truncf %141 : vector<32x128xf32> to vector<32x128xbf16>
    %cst_54 = arith.constant dense<0.000000e+00> : vector<128x128xf32>
    %204 = tpu.matmul %6, %203, %cst_54 {dimension_numbers = #tpu.dot_dimension_numbers<[1], [0], [0], [1], [0, 0, 1, 1], [], []>} : vector<128x32xbf16>, vector<32x128xbf16>, vector<128x128xf32> -> vector<128x128xf32>
    %205 = arith.addf %202, %204 : vector<128x128xf32>
    %206 = vector.extract_strided_slice %205 {offsets = [0, 0], sizes = [32, 128], strides = [1, 1]} : vector<128x128xf32> to vector<32x128xf32>
    %207 = arith.negf %206 : vector<32x128xf32>
    %208 = math.exp %207 : vector<32x128xf32>
    %cst_55 = arith.constant 1.000000e+00 : f32
    %209 = vector.broadcast %cst_55 : f32 to vector<32x128xf32>
    %210 = arith.addf %209, %208 : vector<32x128xf32>
    %211 = arith.divf %209, %210 : vector<32x128xf32>
    %212 = vector.extract_strided_slice %205 {offsets = [32, 0], sizes = [32, 128], strides = [1, 1]} : vector<128x128xf32> to vector<32x128xf32>
    %213 = arith.negf %212 : vector<32x128xf32>
    %214 = math.exp %213 : vector<32x128xf32>
    %cst_56 = arith.constant 1.000000e+00 : f32
    %215 = vector.broadcast %cst_56 : f32 to vector<32x128xf32>
    %216 = arith.addf %215, %214 : vector<32x128xf32>
    %217 = arith.divf %215, %216 : vector<32x128xf32>
    %218 = vector.extract_strided_slice %205 {offsets = [64, 0], sizes = [32, 128], strides = [1, 1]} : vector<128x128xf32> to vector<32x128xf32>
    %219 = math.tanh %218 : vector<32x128xf32>
    %220 = vector.extract_strided_slice %205 {offsets = [96, 0], sizes = [32, 128], strides = [1, 1]} : vector<128x128xf32> to vector<32x128xf32>
    %221 = arith.negf %220 : vector<32x128xf32>
    %222 = math.exp %221 : vector<32x128xf32>
    %cst_57 = arith.constant 1.000000e+00 : f32
    %223 = vector.broadcast %cst_57 : f32 to vector<32x128xf32>
    %224 = arith.addf %223, %222 : vector<32x128xf32>
    %225 = arith.divf %223, %224 : vector<32x128xf32>
    %226 = arith.mulf %217, %144 : vector<32x128xf32>
    %227 = arith.mulf %211, %219 : vector<32x128xf32>
    %228 = arith.addf %226, %227 : vector<32x128xf32>
    %229 = math.tanh %228 : vector<32x128xf32>
    %230 = arith.mulf %225, %229 : vector<32x128xf32>
    %231 = vector.shape_cast %197 : vector<1x128xi1> to vector<1x128xi1>
    %232 = vector.broadcast %231 : vector<1x128xi1> to vector<32x128xi1>
    %233 = arith.select %232, %230, %141 : vector<32x128xi1>, vector<32x128xf32>
    %234 = vector.shape_cast %197 : vector<1x128xi1> to vector<1x128xi1>
    %235 = vector.broadcast %234 : vector<1x128xi1> to vector<32x128xi1>
    %236 = arith.select %235, %228, %144 : vector<32x128xi1>, vector<32x128xf32>
    %c0_58 = arith.constant 0 : index
    %c5 = arith.constant 5 : index
    %c0_59 = arith.constant 0 : index
    %c0_60 = arith.constant 0 : index
    %237 = vector.load %arg2[%c0_58, %c5, %c0_59, %c0_60] : memref<1x8x33x128xbf16, #tpu.memory_space<vmem>>, vector<1x1x33x128xbf16>
    %238 = vector.shape_cast %237 : vector<1x1x33x128xbf16> to vector<33x128xbf16>
    %cst_61 = arith.constant dense<0.000000e+00> : vector<128x128xf32>
    %239 = tpu.matmul %5, %238, %cst_61 {dimension_numbers = #tpu.dot_dimension_numbers<[1], [0], [0], [1], [0, 0, 1, 1], [], []>} : vector<128x33xbf16>, vector<33x128xbf16>, vector<128x128xf32> -> vector<128x128xf32>
    %240 = arith.truncf %178 : vector<32x128xf32> to vector<32x128xbf16>
    %cst_62 = arith.constant dense<0.000000e+00> : vector<128x128xf32>
    %241 = tpu.matmul %7, %240, %cst_62 {dimension_numbers = #tpu.dot_dimension_numbers<[1], [0], [0], [1], [0, 0, 1, 1], [], []>} : vector<128x32xbf16>, vector<32x128xbf16>, vector<128x128xf32> -> vector<128x128xf32>
    %242 = arith.addf %239, %241 : vector<128x128xf32>
    %243 = vector.extract_strided_slice %242 {offsets = [0, 0], sizes = [32, 128], strides = [1, 1]} : vector<128x128xf32> to vector<32x128xf32>
    %244 = arith.negf %243 : vector<32x128xf32>
    %245 = math.exp %244 : vector<32x128xf32>
    %cst_63 = arith.constant 1.000000e+00 : f32
    %246 = vector.broadcast %cst_63 : f32 to vector<32x128xf32>
    %247 = arith.addf %246, %245 : vector<32x128xf32>
    %248 = arith.divf %246, %247 : vector<32x128xf32>
    %249 = vector.extract_strided_slice %242 {offsets = [32, 0], sizes = [32, 128], strides = [1, 1]} : vector<128x128xf32> to vector<32x128xf32>
    %250 = arith.negf %249 : vector<32x128xf32>
    %251 = math.exp %250 : vector<32x128xf32>
    %cst_64 = arith.constant 1.000000e+00 : f32
    %252 = vector.broadcast %cst_64 : f32 to vector<32x128xf32>
    %253 = arith.addf %252, %251 : vector<32x128xf32>
    %254 = arith.divf %252, %253 : vector<32x128xf32>
    %255 = vector.extract_strided_slice %242 {offsets = [64, 0], sizes = [32, 128], strides = [1, 1]} : vector<128x128xf32> to vector<32x128xf32>
    %256 = math.tanh %255 : vector<32x128xf32>
    %257 = vector.extract_strided_slice %242 {offsets = [96, 0], sizes = [32, 128], strides = [1, 1]} : vector<128x128xf32> to vector<32x128xf32>
    %258 = arith.negf %257 : vector<32x128xf32>
    %259 = math.exp %258 : vector<32x128xf32>
    %cst_65 = arith.constant 1.000000e+00 : f32
    %260 = vector.broadcast %cst_65 : f32 to vector<32x128xf32>
    %261 = arith.addf %260, %259 : vector<32x128xf32>
    %262 = arith.divf %260, %261 : vector<32x128xf32>
    %263 = arith.mulf %254, %181 : vector<32x128xf32>
    %264 = arith.mulf %248, %256 : vector<32x128xf32>
    %265 = arith.addf %263, %264 : vector<32x128xf32>
    %266 = math.tanh %265 : vector<32x128xf32>
    %267 = arith.mulf %262, %266 : vector<32x128xf32>
    %268 = vector.shape_cast %199 : vector<1x128xi1> to vector<1x128xi1>
    %269 = vector.broadcast %268 : vector<1x128xi1> to vector<32x128xi1>
    %270 = arith.select %269, %267, %178 : vector<32x128xi1>, vector<32x128xf32>
    %271 = vector.shape_cast %199 : vector<1x128xi1> to vector<1x128xi1>
    %272 = vector.broadcast %271 : vector<1x128xi1> to vector<32x128xi1>
    %273 = arith.select %272, %265, %181 : vector<32x128xi1>, vector<32x128xf32>
    %cst_66 = arith.constant 0.000000e+00 : f32
    %274 = vector.broadcast %cst_66 : f32 to vector<32x128xf32>
    %275 = arith.cmpf one, %230, %274 : vector<32x128xf32>
    %276 = vector.broadcast %197 : vector<1x128xi1> to vector<32x128xi1>
    %277 = arith.andi %276, %275 : vector<32x128xi1>
    %cst_67 = arith.constant -1.000000e+09 : f32
    %278 = vector.broadcast %cst_67 : f32 to vector<32x128xf32>
    %279 = arith.select %277, %230, %278 : vector<32x128xi1>, vector<32x128xf32>
    %280 = arith.maximumf %188, %279 : vector<32x128xf32>
    %cst_68 = arith.constant 0.000000e+00 : f32
    %281 = vector.broadcast %cst_68 : f32 to vector<32x128xf32>
    %282 = arith.cmpf one, %267, %281 : vector<32x128xf32>
    %283 = vector.broadcast %199 : vector<1x128xi1> to vector<32x128xi1>
    %284 = arith.andi %283, %282 : vector<32x128xi1>
    %cst_69 = arith.constant -1.000000e+09 : f32
    %285 = vector.broadcast %cst_69 : f32 to vector<32x128xf32>
    %286 = arith.select %284, %267, %285 : vector<32x128xi1>, vector<32x128xf32>
    %287 = arith.maximumf %195, %286 : vector<32x128xf32>
    %c3_i32 = arith.constant 3 : i32
    %288 = vector.broadcast %c3_i32 : i32 to vector<1x128xi32>
    %289 = arith.cmpi sgt, %9, %288 : vector<1x128xi32>
    %c4_i32 = arith.constant 4 : i32
    %290 = vector.broadcast %c4_i32 : i32 to vector<1x128xi32>
    %291 = arith.cmpi sgt, %9, %290 : vector<1x128xi32>
    %c0_70 = arith.constant 0 : index
    %c3 = arith.constant 3 : index
    %c0_71 = arith.constant 0 : index
    %c0_72 = arith.constant 0 : index
    %292 = vector.load %arg2[%c0_70, %c3, %c0_71, %c0_72] : memref<1x8x33x128xbf16, #tpu.memory_space<vmem>>, vector<1x1x33x128xbf16>
    %293 = vector.shape_cast %292 : vector<1x1x33x128xbf16> to vector<33x128xbf16>
    %cst_73 = arith.constant dense<0.000000e+00> : vector<128x128xf32>
    %294 = tpu.matmul %4, %293, %cst_73 {dimension_numbers = #tpu.dot_dimension_numbers<[1], [0], [0], [1], [0, 0, 1, 1], [], []>} : vector<128x33xbf16>, vector<33x128xbf16>, vector<128x128xf32> -> vector<128x128xf32>
    %295 = arith.truncf %233 : vector<32x128xf32> to vector<32x128xbf16>
    %cst_74 = arith.constant dense<0.000000e+00> : vector<128x128xf32>
    %296 = tpu.matmul %6, %295, %cst_74 {dimension_numbers = #tpu.dot_dimension_numbers<[1], [0], [0], [1], [0, 0, 1, 1], [], []>} : vector<128x32xbf16>, vector<32x128xbf16>, vector<128x128xf32> -> vector<128x128xf32>
    %297 = arith.addf %294, %296 : vector<128x128xf32>
    %298 = vector.extract_strided_slice %297 {offsets = [0, 0], sizes = [32, 128], strides = [1, 1]} : vector<128x128xf32> to vector<32x128xf32>
    %299 = arith.negf %298 : vector<32x128xf32>
    %300 = math.exp %299 : vector<32x128xf32>
    %cst_75 = arith.constant 1.000000e+00 : f32
    %301 = vector.broadcast %cst_75 : f32 to vector<32x128xf32>
    %302 = arith.addf %301, %300 : vector<32x128xf32>
    %303 = arith.divf %301, %302 : vector<32x128xf32>
    %304 = vector.extract_strided_slice %297 {offsets = [32, 0], sizes = [32, 128], strides = [1, 1]} : vector<128x128xf32> to vector<32x128xf32>
    %305 = arith.negf %304 : vector<32x128xf32>
    %306 = math.exp %305 : vector<32x128xf32>
    %cst_76 = arith.constant 1.000000e+00 : f32
    %307 = vector.broadcast %cst_76 : f32 to vector<32x128xf32>
    %308 = arith.addf %307, %306 : vector<32x128xf32>
    %309 = arith.divf %307, %308 : vector<32x128xf32>
    %310 = vector.extract_strided_slice %297 {offsets = [64, 0], sizes = [32, 128], strides = [1, 1]} : vector<128x128xf32> to vector<32x128xf32>
    %311 = math.tanh %310 : vector<32x128xf32>
    %312 = vector.extract_strided_slice %297 {offsets = [96, 0], sizes = [32, 128], strides = [1, 1]} : vector<128x128xf32> to vector<32x128xf32>
    %313 = arith.negf %312 : vector<32x128xf32>
    %314 = math.exp %313 : vector<32x128xf32>
    %cst_77 = arith.constant 1.000000e+00 : f32
    %315 = vector.broadcast %cst_77 : f32 to vector<32x128xf32>
    %316 = arith.addf %315, %314 : vector<32x128xf32>
    %317 = arith.divf %315, %316 : vector<32x128xf32>
    %318 = arith.mulf %309, %236 : vector<32x128xf32>
    %319 = arith.mulf %303, %311 : vector<32x128xf32>
    %320 = arith.addf %318, %319 : vector<32x128xf32>
    %321 = math.tanh %320 : vector<32x128xf32>
    %322 = arith.mulf %317, %321 : vector<32x128xf32>
    %323 = vector.shape_cast %289 : vector<1x128xi1> to vector<1x128xi1>
    %324 = vector.broadcast %323 : vector<1x128xi1> to vector<32x128xi1>
    %325 = arith.select %324, %322, %233 : vector<32x128xi1>, vector<32x128xf32>
    %326 = vector.shape_cast %289 : vector<1x128xi1> to vector<1x128xi1>
    %327 = vector.broadcast %326 : vector<1x128xi1> to vector<32x128xi1>
    %328 = arith.select %327, %320, %236 : vector<32x128xi1>, vector<32x128xf32>
    %c0_78 = arith.constant 0 : index
    %c4 = arith.constant 4 : index
    %c0_79 = arith.constant 0 : index
    %c0_80 = arith.constant 0 : index
    %329 = vector.load %arg2[%c0_78, %c4, %c0_79, %c0_80] : memref<1x8x33x128xbf16, #tpu.memory_space<vmem>>, vector<1x1x33x128xbf16>
    %330 = vector.shape_cast %329 : vector<1x1x33x128xbf16> to vector<33x128xbf16>
    %cst_81 = arith.constant dense<0.000000e+00> : vector<128x128xf32>
    %331 = tpu.matmul %5, %330, %cst_81 {dimension_numbers = #tpu.dot_dimension_numbers<[1], [0], [0], [1], [0, 0, 1, 1], [], []>} : vector<128x33xbf16>, vector<33x128xbf16>, vector<128x128xf32> -> vector<128x128xf32>
    %332 = arith.truncf %270 : vector<32x128xf32> to vector<32x128xbf16>
    %cst_82 = arith.constant dense<0.000000e+00> : vector<128x128xf32>
    %333 = tpu.matmul %7, %332, %cst_82 {dimension_numbers = #tpu.dot_dimension_numbers<[1], [0], [0], [1], [0, 0, 1, 1], [], []>} : vector<128x32xbf16>, vector<32x128xbf16>, vector<128x128xf32> -> vector<128x128xf32>
    %334 = arith.addf %331, %333 : vector<128x128xf32>
    %335 = vector.extract_strided_slice %334 {offsets = [0, 0], sizes = [32, 128], strides = [1, 1]} : vector<128x128xf32> to vector<32x128xf32>
    %336 = arith.negf %335 : vector<32x128xf32>
    %337 = math.exp %336 : vector<32x128xf32>
    %cst_83 = arith.constant 1.000000e+00 : f32
    %338 = vector.broadcast %cst_83 : f32 to vector<32x128xf32>
    %339 = arith.addf %338, %337 : vector<32x128xf32>
    %340 = arith.divf %338, %339 : vector<32x128xf32>
    %341 = vector.extract_strided_slice %334 {offsets = [32, 0], sizes = [32, 128], strides = [1, 1]} : vector<128x128xf32> to vector<32x128xf32>
    %342 = arith.negf %341 : vector<32x128xf32>
    %343 = math.exp %342 : vector<32x128xf32>
    %cst_84 = arith.constant 1.000000e+00 : f32
    %344 = vector.broadcast %cst_84 : f32 to vector<32x128xf32>
    %345 = arith.addf %344, %343 : vector<32x128xf32>
    %346 = arith.divf %344, %345 : vector<32x128xf32>
    %347 = vector.extract_strided_slice %334 {offsets = [64, 0], sizes = [32, 128], strides = [1, 1]} : vector<128x128xf32> to vector<32x128xf32>
    %348 = math.tanh %347 : vector<32x128xf32>
    %349 = vector.extract_strided_slice %334 {offsets = [96, 0], sizes = [32, 128], strides = [1, 1]} : vector<128x128xf32> to vector<32x128xf32>
    %350 = arith.negf %349 : vector<32x128xf32>
    %351 = math.exp %350 : vector<32x128xf32>
    %cst_85 = arith.constant 1.000000e+00 : f32
    %352 = vector.broadcast %cst_85 : f32 to vector<32x128xf32>
    %353 = arith.addf %352, %351 : vector<32x128xf32>
    %354 = arith.divf %352, %353 : vector<32x128xf32>
    %355 = arith.mulf %346, %273 : vector<32x128xf32>
    %356 = arith.mulf %340, %348 : vector<32x128xf32>
    %357 = arith.addf %355, %356 : vector<32x128xf32>
    %358 = math.tanh %357 : vector<32x128xf32>
    %359 = arith.mulf %354, %358 : vector<32x128xf32>
    %360 = vector.shape_cast %291 : vector<1x128xi1> to vector<1x128xi1>
    %361 = vector.broadcast %360 : vector<1x128xi1> to vector<32x128xi1>
    %362 = arith.select %361, %359, %270 : vector<32x128xi1>, vector<32x128xf32>
    %363 = vector.shape_cast %291 : vector<1x128xi1> to vector<1x128xi1>
    %364 = vector.broadcast %363 : vector<1x128xi1> to vector<32x128xi1>
    %365 = arith.select %364, %357, %273 : vector<32x128xi1>, vector<32x128xf32>
    %cst_86 = arith.constant 0.000000e+00 : f32
    %366 = vector.broadcast %cst_86 : f32 to vector<32x128xf32>
    %367 = arith.cmpf one, %322, %366 : vector<32x128xf32>
    %368 = vector.broadcast %289 : vector<1x128xi1> to vector<32x128xi1>
    %369 = arith.andi %368, %367 : vector<32x128xi1>
    %cst_87 = arith.constant -1.000000e+09 : f32
    %370 = vector.broadcast %cst_87 : f32 to vector<32x128xf32>
    %371 = arith.select %369, %322, %370 : vector<32x128xi1>, vector<32x128xf32>
    %372 = arith.maximumf %280, %371 : vector<32x128xf32>
    %cst_88 = arith.constant 0.000000e+00 : f32
    %373 = vector.broadcast %cst_88 : f32 to vector<32x128xf32>
    %374 = arith.cmpf one, %359, %373 : vector<32x128xf32>
    %375 = vector.broadcast %291 : vector<1x128xi1> to vector<32x128xi1>
    %376 = arith.andi %375, %374 : vector<32x128xi1>
    %cst_89 = arith.constant -1.000000e+09 : f32
    %377 = vector.broadcast %cst_89 : f32 to vector<32x128xf32>
    %378 = arith.select %376, %359, %377 : vector<32x128xi1>, vector<32x128xf32>
    %379 = arith.maximumf %287, %378 : vector<32x128xf32>
    %c4_i32_90 = arith.constant 4 : i32
    %380 = vector.broadcast %c4_i32_90 : i32 to vector<1x128xi32>
    %381 = arith.cmpi sgt, %9, %380 : vector<1x128xi32>
    %c3_i32_91 = arith.constant 3 : i32
    %382 = vector.broadcast %c3_i32_91 : i32 to vector<1x128xi32>
    %383 = arith.cmpi sgt, %9, %382 : vector<1x128xi32>
    %c0_92 = arith.constant 0 : index
    %c4_93 = arith.constant 4 : index
    %c0_94 = arith.constant 0 : index
    %c0_95 = arith.constant 0 : index
    %384 = vector.load %arg2[%c0_92, %c4_93, %c0_94, %c0_95] : memref<1x8x33x128xbf16, #tpu.memory_space<vmem>>, vector<1x1x33x128xbf16>
    %385 = vector.shape_cast %384 : vector<1x1x33x128xbf16> to vector<33x128xbf16>
    %cst_96 = arith.constant dense<0.000000e+00> : vector<128x128xf32>
    %386 = tpu.matmul %4, %385, %cst_96 {dimension_numbers = #tpu.dot_dimension_numbers<[1], [0], [0], [1], [0, 0, 1, 1], [], []>} : vector<128x33xbf16>, vector<33x128xbf16>, vector<128x128xf32> -> vector<128x128xf32>
    %387 = arith.truncf %325 : vector<32x128xf32> to vector<32x128xbf16>
    %cst_97 = arith.constant dense<0.000000e+00> : vector<128x128xf32>
    %388 = tpu.matmul %6, %387, %cst_97 {dimension_numbers = #tpu.dot_dimension_numbers<[1], [0], [0], [1], [0, 0, 1, 1], [], []>} : vector<128x32xbf16>, vector<32x128xbf16>, vector<128x128xf32> -> vector<128x128xf32>
    %389 = arith.addf %386, %388 : vector<128x128xf32>
    %390 = vector.extract_strided_slice %389 {offsets = [0, 0], sizes = [32, 128], strides = [1, 1]} : vector<128x128xf32> to vector<32x128xf32>
    %391 = arith.negf %390 : vector<32x128xf32>
    %392 = math.exp %391 : vector<32x128xf32>
    %cst_98 = arith.constant 1.000000e+00 : f32
    %393 = vector.broadcast %cst_98 : f32 to vector<32x128xf32>
    %394 = arith.addf %393, %392 : vector<32x128xf32>
    %395 = arith.divf %393, %394 : vector<32x128xf32>
    %396 = vector.extract_strided_slice %389 {offsets = [32, 0], sizes = [32, 128], strides = [1, 1]} : vector<128x128xf32> to vector<32x128xf32>
    %397 = arith.negf %396 : vector<32x128xf32>
    %398 = math.exp %397 : vector<32x128xf32>
    %cst_99 = arith.constant 1.000000e+00 : f32
    %399 = vector.broadcast %cst_99 : f32 to vector<32x128xf32>
    %400 = arith.addf %399, %398 : vector<32x128xf32>
    %401 = arith.divf %399, %400 : vector<32x128xf32>
    %402 = vector.extract_strided_slice %389 {offsets = [64, 0], sizes = [32, 128], strides = [1, 1]} : vector<128x128xf32> to vector<32x128xf32>
    %403 = math.tanh %402 : vector<32x128xf32>
    %404 = vector.extract_strided_slice %389 {offsets = [96, 0], sizes = [32, 128], strides = [1, 1]} : vector<128x128xf32> to vector<32x128xf32>
    %405 = arith.negf %404 : vector<32x128xf32>
    %406 = math.exp %405 : vector<32x128xf32>
    %cst_100 = arith.constant 1.000000e+00 : f32
    %407 = vector.broadcast %cst_100 : f32 to vector<32x128xf32>
    %408 = arith.addf %407, %406 : vector<32x128xf32>
    %409 = arith.divf %407, %408 : vector<32x128xf32>
    %410 = arith.mulf %401, %328 : vector<32x128xf32>
    %411 = arith.mulf %395, %403 : vector<32x128xf32>
    %412 = arith.addf %410, %411 : vector<32x128xf32>
    %413 = math.tanh %412 : vector<32x128xf32>
    %414 = arith.mulf %409, %413 : vector<32x128xf32>
    %415 = vector.shape_cast %381 : vector<1x128xi1> to vector<1x128xi1>
    %416 = vector.broadcast %415 : vector<1x128xi1> to vector<32x128xi1>
    %417 = arith.select %416, %414, %325 : vector<32x128xi1>, vector<32x128xf32>
    %418 = vector.shape_cast %381 : vector<1x128xi1> to vector<1x128xi1>
    %419 = vector.broadcast %418 : vector<1x128xi1> to vector<32x128xi1>
    %420 = arith.select %419, %412, %328 : vector<32x128xi1>, vector<32x128xf32>
    %c0_101 = arith.constant 0 : index
    %c3_102 = arith.constant 3 : index
    %c0_103 = arith.constant 0 : index
    %c0_104 = arith.constant 0 : index
    %421 = vector.load %arg2[%c0_101, %c3_102, %c0_103, %c0_104] : memref<1x8x33x128xbf16, #tpu.memory_space<vmem>>, vector<1x1x33x128xbf16>
    %422 = vector.shape_cast %421 : vector<1x1x33x128xbf16> to vector<33x128xbf16>
    %cst_105 = arith.constant dense<0.000000e+00> : vector<128x128xf32>
    %423 = tpu.matmul %5, %422, %cst_105 {dimension_numbers = #tpu.dot_dimension_numbers<[1], [0], [0], [1], [0, 0, 1, 1], [], []>} : vector<128x33xbf16>, vector<33x128xbf16>, vector<128x128xf32> -> vector<128x128xf32>
    %424 = arith.truncf %362 : vector<32x128xf32> to vector<32x128xbf16>
    %cst_106 = arith.constant dense<0.000000e+00> : vector<128x128xf32>
    %425 = tpu.matmul %7, %424, %cst_106 {dimension_numbers = #tpu.dot_dimension_numbers<[1], [0], [0], [1], [0, 0, 1, 1], [], []>} : vector<128x32xbf16>, vector<32x128xbf16>, vector<128x128xf32> -> vector<128x128xf32>
    %426 = arith.addf %423, %425 : vector<128x128xf32>
    %427 = vector.extract_strided_slice %426 {offsets = [0, 0], sizes = [32, 128], strides = [1, 1]} : vector<128x128xf32> to vector<32x128xf32>
    %428 = arith.negf %427 : vector<32x128xf32>
    %429 = math.exp %428 : vector<32x128xf32>
    %cst_107 = arith.constant 1.000000e+00 : f32
    %430 = vector.broadcast %cst_107 : f32 to vector<32x128xf32>
    %431 = arith.addf %430, %429 : vector<32x128xf32>
    %432 = arith.divf %430, %431 : vector<32x128xf32>
    %433 = vector.extract_strided_slice %426 {offsets = [32, 0], sizes = [32, 128], strides = [1, 1]} : vector<128x128xf32> to vector<32x128xf32>
    %434 = arith.negf %433 : vector<32x128xf32>
    %435 = math.exp %434 : vector<32x128xf32>
    %cst_108 = arith.constant 1.000000e+00 : f32
    %436 = vector.broadcast %cst_108 : f32 to vector<32x128xf32>
    %437 = arith.addf %436, %435 : vector<32x128xf32>
    %438 = arith.divf %436, %437 : vector<32x128xf32>
    %439 = vector.extract_strided_slice %426 {offsets = [64, 0], sizes = [32, 128], strides = [1, 1]} : vector<128x128xf32> to vector<32x128xf32>
    %440 = math.tanh %439 : vector<32x128xf32>
    %441 = vector.extract_strided_slice %426 {offsets = [96, 0], sizes = [32, 128], strides = [1, 1]} : vector<128x128xf32> to vector<32x128xf32>
    %442 = arith.negf %441 : vector<32x128xf32>
    %443 = math.exp %442 : vector<32x128xf32>
    %cst_109 = arith.constant 1.000000e+00 : f32
    %444 = vector.broadcast %cst_109 : f32 to vector<32x128xf32>
    %445 = arith.addf %444, %443 : vector<32x128xf32>
    %446 = arith.divf %444, %445 : vector<32x128xf32>
    %447 = arith.mulf %438, %365 : vector<32x128xf32>
    %448 = arith.mulf %432, %440 : vector<32x128xf32>
    %449 = arith.addf %447, %448 : vector<32x128xf32>
    %450 = math.tanh %449 : vector<32x128xf32>
    %451 = arith.mulf %446, %450 : vector<32x128xf32>
    %452 = vector.shape_cast %383 : vector<1x128xi1> to vector<1x128xi1>
    %453 = vector.broadcast %452 : vector<1x128xi1> to vector<32x128xi1>
    %454 = arith.select %453, %451, %362 : vector<32x128xi1>, vector<32x128xf32>
    %455 = vector.shape_cast %383 : vector<1x128xi1> to vector<1x128xi1>
    %456 = vector.broadcast %455 : vector<1x128xi1> to vector<32x128xi1>
    %457 = arith.select %456, %449, %365 : vector<32x128xi1>, vector<32x128xf32>
    %cst_110 = arith.constant 0.000000e+00 : f32
    %458 = vector.broadcast %cst_110 : f32 to vector<32x128xf32>
    %459 = arith.cmpf one, %414, %458 : vector<32x128xf32>
    %460 = vector.broadcast %381 : vector<1x128xi1> to vector<32x128xi1>
    %461 = arith.andi %460, %459 : vector<32x128xi1>
    %cst_111 = arith.constant -1.000000e+09 : f32
    %462 = vector.broadcast %cst_111 : f32 to vector<32x128xf32>
    %463 = arith.select %461, %414, %462 : vector<32x128xi1>, vector<32x128xf32>
    %464 = arith.maximumf %372, %463 : vector<32x128xf32>
    %cst_112 = arith.constant 0.000000e+00 : f32
    %465 = vector.broadcast %cst_112 : f32 to vector<32x128xf32>
    %466 = arith.cmpf one, %451, %465 : vector<32x128xf32>
    %467 = vector.broadcast %383 : vector<1x128xi1> to vector<32x128xi1>
    %468 = arith.andi %467, %466 : vector<32x128xi1>
    %cst_113 = arith.constant -1.000000e+09 : f32
    %469 = vector.broadcast %cst_113 : f32 to vector<32x128xf32>
    %470 = arith.select %468, %451, %469 : vector<32x128xi1>, vector<32x128xf32>
    %471 = arith.maximumf %379, %470 : vector<32x128xf32>
    %c5_i32_114 = arith.constant 5 : i32
    %472 = vector.broadcast %c5_i32_114 : i32 to vector<1x128xi32>
    %473 = arith.cmpi sgt, %9, %472 : vector<1x128xi32>
    %c2_i32_115 = arith.constant 2 : i32
    %474 = vector.broadcast %c2_i32_115 : i32 to vector<1x128xi32>
    %475 = arith.cmpi sgt, %9, %474 : vector<1x128xi32>
    %c0_116 = arith.constant 0 : index
    %c5_117 = arith.constant 5 : index
    %c0_118 = arith.constant 0 : index
    %c0_119 = arith.constant 0 : index
    %476 = vector.load %arg2[%c0_116, %c5_117, %c0_118, %c0_119] : memref<1x8x33x128xbf16, #tpu.memory_space<vmem>>, vector<1x1x33x128xbf16>
    %477 = vector.shape_cast %476 : vector<1x1x33x128xbf16> to vector<33x128xbf16>
    %cst_120 = arith.constant dense<0.000000e+00> : vector<128x128xf32>
    %478 = tpu.matmul %4, %477, %cst_120 {dimension_numbers = #tpu.dot_dimension_numbers<[1], [0], [0], [1], [0, 0, 1, 1], [], []>} : vector<128x33xbf16>, vector<33x128xbf16>, vector<128x128xf32> -> vector<128x128xf32>
    %479 = arith.truncf %417 : vector<32x128xf32> to vector<32x128xbf16>
    %cst_121 = arith.constant dense<0.000000e+00> : vector<128x128xf32>
    %480 = tpu.matmul %6, %479, %cst_121 {dimension_numbers = #tpu.dot_dimension_numbers<[1], [0], [0], [1], [0, 0, 1, 1], [], []>} : vector<128x32xbf16>, vector<32x128xbf16>, vector<128x128xf32> -> vector<128x128xf32>
    %481 = arith.addf %478, %480 : vector<128x128xf32>
    %482 = vector.extract_strided_slice %481 {offsets = [0, 0], sizes = [32, 128], strides = [1, 1]} : vector<128x128xf32> to vector<32x128xf32>
    %483 = arith.negf %482 : vector<32x128xf32>
    %484 = math.exp %483 : vector<32x128xf32>
    %cst_122 = arith.constant 1.000000e+00 : f32
    %485 = vector.broadcast %cst_122 : f32 to vector<32x128xf32>
    %486 = arith.addf %485, %484 : vector<32x128xf32>
    %487 = arith.divf %485, %486 : vector<32x128xf32>
    %488 = vector.extract_strided_slice %481 {offsets = [32, 0], sizes = [32, 128], strides = [1, 1]} : vector<128x128xf32> to vector<32x128xf32>
    %489 = arith.negf %488 : vector<32x128xf32>
    %490 = math.exp %489 : vector<32x128xf32>
    %cst_123 = arith.constant 1.000000e+00 : f32
    %491 = vector.broadcast %cst_123 : f32 to vector<32x128xf32>
    %492 = arith.addf %491, %490 : vector<32x128xf32>
    %493 = arith.divf %491, %492 : vector<32x128xf32>
    %494 = vector.extract_strided_slice %481 {offsets = [64, 0], sizes = [32, 128], strides = [1, 1]} : vector<128x128xf32> to vector<32x128xf32>
    %495 = math.tanh %494 : vector<32x128xf32>
    %496 = vector.extract_strided_slice %481 {offsets = [96, 0], sizes = [32, 128], strides = [1, 1]} : vector<128x128xf32> to vector<32x128xf32>
    %497 = arith.negf %496 : vector<32x128xf32>
    %498 = math.exp %497 : vector<32x128xf32>
    %cst_124 = arith.constant 1.000000e+00 : f32
    %499 = vector.broadcast %cst_124 : f32 to vector<32x128xf32>
    %500 = arith.addf %499, %498 : vector<32x128xf32>
    %501 = arith.divf %499, %500 : vector<32x128xf32>
    %502 = arith.mulf %493, %420 : vector<32x128xf32>
    %503 = arith.mulf %487, %495 : vector<32x128xf32>
    %504 = arith.addf %502, %503 : vector<32x128xf32>
    %505 = math.tanh %504 : vector<32x128xf32>
    %506 = arith.mulf %501, %505 : vector<32x128xf32>
    %507 = vector.shape_cast %473 : vector<1x128xi1> to vector<1x128xi1>
    %508 = vector.broadcast %507 : vector<1x128xi1> to vector<32x128xi1>
    %509 = arith.select %508, %506, %417 : vector<32x128xi1>, vector<32x128xf32>
    %510 = vector.shape_cast %473 : vector<1x128xi1> to vector<1x128xi1>
    %511 = vector.broadcast %510 : vector<1x128xi1> to vector<32x128xi1>
    %512 = arith.select %511, %504, %420 : vector<32x128xi1>, vector<32x128xf32>
    %c0_125 = arith.constant 0 : index
    %c2_126 = arith.constant 2 : index
    %c0_127 = arith.constant 0 : index
    %c0_128 = arith.constant 0 : index
    %513 = vector.load %arg2[%c0_125, %c2_126, %c0_127, %c0_128] : memref<1x8x33x128xbf16, #tpu.memory_space<vmem>>, vector<1x1x33x128xbf16>
    %514 = vector.shape_cast %513 : vector<1x1x33x128xbf16> to vector<33x128xbf16>
    %cst_129 = arith.constant dense<0.000000e+00> : vector<128x128xf32>
    %515 = tpu.matmul %5, %514, %cst_129 {dimension_numbers = #tpu.dot_dimension_numbers<[1], [0], [0], [1], [0, 0, 1, 1], [], []>} : vector<128x33xbf16>, vector<33x128xbf16>, vector<128x128xf32> -> vector<128x128xf32>
    %516 = arith.truncf %454 : vector<32x128xf32> to vector<32x128xbf16>
    %cst_130 = arith.constant dense<0.000000e+00> : vector<128x128xf32>
    %517 = tpu.matmul %7, %516, %cst_130 {dimension_numbers = #tpu.dot_dimension_numbers<[1], [0], [0], [1], [0, 0, 1, 1], [], []>} : vector<128x32xbf16>, vector<32x128xbf16>, vector<128x128xf32> -> vector<128x128xf32>
    %518 = arith.addf %515, %517 : vector<128x128xf32>
    %519 = vector.extract_strided_slice %518 {offsets = [0, 0], sizes = [32, 128], strides = [1, 1]} : vector<128x128xf32> to vector<32x128xf32>
    %520 = arith.negf %519 : vector<32x128xf32>
    %521 = math.exp %520 : vector<32x128xf32>
    %cst_131 = arith.constant 1.000000e+00 : f32
    %522 = vector.broadcast %cst_131 : f32 to vector<32x128xf32>
    %523 = arith.addf %522, %521 : vector<32x128xf32>
    %524 = arith.divf %522, %523 : vector<32x128xf32>
    %525 = vector.extract_strided_slice %518 {offsets = [32, 0], sizes = [32, 128], strides = [1, 1]} : vector<128x128xf32> to vector<32x128xf32>
    %526 = arith.negf %525 : vector<32x128xf32>
    %527 = math.exp %526 : vector<32x128xf32>
    %cst_132 = arith.constant 1.000000e+00 : f32
    %528 = vector.broadcast %cst_132 : f32 to vector<32x128xf32>
    %529 = arith.addf %528, %527 : vector<32x128xf32>
    %530 = arith.divf %528, %529 : vector<32x128xf32>
    %531 = vector.extract_strided_slice %518 {offsets = [64, 0], sizes = [32, 128], strides = [1, 1]} : vector<128x128xf32> to vector<32x128xf32>
    %532 = math.tanh %531 : vector<32x128xf32>
    %533 = vector.extract_strided_slice %518 {offsets = [96, 0], sizes = [32, 128], strides = [1, 1]} : vector<128x128xf32> to vector<32x128xf32>
    %534 = arith.negf %533 : vector<32x128xf32>
    %535 = math.exp %534 : vector<32x128xf32>
    %cst_133 = arith.constant 1.000000e+00 : f32
    %536 = vector.broadcast %cst_133 : f32 to vector<32x128xf32>
    %537 = arith.addf %536, %535 : vector<32x128xf32>
    %538 = arith.divf %536, %537 : vector<32x128xf32>
    %539 = arith.mulf %530, %457 : vector<32x128xf32>
    %540 = arith.mulf %524, %532 : vector<32x128xf32>
    %541 = arith.addf %539, %540 : vector<32x128xf32>
    %542 = math.tanh %541 : vector<32x128xf32>
    %543 = arith.mulf %538, %542 : vector<32x128xf32>
    %544 = vector.shape_cast %475 : vector<1x128xi1> to vector<1x128xi1>
    %545 = vector.broadcast %544 : vector<1x128xi1> to vector<32x128xi1>
    %546 = arith.select %545, %543, %454 : vector<32x128xi1>, vector<32x128xf32>
    %547 = vector.shape_cast %475 : vector<1x128xi1> to vector<1x128xi1>
    %548 = vector.broadcast %547 : vector<1x128xi1> to vector<32x128xi1>
    %549 = arith.select %548, %541, %457 : vector<32x128xi1>, vector<32x128xf32>
    %cst_134 = arith.constant 0.000000e+00 : f32
    %550 = vector.broadcast %cst_134 : f32 to vector<32x128xf32>
    %551 = arith.cmpf one, %506, %550 : vector<32x128xf32>
    %552 = vector.broadcast %473 : vector<1x128xi1> to vector<32x128xi1>
    %553 = arith.andi %552, %551 : vector<32x128xi1>
    %cst_135 = arith.constant -1.000000e+09 : f32
    %554 = vector.broadcast %cst_135 : f32 to vector<32x128xf32>
    %555 = arith.select %553, %506, %554 : vector<32x128xi1>, vector<32x128xf32>
    %556 = arith.maximumf %464, %555 : vector<32x128xf32>
    %cst_136 = arith.constant 0.000000e+00 : f32
    %557 = vector.broadcast %cst_136 : f32 to vector<32x128xf32>
    %558 = arith.cmpf one, %543, %557 : vector<32x128xf32>
    %559 = vector.broadcast %475 : vector<1x128xi1> to vector<32x128xi1>
    %560 = arith.andi %559, %558 : vector<32x128xi1>
    %cst_137 = arith.constant -1.000000e+09 : f32
    %561 = vector.broadcast %cst_137 : f32 to vector<32x128xf32>
    %562 = arith.select %560, %543, %561 : vector<32x128xi1>, vector<32x128xf32>
    %563 = arith.maximumf %471, %562 : vector<32x128xf32>
    %c6_i32_138 = arith.constant 6 : i32
    %564 = vector.broadcast %c6_i32_138 : i32 to vector<1x128xi32>
    %565 = arith.cmpi sgt, %9, %564 : vector<1x128xi32>
    %c1_i32_139 = arith.constant 1 : i32
    %566 = vector.broadcast %c1_i32_139 : i32 to vector<1x128xi32>
    %567 = arith.cmpi sgt, %9, %566 : vector<1x128xi32>
    %c0_140 = arith.constant 0 : index
    %c6_141 = arith.constant 6 : index
    %c0_142 = arith.constant 0 : index
    %c0_143 = arith.constant 0 : index
    %568 = vector.load %arg2[%c0_140, %c6_141, %c0_142, %c0_143] : memref<1x8x33x128xbf16, #tpu.memory_space<vmem>>, vector<1x1x33x128xbf16>
    %569 = vector.shape_cast %568 : vector<1x1x33x128xbf16> to vector<33x128xbf16>
    %cst_144 = arith.constant dense<0.000000e+00> : vector<128x128xf32>
    %570 = tpu.matmul %4, %569, %cst_144 {dimension_numbers = #tpu.dot_dimension_numbers<[1], [0], [0], [1], [0, 0, 1, 1], [], []>} : vector<128x33xbf16>, vector<33x128xbf16>, vector<128x128xf32> -> vector<128x128xf32>
    %571 = arith.truncf %509 : vector<32x128xf32> to vector<32x128xbf16>
    %cst_145 = arith.constant dense<0.000000e+00> : vector<128x128xf32>
    %572 = tpu.matmul %6, %571, %cst_145 {dimension_numbers = #tpu.dot_dimension_numbers<[1], [0], [0], [1], [0, 0, 1, 1], [], []>} : vector<128x32xbf16>, vector<32x128xbf16>, vector<128x128xf32> -> vector<128x128xf32>
    %573 = arith.addf %570, %572 : vector<128x128xf32>
    %574 = vector.extract_strided_slice %573 {offsets = [0, 0], sizes = [32, 128], strides = [1, 1]} : vector<128x128xf32> to vector<32x128xf32>
    %575 = arith.negf %574 : vector<32x128xf32>
    %576 = math.exp %575 : vector<32x128xf32>
    %cst_146 = arith.constant 1.000000e+00 : f32
    %577 = vector.broadcast %cst_146 : f32 to vector<32x128xf32>
    %578 = arith.addf %577, %576 : vector<32x128xf32>
    %579 = arith.divf %577, %578 : vector<32x128xf32>
    %580 = vector.extract_strided_slice %573 {offsets = [32, 0], sizes = [32, 128], strides = [1, 1]} : vector<128x128xf32> to vector<32x128xf32>
    %581 = arith.negf %580 : vector<32x128xf32>
    %582 = math.exp %581 : vector<32x128xf32>
    %cst_147 = arith.constant 1.000000e+00 : f32
    %583 = vector.broadcast %cst_147 : f32 to vector<32x128xf32>
    %584 = arith.addf %583, %582 : vector<32x128xf32>
    %585 = arith.divf %583, %584 : vector<32x128xf32>
    %586 = vector.extract_strided_slice %573 {offsets = [64, 0], sizes = [32, 128], strides = [1, 1]} : vector<128x128xf32> to vector<32x128xf32>
    %587 = math.tanh %586 : vector<32x128xf32>
    %588 = vector.extract_strided_slice %573 {offsets = [96, 0], sizes = [32, 128], strides = [1, 1]} : vector<128x128xf32> to vector<32x128xf32>
    %589 = arith.negf %588 : vector<32x128xf32>
    %590 = math.exp %589 : vector<32x128xf32>
    %cst_148 = arith.constant 1.000000e+00 : f32
    %591 = vector.broadcast %cst_148 : f32 to vector<32x128xf32>
    %592 = arith.addf %591, %590 : vector<32x128xf32>
    %593 = arith.divf %591, %592 : vector<32x128xf32>
    %594 = arith.mulf %585, %512 : vector<32x128xf32>
    %595 = arith.mulf %579, %587 : vector<32x128xf32>
    %596 = arith.addf %594, %595 : vector<32x128xf32>
    %597 = math.tanh %596 : vector<32x128xf32>
    %598 = arith.mulf %593, %597 : vector<32x128xf32>
    %599 = vector.shape_cast %565 : vector<1x128xi1> to vector<1x128xi1>
    %600 = vector.broadcast %599 : vector<1x128xi1> to vector<32x128xi1>
    %601 = arith.select %600, %598, %509 : vector<32x128xi1>, vector<32x128xf32>
    %602 = vector.shape_cast %565 : vector<1x128xi1> to vector<1x128xi1>
    %603 = vector.broadcast %602 : vector<1x128xi1> to vector<32x128xi1>
    %604 = arith.select %603, %596, %512 : vector<32x128xi1>, vector<32x128xf32>
    %c0_149 = arith.constant 0 : index
    %c1_150 = arith.constant 1 : index
    %c0_151 = arith.constant 0 : index
    %c0_152 = arith.constant 0 : index
    %605 = vector.load %arg2[%c0_149, %c1_150, %c0_151, %c0_152] : memref<1x8x33x128xbf16, #tpu.memory_space<vmem>>, vector<1x1x33x128xbf16>
    %606 = vector.shape_cast %605 : vector<1x1x33x128xbf16> to vector<33x128xbf16>
    %cst_153 = arith.constant dense<0.000000e+00> : vector<128x128xf32>
    %607 = tpu.matmul %5, %606, %cst_153 {dimension_numbers = #tpu.dot_dimension_numbers<[1], [0], [0], [1], [0, 0, 1, 1], [], []>} : vector<128x33xbf16>, vector<33x128xbf16>, vector<128x128xf32> -> vector<128x128xf32>
    %608 = arith.truncf %546 : vector<32x128xf32> to vector<32x128xbf16>
    %cst_154 = arith.constant dense<0.000000e+00> : vector<128x128xf32>
    %609 = tpu.matmul %7, %608, %cst_154 {dimension_numbers = #tpu.dot_dimension_numbers<[1], [0], [0], [1], [0, 0, 1, 1], [], []>} : vector<128x32xbf16>, vector<32x128xbf16>, vector<128x128xf32> -> vector<128x128xf32>
    %610 = arith.addf %607, %609 : vector<128x128xf32>
    %611 = vector.extract_strided_slice %610 {offsets = [0, 0], sizes = [32, 128], strides = [1, 1]} : vector<128x128xf32> to vector<32x128xf32>
    %612 = arith.negf %611 : vector<32x128xf32>
    %613 = math.exp %612 : vector<32x128xf32>
    %cst_155 = arith.constant 1.000000e+00 : f32
    %614 = vector.broadcast %cst_155 : f32 to vector<32x128xf32>
    %615 = arith.addf %614, %613 : vector<32x128xf32>
    %616 = arith.divf %614, %615 : vector<32x128xf32>
    %617 = vector.extract_strided_slice %610 {offsets = [32, 0], sizes = [32, 128], strides = [1, 1]} : vector<128x128xf32> to vector<32x128xf32>
    %618 = arith.negf %617 : vector<32x128xf32>
    %619 = math.exp %618 : vector<32x128xf32>
    %cst_156 = arith.constant 1.000000e+00 : f32
    %620 = vector.broadcast %cst_156 : f32 to vector<32x128xf32>
    %621 = arith.addf %620, %619 : vector<32x128xf32>
    %622 = arith.divf %620, %621 : vector<32x128xf32>
    %623 = vector.extract_strided_slice %610 {offsets = [64, 0], sizes = [32, 128], strides = [1, 1]} : vector<128x128xf32> to vector<32x128xf32>
    %624 = math.tanh %623 : vector<32x128xf32>
    %625 = vector.extract_strided_slice %610 {offsets = [96, 0], sizes = [32, 128], strides = [1, 1]} : vector<128x128xf32> to vector<32x128xf32>
    %626 = arith.negf %625 : vector<32x128xf32>
    %627 = math.exp %626 : vector<32x128xf32>
    %cst_157 = arith.constant 1.000000e+00 : f32
    %628 = vector.broadcast %cst_157 : f32 to vector<32x128xf32>
    %629 = arith.addf %628, %627 : vector<32x128xf32>
    %630 = arith.divf %628, %629 : vector<32x128xf32>
    %631 = arith.mulf %622, %549 : vector<32x128xf32>
    %632 = arith.mulf %616, %624 : vector<32x128xf32>
    %633 = arith.addf %631, %632 : vector<32x128xf32>
    %634 = math.tanh %633 : vector<32x128xf32>
    %635 = arith.mulf %630, %634 : vector<32x128xf32>
    %636 = vector.shape_cast %567 : vector<1x128xi1> to vector<1x128xi1>
    %637 = vector.broadcast %636 : vector<1x128xi1> to vector<32x128xi1>
    %638 = arith.select %637, %635, %546 : vector<32x128xi1>, vector<32x128xf32>
    %639 = vector.shape_cast %567 : vector<1x128xi1> to vector<1x128xi1>
    %640 = vector.broadcast %639 : vector<1x128xi1> to vector<32x128xi1>
    %641 = arith.select %640, %633, %549 : vector<32x128xi1>, vector<32x128xf32>
    %cst_158 = arith.constant 0.000000e+00 : f32
    %642 = vector.broadcast %cst_158 : f32 to vector<32x128xf32>
    %643 = arith.cmpf one, %598, %642 : vector<32x128xf32>
    %644 = vector.broadcast %565 : vector<1x128xi1> to vector<32x128xi1>
    %645 = arith.andi %644, %643 : vector<32x128xi1>
    %cst_159 = arith.constant -1.000000e+09 : f32
    %646 = vector.broadcast %cst_159 : f32 to vector<32x128xf32>
    %647 = arith.select %645, %598, %646 : vector<32x128xi1>, vector<32x128xf32>
    %648 = arith.maximumf %556, %647 : vector<32x128xf32>
    %cst_160 = arith.constant 0.000000e+00 : f32
    %649 = vector.broadcast %cst_160 : f32 to vector<32x128xf32>
    %650 = arith.cmpf one, %635, %649 : vector<32x128xf32>
    %651 = vector.broadcast %567 : vector<1x128xi1> to vector<32x128xi1>
    %652 = arith.andi %651, %650 : vector<32x128xi1>
    %cst_161 = arith.constant -1.000000e+09 : f32
    %653 = vector.broadcast %cst_161 : f32 to vector<32x128xf32>
    %654 = arith.select %652, %635, %653 : vector<32x128xi1>, vector<32x128xf32>
    %655 = arith.maximumf %563, %654 : vector<32x128xf32>
    %c7_i32_162 = arith.constant 7 : i32
    %656 = vector.broadcast %c7_i32_162 : i32 to vector<1x128xi32>
    %657 = arith.cmpi sgt, %9, %656 : vector<1x128xi32>
    %c0_i32_163 = arith.constant 0 : i32
    %658 = vector.broadcast %c0_i32_163 : i32 to vector<1x128xi32>
    %659 = arith.cmpi sgt, %9, %658 : vector<1x128xi32>
    %c0_164 = arith.constant 0 : index
    %c7_165 = arith.constant 7 : index
    %c0_166 = arith.constant 0 : index
    %c0_167 = arith.constant 0 : index
    %660 = vector.load %arg2[%c0_164, %c7_165, %c0_166, %c0_167] : memref<1x8x33x128xbf16, #tpu.memory_space<vmem>>, vector<1x1x33x128xbf16>
    %661 = vector.shape_cast %660 : vector<1x1x33x128xbf16> to vector<33x128xbf16>
    %cst_168 = arith.constant dense<0.000000e+00> : vector<128x128xf32>
    %662 = tpu.matmul %4, %661, %cst_168 {dimension_numbers = #tpu.dot_dimension_numbers<[1], [0], [0], [1], [0, 0, 1, 1], [], []>} : vector<128x33xbf16>, vector<33x128xbf16>, vector<128x128xf32> -> vector<128x128xf32>
    %663 = arith.truncf %601 : vector<32x128xf32> to vector<32x128xbf16>
    %cst_169 = arith.constant dense<0.000000e+00> : vector<128x128xf32>
    %664 = tpu.matmul %6, %663, %cst_169 {dimension_numbers = #tpu.dot_dimension_numbers<[1], [0], [0], [1], [0, 0, 1, 1], [], []>} : vector<128x32xbf16>, vector<32x128xbf16>, vector<128x128xf32> -> vector<128x128xf32>
    %665 = arith.addf %662, %664 : vector<128x128xf32>
    %666 = vector.extract_strided_slice %665 {offsets = [0, 0], sizes = [32, 128], strides = [1, 1]} : vector<128x128xf32> to vector<32x128xf32>
    %667 = arith.negf %666 : vector<32x128xf32>
    %668 = math.exp %667 : vector<32x128xf32>
    %cst_170 = arith.constant 1.000000e+00 : f32
    %669 = vector.broadcast %cst_170 : f32 to vector<32x128xf32>
    %670 = arith.addf %669, %668 : vector<32x128xf32>
    %671 = arith.divf %669, %670 : vector<32x128xf32>
    %672 = vector.extract_strided_slice %665 {offsets = [32, 0], sizes = [32, 128], strides = [1, 1]} : vector<128x128xf32> to vector<32x128xf32>
    %673 = arith.negf %672 : vector<32x128xf32>
    %674 = math.exp %673 : vector<32x128xf32>
    %cst_171 = arith.constant 1.000000e+00 : f32
    %675 = vector.broadcast %cst_171 : f32 to vector<32x128xf32>
    %676 = arith.addf %675, %674 : vector<32x128xf32>
    %677 = arith.divf %675, %676 : vector<32x128xf32>
    %678 = vector.extract_strided_slice %665 {offsets = [64, 0], sizes = [32, 128], strides = [1, 1]} : vector<128x128xf32> to vector<32x128xf32>
    %679 = math.tanh %678 : vector<32x128xf32>
    %680 = vector.extract_strided_slice %665 {offsets = [96, 0], sizes = [32, 128], strides = [1, 1]} : vector<128x128xf32> to vector<32x128xf32>
    %681 = arith.negf %680 : vector<32x128xf32>
    %682 = math.exp %681 : vector<32x128xf32>
    %cst_172 = arith.constant 1.000000e+00 : f32
    %683 = vector.broadcast %cst_172 : f32 to vector<32x128xf32>
    %684 = arith.addf %683, %682 : vector<32x128xf32>
    %685 = arith.divf %683, %684 : vector<32x128xf32>
    %686 = arith.mulf %677, %604 : vector<32x128xf32>
    %687 = arith.mulf %671, %679 : vector<32x128xf32>
    %688 = arith.addf %686, %687 : vector<32x128xf32>
    %689 = math.tanh %688 : vector<32x128xf32>
    %690 = arith.mulf %685, %689 : vector<32x128xf32>
    %c0_173 = arith.constant 0 : index
    %c0_174 = arith.constant 0 : index
    %c0_175 = arith.constant 0 : index
    %c0_176 = arith.constant 0 : index
    %691 = vector.load %arg2[%c0_173, %c0_174, %c0_175, %c0_176] : memref<1x8x33x128xbf16, #tpu.memory_space<vmem>>, vector<1x1x33x128xbf16>
    %692 = vector.shape_cast %691 : vector<1x1x33x128xbf16> to vector<33x128xbf16>
    %cst_177 = arith.constant dense<0.000000e+00> : vector<128x128xf32>
    %693 = tpu.matmul %5, %692, %cst_177 {dimension_numbers = #tpu.dot_dimension_numbers<[1], [0], [0], [1], [0, 0, 1, 1], [], []>} : vector<128x33xbf16>, vector<33x128xbf16>, vector<128x128xf32> -> vector<128x128xf32>
    %694 = arith.truncf %638 : vector<32x128xf32> to vector<32x128xbf16>
    %cst_178 = arith.constant dense<0.000000e+00> : vector<128x128xf32>
    %695 = tpu.matmul %7, %694, %cst_178 {dimension_numbers = #tpu.dot_dimension_numbers<[1], [0], [0], [1], [0, 0, 1, 1], [], []>} : vector<128x32xbf16>, vector<32x128xbf16>, vector<128x128xf32> -> vector<128x128xf32>
    %696 = arith.addf %693, %695 : vector<128x128xf32>
    %697 = vector.extract_strided_slice %696 {offsets = [0, 0], sizes = [32, 128], strides = [1, 1]} : vector<128x128xf32> to vector<32x128xf32>
    %698 = arith.negf %697 : vector<32x128xf32>
    %699 = math.exp %698 : vector<32x128xf32>
    %cst_179 = arith.constant 1.000000e+00 : f32
    %700 = vector.broadcast %cst_179 : f32 to vector<32x128xf32>
    %701 = arith.addf %700, %699 : vector<32x128xf32>
    %702 = arith.divf %700, %701 : vector<32x128xf32>
    %703 = vector.extract_strided_slice %696 {offsets = [32, 0], sizes = [32, 128], strides = [1, 1]} : vector<128x128xf32> to vector<32x128xf32>
    %704 = arith.negf %703 : vector<32x128xf32>
    %705 = math.exp %704 : vector<32x128xf32>
    %cst_180 = arith.constant 1.000000e+00 : f32
    %706 = vector.broadcast %cst_180 : f32 to vector<32x128xf32>
    %707 = arith.addf %706, %705 : vector<32x128xf32>
    %708 = arith.divf %706, %707 : vector<32x128xf32>
    %709 = vector.extract_strided_slice %696 {offsets = [64, 0], sizes = [32, 128], strides = [1, 1]} : vector<128x128xf32> to vector<32x128xf32>
    %710 = math.tanh %709 : vector<32x128xf32>
    %711 = vector.extract_strided_slice %696 {offsets = [96, 0], sizes = [32, 128], strides = [1, 1]} : vector<128x128xf32> to vector<32x128xf32>
    %712 = arith.negf %711 : vector<32x128xf32>
    %713 = math.exp %712 : vector<32x128xf32>
    %cst_181 = arith.constant 1.000000e+00 : f32
    %714 = vector.broadcast %cst_181 : f32 to vector<32x128xf32>
    %715 = arith.addf %714, %713 : vector<32x128xf32>
    %716 = arith.divf %714, %715 : vector<32x128xf32>
    %717 = arith.mulf %708, %641 : vector<32x128xf32>
    %718 = arith.mulf %702, %710 : vector<32x128xf32>
    %719 = arith.addf %717, %718 : vector<32x128xf32>
    %720 = math.tanh %719 : vector<32x128xf32>
    %721 = arith.mulf %716, %720 : vector<32x128xf32>
    %cst_182 = arith.constant 0.000000e+00 : f32
    %722 = vector.broadcast %cst_182 : f32 to vector<32x128xf32>
    %723 = arith.cmpf one, %690, %722 : vector<32x128xf32>
    %724 = vector.broadcast %657 : vector<1x128xi1> to vector<32x128xi1>
    %725 = arith.andi %724, %723 : vector<32x128xi1>
    %cst_183 = arith.constant -1.000000e+09 : f32
    %726 = vector.broadcast %cst_183 : f32 to vector<32x128xf32>
    %727 = arith.select %725, %690, %726 : vector<32x128xi1>, vector<32x128xf32>
    %728 = arith.maximumf %648, %727 : vector<32x128xf32>
    %cst_184 = arith.constant 0.000000e+00 : f32
    %729 = vector.broadcast %cst_184 : f32 to vector<32x128xf32>
    %730 = arith.cmpf one, %721, %729 : vector<32x128xf32>
    %731 = vector.broadcast %659 : vector<1x128xi1> to vector<32x128xi1>
    %732 = arith.andi %731, %730 : vector<32x128xi1>
    %cst_185 = arith.constant -1.000000e+09 : f32
    %733 = vector.broadcast %cst_185 : f32 to vector<32x128xf32>
    %734 = arith.select %732, %721, %733 : vector<32x128xi1>, vector<32x128xf32>
    %735 = arith.maximumf %655, %734 : vector<32x128xf32>
    %c0_186 = arith.constant 0 : index
    %c0_187 = arith.constant 0 : index
    %c0_188 = arith.constant 0 : index
    %736 = vector.load %arg6[%c0_186, %c0_187, %c0_188] : memref<1x64x128xf32, #tpu.memory_space<vmem>>, vector<1x32x128xf32>
    %737 = vector.shape_cast %736 : vector<1x32x128xf32> to vector<32x128xf32>
    %738 = vector.shape_cast %728 : vector<32x128xf32> to vector<1x32x128xf32>
    tpu.vector_store %arg6[%c0_186, %c0_187, %c0_188], %738 {strides = array<i32>} : memref<1x64x128xf32, #tpu.memory_space<vmem>>, vector<1x32x128xf32>,
    %c0_189 = arith.constant 0 : index
    %c32 = arith.constant 32 : index
    %c0_190 = arith.constant 0 : index
    %739 = vector.load %arg6[%c0_189, %c32, %c0_190] : memref<1x64x128xf32, #tpu.memory_space<vmem>>, vector<1x32x128xf32>
    %740 = vector.shape_cast %739 : vector<1x32x128xf32> to vector<32x128xf32>
    %741 = vector.shape_cast %735 : vector<32x128xf32> to vector<1x32x128xf32>
    tpu.vector_store %arg6[%c0_189, %c32, %c0_190], %741 {strides = array<i32>} : memref<1x64x128xf32, #tpu.memory_space<vmem>>, vector<1x32x128xf32>,
    return
  }
  func.func @transform_0(%arg0: i32, %arg1: i32) -> (i32, i32, i32, i32) {
    %c0_i32 = arith.constant 0 : i32
    %c0_i32_0 = arith.constant 0 : i32
    %c0_i32_1 = arith.constant 0 : i32
    return %arg0, %c0_i32, %c0_i32_0, %arg1 : i32, i32, i32, i32
  }
  func.func @transform_1(%arg0: i32, %arg1: i32) -> (i32, i32, i32) {
    %c0_i32 = arith.constant 0 : i32
    %c0_i32_0 = arith.constant 0 : i32
    return %arg0, %c0_i32, %arg1 : i32, i32, i32
  }
  func.func @transform_2(%arg0: i32, %arg1: i32) -> (i32, i32, i32) {
    %c0_i32 = arith.constant 0 : i32
    %c0_i32_0 = arith.constant 0 : i32
    %c0_i32_1 = arith.constant 0 : i32
    return %arg0, %c0_i32, %c0_i32_0 : i32, i32, i32
  }
  func.func @transform_3(%arg0: i32, %arg1: i32) -> (i32, i32, i32) {
    %c0_i32 = arith.constant 0 : i32
    %c0_i32_0 = arith.constant 0 : i32
    %c0_i32_1 = arith.constant 0 : i32
    return %arg0, %c0_i32, %c0_i32_0 : i32, i32, i32
  }
  func.func @transform_4(%arg0: i32, %arg1: i32) -> (i32, i32, i32) {
    %c0_i32 = arith.constant 0 : i32
    %c0_i32_0 = arith.constant 0 : i32
    return %arg0, %c0_i32, %arg1 : i32, i32, i32
  }
}

</mosaic_0001>

<llo_original>
// kernel: _unreferenced_metric.3
$region0: #{_unreferenced_metric.3}
  #allocation0 [shape = 'u32[]', space=smem, size = 0x4, offset = 0x4, fixed_abs, tag = 'smem constant byte address 0x4 - core index']
  #allocation1 [shape = 'u32[144,128]{1,0:T(1,128)}', space=vmem, size = 0x12000, scoped, tag = 'internal scratch']
  #allocation2 [shape = 'f32[1,1]{1,0:T(1,128)S(1)}', space=vmem, size = 0x200, scoped, tag = 'scoped memory for _unreferenced_metric.3']
  %s0 = inlined_call_operand.vmem [shape: f32[64,128], index: 0, kind: input, shape index: {}]
  %s1 = inlined_call_operand.vmem [shape: f32[64,128], index: 1, kind: input, shape index: {}]
  %s2 = inlined_call_operand.vmem [shape: f32[64,64], index: 2, kind: input, shape index: {}]
  %s3 = inlined_call_operand.vmem [shape: f32[128,64], index: 3, kind: input, shape index: {}]
  %s4 = inlined_call_operand.vmem [shape: f32[128,1], index: 4, kind: input, shape index: {}]
  %s5 = inlined_call_operand.vmem [shape: f32[128,64], index: 5, kind: input, shape index: {}]
  %s6 = inlined_call_operand.vmem [shape: f32[128,1], index: 6, kind: input, shape index: {}]
  %s7 = inlined_call_operand.vmem [shape: f32[128,1], index: 7, kind: input, shape index: {}]
  %s8 = inlined_call_operand.vmem [shape: f32[128,1], index: 8, kind: input, shape index: {}]
  %s9 = inlined_call_operand.vmem [shape: f32[1,128], index: 9, kind: input, shape index: {}]
  %s10 = inlined_call_operand.<no memory space> [shape: f32[1,1], index: 10, kind: input, shape index: {}]
  %s11 = inlined_call_operand.vmem [shape: f32[1,128], index: 11, kind: output, shape index: {}]
  %s12 = sld [smem:[#allocation0]]
  $region54: #{_unreferenced_metric.3} parent=0
    _
  %s14 = ssub.s32 1, %s12
  %s15 = scalar_select 0, %s14, %s12
  %v16 = vstv %s10
  %17 = vst [vmem:[#allocation2] sm:$0x1] %v16
  // Predicated region
  $region2: #{_unreferenced_metric.3} parent=0 // pred_check
    _
  $region3: #{_unreferenced_metric.3} parent=0 // pred_check_branch
    %19 = sbr.rel (0) target = $region5
  $region4: #{_unreferenced_metric.3} parent=0 // pred_region
    _
  $region5: #{_unreferenced_metric.3} parent=0 // pred_fallthru
    _
  // Predicated region
  $region6: #{_unreferenced_metric.3} parent=0 // pred_check
    _
  $region7: #{_unreferenced_metric.3} parent=0 // pred_check_branch
    %21 = sbr.rel (0) target = $region9
  $region8: #{_unreferenced_metric.3} parent=0 // pred_region
    _
  $region9: #{_unreferenced_metric.3} parent=0 // pred_fallthru
    _
  // Predicated region
  $region10: #{_unreferenced_metric.3} parent=0 // pred_check
    _
  $region11: #{_unreferenced_metric.3} parent=0 // pred_check_branch
    %23 = sbr.rel (0) target = $region13
  $region12: #{_unreferenced_metric.3} parent=0 // pred_region
    _
  $region13: #{_unreferenced_metric.3} parent=0 // pred_fallthru
    _
  // Predicated region
  $region14: #{_unreferenced_metric.3} parent=0 // pred_check
    _
  $region15: #{_unreferenced_metric.3} parent=0 // pred_check_branch
    %25 = sbr.rel (0) target = $region17
  $region16: #{_unreferenced_metric.3} parent=0 // pred_region
    _
  $region17: #{_unreferenced_metric.3} parent=0 // pred_fallthru
    _
  // Predicated region
  $region18: #{_unreferenced_metric.3} parent=0 // pred_check
    _
  $region19: #{_unreferenced_metric.3} parent=0 // pred_check_branch
    %27 = sbr.rel (0) target = $region21
  $region20: #{_unreferenced_metric.3} parent=0 // pred_region
    _
  $region21: #{_unreferenced_metric.3} parent=0 // pred_fallthru
    _
  // Predicated region
  $region22: #{_unreferenced_metric.3} parent=0 // pred_check
    _
  $region23: #{_unreferenced_metric.3} parent=0 // pred_check_branch
    %29 = sbr.rel (0) target = $region25
  $region24: #{_unreferenced_metric.3} parent=0 // pred_region
    _
  $region25: #{_unreferenced_metric.3} parent=0 // pred_fallthru
    _
  // Predicated region
  $region26: #{_unreferenced_metric.3} parent=0 // pred_check
    _
  $region27: #{_unreferenced_metric.3} parent=0 // pred_check_branch
    %31 = sbr.rel (0) target = $region29
  $region28: #{_unreferenced_metric.3} parent=0 // pred_region
    _
  $region29: #{_unreferenced_metric.3} parent=0 // pred_fallthru
    _
  // Predicated region
  $region30: #{_unreferenced_metric.3} parent=0 // pred_check
    _
  $region31: #{_unreferenced_metric.3} parent=0 // pred_check_branch
    %33 = sbr.rel (0) target = $region33
  $region32: #{_unreferenced_metric.3} parent=0 // pred_region
    _
  $region33: #{_unreferenced_metric.3} parent=0 // pred_fallthru
    _
  // Predicated region
  $region34: #{_unreferenced_metric.3} parent=0 // pred_check
    _
  $region35: #{_unreferenced_metric.3} parent=0 // pred_check_branch
    %35 = sbr.rel (0) target = $region37
  $region36: #{_unreferenced_metric.3} parent=0 // pred_region
    _
  $region37: #{_unreferenced_metric.3} parent=0 // pred_fallthru
    _
  // Predicated region
  $region38: #{_unreferenced_metric.3} parent=0 // pred_check
    _
  $region39: #{_unreferenced_metric.3} parent=0 // pred_check_branch
    %37 = sbr.rel (0) target = $region41
  $region40: #{_unreferenced_metric.3} parent=0 // pred_region
    _
  $region41: #{_unreferenced_metric.3} parent=0 // pred_fallthru
    _
  // Predicated region
  $region42: #{_unreferenced_metric.3} parent=0 // pred_check
    _
  $region43: #{_unreferenced_metric.3} parent=0 // pred_check_branch
    %39 = sbr.rel (0) target = $region45
  $region44: #{_unreferenced_metric.3} parent=0 // pred_region
    _
  $region45: #{_unreferenced_metric.3} parent=0 // pred_fallthru
    _
  %v40 = vld [vmem:[%s0] sm:$0xff]
  %v41 = vld [vmem:[%s0 + $0x8] sm:$0xff]
  %v42 = vld [vmem:[%s0 + $0x10] sm:$0xff]
  %v43 = vld [vmem:[%s0 + $0x18] sm:$0xff]
  %v44 = vld [vmem:[%s0 + $0x20] sm:$0xff]
  %v45 = vld [vmem:[%s0 + $0x28] sm:$0xff]
  %v46 = vld [vmem:[%s0 + $0x30] sm:$0xff]
  %v47 = vld [vmem:[%s0 + $0x38] sm:$0xff]
  %v48 = vld [vmem:[%s1] sm:$0xff]
  %v49 = vld [vmem:[%s1 + $0x8] sm:$0xff]
  %v50 = vld [vmem:[%s1 + $0x10] sm:$0xff]
  %v51 = vld [vmem:[%s1 + $0x18] sm:$0xff]
  %v52 = vld [vmem:[%s1 + $0x20] sm:$0xff]
  %v53 = vld [vmem:[%s1 + $0x28] sm:$0xff]
  %v54 = vld [vmem:[%s1 + $0x30] sm:$0xff]
  %v55 = vld [vmem:[%s1 + $0x38] sm:$0xff]
  %v56 = vld [vmem:[%s2] sm:$0xff]
  %v57 = vld [vmem:[%s2 + $0x8] sm:$0xff]
  %v58 = vld [vmem:[%s2 + $0x10] sm:$0xff]
  %v59 = vld [vmem:[%s2 + $0x18] sm:$0xff]
  %v60 = vld [vmem:[%s2 + $0x20] sm:$0xff]
  %v61 = vld [vmem:[%s2 + $0x28] sm:$0xff]
  %v62 = vld [vmem:[%s2 + $0x30] sm:$0xff]
  %v63 = vld [vmem:[%s2 + $0x38] sm:$0xff]
  %vm64 = vcmask 523264
  %v66 = vsel %vm64, %v56, 0
  %v69 = vsel %vm64, %v57, 0
  %v72 = vsel %vm64, %v58, 0
  %v75 = vsel %vm64, %v59, 0
  %v78 = vsel %vm64, %v60, 0
  %v81 = vsel %vm64, %v61, 0
  %v84 = vsel %vm64, %v62, 0
  %v87 = vsel %vm64, %v63, 0
  %89 = vmatprep.subr.mxu0 0.0
  %90 = vmatpush1.msra.mxu0 0.0
  %91 = vmatprep.subr.mxu0 0.0
  %92 = vmatpush1.msra.mxu0 0.0
  %93 = vmatprep.subr.mxu0 0.0
  %94 = vmatpush1.msra.mxu0 0.0
  %95 = vmatprep.subr.mxu0 0.0
  %96 = vmatpush1.msra.mxu0 0.0
  %97 = vmatprep.subr.mxu0 0.0
  %98 = vmatpush1.msra.mxu0 0.0
  %99 = vmatprep.subr.mxu0 0.0
  %100 = vmatpush1.msra.mxu0 0.0
  %101 = vmatprep.subr.mxu0 0.0
  %102 = vmatpush1.msra.mxu0 0.0
  %103 = vmatprep.subr.mxu0 0.0
  %104 = vmatpush1.msra.mxu0 0.0
  %105 = vmatprep.subr.mxu0 0.0
  %106 = vmatpush1.msra.mxu0 %v47
  %107 = vmatprep.subr.mxu0 0.0
  %108 = vmatpush1.msra.mxu0 %v46
  %109 = vmatprep.subr.mxu0 0.0
  %110 = vmatpush1.msra.mxu0 %v45
  %111 = vmatprep.subr.mxu0 0.0
  %112 = vmatpush1.msra.mxu0 %v44
  %113 = vmatprep.subr.mxu0 0.0
  %114 = vmatpush1.msra.mxu0 %v43
  %115 = vmatprep.subr.mxu0 0.0
  %116 = vmatpush1.msra.mxu0 %v42
  %117 = vmatprep.subr.mxu0 0.0
  %118 = vmatpush1.msra.mxu0 %v41
  %119 = vmatprep.subr.mxu0 0.0
  %120 = vmatpush1.msra.mxu0 %v40
  %121 = vmatprep.subr.mxu0 0.0
  %122 = vmatpush2.msra.mxu0 0.0
  %123 = vmatprep.subr.mxu0 0.0
  %124 = vmatpush2.msra.mxu0 0.0
  %125 = vmatprep.subr.mxu0 0.0
  %126 = vmatpush2.msra.mxu0 0.0
  %127 = vmatprep.subr.mxu0 0.0
  %128 = vmatpush2.msra.mxu0 0.0
  %129 = vmatprep.subr.mxu0 0.0
  %130 = vmatpush2.msra.mxu0 0.0
  %131 = vmatprep.subr.mxu0 0.0
  %132 = vmatpush2.msra.mxu0 0.0
  %133 = vmatprep.subr.mxu0 0.0
  %134 = vmatpush2.msra.mxu0 0.0
  %135 = vmatprep.subr.mxu0 0.0
  %136 = vmatpush2.msra.mxu0 0.0
  %137 = vmatprep.subr.mxu0 0.0
  %138 = vmatpush2.msra.mxu0 0.0
  %139 = vmatprep.subr.mxu0 0.0
  %140 = vmatpush2.msra.mxu0 0.0
  %141 = vmatprep.subr.mxu0 0.0
  %142 = vmatpush2.msra.mxu0 0.0
  %143 = vmatprep.subr.mxu0 0.0
  %144 = vmatpush2.msra.mxu0 0.0
  %145 = vmatprep.subr.mxu0 0.0
  %146 = vmatpush2.msra.mxu0 0.0
  %147 = vmatprep.subr.mxu0 0.0
  %148 = vmatpush2.msra.mxu0 0.0
  %149 = vmatprep.subr.mxu0 0.0
  %150 = vmatpush2.msra.mxu0 0.0
  %151 = vmatprep.subr.mxu0 0.0
  %152 = vmatpush2.msra.mxu0 0.0
  %153 = vmatprep.mubr.f32.mxu0 0.0
  %154 = vmatmul.mubr.f32.gmra.mxu0 %v66
  %v155 = vpop.f32.mrf.mxu0
  %v156 = vadd.f32 0.0, %v155
  %v157 = vpop.f32.mrf.mxu0
  %158 = vmatprep.mubr.f32.mxu0 0.0
  %159 = vmatmul.mubr.f32.gmra.mxu0 %v69
  %v160 = vpop.f32.mrf.mxu0
  %v161 = vadd.f32 0.0, %v160
  %v162 = vpop.f32.mrf.mxu0
  %163 = vmatprep.mubr.f32.mxu0 0.0
  %164 = vmatmul.mubr.f32.gmra.mxu0 %v72
  %v165 = vpop.f32.mrf.mxu0
  %v166 = vadd.f32 0.0, %v165
  %v167 = vpop.f32.mrf.mxu0
  %168 = vmatprep.mubr.f32.mxu0 0.0
  %169 = vmatmul.mubr.f32.gmra.mxu0 %v75
  %v170 = vpop.f32.mrf.mxu0
  %v171 = vadd.f32 0.0, %v170
  %v172 = vpop.f32.mrf.mxu0
  %173 = vmatprep.mubr.f32.mxu0 0.0
  %174 = vmatmul.mubr.f32.gmra.mxu0 %v78
  %v175 = vpop.f32.mrf.mxu0
  %v176 = vadd.f32 0.0, %v175
  %v177 = vpop.f32.mrf.mxu0
  %178 = vmatprep.mubr.f32.mxu0 0.0
  %179 = vmatmul.mubr.f32.gmra.mxu0 %v81
  %v180 = vpop.f32.mrf.mxu0
  %v181 = vadd.f32 0.0, %v180
  %v182 = vpop.f32.mrf.mxu0
  %183 = vmatprep.mubr.f32.mxu0 0.0
  %184 = vmatmul.mubr.f32.gmra.mxu0 %v84
  %v185 = vpop.f32.mrf.mxu0
  %v186 = vadd.f32 0.0, %v185
  %v187 = vpop.f32.mrf.mxu0
  %188 = vmatprep.mubr.f32.mxu0 0.0
  %189 = vmatmul.mubr.f32.gmra.mxu0 %v87
  %v190 = vpop.f32.mrf.mxu0
  %v191 = vadd.f32 0.0, %v190
  %v192 = vpop.f32.mrf.mxu0
  %193 = vdwg.mxu0
  %v194 = vmul.f32 %v156, %v48
  %v195 = vmul.f32 %v161, %v49
  %v196 = vmul.f32 %v166, %v50
  %v197 = vmul.f32 %v171, %v51
  %v198 = vmul.f32 %v176, %v52
  %v199 = vmul.f32 %v181, %v53
  %v200 = vmul.f32 %v186, %v54
  %v201 = vmul.f32 %v191, %v55
  %v202 = vadd.f32 %v194, %v195
  %v203 = vadd.f32 %v202, %v196
  %v204 = vadd.f32 %v203, %v197
  %v205 = vadd.f32 %v204, %v198
  %v206 = vadd.f32 %v205, %v199
  %v207 = vadd.f32 %v206, %v200
  %v208 = vadd.f32 %v207, %v201
  %v209 = vrot.slane %v208, 4
  %v210 = vadd.f32 %v208, %v209
  %v211 = vrot.slane %v210, 2
  %v212 = vadd.f32 %v210, %v211
  %v213 = vrot.slane %v212, 1
  %v214 = vadd.f32 %v212, %v213
  %v215 = vld [vmem:[%s3] sm:$0xff]
  %v216 = vld [vmem:[%s3 + $0x8] sm:$0xff]
  %v217 = vld [vmem:[%s3 + $0x10] sm:$0xff]
  %v218 = vld [vmem:[%s3 + $0x18] sm:$0xff]
  %v219 = vld [vmem:[%s3 + $0x20] sm:$0xff]
  %v220 = vld [vmem:[%s3 + $0x28] sm:$0xff]
  %v221 = vld [vmem:[%s3 + $0x30] sm:$0xff]
  %v222 = vld [vmem:[%s3 + $0x38] sm:$0xff]
  %v223 = vld [vmem:[%s3 + $0x40] sm:$0xff]
  %v224 = vld [vmem:[%s3 + $0x48] sm:$0xff]
  %v225 = vld [vmem:[%s3 + $0x50] sm:$0xff]
  %v226 = vld [vmem:[%s3 + $0x58] sm:$0xff]
  %v227 = vld [vmem:[%s3 + $0x60] sm:$0xff]
  %v228 = vld [vmem:[%s3 + $0x68] sm:$0xff]
  %v229 = vld [vmem:[%s3 + $0x70] sm:$0xff]
  %v230 = vld [vmem:[%s3 + $0x78] sm:$0xff]
  %v231 = vld [vmem:[%s5] sm:$0xff]
  %v232 = vld [vmem:[%s5 + $0x8] sm:$0xff]
  %v233 = vld [vmem:[%s5 + $0x10] sm:$0xff]
  %v234 = vld [vmem:[%s5 + $0x18] sm:$0xff]
  %v235 = vld [vmem:[%s5 + $0x20] sm:$0xff]
  %v236 = vld [vmem:[%s5 + $0x28] sm:$0xff]
  %v237 = vld [vmem:[%s5 + $0x30] sm:$0xff]
  %v238 = vld [vmem:[%s5 + $0x38] sm:$0xff]
  %v239 = vld [vmem:[%s5 + $0x40] sm:$0xff]
  %v240 = vld [vmem:[%s5 + $0x48] sm:$0xff]
  %v241 = vld [vmem:[%s5 + $0x50] sm:$0xff]
  %v242 = vld [vmem:[%s5 + $0x58] sm:$0xff]
  %v243 = vld [vmem:[%s5 + $0x60] sm:$0xff]
  %v244 = vld [vmem:[%s5 + $0x68] sm:$0xff]
  %v245 = vld [vmem:[%s5 + $0x70] sm:$0xff]
  %v246 = vld [vmem:[%s5 + $0x78] sm:$0xff]
  %v248 = vsel %vm64, %v231, 0
  %v251 = vsel %vm64, %v232, 0
  %v254 = vsel %vm64, %v233, 0
  %v257 = vsel %vm64, %v234, 0
  %v260 = vsel %vm64, %v235, 0
  %v263 = vsel %vm64, %v236, 0
  %v266 = vsel %vm64, %v237, 0
  %v269 = vsel %vm64, %v238, 0
  %v272 = vsel %vm64, %v239, 0
  %v275 = vsel %vm64, %v240, 0
  %v278 = vsel %vm64, %v241, 0
  %v281 = vsel %vm64, %v242, 0
  %v284 = vsel %vm64, %v243, 0
  %v287 = vsel %vm64, %v244, 0
  %v290 = vsel %vm64, %v245, 0
  %v293 = vsel %vm64, %v246, 0
  %295 = vmatprep.subr.mxu0 0.0
  %296 = vmatpush1.msra.mxu0 0.0
  %297 = vmatprep.subr.mxu0 0.0
  %298 = vmatpush1.msra.mxu0 0.0
  %299 = vmatprep.subr.mxu0 0.0
  %300 = vmatpush1.msra.mxu0 0.0
  %301 = vmatprep.subr.mxu0 0.0
  %302 = vmatpush1.msra.mxu0 0.0
  %303 = vmatprep.subr.mxu0 0.0
  %304 = vmatpush1.msra.mxu0 0.0
  %305 = vmatprep.subr.mxu0 0.0
  %306 = vmatpush1.msra.mxu0 0.0
  %307 = vmatprep.subr.mxu0 0.0
  %308 = vmatpush1.msra.mxu0 0.0
  %309 = vmatprep.subr.mxu0 0.0
  %310 = vmatpush1.msra.mxu0 0.0
  %311 = vmatprep.subr.mxu0 0.0
  %312 = vmatpush1.msra.mxu0 %v55
  %313 = vmatprep.subr.mxu0 0.0
  %314 = vmatpush1.msra.mxu0 %v54
  %315 = vmatprep.subr.mxu0 0.0
  %316 = vmatpush1.msra.mxu0 %v53
  %317 = vmatprep.subr.mxu0 0.0
  %318 = vmatpush1.msra.mxu0 %v52
  %319 = vmatprep.subr.mxu0 0.0
  %320 = vmatpush1.msra.mxu0 %v51
  %321 = vmatprep.subr.mxu0 0.0
  %322 = vmatpush1.msra.mxu0 %v50
  %323 = vmatprep.subr.mxu0 0.0
  %324 = vmatpush1.msra.mxu0 %v49
  %325 = vmatprep.subr.mxu0 0.0
  %326 = vmatpush1.msra.mxu0 %v48
  %327 = vmatprep.subr.mxu0 0.0
  %328 = vmatpush2.msra.mxu0 0.0
  %329 = vmatprep.subr.mxu0 0.0
  %330 = vmatpush2.msra.mxu0 0.0
  %331 = vmatprep.subr.mxu0 0.0
  %332 = vmatpush2.msra.mxu0 0.0
  %333 = vmatprep.subr.mxu0 0.0
  %334 = vmatpush2.msra.mxu0 0.0
  %335 = vmatprep.subr.mxu0 0.0
  %336 = vmatpush2.msra.mxu0 0.0
  %337 = vmatprep.subr.mxu0 0.0
  %338 = vmatpush2.msra.mxu0 0.0
  %339 = vmatprep.subr.mxu0 0.0
  %340 = vmatpush2.msra.mxu0 0.0
  %341 = vmatprep.subr.mxu0 0.0
  %342 = vmatpush2.msra.mxu0 0.0
  %343 = vmatprep.subr.mxu0 0.0
  %344 = vmatpush2.msra.mxu0 0.0
  %345 = vmatprep.subr.mxu0 0.0
  %346 = vmatpush2.msra.mxu0 0.0
  %347 = vmatprep.subr.mxu0 0.0
  %348 = vmatpush2.msra.mxu0 0.0
  %349 = vmatprep.subr.mxu0 0.0
  %350 = vmatpush2.msra.mxu0 0.0
  %351 = vmatprep.subr.mxu0 0.0
  %352 = vmatpush2.msra.mxu0 0.0
  %353 = vmatprep.subr.mxu0 0.0
  %354 = vmatpush2.msra.mxu0 0.0
  %355 = vmatprep.subr.mxu0 0.0
  %356 = vmatpush2.msra.mxu0 0.0
  %357 = vmatprep.subr.mxu0 0.0
  %358 = vmatpush2.msra.mxu0 0.0
  %359 = vmatprep.mubr.f32.mxu0 0.0
  %360 = vmatmul.mubr.f32.gmra.mxu0 %v248
  %v361 = vpop.f32.mrf.mxu0
  %v362 = vadd.f32 0.0, %v361
  %v363 = vpop.f32.mrf.mxu0
  %364 = vmatprep.mubr.f32.mxu0 0.0
  %365 = vmatmul.mubr.f32.gmra.mxu0 %v251
  %v366 = vpop.f32.mrf.mxu0
  %v367 = vadd.f32 0.0, %v366
  %v368 = vpop.f32.mrf.mxu0
  %369 = vmatprep.mubr.f32.mxu0 0.0
  %370 = vmatmul.mubr.f32.gmra.mxu0 %v254
  %v371 = vpop.f32.mrf.mxu0
  %v372 = vadd.f32 0.0, %v371
  %v373 = vpop.f32.mrf.mxu0
  %374 = vmatprep.mubr.f32.mxu0 0.0
  %375 = vmatmul.mubr.f32.gmra.mxu0 %v257
  %v376 = vpop.f32.mrf.mxu0
  %v377 = vadd.f32 0.0, %v376
  %v378 = vpop.f32.mrf.mxu0
  %379 = vmatprep.mubr.f32.mxu0 0.0
  %380 = vmatmul.mubr.f32.gmra.mxu0 %v260
  %v381 = vpop.f32.mrf.mxu0
  %v382 = vadd.f32 0.0, %v381
  %v383 = vpop.f32.mrf.mxu0
  %384 = vmatprep.mubr.f32.mxu0 0.0
  %385 = vmatmul.mubr.f32.gmra.mxu0 %v263
  %v386 = vpop.f32.mrf.mxu0
  %v387 = vadd.f32 0.0, %v386
  %v388 = vpop.f32.mrf.mxu0
  %389 = vmatprep.mubr.f32.mxu0 0.0
  %390 = vmatmul.mubr.f32.gmra.mxu0 %v266
  %v391 = vpop.f32.mrf.mxu0
  %v392 = vadd.f32 0.0, %v391
  %v393 = vpop.f32.mrf.mxu0
  %394 = vmatprep.mubr.f32.mxu0 0.0
  %395 = vmatmul.mubr.f32.gmra.mxu0 %v269
  %v396 = vpop.f32.mrf.mxu0
  %v397 = vadd.f32 0.0, %v396
  %v398 = vpop.f32.mrf.mxu0
  %399 = vmatprep.mubr.f32.mxu0 0.0
  %400 = vmatmul.mubr.f32.gmra.mxu0 %v272
  %v401 = vpop.f32.mrf.mxu0
  %v402 = vadd.f32 0.0, %v401
  %v403 = vpop.f32.mrf.mxu0
  %404 = vmatprep.mubr.f32.mxu0 0.0
  %405 = vmatmul.mubr.f32.gmra.mxu0 %v275
  %v406 = vpop.f32.mrf.mxu0
  %v407 = vadd.f32 0.0, %v406
  %v408 = vpop.f32.mrf.mxu0
  %409 = vmatprep.mubr.f32.mxu0 0.0
  %410 = vmatmul.mubr.f32.gmra.mxu0 %v278
  %v411 = vpop.f32.mrf.mxu0
  %v412 = vadd.f32 0.0, %v411
  %v413 = vpop.f32.mrf.mxu0
  %414 = vmatprep.mubr.f32.mxu0 0.0
  %415 = vmatmul.mubr.f32.gmra.mxu0 %v281
  %v416 = vpop.f32.mrf.mxu0
  %v417 = vadd.f32 0.0, %v416
  %v418 = vpop.f32.mrf.mxu0
  %419 = vmatprep.mubr.f32.mxu0 0.0
  %420 = vmatmul.mubr.f32.gmra.mxu0 %v284
  %v421 = vpop.f32.mrf.mxu0
  %v422 = vadd.f32 0.0, %v421
  %v423 = vpop.f32.mrf.mxu0
  %424 = vmatprep.mubr.f32.mxu0 0.0
  %425 = vmatmul.mubr.f32.gmra.mxu0 %v287
  %v426 = vpop.f32.mrf.mxu0
  %v427 = vadd.f32 0.0, %v426
  %v428 = vpop.f32.mrf.mxu0
  %429 = vmatprep.mubr.f32.mxu0 0.0
  %430 = vmatmul.mubr.f32.gmra.mxu0 %v290
  %v431 = vpop.f32.mrf.mxu0
  %v432 = vadd.f32 0.0, %v431
  %v433 = vpop.f32.mrf.mxu0
  %434 = vmatprep.mubr.f32.mxu0 0.0
  %435 = vmatmul.mubr.f32.gmra.mxu0 %v293
  %v436 = vpop.f32.mrf.mxu0
  %v437 = vadd.f32 0.0, %v436
  %v438 = vpop.f32.mrf.mxu0
  %439 = vdwg.mxu0
  %v441 = vsel %vm64, %v215, 0
  %v444 = vsel %vm64, %v216, 0
  %v447 = vsel %vm64, %v217, 0
  %v450 = vsel %vm64, %v218, 0
  %v453 = vsel %vm64, %v219, 0
  %v456 = vsel %vm64, %v220, 0
  %v459 = vsel %vm64, %v221, 0
  %v462 = vsel %vm64, %v222, 0
  %v465 = vsel %vm64, %v223, 0
  %v468 = vsel %vm64, %v224, 0
  %v471 = vsel %vm64, %v225, 0
  %v474 = vsel %vm64, %v226, 0
  %v477 = vsel %vm64, %v227, 0
  %v480 = vsel %vm64, %v228, 0
  %v483 = vsel %vm64, %v229, 0
  %v486 = vsel %vm64, %v230, 0
  %488 = vmatprep.subr.mxu0 0.0
  %489 = vmatpush1.msra.mxu0 0.0
  %490 = vmatprep.subr.mxu0 0.0
  %491 = vmatpush1.msra.mxu0 0.0
  %492 = vmatprep.subr.mxu0 0.0
  %493 = vmatpush1.msra.mxu0 0.0
  %494 = vmatprep.subr.mxu0 0.0
  %495 = vmatpush1.msra.mxu0 0.0
  %496 = vmatprep.subr.mxu0 0.0
  %497 = vmatpush1.msra.mxu0 0.0
  %498 = vmatprep.subr.mxu0 0.0
  %499 = vmatpush1.msra.mxu0 0.0
  %500 = vmatprep.subr.mxu0 0.0
  %501 = vmatpush1.msra.mxu0 0.0
  %502 = vmatprep.subr.mxu0 0.0
  %503 = vmatpush1.msra.mxu0 0.0
  %504 = vmatprep.subr.mxu0 0.0
  %505 = vmatpush1.msra.mxu0 %v47
  %506 = vmatprep.subr.mxu0 0.0
  %507 = vmatpush1.msra.mxu0 %v46
  %508 = vmatprep.subr.mxu0 0.0
  %509 = vmatpush1.msra.mxu0 %v45
  %510 = vmatprep.subr.mxu0 0.0
  %511 = vmatpush1.msra.mxu0 %v44
  %512 = vmatprep.subr.mxu0 0.0
  %513 = vmatpush1.msra.mxu0 %v43
  %514 = vmatprep.subr.mxu0 0.0
  %515 = vmatpush1.msra.mxu0 %v42
  %516 = vmatprep.subr.mxu0 0.0
  %517 = vmatpush1.msra.mxu0 %v41
  %518 = vmatprep.subr.mxu0 0.0
  %519 = vmatpush1.msra.mxu0 %v40
  %520 = vmatprep.subr.mxu0 0.0
  %521 = vmatpush2.msra.mxu0 0.0
  %522 = vmatprep.subr.mxu0 0.0
  %523 = vmatpush2.msra.mxu0 0.0
  %524 = vmatprep.subr.mxu0 0.0
  %525 = vmatpush2.msra.mxu0 0.0
  %526 = vmatprep.subr.mxu0 0.0
  %527 = vmatpush2.msra.mxu0 0.0
  %528 = vmatprep.subr.mxu0 0.0
  %529 = vmatpush2.msra.mxu0 0.0
  %530 = vmatprep.subr.mxu0 0.0
  %531 = vmatpush2.msra.mxu0 0.0
  %532 = vmatprep.subr.mxu0 0.0
  %533 = vmatpush2.msra.mxu0 0.0
  %534 = vmatprep.subr.mxu0 0.0
  %535 = vmatpush2.msra.mxu0 0.0
  %536 = vmatprep.subr.mxu0 0.0
  %537 = vmatpush2.msra.mxu0 0.0
  %538 = vmatprep.subr.mxu0 0.0
  %539 = vmatpush2.msra.mxu0 0.0
  %540 = vmatprep.subr.mxu0 0.0
  %541 = vmatpush2.msra.mxu0 0.0
  %542 = vmatprep.subr.mxu0 0.0
  %543 = vmatpush2.msra.mxu0 0.0
  %544 = vmatprep.subr.mxu0 0.0
  %545 = vmatpush2.msra.mxu0 0.0
  %546 = vmatprep.subr.mxu0 0.0
  %547 = vmatpush2.msra.mxu0 0.0
  %548 = vmatprep.subr.mxu0 0.0
  %549 = vmatpush2.msra.mxu0 0.0
  %550 = vmatprep.subr.mxu0 0.0
  %551 = vmatpush2.msra.mxu0 0.0
  %552 = vmatprep.mubr.f32.mxu0 0.0
  %553 = vmatmul.mubr.f32.gmra.mxu0 %v441
  %v554 = vpop.f32.mrf.mxu0
  %v555 = vadd.f32 %v362, %v554
  %v556 = vpop.f32.mrf.mxu0
  %557 = vmatprep.mubr.f32.mxu0 0.0
  %558 = vmatmul.mubr.f32.gmra.mxu0 %v444
  %v559 = vpop.f32.mrf.mxu0
  %v560 = vadd.f32 %v367, %v559
  %v561 = vpop.f32.mrf.mxu0
  %562 = vmatprep.mubr.f32.mxu0 0.0
  %563 = vmatmul.mubr.f32.gmra.mxu0 %v447
  %v564 = vpop.f32.mrf.mxu0
  %v565 = vadd.f32 %v372, %v564
  %v566 = vpop.f32.mrf.mxu0
  %567 = vmatprep.mubr.f32.mxu0 0.0
  %568 = vmatmul.mubr.f32.gmra.mxu0 %v450
  %v569 = vpop.f32.mrf.mxu0
  %v570 = vadd.f32 %v377, %v569
  %v571 = vpop.f32.mrf.mxu0
  %572 = vmatprep.mubr.f32.mxu0 0.0
  %573 = vmatmul.mubr.f32.gmra.mxu0 %v453
  %v574 = vpop.f32.mrf.mxu0
  %v575 = vadd.f32 %v382, %v574
  %v576 = vpop.f32.mrf.mxu0
  %577 = vmatprep.mubr.f32.mxu0 0.0
  %578 = vmatmul.mubr.f32.gmra.mxu0 %v456
  %v579 = vpop.f32.mrf.mxu0
  %v580 = vadd.f32 %v387, %v579
  %v581 = vpop.f32.mrf.mxu0
  %582 = vmatprep.mubr.f32.mxu0 0.0
  %583 = vmatmul.mubr.f32.gmra.mxu0 %v459
  %v584 = vpop.f32.mrf.mxu0
  %v585 = vadd.f32 %v392, %v584
  %v586 = vpop.f32.mrf.mxu0
  %587 = vmatprep.mubr.f32.mxu0 0.0
  %588 = vmatmul.mubr.f32.gmra.mxu0 %v462
  %v589 = vpop.f32.mrf.mxu0
  %v590 = vadd.f32 %v397, %v589
  %v591 = vpop.f32.mrf.mxu0
  %592 = vmatprep.mubr.f32.mxu0 0.0
  %593 = vmatmul.mubr.f32.gmra.mxu0 %v465
  %v594 = vpop.f32.mrf.mxu0
  %v595 = vadd.f32 %v402, %v594
  %v596 = vpop.f32.mrf.mxu0
  %597 = vmatprep.mubr.f32.mxu0 0.0
  %598 = vmatmul.mubr.f32.gmra.mxu0 %v468
  %v599 = vpop.f32.mrf.mxu0
  %v600 = vadd.f32 %v407, %v599
  %v601 = vpop.f32.mrf.mxu0
  %602 = vmatprep.mubr.f32.mxu0 0.0
  %603 = vmatmul.mubr.f32.gmra.mxu0 %v471
  %v604 = vpop.f32.mrf.mxu0
  %v605 = vadd.f32 %v412, %v604
  %v606 = vpop.f32.mrf.mxu0
  %607 = vmatprep.mubr.f32.mxu0 0.0
  %608 = vmatmul.mubr.f32.gmra.mxu0 %v474
  %v609 = vpop.f32.mrf.mxu0
  %v610 = vadd.f32 %v417, %v609
  %v611 = vpop.f32.mrf.mxu0
  %612 = vmatprep.mubr.f32.mxu0 0.0
  %613 = vmatmul.mubr.f32.gmra.mxu0 %v477
  %v614 = vpop.f32.mrf.mxu0
  %v615 = vadd.f32 %v422, %v614
  %v616 = vpop.f32.mrf.mxu0
  %617 = vmatprep.mubr.f32.mxu0 0.0
  %618 = vmatmul.mubr.f32.gmra.mxu0 %v480
  %v619 = vpop.f32.mrf.mxu0
  %v620 = vadd.f32 %v427, %v619
  %v621 = vpop.f32.mrf.mxu0
  %622 = vmatprep.mubr.f32.mxu0 0.0
  %623 = vmatmul.mubr.f32.gmra.mxu0 %v483
  %v624 = vpop.f32.mrf.mxu0
  %v625 = vadd.f32 %v432, %v624
  %v626 = vpop.f32.mrf.mxu0
  %627 = vmatprep.mubr.f32.mxu0 0.0
  %628 = vmatmul.mubr.f32.gmra.mxu0 %v486
  %v629 = vpop.f32.mrf.mxu0
  %v630 = vadd.f32 %v437, %v629
  %v631 = vpop.f32.mrf.mxu0
  %632 = vdwg.mxu0
  %v633 = vld [vmem:[%s4] sm:$0xff]
  %v634 = vld [vmem:[%s4 + $0x8] sm:$0xff]
  %v635 = vld [vmem:[%s4 + $0x10] sm:$0xff]
  %v636 = vld [vmem:[%s4 + $0x18] sm:$0xff]
  %v637 = vld [vmem:[%s4 + $0x20] sm:$0xff]
  %v638 = vld [vmem:[%s4 + $0x28] sm:$0xff]
  %v639 = vld [vmem:[%s4 + $0x30] sm:$0xff]
  %v640 = vld [vmem:[%s4 + $0x38] sm:$0xff]
  %v641 = vld [vmem:[%s4 + $0x40] sm:$0xff]
  %v642 = vld [vmem:[%s4 + $0x48] sm:$0xff]
  %v643 = vld [vmem:[%s4 + $0x50] sm:$0xff]
  %v644 = vld [vmem:[%s4 + $0x58] sm:$0xff]
  %v645 = vld [vmem:[%s4 + $0x60] sm:$0xff]
  %v646 = vld [vmem:[%s4 + $0x68] sm:$0xff]
  %v647 = vld [vmem:[%s4 + $0x70] sm:$0xff]
  %v648 = vld [vmem:[%s4 + $0x78] sm:$0xff]
  %650 = vset.pattern.permute.xlu0 0
  %651 = vperm.xlu0 %650, %v633
  %v652 = vpop.permute.xlu0 %651
  %655 = vset.pattern.permute.xlu0 0
  %656 = vperm.xlu0 %655, %v634
  %v657 = vpop.permute.xlu0 %656
  %660 = vset.pattern.permute.xlu0 0
  %661 = vperm.xlu0 %660, %v635
  %v662 = vpop.permute.xlu0 %661
  %665 = vset.pattern.permute.xlu0 0
  %666 = vperm.xlu0 %665, %v636
  %v667 = vpop.permute.xlu0 %666
  %670 = vset.pattern.permute.xlu0 0
  %671 = vperm.xlu0 %670, %v637
  %v672 = vpop.permute.xlu0 %671
  %675 = vset.pattern.permute.xlu0 0
  %676 = vperm.xlu0 %675, %v638
  %v677 = vpop.permute.xlu0 %676
  %680 = vset.pattern.permute.xlu0 0
  %681 = vperm.xlu0 %680, %v639
  %v682 = vpop.permute.xlu0 %681
  %685 = vset.pattern.permute.xlu0 0
  %686 = vperm.xlu0 %685, %v640
  %v687 = vpop.permute.xlu0 %686
  %690 = vset.pattern.permute.xlu0 0
  %691 = vperm.xlu0 %690, %v641
  %v692 = vpop.permute.xlu0 %691
  %695 = vset.pattern.permute.xlu0 0
  %696 = vperm.xlu0 %695, %v642
  %v697 = vpop.permute.xlu0 %696
  %700 = vset.pattern.permute.xlu0 0
  %701 = vperm.xlu0 %700, %v643
  %v702 = vpop.permute.xlu0 %701
  %705 = vset.pattern.permute.xlu0 0
  %706 = vperm.xlu0 %705, %v644
  %v707 = vpop.permute.xlu0 %706
  %710 = vset.pattern.permute.xlu0 0
  %711 = vperm.xlu0 %710, %v645
  %v712 = vpop.permute.xlu0 %711
  %715 = vset.pattern.permute.xlu0 0
  %716 = vperm.xlu0 %715, %v646
  %v717 = vpop.permute.xlu0 %716
  %720 = vset.pattern.permute.xlu0 0
  %721 = vperm.xlu0 %720, %v647
  %v722 = vpop.permute.xlu0 %721
  %725 = vset.pattern.permute.xlu0 0
  %726 = vperm.xlu0 %725, %v648
  %v727 = vpop.permute.xlu0 %726
  %v729 = vmul.f32 %v652, %v214
  %v730 = vmul.f32 %v657, %v214
  %v731 = vmul.f32 %v662, %v214
  %v732 = vmul.f32 %v667, %v214
  %v733 = vmul.f32 %v672, %v214
  %v734 = vmul.f32 %v677, %v214
  %v735 = vmul.f32 %v682, %v214
  %v736 = vmul.f32 %v687, %v214
  %v737 = vmul.f32 %v692, %v214
  %v738 = vmul.f32 %v697, %v214
  %v739 = vmul.f32 %v702, %v214
  %v740 = vmul.f32 %v707, %v214
  %v741 = vmul.f32 %v712, %v214
  %v742 = vmul.f32 %v717, %v214
  %v743 = vmul.f32 %v722, %v214
  %v744 = vmul.f32 %v727, %v214
  %v745 = vadd.f32 %v555, %v729
  %v746 = vadd.f32 %v560, %v730
  %v747 = vadd.f32 %v565, %v731
  %v748 = vadd.f32 %v570, %v732
  %v749 = vadd.f32 %v575, %v733
  %v750 = vadd.f32 %v580, %v734
  %v751 = vadd.f32 %v585, %v735
  %v752 = vadd.f32 %v590, %v736
  %v753 = vadd.f32 %v595, %v737
  %v754 = vadd.f32 %v600, %v738
  %v755 = vadd.f32 %v605, %v739
  %v756 = vadd.f32 %v610, %v740
  %v757 = vadd.f32 %v615, %v741
  %v758 = vadd.f32 %v620, %v742
  %v759 = vadd.f32 %v625, %v743
  %v760 = vadd.f32 %v630, %v744
  %v761 = vld [vmem:[%s6] sm:$0xff]
  %v762 = vld [vmem:[%s6 + $0x8] sm:$0xff]
  %v763 = vld [vmem:[%s6 + $0x10] sm:$0xff]
  %v764 = vld [vmem:[%s6 + $0x18] sm:$0xff]
  %v765 = vld [vmem:[%s6 + $0x20] sm:$0xff]
  %v766 = vld [vmem:[%s6 + $0x28] sm:$0xff]
  %v767 = vld [vmem:[%s6 + $0x30] sm:$0xff]
  %v768 = vld [vmem:[%s6 + $0x38] sm:$0xff]
  %v769 = vld [vmem:[%s6 + $0x40] sm:$0xff]
  %v770 = vld [vmem:[%s6 + $0x48] sm:$0xff]
  %v771 = vld [vmem:[%s6 + $0x50] sm:$0xff]
  %v772 = vld [vmem:[%s6 + $0x58] sm:$0xff]
  %v773 = vld [vmem:[%s6 + $0x60] sm:$0xff]
  %v774 = vld [vmem:[%s6 + $0x68] sm:$0xff]
  %v775 = vld [vmem:[%s6 + $0x70] sm:$0xff]
  %v776 = vld [vmem:[%s6 + $0x78] sm:$0xff]
  %778 = vset.pattern.permute.xlu0 0
  %779 = vperm.xlu0 %778, %v761
  %v780 = vpop.permute.xlu0 %779
  %783 = vset.pattern.permute.xlu0 0
  %784 = vperm.xlu0 %783, %v762
  %v785 = vpop.permute.xlu0 %784
  %788 = vset.pattern.permute.xlu0 0
  %789 = vperm.xlu0 %788, %v763
  %v790 = vpop.permute.xlu0 %789
  %793 = vset.pattern.permute.xlu0 0
  %794 = vperm.xlu0 %793, %v764
  %v795 = vpop.permute.xlu0 %794
  %798 = vset.pattern.permute.xlu0 0
  %799 = vperm.xlu0 %798, %v765
  %v800 = vpop.permute.xlu0 %799
  %803 = vset.pattern.permute.xlu0 0
  %804 = vperm.xlu0 %803, %v766
  %v805 = vpop.permute.xlu0 %804
  %808 = vset.pattern.permute.xlu0 0
  %809 = vperm.xlu0 %808, %v767
  %v810 = vpop.permute.xlu0 %809
  %813 = vset.pattern.permute.xlu0 0
  %814 = vperm.xlu0 %813, %v768
  %v815 = vpop.permute.xlu0 %814
  %818 = vset.pattern.permute.xlu0 0
  %819 = vperm.xlu0 %818, %v769
  %v820 = vpop.permute.xlu0 %819
  %823 = vset.pattern.permute.xlu0 0
  %824 = vperm.xlu0 %823, %v770
  %v825 = vpop.permute.xlu0 %824
  %828 = vset.pattern.permute.xlu0 0
  %829 = vperm.xlu0 %828, %v771
  %v830 = vpop.permute.xlu0 %829
  %833 = vset.pattern.permute.xlu0 0
  %834 = vperm.xlu0 %833, %v772
  %v835 = vpop.permute.xlu0 %834
  %838 = vset.pattern.permute.xlu0 0
  %839 = vperm.xlu0 %838, %v773
  %v840 = vpop.permute.xlu0 %839
  %843 = vset.pattern.permute.xlu0 0
  %844 = vperm.xlu0 %843, %v774
  %v845 = vpop.permute.xlu0 %844
  %848 = vset.pattern.permute.xlu0 0
  %849 = vperm.xlu0 %848, %v775
  %v850 = vpop.permute.xlu0 %849
  %853 = vset.pattern.permute.xlu0 0
  %854 = vperm.xlu0 %853, %v776
  %v855 = vpop.permute.xlu0 %854
  %v857 = vadd.f32 %v745, %v780
  %v858 = vadd.f32 %v746, %v785
  %v859 = vadd.f32 %v747, %v790
  %v860 = vadd.f32 %v748, %v795
  %v861 = vadd.f32 %v749, %v800
  %v862 = vadd.f32 %v750, %v805
  %v863 = vadd.f32 %v751, %v810
  %v864 = vadd.f32 %v752, %v815
  %v865 = vadd.f32 %v753, %v820
  %v866 = vadd.f32 %v754, %v825
  %v867 = vadd.f32 %v755, %v830
  %v868 = vadd.f32 %v756, %v835
  %v869 = vadd.f32 %v757, %v840
  %v870 = vadd.f32 %v758, %v845
  %v871 = vadd.f32 %v759, %v850
  %v872 = vadd.f32 %v760, %v855
  %v873 = vmax.f32 %v857, 0.0
  %v874 = vmax.f32 %v858, 0.0
  %v875 = vmax.f32 %v859, 0.0
  %v876 = vmax.f32 %v860, 0.0
  %v877 = vmax.f32 %v861, 0.0
  %v878 = vmax.f32 %v862, 0.0
  %v879 = vmax.f32 %v863, 0.0
  %v880 = vmax.f32 %v864, 0.0
  %v881 = vmax.f32 %v865, 0.0
  %v882 = vmax.f32 %v866, 0.0
  %v883 = vmax.f32 %v867, 0.0
  %v884 = vmax.f32 %v868, 0.0
  %v885 = vmax.f32 %v869, 0.0
  %v886 = vmax.f32 %v870, 0.0
  %v887 = vmax.f32 %v871, 0.0
  %v888 = vmax.f32 %v872, 0.0
  %v889 = vld [vmem:[%s7] sm:$0xff]
  %v890 = vld [vmem:[%s7 + $0x8] sm:$0xff]
  %v891 = vld [vmem:[%s7 + $0x10] sm:$0xff]
  %v892 = vld [vmem:[%s7 + $0x18] sm:$0xff]
  %v893 = vld [vmem:[%s7 + $0x20] sm:$0xff]
  %v894 = vld [vmem:[%s7 + $0x28] sm:$0xff]
  %v895 = vld [vmem:[%s7 + $0x30] sm:$0xff]
  %v896 = vld [vmem:[%s7 + $0x38] sm:$0xff]
  %v897 = vld [vmem:[%s7 + $0x40] sm:$0xff]
  %v898 = vld [vmem:[%s7 + $0x48] sm:$0xff]
  %v899 = vld [vmem:[%s7 + $0x50] sm:$0xff]
  %v900 = vld [vmem:[%s7 + $0x58] sm:$0xff]
  %v901 = vld [vmem:[%s7 + $0x60] sm:$0xff]
  %v902 = vld [vmem:[%s7 + $0x68] sm:$0xff]
  %v903 = vld [vmem:[%s7 + $0x70] sm:$0xff]
  %v904 = vld [vmem:[%s7 + $0x78] sm:$0xff]
  %906 = vset.pattern.permute.xlu0 0
  %907 = vperm.xlu0 %906, %v889
  %v908 = vpop.permute.xlu0 %907
  %911 = vset.pattern.permute.xlu0 0
  %912 = vperm.xlu0 %911, %v890
  %v913 = vpop.permute.xlu0 %912
  %916 = vset.pattern.permute.xlu0 0
  %917 = vperm.xlu0 %916, %v891
  %v918 = vpop.permute.xlu0 %917
  %921 = vset.pattern.permute.xlu0 0
  %922 = vperm.xlu0 %921, %v892
  %v923 = vpop.permute.xlu0 %922
  %926 = vset.pattern.permute.xlu0 0
  %927 = vperm.xlu0 %926, %v893
  %v928 = vpop.permute.xlu0 %927
  %931 = vset.pattern.permute.xlu0 0
  %932 = vperm.xlu0 %931, %v894
  %v933 = vpop.permute.xlu0 %932
  %936 = vset.pattern.permute.xlu0 0
  %937 = vperm.xlu0 %936, %v895
  %v938 = vpop.permute.xlu0 %937
  %941 = vset.pattern.permute.xlu0 0
  %942 = vperm.xlu0 %941, %v896
  %v943 = vpop.permute.xlu0 %942
  %946 = vset.pattern.permute.xlu0 0
  %947 = vperm.xlu0 %946, %v897
  %v948 = vpop.permute.xlu0 %947
  %951 = vset.pattern.permute.xlu0 0
  %952 = vperm.xlu0 %951, %v898
  %v953 = vpop.permute.xlu0 %952
  %956 = vset.pattern.permute.xlu0 0
  %957 = vperm.xlu0 %956, %v899
  %v958 = vpop.permute.xlu0 %957
  %961 = vset.pattern.permute.xlu0 0
  %962 = vperm.xlu0 %961, %v900
  %v963 = vpop.permute.xlu0 %962
  %966 = vset.pattern.permute.xlu0 0
  %967 = vperm.xlu0 %966, %v901
  %v968 = vpop.permute.xlu0 %967
  %971 = vset.pattern.permute.xlu0 0
  %972 = vperm.xlu0 %971, %v902
  %v973 = vpop.permute.xlu0 %972
  %976 = vset.pattern.permute.xlu0 0
  %977 = vperm.xlu0 %976, %v903
  %v978 = vpop.permute.xlu0 %977
  %981 = vset.pattern.permute.xlu0 0
  %982 = vperm.xlu0 %981, %v904
  %v983 = vpop.permute.xlu0 %982
  %v985 = vmul.f32 %v873, %v908
  %v986 = vmul.f32 %v874, %v913
  %v987 = vmul.f32 %v875, %v918
  %v988 = vmul.f32 %v876, %v923
  %v989 = vmul.f32 %v877, %v928
  %v990 = vmul.f32 %v878, %v933
  %v991 = vmul.f32 %v879, %v938
  %v992 = vmul.f32 %v880, %v943
  %v993 = vmul.f32 %v881, %v948
  %v994 = vmul.f32 %v882, %v953
  %v995 = vmul.f32 %v883, %v958
  %v996 = vmul.f32 %v884, %v963
  %v997 = vmul.f32 %v885, %v968
  %v998 = vmul.f32 %v886, %v973
  %v999 = vmul.f32 %v887, %v978
  %v1000 = vmul.f32 %v888, %v983
  %v1001 = vld [vmem:[%s8] sm:$0xff]
  %v1002 = vld [vmem:[%s8 + $0x8] sm:$0xff]
  %v1003 = vld [vmem:[%s8 + $0x10] sm:$0xff]
  %v1004 = vld [vmem:[%s8 + $0x18] sm:$0xff]
  %v1005 = vld [vmem:[%s8 + $0x20] sm:$0xff]
  %v1006 = vld [vmem:[%s8 + $0x28] sm:$0xff]
  %v1007 = vld [vmem:[%s8 + $0x30] sm:$0xff]
  %v1008 = vld [vmem:[%s8 + $0x38] sm:$0xff]
  %v1009 = vld [vmem:[%s8 + $0x40] sm:$0xff]
  %v1010 = vld [vmem:[%s8 + $0x48] sm:$0xff]
  %v1011 = vld [vmem:[%s8 + $0x50] sm:$0xff]
  %v1012 = vld [vmem:[%s8 + $0x58] sm:$0xff]
  %v1013 = vld [vmem:[%s8 + $0x60] sm:$0xff]
  %v1014 = vld [vmem:[%s8 + $0x68] sm:$0xff]
  %v1015 = vld [vmem:[%s8 + $0x70] sm:$0xff]
  %v1016 = vld [vmem:[%s8 + $0x78] sm:$0xff]
  %1018 = vset.pattern.permute.xlu0 0
  %1019 = vperm.xlu0 %1018, %v1001
  %v1020 = vpop.permute.xlu0 %1019
  %1023 = vset.pattern.permute.xlu0 0
  %1024 = vperm.xlu0 %1023, %v1002
  %v1025 = vpop.permute.xlu0 %1024
  %1028 = vset.pattern.permute.xlu0 0
  %1029 = vperm.xlu0 %1028, %v1003
  %v1030 = vpop.permute.xlu0 %1029
  %1033 = vset.pattern.permute.xlu0 0
  %1034 = vperm.xlu0 %1033, %v1004
  %v1035 = vpop.permute.xlu0 %1034
  %1038 = vset.pattern.permute.xlu0 0
  %1039 = vperm.xlu0 %1038, %v1005
  %v1040 = vpop.permute.xlu0 %1039
  %1043 = vset.pattern.permute.xlu0 0
  %1044 = vperm.xlu0 %1043, %v1006
  %v1045 = vpop.permute.xlu0 %1044
  %1048 = vset.pattern.permute.xlu0 0
  %1049 = vperm.xlu0 %1048, %v1007
  %v1050 = vpop.permute.xlu0 %1049
  %1053 = vset.pattern.permute.xlu0 0
  %1054 = vperm.xlu0 %1053, %v1008
  %v1055 = vpop.permute.xlu0 %1054
  %1058 = vset.pattern.permute.xlu0 0
  %1059 = vperm.xlu0 %1058, %v1009
  %v1060 = vpop.permute.xlu0 %1059
  %1063 = vset.pattern.permute.xlu0 0
  %1064 = vperm.xlu0 %1063, %v1010
  %v1065 = vpop.permute.xlu0 %1064
  %1068 = vset.pattern.permute.xlu0 0
  %1069 = vperm.xlu0 %1068, %v1011
  %v1070 = vpop.permute.xlu0 %1069
  %1073 = vset.pattern.permute.xlu0 0
  %1074 = vperm.xlu0 %1073, %v1012
  %v1075 = vpop.permute.xlu0 %1074
  %1078 = vset.pattern.permute.xlu0 0
  %1079 = vperm.xlu0 %1078, %v1013
  %v1080 = vpop.permute.xlu0 %1079
  %1083 = vset.pattern.permute.xlu0 0
  %1084 = vperm.xlu0 %1083, %v1014
  %v1085 = vpop.permute.xlu0 %1084
  %1088 = vset.pattern.permute.xlu0 0
  %1089 = vperm.xlu0 %1088, %v1015
  %v1090 = vpop.permute.xlu0 %1089
  %1093 = vset.pattern.permute.xlu0 0
  %1094 = vperm.xlu0 %1093, %v1016
  %v1095 = vpop.permute.xlu0 %1094
  %v1097 = vadd.f32 %v985, %v1020
  %v1098 = vadd.f32 %v986, %v1025
  %v1099 = vadd.f32 %v987, %v1030
  %v1100 = vadd.f32 %v988, %v1035
  %v1101 = vadd.f32 %v989, %v1040
  %v1102 = vadd.f32 %v990, %v1045
  %v1103 = vadd.f32 %v991, %v1050
  %v1104 = vadd.f32 %v992, %v1055
  %v1105 = vadd.f32 %v993, %v1060
  %v1106 = vadd.f32 %v994, %v1065
  %v1107 = vadd.f32 %v995, %v1070
  %v1108 = vadd.f32 %v996, %v1075
  %v1109 = vadd.f32 %v997, %v1080
  %v1110 = vadd.f32 %v998, %v1085
  %v1111 = vadd.f32 %v999, %v1090
  %v1112 = vadd.f32 %v1000, %v1095
  %v1113 = vld [vmem:[%s9] sm:$0x1]
  %v1114 = vld [vmem:[#allocation2] sm:$0x1]
  %1116 = vset.pattern.permute.xlu0 0
  %1117 = vperm.xlu0 %1116, %v1114
  %v1118 = vpop.permute.xlu0 %1117
  %v1120 = vlaneseq
  %v1121 = vshrl.u32 %v1120, 7
  %v1122 = vsub.s32 0, %v1121
  %v1123 = vrot.slane %v1118, %v1122
  %1124 = vmatprep.subr.mxu0 0.0
  %1125 = vmatpush1.msra.mxu0 %v1112
  %1126 = vmatprep.subr.mxu0 0.0
  %1127 = vmatpush1.msra.mxu0 %v1111
  %1128 = vmatprep.subr.mxu0 0.0
  %1129 = vmatpush1.msra.mxu0 %v1110
  %1130 = vmatprep.subr.mxu0 0.0
  %1131 = vmatpush1.msra.mxu0 %v1109
  %1132 = vmatprep.subr.mxu0 0.0
  %1133 = vmatpush1.msra.mxu0 %v1108
  %1134 = vmatprep.subr.mxu0 0.0
  %1135 = vmatpush1.msra.mxu0 %v1107
  %1136 = vmatprep.subr.mxu0 0.0
  %1137 = vmatpush1.msra.mxu0 %v1106
  %1138 = vmatprep.subr.mxu0 0.0
  %1139 = vmatpush1.msra.mxu0 %v1105
  %1140 = vmatprep.subr.mxu0 0.0
  %1141 = vmatpush1.msra.mxu0 %v1104
  %1142 = vmatprep.subr.mxu0 0.0
  %1143 = vmatpush1.msra.mxu0 %v1103
  %1144 = vmatprep.subr.mxu0 0.0
  %1145 = vmatpush1.msra.mxu0 %v1102
  %1146 = vmatprep.subr.mxu0 0.0
  %1147 = vmatpush1.msra.mxu0 %v1101
  %1148 = vmatprep.subr.mxu0 0.0
  %1149 = vmatpush1.msra.mxu0 %v1100
  %1150 = vmatprep.subr.mxu0 0.0
  %1151 = vmatpush1.msra.mxu0 %v1099
  %1152 = vmatprep.subr.mxu0 0.0
  %1153 = vmatpush1.msra.mxu0 %v1098
  %1154 = vmatprep.subr.mxu0 0.0
  %1155 = vmatpush1.msra.mxu0 %v1097
  %1156 = vmatprep.subr.mxu0 0.0
  %1157 = vmatpush2.msra.mxu0 0.0
  %1158 = vmatprep.subr.mxu0 0.0
  %1159 = vmatpush2.msra.mxu0 0.0
  %1160 = vmatprep.subr.mxu0 0.0
  %1161 = vmatpush2.msra.mxu0 0.0
  %1162 = vmatprep.subr.mxu0 0.0
  %1163 = vmatpush2.msra.mxu0 0.0
  %1164 = vmatprep.subr.mxu0 0.0
  %1165 = vmatpush2.msra.mxu0 0.0
  %1166 = vmatprep.subr.mxu0 0.0
  %1167 = vmatpush2.msra.mxu0 0.0
  %1168 = vmatprep.subr.mxu0 0.0
  %1169 = vmatpush2.msra.mxu0 0.0
  %1170 = vmatprep.subr.mxu0 0.0
  %1171 = vmatpush2.msra.mxu0 0.0
  %1172 = vmatprep.subr.mxu0 0.0
  %1173 = vmatpush2.msra.mxu0 0.0
  %1174 = vmatprep.subr.mxu0 0.0
  %1175 = vmatpush2.msra.mxu0 0.0
  %1176 = vmatprep.subr.mxu0 0.0
  %1177 = vmatpush2.msra.mxu0 0.0
  %1178 = vmatprep.subr.mxu0 0.0
  %1179 = vmatpush2.msra.mxu0 0.0
  %1180 = vmatprep.subr.mxu0 0.0
  %1181 = vmatpush2.msra.mxu0 0.0
  %1182 = vmatprep.subr.mxu0 0.0
  %1183 = vmatpush2.msra.mxu0 0.0
  %1184 = vmatprep.subr.mxu0 0.0
  %1185 = vmatpush2.msra.mxu0 0.0
  %1186 = vmatprep.subr.mxu0 0.0
  %1187 = vmatpush2.msra.mxu0 0.0
  %1188 = vmatprep.mubr.f32.mxu0 0.0
  %1189 = vmatmul.mubr.f32.gmra.mxu0 %v1113
  %v1190 = vpop.f32.mrf.mxu0
  %v1191 = vadd.f32 %v1123, %v1190
  %v1192 = vpop.f32.mrf.mxu0
  %1193 = vdwg.mxu0
  %v1194 = vxor.u32 %v1191, 2147483648
  %v1195 = vmul.f32 %v1194, 1.442695
  %v1196 = vpow.pop %v1195
  %v1197 = vadd.f32 %v1196, 1.0
  %v1198 = vrcp.pop %v1197
  %v1199 = vmul.f32 1.0, %v1198
  %1200 = vst [vmem:[%s11] sm:$0x1] %v1199
  // Predicated region
  $region46: #{_unreferenced_metric.3} parent=0 // pred_check
    _
  $region47: #{_unreferenced_metric.3} parent=0 // pred_check_branch
    %1202 = sbr.rel (0) target = $region49
  $region48: #{_unreferenced_metric.3} parent=0 // pred_region
    _
  $region49: #{_unreferenced_metric.3} parent=0 // pred_fallthru
    _
  // Predicated region
  $region50: #{_unreferenced_metric.3} parent=0 // pred_check
    _
  $region51: #{_unreferenced_metric.3} parent=0 // pred_check_branch
    %1204 = sbr.rel (0) target = $region53
  $region52: #{_unreferenced_metric.3} parent=0 // pred_region
    _
  $region53: #{_unreferenced_metric.3} parent=0 // pred_fallthru
    _

// kernel: _unreferenced_metric.2
$region0: #{_unreferenced_metric.2}
  #allocation0 [shape = 'u32[]', space=smem, size = 0x4, offset = 0x4, fixed_abs, tag = 'smem constant byte address 0x4 - core index']
  #allocation1 [shape = 'u32[144,128]{1,0:T(1,128)}', space=vmem, size = 0x12000, scoped, tag = 'internal scratch']
  %s0 = inlined_call_operand.vmem [shape: bf16[2,8,33,128], index: 0, kind: input, shape index: {}]
  %s1 = inlined_call_operand.vmem [shape: s32[2,1,128], index: 1, kind: input, shape index: {}]
  %s2 = inlined_call_operand.vmem [shape: bf16[2,256,33], index: 2, kind: input, shape index: {}]
  %s3 = inlined_call_operand.vmem [shape: bf16[2,256,32], index: 3, kind: input, shape index: {}]
  %s4 = inlined_call_operand.vmem [shape: f32[2,64,128], index: 4, kind: output, shape index: {}]
  %s5 = sld [smem:[#allocation0]]
  $region49: #{_unreferenced_metric.2} parent=0
    _
  %s7 = ssub.s32 1, %s5
  %s8 = scalar_select 0, %s7, %s5
  loop: start=0, step=1, limit=4
  $region2: #{_unreferenced_metric.2} parent=0 // loop_pre_header
    _
  $region3: #{_unreferenced_metric.2} parent=0 // loop_header
    %s10 = sphi 0, %s14
    %p11 = scmp.ge.s32.totalorder %s10, 4
    %s17 = sphi 0, %s29
    %s18 = sphi 0, %s25
    %s19 = sphi 0, %s17
    %s20 = sphi 0, %s18
    %s21 = sphi 0, %s19
    %s22 = sphi 0, %s20
    %s34 = sphi 0, %s36
    %s37 = sphi 0, %s34
    %s38 = sphi 0, %s37
    %s54 = sphi 0, %s38
    %s62 = sphi 0, %s64
    %s65 = sphi 0, %s62
    %s66 = sphi 0, %s65
    %s82 = sphi 0, %s66
    %s88 = sphi 0, %s90
    %s91 = sphi 0, %s88
    %s92 = sphi 0, %s91
    %s108 = sphi 0, %s92
    %s114 = sphi 0, %s116
    %s117 = sphi 0, %s114
    %s118 = sphi 0, %s117
    %s134 = sphi 0, %s118
    %s142 = sphi 0, %s144
    %s145 = sphi 0, %s142
    %s146 = sphi 0, %s145
    %s162 = sphi 0, %s146
  $region4: #{_unreferenced_metric.2} parent=0 // loop_header_branch
    %13 = sbr.rel (%p11) target = $region8
  $region5: #{_unreferenced_metric.2} parent=0 // loop_body
    %s15 = ssub.s32 %s10, 1
    %s16 = ssub.s32 %s10, 2
    %s23 = sadd.s32 1, %s18
    %p24 = scmp.ge.s32.totalorder %s23, 1
    %s25 = scalar_select %p24, 0, %s23
    %s26 = sadd.s32 1, %s17
    %s27 = scalar_select %p24, %s26, %s17
    %p28 = scmp.ge.s32.totalorder %s27, 2
    %s29 = scalar_select %p28, 0, %s27
    %s30 = ssub.s32 %s17, %s29
    %s31 = ssub.s32 %s18, %s25
    %s32 = sor.u32 %s30, %s31
    %p33 = scmp.eq.s32.totalorder %s32, 0
    %s35 = sadd.s32 %s34, 1
    %s36 = scalar_select %p33, %s34, %s35
    %p39 = pneg %p33
    %p40 = scmp.eq.s32.totalorder %s10, 1
    %p41 = por %p39, %p40
    %p42 = scmp.ne.s32.totalorder %s34, %s37
    %p43 = scmp.eq.s32.totalorder %s10, 0
    %p44 = por %p42, %p43
    %p45 = scmp.ne.s32.totalorder %s34, %s37
    %p46 = scmp.eq.s32.totalorder %s15, 1
    %p47 = por %p45, %p46
    %p48 = scmp.ne.s32.totalorder %s37, %s38
    %p49 = scmp.eq.s32.totalorder %s15, 0
    %p50 = por %p48, %p49
    %p51 = scmp.ne.s32.totalorder %s37, %s38
    %p52 = scmp.eq.s32.totalorder %s16, 1
    %p53 = por %p51, %p52
    %p55 = scmp.ne.s32.totalorder %s38, %s54
    %p56 = scmp.eq.s32.totalorder %s16, 0
    %p57 = por %p55, %p56
    %s58 = ssub.s32 %s17, %s29
    %s59 = ssub.s32 %s18, %s25
    %s60 = sor.u32 %s58, %s59
    %p61 = scmp.eq.s32.totalorder %s60, 0
    %s63 = sadd.s32 %s62, 1
    %s64 = scalar_select %p61, %s62, %s63
    %p67 = pneg %p61
    %p68 = scmp.eq.s32.totalorder %s10, 1
    %p69 = por %p67, %p68
    %p70 = scmp.ne.s32.totalorder %s62, %s65
    %p71 = scmp.eq.s32.totalorder %s10, 0
    %p72 = por %p70, %p71
    %p73 = scmp.ne.s32.totalorder %s62, %s65
    %p74 = scmp.eq.s32.totalorder %s15, 1
    %p75 = por %p73, %p74
    %p76 = scmp.ne.s32.totalorder %s65, %s66
    %p77 = scmp.eq.s32.totalorder %s15, 0
    %p78 = por %p76, %p77
    %p79 = scmp.ne.s32.totalorder %s65, %s66
    %p80 = scmp.eq.s32.totalorder %s16, 1
    %p81 = por %p79, %p80
    %p83 = scmp.ne.s32.totalorder %s66, %s82
    %p84 = scmp.eq.s32.totalorder %s16, 0
    %p85 = por %p83, %p84
    %s86 = ssub.s32 %s17, %s29
    %p87 = scmp.eq.s32.totalorder %s86, 0
    %s89 = sadd.s32 %s88, 1
    %s90 = scalar_select %p87, %s88, %s89
    %p93 = pneg %p87
    %p94 = scmp.eq.s32.totalorder %s10, 1
    %p95 = por %p93, %p94
    %p96 = scmp.ne.s32.totalorder %s88, %s91
    %p97 = scmp.eq.s32.totalorder %s10, 0
    %p98 = por %p96, %p97
    %p99 = scmp.ne.s32.totalorder %s88, %s91
    %p100 = scmp.eq.s32.totalorder %s15, 1
    %p101 = por %p99, %p100
    %p102 = scmp.ne.s32.totalorder %s91, %s92
    %p103 = scmp.eq.s32.totalorder %s15, 0
    %p104 = por %p102, %p103
    %p105 = scmp.ne.s32.totalorder %s91, %s92
    %p106 = scmp.eq.s32.totalorder %s16, 1
    %p107 = por %p105, %p106
    %p109 = scmp.ne.s32.totalorder %s92, %s108
    %p110 = scmp.eq.s32.totalorder %s16, 0
    %p111 = por %p109, %p110
    %s112 = ssub.s32 %s17, %s29
    %p113 = scmp.eq.s32.totalorder %s112, 0
    %s115 = sadd.s32 %s114, 1
    %s116 = scalar_select %p113, %s114, %s115
    %p119 = pneg %p113
    %p120 = scmp.eq.s32.totalorder %s10, 1
    %p121 = por %p119, %p120
    %p122 = scmp.ne.s32.totalorder %s114, %s117
    %p123 = scmp.eq.s32.totalorder %s10, 0
    %p124 = por %p122, %p123
    %p125 = scmp.ne.s32.totalorder %s114, %s117
    %p126 = scmp.eq.s32.totalorder %s15, 1
    %p127 = por %p125, %p126
    %p128 = scmp.ne.s32.totalorder %s117, %s118
    %p129 = scmp.eq.s32.totalorder %s15, 0
    %p130 = por %p128, %p129
    %p131 = scmp.ne.s32.totalorder %s117, %s118
    %p132 = scmp.eq.s32.totalorder %s16, 1
    %p133 = por %p131, %p132
    %p135 = scmp.ne.s32.totalorder %s118, %s134
    %p136 = scmp.eq.s32.totalorder %s16, 0
    %p137 = por %p135, %p136
    %s138 = ssub.s32 %s17, %s29
    %s139 = ssub.s32 %s18, %s25
    %s140 = sor.u32 %s138, %s139
    %p141 = scmp.eq.s32.totalorder %s140, 0
    %s143 = sadd.s32 %s142, 1
    %s144 = scalar_select %p141, %s142, %s143
    %p147 = pneg %p141
    %p148 = scmp.eq.s32.totalorder %s10, 1
    %p149 = por %p147, %p148
    %p150 = scmp.ne.s32.totalorder %s142, %s145
    %p151 = scmp.eq.s32.totalorder %s10, 0
    %p152 = por %p150, %p151
    %p153 = scmp.ne.s32.totalorder %s142, %s145
    %p154 = scmp.eq.s32.totalorder %s15, 1
    %p155 = por %p153, %p154
    %p156 = scmp.ne.s32.totalorder %s145, %s146
    %p157 = scmp.eq.s32.totalorder %s15, 0
    %p158 = por %p156, %p157
    %p159 = scmp.ne.s32.totalorder %s145, %s146
    %p160 = scmp.eq.s32.totalorder %s16, 1
    %p161 = por %p159, %p160
    %p163 = scmp.ne.s32.totalorder %s146, %s162
    %p164 = scmp.eq.s32.totalorder %s16, 0
    %p165 = por %p163, %p164
    %p166 = scmp.le.s32.totalorder 1, %s10
    %p167 = scmp.lt.s32.totalorder %s10, 3
    %p168 = pnand %p166, %p167
    %p169 = pneg %p168
    // Predicated region
    $region9: #{_unreferenced_metric.2} parent=5 // pred_check
      _
    $region10: #{_unreferenced_metric.2} parent=5 // pred_check_branch
      %171 = sbr.rel (%p168) target = $region12
    $region11: #{_unreferenced_metric.2} parent=5 // pred_region
      %s172 = ssub.s32 %s10, 1
    $region12: #{_unreferenced_metric.2} parent=5 // pred_fallthru
      _
    %p173 = scmp.lt.s32.totalorder %s10, 2
    // Predicated region
    $region13: #{_unreferenced_metric.2} parent=5 // pred_check
      %p174 = pneg %p173
    $region14: #{_unreferenced_metric.2} parent=5 // pred_check_branch
      %176 = sbr.rel (%p174) target = $region16
    $region15: #{_unreferenced_metric.2} parent=5 // pred_region
      // Predicated region
      $region17: #{_unreferenced_metric.2} parent=15 // pred_check
        %p177 = pneg %p44
      $region18: #{_unreferenced_metric.2} parent=15 // pred_check_branch
        %179 = sbr.rel (%p177) target = $region20
      $region19: #{_unreferenced_metric.2} parent=15 // pred_region
        %p180 = scmp.lt.s32.totalorder %s17, 1
        %s181 = scalar_select %p180, %s17, 1
        %p182 = scmp.lt.s32.totalorder %s18, 0
        %s183 = scalar_select %p182, %s18, 0
        %s184 = smul.addr %s181, 40
        %s185 = sadd.s32 %s183, %s184
        %s186 = smul.addr %s185, 4
        %s187 = scalar_lea.vmem %s0, %s186
      $region20: #{_unreferenced_metric.2} parent=15 // pred_fallthru
        _
      // Predicated region
      $region21: #{_unreferenced_metric.2} parent=15 // pred_check
        %p188 = pneg %p72
      $region22: #{_unreferenced_metric.2} parent=15 // pred_check_branch
        %190 = sbr.rel (%p188) target = $region24
      $region23: #{_unreferenced_metric.2} parent=15 // pred_region
        %p191 = scmp.lt.s32.totalorder %s17, 1
        %s192 = scalar_select %p191, %s17, 1
        %p193 = scmp.lt.s32.totalorder %s18, 0
        %s194 = scalar_select %p193, %s18, 0
        %s195 = sadd.s32 %s194, %s192
        %s196 = scalar_lea.vmem %s1, %s195
      $region24: #{_unreferenced_metric.2} parent=15 // pred_fallthru
        _
      // Predicated region
      $region25: #{_unreferenced_metric.2} parent=15 // pred_check
        %p197 = pneg %p98
      $region26: #{_unreferenced_metric.2} parent=15 // pred_check_branch
        %199 = sbr.rel (%p197) target = $region28
      $region27: #{_unreferenced_metric.2} parent=15 // pred_region
        %p200 = scmp.lt.s32.totalorder %s17, 1
        %s201 = scalar_select %p200, %s17, 1
        %s202 = smul.addr %s201, 32
        %s203 = smul.addr %s202, 4
        %s204 = scalar_lea.vmem %s2, %s203
      $region28: #{_unreferenced_metric.2} parent=15 // pred_fallthru
        _
      // Predicated region
      $region29: #{_unreferenced_metric.2} parent=15 // pred_check
        %p205 = pneg %p124
      $region30: #{_unreferenced_metric.2} parent=15 // pred_check_branch
        %207 = sbr.rel (%p205) target = $region32
      $region31: #{_unreferenced_metric.2} parent=15 // pred_region
        %p208 = scmp.lt.s32.totalorder %s17, 1
        %s209 = scalar_select %p208, %s17, 1
        %s210 = smul.addr %s209, 32
        %s211 = smul.addr %s210, 4
        %s212 = scalar_lea.vmem %s3, %s211
      $region32: #{_unreferenced_metric.2} parent=15 // pred_fallthru
        _
    $region16: #{_unreferenced_metric.2} parent=5 // pred_fallthru
      _
    %p213 = scmp.le.s32.totalorder 1, %s10
    %p214 = scmp.lt.s32.totalorder %s10, 3
    %p215 = pnand %p213, %p214
    %p216 = pneg %p215
    // Predicated region
    $region33: #{_unreferenced_metric.2} parent=5 // pred_check
      _
    $region34: #{_unreferenced_metric.2} parent=5 // pred_check_branch
      %218 = sbr.rel (%p215) target = $region36
    $region35: #{_unreferenced_metric.2} parent=5 // pred_region
      %s219 = ssub.s32 %s10, 1
      %p220 = scmp.lt.s32.totalorder %s19, 1
      %s221 = scalar_select %p220, %s19, 1
      %p222 = scmp.lt.s32.totalorder %s20, 0
      %s223 = scalar_select %p222, %s20, 0
      %s224 = smul.addr %s221, 40
      %s225 = sadd.s32 %s223, %s224
      %s226 = smul.addr %s225, 4
      %s227 = scalar_lea.vmem %s0, %s226
      %p228 = pneg %p50
      %p229 = pneg %p47
      %p230 = scmp.lt.s32.totalorder %s19, 1
      %s231 = scalar_select %p230, %s19, 1
      %p232 = scmp.lt.s32.totalorder %s20, 0
      %s233 = scalar_select %p232, %s20, 0
      %s234 = sadd.s32 %s233, %s231
      %s235 = scalar_lea.vmem %s1, %s234
      %p236 = pneg %p78
      %p237 = pneg %p75
      %p238 = scmp.lt.s32.totalorder %s19, 1
      %s239 = scalar_select %p238, %s19, 1
      %s240 = smul.addr %s239, 32
      %s241 = smul.addr %s240, 4
      %s242 = scalar_lea.vmem %s2, %s241
      %p243 = pneg %p104
      %p244 = pneg %p101
      %p245 = scmp.lt.s32.totalorder %s19, 1
      %s246 = scalar_select %p245, %s19, 1
      %s247 = smul.addr %s246, 32
      %s248 = smul.addr %s247, 4
      %s249 = scalar_lea.vmem %s3, %s248
      %p250 = pneg %p130
      %p251 = pneg %p127
      %p252 = pneg %p158
      %p253 = pneg %p155
      %p254 = scmp.lt.s32.totalorder %s19, 1
      %s255 = scalar_select %p254, %s19, 1
      %p256 = scmp.lt.s32.totalorder %s20, 0
      %s257 = scalar_select %p256, %s20, 0
      %s258 = smul.addr %s255, 8
      %s259 = sadd.s32 %s257, %s258
      %s260 = smul.addr %s259, 8
      %s261 = scalar_lea.vmem %s4, %s260
      %p262 = scmp.lt.s32.totalorder %s19, 1
      %s263 = scalar_select %p262, %s19, 1
      %p264 = scmp.lt.s32.totalorder %s20, 0
      %s265 = scalar_select %p264, %s20, 0
      %s266 = smul.addr %s263, 40
      %s267 = sadd.s32 %s265, %s266
      %s268 = smul.addr %s267, 4
      %s269 = scalar_lea.vmem %s0, %s268
      %p270 = scmp.lt.s32.totalorder %s19, 1
      %s271 = scalar_select %p270, %s19, 1
      %p272 = scmp.lt.s32.totalorder %s20, 0
      %s273 = scalar_select %p272, %s20, 0
      %s274 = sadd.s32 %s273, %s271
      %s275 = scalar_lea.vmem %s1, %s274
      %p276 = scmp.lt.s32.totalorder %s19, 1
      %s277 = scalar_select %p276, %s19, 1
      %s278 = smul.addr %s277, 32
      %s279 = smul.addr %s278, 4
      %s280 = scalar_lea.vmem %s2, %s279
      %p281 = scmp.lt.s32.totalorder %s19, 1
      %s282 = scalar_select %p281, %s19, 1
      %s283 = smul.addr %s282, 32
      %s284 = smul.addr %s283, 4
      %s285 = scalar_lea.vmem %s3, %s284
      %p286 = scmp.lt.s32.totalorder %s19, 1
      %s287 = scalar_select %p286, %s19, 1
      %p288 = scmp.lt.s32.totalorder %s20, 0
      %s289 = scalar_select %p288, %s20, 0
      %s290 = smul.addr %s287, 8
      %s291 = sadd.s32 %s289, %s290
      %s292 = smul.addr %s291, 8
      %s293 = scalar_lea.vmem %s4, %s292
      %v295 = vld [vmem:[%s280] sm:$0xf]
      %v296 = vld [vmem:[%s280 + $0x4] sm:$0xf]
      %v297 = vld [vmem:[%s280 + $0x8] sm:$0xf]
      %v298 = vld [vmem:[%s280 + $0xc] sm:$0xf]
      %v299 = vld [vmem:[%s280 + $0x10] sm:$0xf]
      %v300 = vld [vmem:[%s280 + $0x14] sm:$0xf]
      %v301 = vld [vmem:[%s280 + $0x18] sm:$0xf]
      %v302 = vld [vmem:[%s280 + $0x1c] sm:$0xf]
      %v303 = vld [vmem:[%s280 + $0x20] sm:$0xf]
      %v304 = vld [vmem:[%s280 + $0x24] sm:$0xf]
      %v305 = vld [vmem:[%s280 + $0x28] sm:$0xf]
      %v306 = vld [vmem:[%s280 + $0x2c] sm:$0xf]
      %v307 = vld [vmem:[%s280 + $0x30] sm:$0xf]
      %v308 = vld [vmem:[%s280 + $0x34] sm:$0xf]
      %v309 = vld [vmem:[%s280 + $0x38] sm:$0xf]
      %v310 = vld [vmem:[%s280 + $0x3c] sm:$0xf]
      %v311 = vld [vmem:[%s280 + $0x40] sm:$0xf]
      %v312 = vld [vmem:[%s280 + $0x44] sm:$0xf]
      %v313 = vld [vmem:[%s280 + $0x48] sm:$0xf]
      %v314 = vld [vmem:[%s280 + $0x4c] sm:$0xf]
      %v315 = vld [vmem:[%s280 + $0x50] sm:$0xf]
      %v316 = vld [vmem:[%s280 + $0x54] sm:$0xf]
      %v317 = vld [vmem:[%s280 + $0x58] sm:$0xf]
      %v318 = vld [vmem:[%s280 + $0x5c] sm:$0xf]
      %v319 = vld [vmem:[%s280 + $0x60] sm:$0xf]
      %v320 = vld [vmem:[%s280 + $0x64] sm:$0xf]
      %v321 = vld [vmem:[%s280 + $0x68] sm:$0xf]
      %v322 = vld [vmem:[%s280 + $0x6c] sm:$0xf]
      %v323 = vld [vmem:[%s280 + $0x70] sm:$0xf]
      %v324 = vld [vmem:[%s280 + $0x74] sm:$0xf]
      %v325 = vld [vmem:[%s280 + $0x78] sm:$0xf]
      %v326 = vld [vmem:[%s280 + $0x7c] sm:$0xf]
      %v327 = vld [vmem:[%s285] sm:$0xf]
      %v328 = vld [vmem:[%s285 + $0x4] sm:$0xf]
      %v329 = vld [vmem:[%s285 + $0x8] sm:$0xf]
      %v330 = vld [vmem:[%s285 + $0xc] sm:$0xf]
      %v331 = vld [vmem:[%s285 + $0x10] sm:$0xf]
      %v332 = vld [vmem:[%s285 + $0x14] sm:$0xf]
      %v333 = vld [vmem:[%s285 + $0x18] sm:$0xf]
      %v334 = vld [vmem:[%s285 + $0x1c] sm:$0xf]
      %v335 = vld [vmem:[%s285 + $0x20] sm:$0xf]
      %v336 = vld [vmem:[%s285 + $0x24] sm:$0xf]
      %v337 = vld [vmem:[%s285 + $0x28] sm:$0xf]
      %v338 = vld [vmem:[%s285 + $0x2c] sm:$0xf]
      %v339 = vld [vmem:[%s285 + $0x30] sm:$0xf]
      %v340 = vld [vmem:[%s285 + $0x34] sm:$0xf]
      %v341 = vld [vmem:[%s285 + $0x38] sm:$0xf]
      %v342 = vld [vmem:[%s285 + $0x3c] sm:$0xf]
      %v343 = vld [vmem:[%s285 + $0x40] sm:$0xf]
      %v344 = vld [vmem:[%s285 + $0x44] sm:$0xf]
      %v345 = vld [vmem:[%s285 + $0x48] sm:$0xf]
      %v346 = vld [vmem:[%s285 + $0x4c] sm:$0xf]
      %v347 = vld [vmem:[%s285 + $0x50] sm:$0xf]
      %v348 = vld [vmem:[%s285 + $0x54] sm:$0xf]
      %v349 = vld [vmem:[%s285 + $0x58] sm:$0xf]
      %v350 = vld [vmem:[%s285 + $0x5c] sm:$0xf]
      %v351 = vld [vmem:[%s285 + $0x60] sm:$0xf]
      %v352 = vld [vmem:[%s285 + $0x64] sm:$0xf]
      %v353 = vld [vmem:[%s285 + $0x68] sm:$0xf]
      %v354 = vld [vmem:[%s285 + $0x6c] sm:$0xf]
      %v355 = vld [vmem:[%s285 + $0x70] sm:$0xf]
      %v356 = vld [vmem:[%s285 + $0x74] sm:$0xf]
      %v357 = vld [vmem:[%s285 + $0x78] sm:$0xf]
      %v358 = vld [vmem:[%s285 + $0x7c] sm:$0xf]
      %v359 = vld [vmem:[%s275] sm:$0x1]
      %vm360 = vcmp.gt.s32.totalorder %v359, 0
      %vm361 = vcmp.gt.s32.totalorder %v359, 7
      %v362 = vld [vmem:[%s269] sm:$0xf]
      %v363 = vld [vmem:[%s269 + $0x4] sm:$0xf]
      %v364 = vld [vmem:[%s269 + $0x8] sm:$0xf]
      %v365 = vld [vmem:[%s269 + $0xc] sm:$0xf]
      %v366 = vld [vmem:[%s269 + $0x10] sm:$0x1]
      %v383 = vunpack.c.l.b16 %v327
      %v384 = vunpack.c.l.b16 %v328
      %v385 = vunpack.c.l.b16 %v329
      %v386 = vunpack.c.l.b16 %v330
      %v387 = vunpack.c.l.b16 %v331
      %v388 = vunpack.c.l.b16 %v332
      %v389 = vunpack.c.l.b16 %v333
      %v390 = vunpack.c.l.b16 %v334
      %v391 = vunpack.c.l.b16 %v335
      %v392 = vunpack.c.l.b16 %v336
      %v393 = vunpack.c.l.b16 %v337
      %v394 = vunpack.c.l.b16 %v338
      %v395 = vunpack.c.l.b16 %v339
      %v396 = vunpack.c.l.b16 %v340
      %v397 = vunpack.c.l.b16 %v341
      %v398 = vunpack.c.l.b16 %v342
      %v399 = vpack.c.b16 %v384, %v383
      %v400 = vpack.c.b16 %v386, %v385
      %v401 = vpack.c.b16 %v388, %v387
      %v402 = vpack.c.b16 %v390, %v389
      %v403 = vpack.c.b16 %v392, %v391
      %v404 = vpack.c.b16 %v394, %v393
      %v405 = vpack.c.b16 %v396, %v395
      %v406 = vpack.c.b16 %v398, %v397
      %vm407 = vcmask 261120
      %v409 = vsel %vm407, %v399, 0
      %v412 = vsel %vm407, %v400, 0
      %v415 = vsel %vm407, %v401, 0
      %v418 = vsel %vm407, %v402, 0
      %v421 = vsel %vm407, %v403, 0
      %v424 = vsel %vm407, %v404, 0
      %v427 = vsel %vm407, %v405, 0
      %v430 = vsel %vm407, %v406, 0
      %432 = vmatprep.subr.bf16.mxu0 0
      %433 = vmatpush1.bf16.msra.mxu0 0
      %434 = vmatprep.subr.bf16.mxu0 0
      %435 = vmatpush1.bf16.msra.mxu0 0
      %436 = vmatprep.subr.bf16.mxu0 0
      %437 = vmatpush1.bf16.msra.mxu0 0
      %438 = vmatprep.subr.bf16.mxu0 0
      %439 = vmatpush1.bf16.msra.mxu0 0
      %440 = vmatprep.subr.bf16.mxu0 0
      %441 = vmatpush1.bf16.msra.mxu0 0
      %442 = vmatprep.subr.bf16.mxu0 0
      %443 = vmatpush1.bf16.msra.mxu0 0
      %444 = vmatprep.subr.bf16.mxu0 0
      %445 = vmatpush1.bf16.msra.mxu0 0
      %446 = vmatprep.subr.bf16.mxu0 0
      %447 = vmatpush1.bf16.msra.mxu0 0
      %448 = vmatprep.subr.bf16.mxu0 0
      %449 = vmatpush2.bf16.msra.mxu0 0
      %450 = vmatprep.subr.bf16.mxu0 0
      %451 = vmatpush2.bf16.msra.mxu0 0
      %452 = vmatprep.subr.bf16.mxu0 0
      %453 = vmatpush2.bf16.msra.mxu0 0
      %454 = vmatprep.subr.bf16.mxu0 0
      %455 = vmatpush2.bf16.msra.mxu0 0
      %456 = vmatprep.subr.bf16.mxu0 0
      %457 = vmatpush2.bf16.msra.mxu0 0
      %458 = vmatprep.subr.bf16.mxu0 0
      %459 = vmatpush2.bf16.msra.mxu0 0
      %460 = vmatprep.subr.bf16.mxu0 0
      %461 = vmatpush2.bf16.msra.mxu0 0
      %462 = vmatprep.subr.bf16.mxu0 0
      %463 = vmatpush2.bf16.msra.mxu0 0
      %464 = vmatprep.mubr.bf16.mxu0 0
      %465 = vmatmul.mubr.bf16.gmra.mxu0 %v409
      %v466 = vpop.f32.mrf.mxu0
      %v467 = vadd.f32 0.0, %v466
      %v468 = vpop.f32.mrf.mxu0
      %v469 = vpop.f32.mrf.mxu0
      %v470 = vadd.f32 0.0, %v469
      %v471 = vpop.f32.mrf.mxu0
      %472 = vmatprep.mubr.bf16.mxu0 0
      %473 = vmatmul.mubr.bf16.gmra.mxu0 %v412
      %v474 = vpop.f32.mrf.mxu0
      %v475 = vadd.f32 0.0, %v474
      %v476 = vpop.f32.mrf.mxu0
      %v477 = vpop.f32.mrf.mxu0
      %v478 = vadd.f32 0.0, %v477
      %v479 = vpop.f32.mrf.mxu0
      %480 = vmatprep.mubr.bf16.mxu0 0
      %481 = vmatmul.mubr.bf16.gmra.mxu0 %v415
      %v482 = vpop.f32.mrf.mxu0
      %v483 = vadd.f32 0.0, %v482
      %v484 = vpop.f32.mrf.mxu0
      %v485 = vpop.f32.mrf.mxu0
      %v486 = vadd.f32 0.0, %v485
      %v487 = vpop.f32.mrf.mxu0
      %488 = vmatprep.mubr.bf16.mxu0 0
      %489 = vmatmul.mubr.bf16.gmra.mxu0 %v418
      %v490 = vpop.f32.mrf.mxu0
      %v491 = vadd.f32 0.0, %v490
      %v492 = vpop.f32.mrf.mxu0
      %v493 = vpop.f32.mrf.mxu0
      %v494 = vadd.f32 0.0, %v493
      %v495 = vpop.f32.mrf.mxu0
      %496 = vmatprep.mubr.bf16.mxu0 0
      %497 = vmatmul.mubr.bf16.gmra.mxu0 %v421
      %v498 = vpop.f32.mrf.mxu0
      %v499 = vadd.f32 0.0, %v498
      %v500 = vpop.f32.mrf.mxu0
      %v501 = vpop.f32.mrf.mxu0
      %v502 = vadd.f32 0.0, %v501
      %v503 = vpop.f32.mrf.mxu0
      %504 = vmatprep.mubr.bf16.mxu0 0
      %505 = vmatmul.mubr.bf16.gmra.mxu0 %v424
      %v506 = vpop.f32.mrf.mxu0
      %v507 = vadd.f32 0.0, %v506
      %v508 = vpop.f32.mrf.mxu0
      %v509 = vpop.f32.mrf.mxu0
      %v510 = vadd.f32 0.0, %v509
      %v511 = vpop.f32.mrf.mxu0
      %512 = vmatprep.mubr.bf16.mxu0 0
      %513 = vmatmul.mubr.bf16.gmra.mxu0 %v427
      %v514 = vpop.f32.mrf.mxu0
      %v515 = vadd.f32 0.0, %v514
      %v516 = vpop.f32.mrf.mxu0
      %v517 = vpop.f32.mrf.mxu0
      %v518 = vadd.f32 0.0, %v517
      %v519 = vpop.f32.mrf.mxu0
      %520 = vmatprep.mubr.bf16.mxu0 0
      %521 = vmatmul.mubr.bf16.gmra.mxu0 %v430
      %v522 = vpop.f32.mrf.mxu0
      %v523 = vadd.f32 0.0, %v522
      %v524 = vpop.f32.mrf.mxu0
      %v525 = vpop.f32.mrf.mxu0
      %v526 = vadd.f32 0.0, %v525
      %v527 = vpop.f32.mrf.mxu0
      %528 = vdwg.mxu0
      %v545 = vunpack.c.l.b16 %v295
      %v546 = vunpack.c.l.b16 %v296
      %v547 = vunpack.c.l.b16 %v297
      %v548 = vunpack.c.l.b16 %v298
      %v549 = vunpack.c.l.b16 %v299
      %v550 = vunpack.c.l.b16 %v300
      %v551 = vunpack.c.l.b16 %v301
      %v552 = vunpack.c.l.b16 %v302
      %v553 = vunpack.c.l.b16 %v303
      %v554 = vunpack.c.l.b16 %v304
      %v555 = vunpack.c.l.b16 %v305
      %v556 = vunpack.c.l.b16 %v306
      %v557 = vunpack.c.l.b16 %v307
      %v558 = vunpack.c.l.b16 %v308
      %v559 = vunpack.c.l.b16 %v309
      %v560 = vunpack.c.l.b16 %v310
      %v561 = vpack.c.b16 %v546, %v545
      %v562 = vpack.c.b16 %v548, %v547
      %v563 = vpack.c.b16 %v550, %v549
      %v564 = vpack.c.b16 %v552, %v551
      %v565 = vpack.c.b16 %v554, %v553
      %v566 = vpack.c.b16 %v556, %v555
      %v567 = vpack.c.b16 %v558, %v557
      %v568 = vpack.c.b16 %v560, %v559
      %v574 = vunpack.c.l.b16 %v362
      %v575 = vunpack.c.l.b16 %v363
      %v576 = vunpack.c.l.b16 %v364
      %v577 = vunpack.c.l.b16 %v365
      %v578 = vunpack.c.l.b16 %v366
      %v579 = vpack.c.b16 %v575, %v574
      %v580 = vpack.c.b16 %v577, %v576
      %v581 = vpack.c.b16 %v578, %v578
      %vm584 = vcmask 269312
      %v586 = vsel %vm584, %v561, 0
      %v589 = vsel %vm584, %v562, 0
      %v592 = vsel %vm584, %v563, 0
      %v595 = vsel %vm584, %v564, 0
      %v598 = vsel %vm584, %v565, 0
      %v601 = vsel %vm584, %v566, 0
      %v604 = vsel %vm584, %v567, 0
      %v607 = vsel %vm584, %v568, 0
      %vm609 = vcmask 1040384
      %v610 = vsel 0, 4294967295, 65535
      %v611 = vsel %vm609, %v610, 0
      %v613 = vand.u32 %v581, %v611
      %615 = vmatprep.subr.bf16.mxu0 0
      %616 = vmatpush1.bf16.msra.mxu0 0
      %617 = vmatprep.subr.bf16.mxu0 0
      %618 = vmatpush1.bf16.msra.mxu0 0
      %619 = vmatprep.subr.bf16.mxu0 0
      %620 = vmatpush1.bf16.msra.mxu0 0
      %621 = vmatprep.subr.bf16.mxu0 0
      %622 = vmatpush1.bf16.msra.mxu0 0
      %623 = vmatprep.subr.bf16.mxu0 0
      %624 = vmatpush1.bf16.msra.mxu0 0
      %625 = vmatprep.subr.bf16.mxu0 0
      %626 = vmatpush1.bf16.msra.mxu0 %v613
      %627 = vmatprep.subr.bf16.mxu0 0
      %628 = vmatpush1.bf16.msra.mxu0 %v580
      %629 = vmatprep.subr.bf16.mxu0 0
      %630 = vmatpush1.bf16.msra.mxu0 %v579
      %631 = vmatprep.subr.bf16.mxu0 0
      %632 = vmatpush2.bf16.msra.mxu0 0
      %633 = vmatprep.subr.bf16.mxu0 0
      %634 = vmatpush2.bf16.msra.mxu0 0
      %635 = vmatprep.subr.bf16.mxu0 0
      %636 = vmatpush2.bf16.msra.mxu0 0
      %637 = vmatprep.subr.bf16.mxu0 0
      %638 = vmatpush2.bf16.msra.mxu0 0
      %639 = vmatprep.subr.bf16.mxu0 0
      %640 = vmatpush2.bf16.msra.mxu0 0
      %641 = vmatprep.subr.bf16.mxu0 0
      %642 = vmatpush2.bf16.msra.mxu0 0
      %643 = vmatprep.subr.bf16.mxu0 0
      %644 = vmatpush2.bf16.msra.mxu0 0
      %645 = vmatprep.subr.bf16.mxu0 0
      %646 = vmatpush2.bf16.msra.mxu0 0
      %647 = vmatprep.mubr.bf16.mxu0 0
      %648 = vmatmul.mubr.bf16.gmra.mxu0 %v586
      %v649 = vpop.f32.mrf.mxu0
      %v650 = vadd.f32 %v467, %v649
      %v651 = vpop.f32.mrf.mxu0
      %v652 = vpop.f32.mrf.mxu0
      %v653 = vadd.f32 %v470, %v652
      %v654 = vpop.f32.mrf.mxu0
      %655 = vmatprep.mubr.bf16.mxu0 0
      %656 = vmatmul.mubr.bf16.gmra.mxu0 %v589
      %v657 = vpop.f32.mrf.mxu0
      %v658 = vadd.f32 %v475, %v657
      %v659 = vpop.f32.mrf.mxu0
      %v660 = vpop.f32.mrf.mxu0
      %v661 = vadd.f32 %v478, %v660
      %v662 = vpop.f32.mrf.mxu0
      %663 = vmatprep.mubr.bf16.mxu0 0
      %664 = vmatmul.mubr.bf16.gmra.mxu0 %v592
      %v665 = vpop.f32.mrf.mxu0
      %v666 = vadd.f32 %v483, %v665
      %v667 = vpop.f32.mrf.mxu0
      %v668 = vpop.f32.mrf.mxu0
      %v669 = vadd.f32 %v486, %v668
      %v670 = vpop.f32.mrf.mxu0
      %671 = vmatprep.mubr.bf16.mxu0 0
      %672 = vmatmul.mubr.bf16.gmra.mxu0 %v595
      %v673 = vpop.f32.mrf.mxu0
      %v674 = vadd.f32 %v491, %v673
      %v675 = vpop.f32.mrf.mxu0
      %v676 = vpop.f32.mrf.mxu0
      %v677 = vadd.f32 %v494, %v676
      %v678 = vpop.f32.mrf.mxu0
      %679 = vmatprep.mubr.bf16.mxu0 0
      %680 = vmatmul.mubr.bf16.gmra.mxu0 %v598
      %v681 = vpop.f32.mrf.mxu0
      %v682 = vadd.f32 %v499, %v681
      %v683 = vpop.f32.mrf.mxu0
      %v684 = vpop.f32.mrf.mxu0
      %v685 = vadd.f32 %v502, %v684
      %v686 = vpop.f32.mrf.mxu0
      %687 = vmatprep.mubr.bf16.mxu0 0
      %688 = vmatmul.mubr.bf16.gmra.mxu0 %v601
      %v689 = vpop.f32.mrf.mxu0
      %v690 = vadd.f32 %v507, %v689
      %v691 = vpop.f32.mrf.mxu0
      %v692 = vpop.f32.mrf.mxu0
      %v693 = vadd.f32 %v510, %v692
      %v694 = vpop.f32.mrf.mxu0
      %695 = vmatprep.mubr.bf16.mxu0 0
      %696 = vmatmul.mubr.bf16.gmra.mxu0 %v604
      %v697 = vpop.f32.mrf.mxu0
      %v698 = vadd.f32 %v515, %v697
      %v699 = vpop.f32.mrf.mxu0
      %v700 = vpop.f32.mrf.mxu0
      %v701 = vadd.f32 %v518, %v700
      %v702 = vpop.f32.mrf.mxu0
      %703 = vmatprep.mubr.bf16.mxu0 0
      %704 = vmatmul.mubr.bf16.gmra.mxu0 %v607
      %v705 = vpop.f32.mrf.mxu0
      %v706 = vadd.f32 %v523, %v705
      %v707 = vpop.f32.mrf.mxu0
      %v708 = vpop.f32.mrf.mxu0
      %v709 = vadd.f32 %v526, %v708
      %v710 = vpop.f32.mrf.mxu0
      %711 = vdwg.mxu0
      %v712 = vxor.u32 %v650, 2147483648
      %v713 = vxor.u32 %v653, 2147483648
      %v714 = vxor.u32 %v658, 2147483648
      %v715 = vxor.u32 %v661, 2147483648
      %v716 = vmul.f32 %v712, 1.442695
      %v717 = vpow.pop %v716
      %v718 = vmul.f32 %v713, 1.442695
      %v719 = vpow.pop %v718
      %v720 = vmul.f32 %v714, 1.442695
      %v721 = vpow.pop %v720
      %v722 = vmul.f32 %v715, 1.442695
      %v723 = vpow.pop %v722
      %v724 = vadd.f32 %v717, 1.0
      %v725 = vadd.f32 %v719, 1.0
      %v726 = vadd.f32 %v721, 1.0
      %v727 = vadd.f32 %v723, 1.0
      %v728 = vrcp.pop %v724
      %v729 = vmul.f32 1.0, %v728
      %v730 = vrcp.pop %v725
      %v731 = vmul.f32 1.0, %v730
      %v732 = vrcp.pop %v726
      %v733 = vmul.f32 1.0, %v732
      %v734 = vrcp.pop %v727
      %v735 = vmul.f32 1.0, %v734
      %v736 = vxor.u32 %v666, 2147483648
      %v737 = vxor.u32 %v669, 2147483648
      %v738 = vxor.u32 %v674, 2147483648
      %v739 = vxor.u32 %v677, 2147483648
      %v740 = vmul.f32 %v736, 1.442695
      %v741 = vpow.pop %v740
      %v742 = vmul.f32 %v737, 1.442695
      %v743 = vpow.pop %v742
      %v744 = vmul.f32 %v738, 1.442695
      %v745 = vpow.pop %v744
      %v746 = vmul.f32 %v739, 1.442695
      %v747 = vpow.pop %v746
      %v748 = vadd.f32 %v741, 1.0
      %v749 = vadd.f32 %v743, 1.0
      %v750 = vadd.f32 %v745, 1.0
      %v751 = vadd.f32 %v747, 1.0
      %v752 = vrcp.pop %v748
      %v753 = vmul.f32 1.0, %v752
      %v754 = vrcp.pop %v749
      %v755 = vmul.f32 1.0, %v754
      %v756 = vrcp.pop %v750
      %v757 = vmul.f32 1.0, %v756
      %v758 = vrcp.pop %v751
      %v759 = vmul.f32 1.0, %v758
      %v760 = vtanh.pop %v682
      %v761 = vtanh.pop %v685
      %v762 = vtanh.pop %v690
      %v763 = vtanh.pop %v693
      %v764 = vxor.u32 %v698, 2147483648
      %v765 = vxor.u32 %v701, 2147483648
      %v766 = vxor.u32 %v706, 2147483648
      %v767 = vxor.u32 %v709, 2147483648
      %v768 = vmul.f32 %v764, 1.442695
      %v769 = vpow.pop %v768
      %v770 = vmul.f32 %v765, 1.442695
      %v771 = vpow.pop %v770
      %v772 = vmul.f32 %v766, 1.442695
      %v773 = vpow.pop %v772
      %v774 = vmul.f32 %v767, 1.442695
      %v775 = vpow.pop %v774
      %v776 = vadd.f32 %v769, 1.0
      %v777 = vadd.f32 %v771, 1.0
      %v778 = vadd.f32 %v773, 1.0
      %v779 = vadd.f32 %v775, 1.0
      %v780 = vrcp.pop %v776
      %v781 = vmul.f32 1.0, %v780
      %v782 = vrcp.pop %v777
      %v783 = vmul.f32 1.0, %v782
      %v784 = vrcp.pop %v778
      %v785 = vmul.f32 1.0, %v784
      %v786 = vrcp.pop %v779
      %v787 = vmul.f32 1.0, %v786
      %v788 = vmul.f32 %v753, 0.0
      %v789 = vmul.f32 %v755, 0.0
      %v790 = vmul.f32 %v757, 0.0
      %v791 = vmul.f32 %v759, 0.0
      %v792 = vmul.f32 %v729, %v760
      %v793 = vmul.f32 %v731, %v761
      %v794 = vmul.f32 %v733, %v762
      %v795 = vmul.f32 %v735, %v763
      %v796 = vadd.f32 %v788, %v792
      %v797 = vadd.f32 %v789, %v793
      %v798 = vadd.f32 %v790, %v794
      %v799 = vadd.f32 %v791, %v795
      %v800 = vtanh.pop %v796
      %v801 = vtanh.pop %v797
      %v802 = vtanh.pop %v798
      %v803 = vtanh.pop %v799
      %v804 = vmul.f32 %v781, %v800
      %v805 = vmul.f32 %v783, %v801
      %v806 = vmul.f32 %v785, %v802
      %v807 = vmul.f32 %v787, %v803
      %v808 = vsel %vm360, 1, 0
      %v809 = vlaneseq
      %v810 = vshrl.u32 %v809, 7
      %v811 = vsub.s32 0, %v810
      %v812 = vrot.slane %v808, %v811
      %vm813 = vcmp.eq.s32.totalorder %v812, 1
      %v814 = vsel %vm813, %v804, 0.0
      %v815 = vsel %vm813, %v805, 0.0
      %v816 = vsel %vm813, %v806, 0.0
      %v817 = vsel %vm813, %v807, 0.0
      %v818 = vsel %vm813, %v796, 0.0
      %v819 = vsel %vm813, %v797, 0.0
      %v820 = vsel %vm813, %v798, 0.0
      %v821 = vsel %vm813, %v799, 0.0
      %s822 = scalar_lea.vmem %s269, 140
      %v823 = vld [vmem:[%s822] sm:$0xf]
      %v824 = vld [vmem:[%s822 + $0x4] sm:$0xf]
      %v825 = vld [vmem:[%s822 + $0x8] sm:$0xf]
      %v826 = vld [vmem:[%s822 + $0xc] sm:$0xf]
      %v827 = vld [vmem:[%s822 + $0x10] sm:$0x1]
      %v844 = vunpack.c.l.b16 %v343
      %v845 = vunpack.c.l.b16 %v344
      %v846 = vunpack.c.l.b16 %v345
      %v847 = vunpack.c.l.b16 %v346
      %v848 = vunpack.c.l.b16 %v347
      %v849 = vunpack.c.l.b16 %v348
      %v850 = vunpack.c.l.b16 %v349
      %v851 = vunpack.c.l.b16 %v350
      %v852 = vunpack.c.l.b16 %v351
      %v853 = vunpack.c.l.b16 %v352
      %v854 = vunpack.c.l.b16 %v353
      %v855 = vunpack.c.l.b16 %v354
      %v856 = vunpack.c.l.b16 %v355
      %v857 = vunpack.c.l.b16 %v356
      %v858 = vunpack.c.l.b16 %v357
      %v859 = vunpack.c.l.b16 %v358
      %v860 = vpack.c.b16 %v845, %v844
      %v861 = vpack.c.b16 %v847, %v846
      %v862 = vpack.c.b16 %v849, %v848
      %v863 = vpack.c.b16 %v851, %v850
      %v864 = vpack.c.b16 %v853, %v852
      %v865 = vpack.c.b16 %v855, %v854
      %v866 = vpack.c.b16 %v857, %v856
      %v867 = vpack.c.b16 %v859, %v858
      %v869 = vsel %vm407, %v860, 0
      %v872 = vsel %vm407, %v861, 0
      %v875 = vsel %vm407, %v862, 0
      %v878 = vsel %vm407, %v863, 0
      %v881 = vsel %vm407, %v864, 0
      %v884 = vsel %vm407, %v865, 0
      %v887 = vsel %vm407, %v866, 0
      %v890 = vsel %vm407, %v867, 0
      %892 = vmatprep.subr.bf16.mxu0 0
      %893 = vmatpush1.bf16.msra.mxu0 0
      %894 = vmatprep.subr.bf16.mxu0 0
      %895 = vmatpush1.bf16.msra.mxu0 0
      %896 = vmatprep.subr.bf16.mxu0 0
      %897 = vmatpush1.bf16.msra.mxu0 0
      %898 = vmatprep.subr.bf16.mxu0 0
      %899 = vmatpush1.bf16.msra.mxu0 0
      %900 = vmatprep.subr.bf16.mxu0 0
      %901 = vmatpush1.bf16.msra.mxu0 0
      %902 = vmatprep.subr.bf16.mxu0 0
      %903 = vmatpush1.bf16.msra.mxu0 0
      %904 = vmatprep.subr.bf16.mxu0 0
      %905 = vmatpush1.bf16.msra.mxu0 0
      %906 = vmatprep.subr.bf16.mxu0 0
      %907 = vmatpush1.bf16.msra.mxu0 0
      %908 = vmatprep.subr.bf16.mxu0 0
      %909 = vmatpush2.bf16.msra.mxu0 0
      %910 = vmatprep.subr.bf16.mxu0 0
      %911 = vmatpush2.bf16.msra.mxu0 0
      %912 = vmatprep.subr.bf16.mxu0 0
      %913 = vmatpush2.bf16.msra.mxu0 0
      %914 = vmatprep.subr.bf16.mxu0 0
      %915 = vmatpush2.bf16.msra.mxu0 0
      %916 = vmatprep.subr.bf16.mxu0 0
      %917 = vmatpush2.bf16.msra.mxu0 0
      %918 = vmatprep.subr.bf16.mxu0 0
      %919 = vmatpush2.bf16.msra.mxu0 0
      %920 = vmatprep.subr.bf16.mxu0 0
      %921 = vmatpush2.bf16.msra.mxu0 0
      %922 = vmatprep.subr.bf16.mxu0 0
      %923 = vmatpush2.bf16.msra.mxu0 0
      %924 = vmatprep.mubr.bf16.mxu0 0
      %925 = vmatmul.mubr.bf16.gmra.mxu0 %v869
      %v926 = vpop.f32.mrf.mxu0
      %v927 = vadd.f32 0.0, %v926
      %v928 = vpop.f32.mrf.mxu0
      %v929 = vpop.f32.mrf.mxu0
      %v930 = vadd.f32 0.0, %v929
      %v931 = vpop.f32.mrf.mxu0
      %932 = vmatprep.mubr.bf16.mxu0 0
      %933 = vmatmul.mubr.bf16.gmra.mxu0 %v872
      %v934 = vpop.f32.mrf.mxu0
      %v935 = vadd.f32 0.0, %v934
      %v936 = vpop.f32.mrf.mxu0
      %v937 = vpop.f32.mrf.mxu0
      %v938 = vadd.f32 0.0, %v937
      %v939 = vpop.f32.mrf.mxu0
      %940 = vmatprep.mubr.bf16.mxu0 0
      %941 = vmatmul.mubr.bf16.gmra.mxu0 %v875
      %v942 = vpop.f32.mrf.mxu0
      %v943 = vadd.f32 0.0, %v942
      %v944 = vpop.f32.mrf.mxu0
      %v945 = vpop.f32.mrf.mxu0
      %v946 = vadd.f32 0.0, %v945
      %v947 = vpop.f32.mrf.mxu0
      %948 = vmatprep.mubr.bf16.mxu0 0
      %949 = vmatmul.mubr.bf16.gmra.mxu0 %v878
      %v950 = vpop.f32.mrf.mxu0
      %v951 = vadd.f32 0.0, %v950
      %v952 = vpop.f32.mrf.mxu0
      %v953 = vpop.f32.mrf.mxu0
      %v954 = vadd.f32 0.0, %v953
      %v955 = vpop.f32.mrf.mxu0
      %956 = vmatprep.mubr.bf16.mxu0 0
      %957 = vmatmul.mubr.bf16.gmra.mxu0 %v881
      %v958 = vpop.f32.mrf.mxu0
      %v959 = vadd.f32 0.0, %v958
      %v960 = vpop.f32.mrf.mxu0
      %v961 = vpop.f32.mrf.mxu0
      %v962 = vadd.f32 0.0, %v961
      %v963 = vpop.f32.mrf.mxu0
      %964 = vmatprep.mubr.bf16.mxu0 0
      %965 = vmatmul.mubr.bf16.gmra.mxu0 %v884
      %v966 = vpop.f32.mrf.mxu0
      %v967 = vadd.f32 0.0, %v966
      %v968 = vpop.f32.mrf.mxu0
      %v969 = vpop.f32.mrf.mxu0
      %v970 = vadd.f32 0.0, %v969
      %v971 = vpop.f32.mrf.mxu0
      %972 = vmatprep.mubr.bf16.mxu0 0
      %973 = vmatmul.mubr.bf16.gmra.mxu0 %v887
      %v974 = vpop.f32.mrf.mxu0
      %v975 = vadd.f32 0.0, %v974
      %v976 = vpop.f32.mrf.mxu0
      %v977 = vpop.f32.mrf.mxu0
      %v978 = vadd.f32 0.0, %v977
      %v979 = vpop.f32.mrf.mxu0
      %980 = vmatprep.mubr.bf16.mxu0 0
      %981 = vmatmul.mubr.bf16.gmra.mxu0 %v890
      %v982 = vpop.f32.mrf.mxu0
      %v983 = vadd.f32 0.0, %v982
      %v984 = vpop.f32.mrf.mxu0
      %v985 = vpop.f32.mrf.mxu0
      %v986 = vadd.f32 0.0, %v985
      %v987 = vpop.f32.mrf.mxu0
      %988 = vdwg.mxu0
      %v1005 = vunpack.c.l.b16 %v311
      %v1006 = vunpack.c.l.b16 %v312
      %v1007 = vunpack.c.l.b16 %v313
      %v1008 = vunpack.c.l.b16 %v314
      %v1009 = vunpack.c.l.b16 %v315
      %v1010 = vunpack.c.l.b16 %v316
      %v1011 = vunpack.c.l.b16 %v317
      %v1012 = vunpack.c.l.b16 %v318
      %v1013 = vunpack.c.l.b16 %v319
      %v1014 = vunpack.c.l.b16 %v320
      %v1015 = vunpack.c.l.b16 %v321
      %v1016 = vunpack.c.l.b16 %v322
      %v1017 = vunpack.c.l.b16 %v323
      %v1018 = vunpack.c.l.b16 %v324
      %v1019 = vunpack.c.l.b16 %v325
      %v1020 = vunpack.c.l.b16 %v326
      %v1021 = vpack.c.b16 %v1006, %v1005
      %v1022 = vpack.c.b16 %v1008, %v1007
      %v1023 = vpack.c.b16 %v1010, %v1009
      %v1024 = vpack.c.b16 %v1012, %v1011
      %v1025 = vpack.c.b16 %v1014, %v1013
      %v1026 = vpack.c.b16 %v1016, %v1015
      %v1027 = vpack.c.b16 %v1018, %v1017
      %v1028 = vpack.c.b16 %v1020, %v1019
      %v1034 = vunpack.c.l.b16 %v823
      %v1035 = vunpack.c.l.b16 %v824
      %v1036 = vunpack.c.l.b16 %v825
      %v1037 = vunpack.c.l.b16 %v826
      %v1038 = vunpack.c.l.b16 %v827
      %v1039 = vpack.c.b16 %v1035, %v1034
      %v1040 = vpack.c.b16 %v1037, %v1036
      %v1041 = vpack.c.b16 %v1038, %v1038
      %v1045 = vsel %vm584, %v1021, 0
      %v1048 = vsel %vm584, %v1022, 0
      %v1051 = vsel %vm584, %v1023, 0
      %v1054 = vsel %vm584, %v1024, 0
      %v1057 = vsel %vm584, %v1025, 0
      %v1060 = vsel %vm584, %v1026, 0
      %v1063 = vsel %vm584, %v1027, 0
      %v1066 = vsel %vm584, %v1028, 0
      %v1069 = vand.u32 %v1041, %v611
      %1071 = vmatprep.subr.bf16.mxu0 0
      %1072 = vmatpush1.bf16.msra.mxu0 0
      %1073 = vmatprep.subr.bf16.mxu0 0
      %1074 = vmatpush1.bf16.msra.mxu0 0
      %1075 = vmatprep.subr.bf16.mxu0 0
      %1076 = vmatpush1.bf16.msra.mxu0 0
      %1077 = vmatprep.subr.bf16.mxu0 0
      %1078 = vmatpush1.bf16.msra.mxu0 0
      %1079 = vmatprep.subr.bf16.mxu0 0
      %1080 = vmatpush1.bf16.msra.mxu0 0
      %1081 = vmatprep.subr.bf16.mxu0 0
      %1082 = vmatpush1.bf16.msra.mxu0 %v1069
      %1083 = vmatprep.subr.bf16.mxu0 0
      %1084 = vmatpush1.bf16.msra.mxu0 %v1040
      %1085 = vmatprep.subr.bf16.mxu0 0
      %1086 = vmatpush1.bf16.msra.mxu0 %v1039
      %1087 = vmatprep.subr.bf16.mxu0 0
      %1088 = vmatpush2.bf16.msra.mxu0 0
      %1089 = vmatprep.subr.bf16.mxu0 0
      %1090 = vmatpush2.bf16.msra.mxu0 0
      %1091 = vmatprep.subr.bf16.mxu0 0
      %1092 = vmatpush2.bf16.msra.mxu0 0
      %1093 = vmatprep.subr.bf16.mxu0 0
      %1094 = vmatpush2.bf16.msra.mxu0 0
      %1095 = vmatprep.subr.bf16.mxu0 0
      %1096 = vmatpush2.bf16.msra.mxu0 0
      %1097 = vmatprep.subr.bf16.mxu0 0
      %1098 = vmatpush2.bf16.msra.mxu0 0
      %1099 = vmatprep.subr.bf16.mxu0 0
      %1100 = vmatpush2.bf16.msra.mxu0 0
      %1101 = vmatprep.subr.bf16.mxu0 0
      %1102 = vmatpush2.bf16.msra.mxu0 0
      %1103 = vmatprep.mubr.bf16.mxu0 0
      %1104 = vmatmul.mubr.bf16.gmra.mxu0 %v1045
      %v1105 = vpop.f32.mrf.mxu0
      %v1106 = vadd.f32 %v927, %v1105
      %v1107 = vpop.f32.mrf.mxu0
      %v1108 = vpop.f32.mrf.mxu0
      %v1109 = vadd.f32 %v930, %v1108
      %v1110 = vpop.f32.mrf.mxu0
      %1111 = vmatprep.mubr.bf16.mxu0 0
      %1112 = vmatmul.mubr.bf16.gmra.mxu0 %v1048
      %v1113 = vpop.f32.mrf.mxu0
      %v1114 = vadd.f32 %v935, %v1113
      %v1115 = vpop.f32.mrf.mxu0
      %v1116 = vpop.f32.mrf.mxu0
      %v1117 = vadd.f32 %v938, %v1116
      %v1118 = vpop.f32.mrf.mxu0
      %1119 = vmatprep.mubr.bf16.mxu0 0
      %1120 = vmatmul.mubr.bf16.gmra.mxu0 %v1051
      %v1121 = vpop.f32.mrf.mxu0
      %v1122 = vadd.f32 %v943, %v1121
      %v1123 = vpop.f32.mrf.mxu0
      %v1124 = vpop.f32.mrf.mxu0
      %v1125 = vadd.f32 %v946, %v1124
      %v1126 = vpop.f32.mrf.mxu0
      %1127 = vmatprep.mubr.bf16.mxu0 0
      %1128 = vmatmul.mubr.bf16.gmra.mxu0 %v1054
      %v1129 = vpop.f32.mrf.mxu0
      %v1130 = vadd.f32 %v951, %v1129
      %v1131 = vpop.f32.mrf.mxu0
      %v1132 = vpop.f32.mrf.mxu0
      %v1133 = vadd.f32 %v954, %v1132
      %v1134 = vpop.f32.mrf.mxu0
      %1135 = vmatprep.mubr.bf16.mxu0 0
      %1136 = vmatmul.mubr.bf16.gmra.mxu0 %v1057
      %v1137 = vpop.f32.mrf.mxu0
      %v1138 = vadd.f32 %v959, %v1137
      %v1139 = vpop.f32.mrf.mxu0
      %v1140 = vpop.f32.mrf.mxu0
      %v1141 = vadd.f32 %v962, %v1140
      %v1142 = vpop.f32.mrf.mxu0
      %1143 = vmatprep.mubr.bf16.mxu0 0
      %1144 = vmatmul.mubr.bf16.gmra.mxu0 %v1060
      %v1145 = vpop.f32.mrf.mxu0
      %v1146 = vadd.f32 %v967, %v1145
      %v1147 = vpop.f32.mrf.mxu0
      %v1148 = vpop.f32.mrf.mxu0
      %v1149 = vadd.f32 %v970, %v1148
      %v1150 = vpop.f32.mrf.mxu0
      %1151 = vmatprep.mubr.bf16.mxu0 0
      %1152 = vmatmul.mubr.bf16.gmra.mxu0 %v1063
      %v1153 = vpop.f32.mrf.mxu0
      %v1154 = vadd.f32 %v975, %v1153
      %v1155 = vpop.f32.mrf.mxu0
      %v1156 = vpop.f32.mrf.mxu0
      %v1157 = vadd.f32 %v978, %v1156
      %v1158 = vpop.f32.mrf.mxu0
      %1159 = vmatprep.mubr.bf16.mxu0 0
      %1160 = vmatmul.mubr.bf16.gmra.mxu0 %v1066
      %v1161 = vpop.f32.mrf.mxu0
      %v1162 = vadd.f32 %v983, %v1161
      %v1163 = vpop.f32.mrf.mxu0
      %v1164 = vpop.f32.mrf.mxu0
      %v1165 = vadd.f32 %v986, %v1164
      %v1166 = vpop.f32.mrf.mxu0
      %1167 = vdwg.mxu0
      %v1168 = vxor.u32 %v1106, 2147483648
      %v1169 = vxor.u32 %v1109, 2147483648
      %v1170 = vxor.u32 %v1114, 2147483648
      %v1171 = vxor.u32 %v1117, 2147483648
      %v1172 = vmul.f32 %v1168, 1.442695
      %v1173 = vpow.pop %v1172
      %v1174 = vmul.f32 %v1169, 1.442695
      %v1175 = vpow.pop %v1174
      %v1176 = vmul.f32 %v1170, 1.442695
      %v1177 = vpow.pop %v1176
      %v1178 = vmul.f32 %v1171, 1.442695
      %v1179 = vpow.pop %v1178
      %v1180 = vadd.f32 %v1173, 1.0
      %v1181 = vadd.f32 %v1175, 1.0
      %v1182 = vadd.f32 %v1177, 1.0
      %v1183 = vadd.f32 %v1179, 1.0
      %v1184 = vrcp.pop %v1180
      %v1185 = vmul.f32 1.0, %v1184
      %v1186 = vrcp.pop %v1181
      %v1187 = vmul.f32 1.0, %v1186
      %v1188 = vrcp.pop %v1182
      %v1189 = vmul.f32 1.0, %v1188
      %v1190 = vrcp.pop %v1183
      %v1191 = vmul.f32 1.0, %v1190
      %v1192 = vxor.u32 %v1122, 2147483648
      %v1193 = vxor.u32 %v1125, 2147483648
      %v1194 = vxor.u32 %v1130, 2147483648
      %v1195 = vxor.u32 %v1133, 2147483648
      %v1196 = vmul.f32 %v1192, 1.442695
      %v1197 = vpow.pop %v1196
      %v1198 = vmul.f32 %v1193, 1.442695
      %v1199 = vpow.pop %v1198
      %v1200 = vmul.f32 %v1194, 1.442695
      %v1201 = vpow.pop %v1200
      %v1202 = vmul.f32 %v1195, 1.442695
      %v1203 = vpow.pop %v1202
      %v1204 = vadd.f32 %v1197, 1.0
      %v1205 = vadd.f32 %v1199, 1.0
      %v1206 = vadd.f32 %v1201, 1.0
      %v1207 = vadd.f32 %v1203, 1.0
      %v1208 = vrcp.pop %v1204
      %v1209 = vmul.f32 1.0, %v1208
      %v1210 = vrcp.pop %v1205
      %v1211 = vmul.f32 1.0, %v1210
      %v1212 = vrcp.pop %v1206
      %v1213 = vmul.f32 1.0, %v1212
      %v1214 = vrcp.pop %v1207
      %v1215 = vmul.f32 1.0, %v1214
      %v1216 = vtanh.pop %v1138
      %v1217 = vtanh.pop %v1141
      %v1218 = vtanh.pop %v1146
      %v1219 = vtanh.pop %v1149
      %v1220 = vxor.u32 %v1154, 2147483648
      %v1221 = vxor.u32 %v1157, 2147483648
      %v1222 = vxor.u32 %v1162, 2147483648
      %v1223 = vxor.u32 %v1165, 2147483648
      %v1224 = vmul.f32 %v1220, 1.442695
      %v1225 = vpow.pop %v1224
      %v1226 = vmul.f32 %v1221, 1.442695
      %v1227 = vpow.pop %v1226
      %v1228 = vmul.f32 %v1222, 1.442695
      %v1229 = vpow.pop %v1228
      %v1230 = vmul.f32 %v1223, 1.442695
      %v1231 = vpow.pop %v1230
      %v1232 = vadd.f32 %v1225, 1.0
      %v1233 = vadd.f32 %v1227, 1.0
      %v1234 = vadd.f32 %v1229, 1.0
      %v1235 = vadd.f32 %v1231, 1.0
      %v1236 = vrcp.pop %v1232
      %v1237 = vmul.f32 1.0, %v1236
      %v1238 = vrcp.pop %v1233
      %v1239 = vmul.f32 1.0, %v1238
      %v1240 = vrcp.pop %v1234
      %v1241 = vmul.f32 1.0, %v1240
      %v1242 = vrcp.pop %v1235
      %v1243 = vmul.f32 1.0, %v1242
      %v1244 = vmul.f32 %v1209, 0.0
      %v1245 = vmul.f32 %v1211, 0.0
      %v1246 = vmul.f32 %v1213, 0.0
      %v1247 = vmul.f32 %v1215, 0.0
      %v1248 = vmul.f32 %v1185, %v1216
      %v1249 = vmul.f32 %v1187, %v1217
      %v1250 = vmul.f32 %v1189, %v1218
      %v1251 = vmul.f32 %v1191, %v1219
      %v1252 = vadd.f32 %v1244, %v1248
      %v1253 = vadd.f32 %v1245, %v1249
      %v1254 = vadd.f32 %v1246, %v1250
      %v1255 = vadd.f32 %v1247, %v1251
      %v1256 = vtanh.pop %v1252
      %v1257 = vtanh.pop %v1253
      %v1258 = vtanh.pop %v1254
      %v1259 = vtanh.pop %v1255
      %v1260 = vmul.f32 %v1237, %v1256
      %v1261 = vmul.f32 %v1239, %v1257
      %v1262 = vmul.f32 %v1241, %v1258
      %v1263 = vmul.f32 %v1243, %v1259
      %v1264 = vsel %vm361, 1, 0
      %v1265 = vlaneseq
      %v1266 = vshrl.u32 %v1265, 7
      %v1267 = vsub.s32 0, %v1266
      %v1268 = vrot.slane %v1264, %v1267
      %vm1269 = vcmp.eq.s32.totalorder %v1268, 1
      %v1270 = vsel %vm1269, %v1260, 0.0
      %v1271 = vsel %vm1269, %v1261, 0.0
      %v1272 = vsel %vm1269, %v1262, 0.0
      %v1273 = vsel %vm1269, %v1263, 0.0
      %v1274 = vsel %vm1269, %v1252, 0.0
      %v1275 = vsel %vm1269, %v1253, 0.0
      %v1276 = vsel %vm1269, %v1254, 0.0
      %v1277 = vsel %vm1269, %v1255, 0.0
      %vm1278 = vcmp.ne.f32.partialorder %v804, 0.0
      %vm1279 = vcmp.ne.f32.partialorder %v805, 0.0
      %vm1280 = vcmp.ne.f32.partialorder %v806, 0.0
      %vm1281 = vcmp.ne.f32.partialorder %v807, 0.0
      %vm1282 = vmand %vm813, %vm1278
      %vm1283 = vmand %vm813, %vm1279
      %vm1284 = vmand %vm813, %vm1280
      %vm1285 = vmand %vm813, %vm1281
      %v1286 = vsel %vm1282, %v804, -1e+09
      %v1287 = vsel %vm1283, %v805, -1e+09
      %v1288 = vsel %vm1284, %v806, -1e+09
      %v1289 = vsel %vm1285, %v807, -1e+09
      %v1290 = vmax.f32 %v1286, -1e+09
      %v1291 = vmax.f32 %v1287, -1e+09
      %v1292 = vmax.f32 %v1288, -1e+09
      %v1293 = vmax.f32 %v1289, -1e+09
      %vm1294 = vcmp.ne.f32.partialorder %v1260, 0.0
      %vm1295 = vcmp.ne.f32.partialorder %v1261, 0.0
      %vm1296 = vcmp.ne.f32.partialorder %v1262, 0.0
      %vm1297 = vcmp.ne.f32.partialorder %v1263, 0.0
      %vm1298 = vmand %vm1269, %vm1294
      %vm1299 = vmand %vm1269, %vm1295
      %vm1300 = vmand %vm1269, %vm1296
      %vm1301 = vmand %vm1269, %vm1297
      %v1302 = vsel %vm1298, %v1260, -1e+09
      %v1303 = vsel %vm1299, %v1261, -1e+09
      %v1304 = vsel %vm1300, %v1262, -1e+09
      %v1305 = vsel %vm1301, %v1263, -1e+09
      %v1306 = vmax.f32 %v1302, -1e+09
      %v1307 = vmax.f32 %v1303, -1e+09
      %v1308 = vmax.f32 %v1304, -1e+09
      %v1309 = vmax.f32 %v1305, -1e+09
      %vm1310 = vcmp.gt.s32.totalorder %v359, 1
      %vm1311 = vcmp.gt.s32.totalorder %v359, 6
      %s1312 = scalar_lea.vmem %s269, 20
      %v1313 = vld [vmem:[%s1312] sm:$0xf]
      %v1314 = vld [vmem:[%s1312 + $0x4] sm:$0xf]
      %v1315 = vld [vmem:[%s1312 + $0x8] sm:$0xf]
      %v1316 = vld [vmem:[%s1312 + $0xc] sm:$0xf]
      %v1317 = vld [vmem:[%s1312 + $0x10] sm:$0x1]
      %v1318 = vpack.c.bf16 %v815, %v814
      %v1319 = vpack.c.bf16 %v817, %v816
      %1320 = vmatprep.subr.bf16.mxu0 0
      %1321 = vmatpush1.bf16.msra.mxu0 0
      %1322 = vmatprep.subr.bf16.mxu0 0
      %1323 = vmatpush1.bf16.msra.mxu0 0
      %1324 = vmatprep.subr.bf16.mxu0 0
      %1325 = vmatpush1.bf16.msra.mxu0 0
      %1326 = vmatprep.subr.bf16.mxu0 0
      %1327 = vmatpush1.bf16.msra.mxu0 0
      %1328 = vmatprep.subr.bf16.mxu0 0
      %1329 = vmatpush1.bf16.msra.mxu0 0
      %1330 = vmatprep.subr.bf16.mxu0 0
      %1331 = vmatpush1.bf16.msra.mxu0 0
      %1332 = vmatprep.subr.bf16.mxu0 0
      %1333 = vmatpush1.bf16.msra.mxu0 %v1319
      %1334 = vmatprep.subr.bf16.mxu0 0
      %1335 = vmatpush1.bf16.msra.mxu0 %v1318
      %1336 = vmatprep.subr.bf16.mxu0 0
      %1337 = vmatpush2.bf16.msra.mxu0 0
      %1338 = vmatprep.subr.bf16.mxu0 0
      %1339 = vmatpush2.bf16.msra.mxu0 0
      %1340 = vmatprep.subr.bf16.mxu0 0
      %1341 = vmatpush2.bf16.msra.mxu0 0
      %1342 = vmatprep.subr.bf16.mxu0 0
      %1343 = vmatpush2.bf16.msra.mxu0 0
      %1344 = vmatprep.subr.bf16.mxu0 0
      %1345 = vmatpush2.bf16.msra.mxu0 0
      %1346 = vmatprep.subr.bf16.mxu0 0
      %1347 = vmatpush2.bf16.msra.mxu0 0
      %1348 = vmatprep.subr.bf16.mxu0 0
      %1349 = vmatpush2.bf16.msra.mxu0 0
      %1350 = vmatprep.subr.bf16.mxu0 0
      %1351 = vmatpush2.bf16.msra.mxu0 0
      %1352 = vmatprep.mubr.bf16.mxu0 0
      %1353 = vmatmul.mubr.bf16.gmra.mxu0 %v409
      %v1354 = vpop.f32.mrf.mxu0
      %v1355 = vadd.f32 0.0, %v1354
      %v1356 = vpop.f32.mrf.mxu0
      %v1357 = vpop.f32.mrf.mxu0
      %v1358 = vadd.f32 0.0, %v1357
      %v1359 = vpop.f32.mrf.mxu0
      %1360 = vmatprep.mubr.bf16.mxu0 0
      %1361 = vmatmul.mubr.bf16.gmra.mxu0 %v412
      %v1362 = vpop.f32.mrf.mxu0
      %v1363 = vadd.f32 0.0, %v1362
      %v1364 = vpop.f32.mrf.mxu0
      %v1365 = vpop.f32.mrf.mxu0
      %v1366 = vadd.f32 0.0, %v1365
      %v1367 = vpop.f32.mrf.mxu0
      %1368 = vmatprep.mubr.bf16.mxu0 0
      %1369 = vmatmul.mubr.bf16.gmra.mxu0 %v415
      %v1370 = vpop.f32.mrf.mxu0
      %v1371 = vadd.f32 0.0, %v1370
      %v1372 = vpop.f32.mrf.mxu0
      %v1373 = vpop.f32.mrf.mxu0
      %v1374 = vadd.f32 0.0, %v1373
      %v1375 = vpop.f32.mrf.mxu0
      %1376 = vmatprep.mubr.bf16.mxu0 0
      %1377 = vmatmul.mubr.bf16.gmra.mxu0 %v418
      %v1378 = vpop.f32.mrf.mxu0
      %v1379 = vadd.f32 0.0, %v1378
      %v1380 = vpop.f32.mrf.mxu0
      %v1381 = vpop.f32.mrf.mxu0
      %v1382 = vadd.f32 0.0, %v1381
      %v1383 = vpop.f32.mrf.mxu0
      %1384 = vmatprep.mubr.bf16.mxu0 0
      %1385 = vmatmul.mubr.bf16.gmra.mxu0 %v421
      %v1386 = vpop.f32.mrf.mxu0
      %v1387 = vadd.f32 0.0, %v1386
      %v1388 = vpop.f32.mrf.mxu0
      %v1389 = vpop.f32.mrf.mxu0
      %v1390 = vadd.f32 0.0, %v1389
      %v1391 = vpop.f32.mrf.mxu0
      %1392 = vmatprep.mubr.bf16.mxu0 0
      %1393 = vmatmul.mubr.bf16.gmra.mxu0 %v424
      %v1394 = vpop.f32.mrf.mxu0
      %v1395 = vadd.f32 0.0, %v1394
      %v1396 = vpop.f32.mrf.mxu0
      %v1397 = vpop.f32.mrf.mxu0
      %v1398 = vadd.f32 0.0, %v1397
      %v1399 = vpop.f32.mrf.mxu0
      %1400 = vmatprep.mubr.bf16.mxu0 0
      %1401 = vmatmul.mubr.bf16.gmra.mxu0 %v427
      %v1402 = vpop.f32.mrf.mxu0
      %v1403 = vadd.f32 0.0, %v1402
      %v1404 = vpop.f32.mrf.mxu0
      %v1405 = vpop.f32.mrf.mxu0
      %v1406 = vadd.f32 0.0, %v1405
      %v1407 = vpop.f32.mrf.mxu0
      %1408 = vmatprep.mubr.bf16.mxu0 0
      %1409 = vmatmul.mubr.bf16.gmra.mxu0 %v430
      %v1410 = vpop.f32.mrf.mxu0
      %v1411 = vadd.f32 0.0, %v1410
      %v1412 = vpop.f32.mrf.mxu0
      %v1413 = vpop.f32.mrf.mxu0
      %v1414 = vadd.f32 0.0, %v1413
      %v1415 = vpop.f32.mrf.mxu0
      %1416 = vdwg.mxu0
      %v1422 = vunpack.c.l.b16 %v1313
      %v1423 = vunpack.c.l.b16 %v1314
      %v1424 = vunpack.c.l.b16 %v1315
      %v1425 = vunpack.c.l.b16 %v1316
      %v1426 = vunpack.c.l.b16 %v1317
      %v1427 = vpack.c.b16 %v1423, %v1422
      %v1428 = vpack.c.b16 %v1425, %v1424
      %v1429 = vpack.c.b16 %v1426, %v1426
      %v1433 = vand.u32 %v1429, %v611
      %1435 = vmatprep.subr.bf16.mxu0 0
      %1436 = vmatpush1.bf16.msra.mxu0 0
      %1437 = vmatprep.subr.bf16.mxu0 0
      %1438 = vmatpush1.bf16.msra.mxu0 0
      %1439 = vmatprep.subr.bf16.mxu0 0
      %1440 = vmatpush1.bf16.msra.mxu0 0
      %1441 = vmatprep.subr.bf16.mxu0 0
      %1442 = vmatpush1.bf16.msra.mxu0 0
      %1443 = vmatprep.subr.bf16.mxu0 0
      %1444 = vmatpush1.bf16.msra.mxu0 0
      %1445 = vmatprep.subr.bf16.mxu0 0
      %1446 = vmatpush1.bf16.msra.mxu0 %v1433
      %1447 = vmatprep.subr.bf16.mxu0 0
      %1448 = vmatpush1.bf16.msra.mxu0 %v1428
      %1449 = vmatprep.subr.bf16.mxu0 0
      %1450 = vmatpush1.bf16.msra.mxu0 %v1427
      %1451 = vmatprep.subr.bf16.mxu0 0
      %1452 = vmatpush2.bf16.msra.mxu0 0
      %1453 = vmatprep.subr.bf16.mxu0 0
      %1454 = vmatpush2.bf16.msra.mxu0 0
      %1455 = vmatprep.subr.bf16.mxu0 0
      %1456 = vmatpush2.bf16.msra.mxu0 0
      %1457 = vmatprep.subr.bf16.mxu0 0
      %1458 = vmatpush2.bf16.msra.mxu0 0
      %1459 = vmatprep.subr.bf16.mxu0 0
      %1460 = vmatpush2.bf16.msra.mxu0 0
      %1461 = vmatprep.subr.bf16.mxu0 0
      %1462 = vmatpush2.bf16.msra.mxu0 0
      %1463 = vmatprep.subr.bf16.mxu0 0
      %1464 = vmatpush2.bf16.msra.mxu0 0
      %1465 = vmatprep.subr.bf16.mxu0 0
      %1466 = vmatpush2.bf16.msra.mxu0 0
      %1467 = vmatprep.mubr.bf16.mxu0 0
      %1468 = vmatmul.mubr.bf16.gmra.mxu0 %v586
      %v1469 = vpop.f32.mrf.mxu0
      %v1470 = vadd.f32 %v1355, %v1469
      %v1471 = vpop.f32.mrf.mxu0
      %v1472 = vpop.f32.mrf.mxu0
      %v1473 = vadd.f32 %v1358, %v1472
      %v1474 = vpop.f32.mrf.mxu0
      %1475 = vmatprep.mubr.bf16.mxu0 0
      %1476 = vmatmul.mubr.bf16.gmra.mxu0 %v589
      %v1477 = vpop.f32.mrf.mxu0
      %v1478 = vadd.f32 %v1363, %v1477
      %v1479 = vpop.f32.mrf.mxu0
      %v1480 = vpop.f32.mrf.mxu0
      %v1481 = vadd.f32 %v1366, %v1480
      %v1482 = vpop.f32.mrf.mxu0
      %1483 = vmatprep.mubr.bf16.mxu0 0
      %1484 = vmatmul.mubr.bf16.gmra.mxu0 %v592
      %v1485 = vpop.f32.mrf.mxu0
      %v1486 = vadd.f32 %v1371, %v1485
      %v1487 = vpop.f32.mrf.mxu0
      %v1488 = vpop.f32.mrf.mxu0
      %v1489 = vadd.f32 %v1374, %v1488
      %v1490 = vpop.f32.mrf.mxu0
      %1491 = vmatprep.mubr.bf16.mxu0 0
      %1492 = vmatmul.mubr.bf16.gmra.mxu0 %v595
      %v1493 = vpop.f32.mrf.mxu0
      %v1494 = vadd.f32 %v1379, %v1493
      %v1495 = vpop.f32.mrf.mxu0
      %v1496 = vpop.f32.mrf.mxu0
      %v1497 = vadd.f32 %v1382, %v1496
      %v1498 = vpop.f32.mrf.mxu0
      %1499 = vmatprep.mubr.bf16.mxu0 0
      %1500 = vmatmul.mubr.bf16.gmra.mxu0 %v598
      %v1501 = vpop.f32.mrf.mxu0
      %v1502 = vadd.f32 %v1387, %v1501
      %v1503 = vpop.f32.mrf.mxu0
      %v1504 = vpop.f32.mrf.mxu0
      %v1505 = vadd.f32 %v1390, %v1504
      %v1506 = vpop.f32.mrf.mxu0
      %1507 = vmatprep.mubr.bf16.mxu0 0
      %1508 = vmatmul.mubr.bf16.gmra.mxu0 %v601
      %v1509 = vpop.f32.mrf.mxu0
      %v1510 = vadd.f32 %v1395, %v1509
      %v1511 = vpop.f32.mrf.mxu0
      %v1512 = vpop.f32.mrf.mxu0
      %v1513 = vadd.f32 %v1398, %v1512
      %v1514 = vpop.f32.mrf.mxu0
      %1515 = vmatprep.mubr.bf16.mxu0 0
      %1516 = vmatmul.mubr.bf16.gmra.mxu0 %v604
      %v1517 = vpop.f32.mrf.mxu0
      %v1518 = vadd.f32 %v1403, %v1517
      %v1519 = vpop.f32.mrf.mxu0
      %v1520 = vpop.f32.mrf.mxu0
      %v1521 = vadd.f32 %v1406, %v1520
      %v1522 = vpop.f32.mrf.mxu0
      %1523 = vmatprep.mubr.bf16.mxu0 0
      %1524 = vmatmul.mubr.bf16.gmra.mxu0 %v607
      %v1525 = vpop.f32.mrf.mxu0
      %v1526 = vadd.f32 %v1411, %v1525
      %v1527 = vpop.f32.mrf.mxu0
      %v1528 = vpop.f32.mrf.mxu0
      %v1529 = vadd.f32 %v1414, %v1528
      %v1530 = vpop.f32.mrf.mxu0
      %1531 = vdwg.mxu0
      %v1532 = vxor.u32 %v1470, 2147483648
      %v1533 = vxor.u32 %v1473, 2147483648
      %v1534 = vxor.u32 %v1478, 2147483648
      %v1535 = vxor.u32 %v1481, 2147483648
      %v1536 = vmul.f32 %v1532, 1.442695
      %v1537 = vpow.pop %v1536
      %v1538 = vmul.f32 %v1533, 1.442695
      %v1539 = vpow.pop %v1538
      %v1540 = vmul.f32 %v1534, 1.442695
      %v1541 = vpow.pop %v1540
      %v1542 = vmul.f32 %v1535, 1.442695
      %v1543 = vpow.pop %v1542
      %v1544 = vadd.f32 %v1537, 1.0
      %v1545 = vadd.f32 %v1539, 1.0
      %v1546 = vadd.f32 %v1541, 1.0
      %v1547 = vadd.f32 %v1543, 1.0
      %v1548 = vrcp.pop %v1544
      %v1549 = vmul.f32 1.0, %v1548
      %v1550 = vrcp.pop %v1545
      %v1551 = vmul.f32 1.0, %v1550
      %v1552 = vrcp.pop %v1546
      %v1553 = vmul.f32 1.0, %v1552
      %v1554 = vrcp.pop %v1547
      %v1555 = vmul.f32 1.0, %v1554
      %v1556 = vxor.u32 %v1486, 2147483648
      %v1557 = vxor.u32 %v1489, 2147483648
      %v1558 = vxor.u32 %v1494, 2147483648
      %v1559 = vxor.u32 %v1497, 2147483648
      %v1560 = vmul.f32 %v1556, 1.442695
      %v1561 = vpow.pop %v1560
      %v1562 = vmul.f32 %v1557, 1.442695
      %v1563 = vpow.pop %v1562
      %v1564 = vmul.f32 %v1558, 1.442695
      %v1565 = vpow.pop %v1564
      %v1566 = vmul.f32 %v1559, 1.442695
      %v1567 = vpow.pop %v1566
      %v1568 = vadd.f32 %v1561, 1.0
      %v1569 = vadd.f32 %v1563, 1.0
      %v1570 = vadd.f32 %v1565, 1.0
      %v1571 = vadd.f32 %v1567, 1.0
      %v1572 = vrcp.pop %v1568
      %v1573 = vmul.f32 1.0, %v1572
      %v1574 = vrcp.pop %v1569
      %v1575 = vmul.f32 1.0, %v1574
      %v1576 = vrcp.pop %v1570
      %v1577 = vmul.f32 1.0, %v1576
      %v1578 = vrcp.pop %v1571
      %v1579 = vmul.f32 1.0, %v1578
      %v1580 = vtanh.pop %v1502
      %v1581 = vtanh.pop %v1505
      %v1582 = vtanh.pop %v1510
      %v1583 = vtanh.pop %v1513
      %v1584 = vxor.u32 %v1518, 2147483648
      %v1585 = vxor.u32 %v1521, 2147483648
      %v1586 = vxor.u32 %v1526, 2147483648
      %v1587 = vxor.u32 %v1529, 2147483648
      %v1588 = vmul.f32 %v1584, 1.442695
      %v1589 = vpow.pop %v1588
      %v1590 = vmul.f32 %v1585, 1.442695
      %v1591 = vpow.pop %v1590
      %v1592 = vmul.f32 %v1586, 1.442695
      %v1593 = vpow.pop %v1592
      %v1594 = vmul.f32 %v1587, 1.442695
      %v1595 = vpow.pop %v1594
      %v1596 = vadd.f32 %v1589, 1.0
      %v1597 = vadd.f32 %v1591, 1.0
      %v1598 = vadd.f32 %v1593, 1.0
      %v1599 = vadd.f32 %v1595, 1.0
      %v1600 = vrcp.pop %v1596
      %v1601 = vmul.f32 1.0, %v1600
      %v1602 = vrcp.pop %v1597
      %v1603 = vmul.f32 1.0, %v1602
      %v1604 = vrcp.pop %v1598
      %v1605 = vmul.f32 1.0, %v1604
      %v1606 = vrcp.pop %v1599
      %v1607 = vmul.f32 1.0, %v1606
      %v1608 = vmul.f32 %v1573, %v818
      %v1609 = vmul.f32 %v1575, %v819
      %v1610 = vmul.f32 %v1577, %v820
      %v1611 = vmul.f32 %v1579, %v821
      %v1612 = vmul.f32 %v1549, %v1580
      %v1613 = vmul.f32 %v1551, %v1581
      %v1614 = vmul.f32 %v1553, %v1582
      %v1615 = vmul.f32 %v1555, %v1583
      %v1616 = vadd.f32 %v1608, %v1612
      %v1617 = vadd.f32 %v1609, %v1613
      %v1618 = vadd.f32 %v1610, %v1614
      %v1619 = vadd.f32 %v1611, %v1615
      %v1620 = vtanh.pop %v1616
      %v1621 = vtanh.pop %v1617
      %v1622 = vtanh.pop %v1618
      %v1623 = vtanh.pop %v1619
      %v1624 = vmul.f32 %v1601, %v1620
      %v1625 = vmul.f32 %v1603, %v1621
      %v1626 = vmul.f32 %v1605, %v1622
      %v1627 = vmul.f32 %v1607, %v1623
      %v1628 = vsel %vm1310, 1, 0
      %v1629 = vlaneseq
      %v1630 = vshrl.u32 %v1629, 7
      %v1631 = vsub.s32 0, %v1630
      %v1632 = vrot.slane %v1628, %v1631
      %vm1633 = vcmp.eq.s32.totalorder %v1632, 1
      %v1634 = vsel %vm1633, %v1624, %v814
      %v1635 = vsel %vm1633, %v1625, %v815
      %v1636 = vsel %vm1633, %v1626, %v816
      %v1637 = vsel %vm1633, %v1627, %v817
      %v1638 = vsel %vm1633, %v1616, %v818
      %v1639 = vsel %vm1633, %v1617, %v819
      %v1640 = vsel %vm1633, %v1618, %v820
      %v1641 = vsel %vm1633, %v1619, %v821
      %s1642 = scalar_lea.vmem %s269, 120
      %v1643 = vld [vmem:[%s1642] sm:$0xf]
      %v1644 = vld [vmem:[%s1642 + $0x4] sm:$0xf]
      %v1645 = vld [vmem:[%s1642 + $0x8] sm:$0xf]
      %v1646 = vld [vmem:[%s1642 + $0xc] sm:$0xf]
      %v1647 = vld [vmem:[%s1642 + $0x10] sm:$0x1]
      %v1648 = vpack.c.bf16 %v1271, %v1270
      %v1649 = vpack.c.bf16 %v1273, %v1272
      %1650 = vmatprep.subr.bf16.mxu0 0
      %1651 = vmatpush1.bf16.msra.mxu0 0
      %1652 = vmatprep.subr.bf16.mxu0 0
      %1653 = vmatpush1.bf16.msra.mxu0 0
      %1654 = vmatprep.subr.bf16.mxu0 0
      %1655 = vmatpush1.bf16.msra.mxu0 0
      %1656 = vmatprep.subr.bf16.mxu0 0
      %1657 = vmatpush1.bf16.msra.mxu0 0
      %1658 = vmatprep.subr.bf16.mxu0 0
      %1659 = vmatpush1.bf16.msra.mxu0 0
      %1660 = vmatprep.subr.bf16.mxu0 0
      %1661 = vmatpush1.bf16.msra.mxu0 0
      %1662 = vmatprep.subr.bf16.mxu0 0
      %1663 = vmatpush1.bf16.msra.mxu0 %v1649
      %1664 = vmatprep.subr.bf16.mxu0 0
      %1665 = vmatpush1.bf16.msra.mxu0 %v1648
      %1666 = vmatprep.subr.bf16.mxu0 0
      %1667 = vmatpush2.bf16.msra.mxu0 0
      %1668 = vmatprep.subr.bf16.mxu0 0
      %1669 = vmatpush2.bf16.msra.mxu0 0
      %1670 = vmatprep.subr.bf16.mxu0 0
      %1671 = vmatpush2.bf16.msra.mxu0 0
      %1672 = vmatprep.subr.bf16.mxu0 0
      %1673 = vmatpush2.bf16.msra.mxu0 0
      %1674 = vmatprep.subr.bf16.mxu0 0
      %1675 = vmatpush2.bf16.msra.mxu0 0
      %1676 = vmatprep.subr.bf16.mxu0 0
      %1677 = vmatpush2.bf16.msra.mxu0 0
      %1678 = vmatprep.subr.bf16.mxu0 0
      %1679 = vmatpush2.bf16.msra.mxu0 0
      %1680 = vmatprep.subr.bf16.mxu0 0
      %1681 = vmatpush2.bf16.msra.mxu0 0
      %1682 = vmatprep.mubr.bf16.mxu0 0
      %1683 = vmatmul.mubr.bf16.gmra.mxu0 %v869
      %v1684 = vpop.f32.mrf.mxu0
      %v1685 = vadd.f32 0.0, %v1684
      %v1686 = vpop.f32.mrf.mxu0
      %v1687 = vpop.f32.mrf.mxu0
      %v1688 = vadd.f32 0.0, %v1687
      %v1689 = vpop.f32.mrf.mxu0
      %1690 = vmatprep.mubr.bf16.mxu0 0
      %1691 = vmatmul.mubr.bf16.gmra.mxu0 %v872
      %v1692 = vpop.f32.mrf.mxu0
      %v1693 = vadd.f32 0.0, %v1692
      %v1694 = vpop.f32.mrf.mxu0
      %v1695 = vpop.f32.mrf.mxu0
      %v1696 = vadd.f32 0.0, %v1695
      %v1697 = vpop.f32.mrf.mxu0
      %1698 = vmatprep.mubr.bf16.mxu0 0
      %1699 = vmatmul.mubr.bf16.gmra.mxu0 %v875
      %v1700 = vpop.f32.mrf.mxu0
      %v1701 = vadd.f32 0.0, %v1700
      %v1702 = vpop.f32.mrf.mxu0
      %v1703 = vpop.f32.mrf.mxu0
      %v1704 = vadd.f32 0.0, %v1703
      %v1705 = vpop.f32.mrf.mxu0
      %1706 = vmatprep.mubr.bf16.mxu0 0
      %1707 = vmatmul.mubr.bf16.gmra.mxu0 %v878
      %v1708 = vpop.f32.mrf.mxu0
      %v1709 = vadd.f32 0.0, %v1708
      %v1710 = vpop.f32.mrf.mxu0
      %v1711 = vpop.f32.mrf.mxu0
      %v1712 = vadd.f32 0.0, %v1711
      %v1713 = vpop.f32.mrf.mxu0
      %1714 = vmatprep.mubr.bf16.mxu0 0
      %1715 = vmatmul.mubr.bf16.gmra.mxu0 %v881
      %v1716 = vpop.f32.mrf.mxu0
      %v1717 = vadd.f32 0.0, %v1716
      %v1718 = vpop.f32.mrf.mxu0
      %v1719 = vpop.f32.mrf.mxu0
      %v1720 = vadd.f32 0.0, %v1719
      %v1721 = vpop.f32.mrf.mxu0
      %1722 = vmatprep.mubr.bf16.mxu0 0
      %1723 = vmatmul.mubr.bf16.gmra.mxu0 %v884
      %v1724 = vpop.f32.mrf.mxu0
      %v1725 = vadd.f32 0.0, %v1724
      %v1726 = vpop.f32.mrf.mxu0
      %v1727 = vpop.f32.mrf.mxu0
      %v1728 = vadd.f32 0.0, %v1727
      %v1729 = vpop.f32.mrf.mxu0
      %1730 = vmatprep.mubr.bf16.mxu0 0
      %1731 = vmatmul.mubr.bf16.gmra.mxu0 %v887
      %v1732 = vpop.f32.mrf.mxu0
      %v1733 = vadd.f32 0.0, %v1732
      %v1734 = vpop.f32.mrf.mxu0
      %v1735 = vpop.f32.mrf.mxu0
      %v1736 = vadd.f32 0.0, %v1735
      %v1737 = vpop.f32.mrf.mxu0
      %1738 = vmatprep.mubr.bf16.mxu0 0
      %1739 = vmatmul.mubr.bf16.gmra.mxu0 %v890
      %v1740 = vpop.f32.mrf.mxu0
      %v1741 = vadd.f32 0.0, %v1740
      %v1742 = vpop.f32.mrf.mxu0
      %v1743 = vpop.f32.mrf.mxu0
      %v1744 = vadd.f32 0.0, %v1743
      %v1745 = vpop.f32.mrf.mxu0
      %1746 = vdwg.mxu0
      %v1752 = vunpack.c.l.b16 %v1643
      %v1753 = vunpack.c.l.b16 %v1644
      %v1754 = vunpack.c.l.b16 %v1645
      %v1755 = vunpack.c.l.b16 %v1646
      %v1756 = vunpack.c.l.b16 %v1647
      %v1757 = vpack.c.b16 %v1753, %v1752
      %v1758 = vpack.c.b16 %v1755, %v1754
      %v1759 = vpack.c.b16 %v1756, %v1756
      %v1763 = vand.u32 %v1759, %v611
      %1765 = vmatprep.subr.bf16.mxu0 0
      %1766 = vmatpush1.bf16.msra.mxu0 0
      %1767 = vmatprep.subr.bf16.mxu0 0
      %1768 = vmatpush1.bf16.msra.mxu0 0
      %1769 = vmatprep.subr.bf16.mxu0 0
      %1770 = vmatpush1.bf16.msra.mxu0 0
      %1771 = vmatprep.subr.bf16.mxu0 0
      %1772 = vmatpush1.bf16.msra.mxu0 0
      %1773 = vmatprep.subr.bf16.mxu0 0
      %1774 = vmatpush1.bf16.msra.mxu0 0
      %1775 = vmatprep.subr.bf16.mxu0 0
      %1776 = vmatpush1.bf16.msra.mxu0 %v1763
      %1777 = vmatprep.subr.bf16.mxu0 0
      %1778 = vmatpush1.bf16.msra.mxu0 %v1758
      %1779 = vmatprep.subr.bf16.mxu0 0
      %1780 = vmatpush1.bf16.msra.mxu0 %v1757
      %1781 = vmatprep.subr.bf16.mxu0 0
      %1782 = vmatpush2.bf16.msra.mxu0 0
      %1783 = vmatprep.subr.bf16.mxu0 0
      %1784 = vmatpush2.bf16.msra.mxu0 0
      %1785 = vmatprep.subr.bf16.mxu0 0
      %1786 = vmatpush2.bf16.msra.mxu0 0
      %1787 = vmatprep.subr.bf16.mxu0 0
      %1788 = vmatpush2.bf16.msra.mxu0 0
      %1789 = vmatprep.subr.bf16.mxu0 0
      %1790 = vmatpush2.bf16.msra.mxu0 0
      %1791 = vmatprep.subr.bf16.mxu0 0
      %1792 = vmatpush2.bf16.msra.mxu0 0
      %1793 = vmatprep.subr.bf16.mxu0 0
      %1794 = vmatpush2.bf16.msra.mxu0 0
      %1795 = vmatprep.subr.bf16.mxu0 0
      %1796 = vmatpush2.bf16.msra.mxu0 0
      %1797 = vmatprep.mubr.bf16.mxu0 0
      %1798 = vmatmul.mubr.bf16.gmra.mxu0 %v1045
      %v1799 = vpop.f32.mrf.mxu0
      %v1800 = vadd.f32 %v1685, %v1799
      %v1801 = vpop.f32.mrf.mxu0
      %v1802 = vpop.f32.mrf.mxu0
      %v1803 = vadd.f32 %v1688, %v1802
      %v1804 = vpop.f32.mrf.mxu0
      %1805 = vmatprep.mubr.bf16.mxu0 0
      %1806 = vmatmul.mubr.bf16.gmra.mxu0 %v1048
      %v1807 = vpop.f32.mrf.mxu0
      %v1808 = vadd.f32 %v1693, %v1807
      %v1809 = vpop.f32.mrf.mxu0
      %v1810 = vpop.f32.mrf.mxu0
      %v1811 = vadd.f32 %v1696, %v1810
      %v1812 = vpop.f32.mrf.mxu0
      %1813 = vmatprep.mubr.bf16.mxu0 0
      %1814 = vmatmul.mubr.bf16.gmra.mxu0 %v1051
      %v1815 = vpop.f32.mrf.mxu0
      %v1816 = vadd.f32 %v1701, %v1815
      %v1817 = vpop.f32.mrf.mxu0
      %v1818 = vpop.f32.mrf.mxu0
      %v1819 = vadd.f32 %v1704, %v1818
      %v1820 = vpop.f32.mrf.mxu0
      %1821 = vmatprep.mubr.bf16.mxu0 0
      %1822 = vmatmul.mubr.bf16.gmra.mxu0 %v1054
      %v1823 = vpop.f32.mrf.mxu0
      %v1824 = vadd.f32 %v1709, %v1823
      %v1825 = vpop.f32.mrf.mxu0
      %v1826 = vpop.f32.mrf.mxu0
      %v1827 = vadd.f32 %v1712, %v1826
      %v1828 = vpop.f32.mrf.mxu0
      %1829 = vmatprep.mubr.bf16.mxu0 0
      %1830 = vmatmul.mubr.bf16.gmra.mxu0 %v1057
      %v1831 = vpop.f32.mrf.mxu0
      %v1832 = vadd.f32 %v1717, %v1831
      %v1833 = vpop.f32.mrf.mxu0
      %v1834 = vpop.f32.mrf.mxu0
      %v1835 = vadd.f32 %v1720, %v1834
      %v1836 = vpop.f32.mrf.mxu0
      %1837 = vmatprep.mubr.bf16.mxu0 0
      %1838 = vmatmul.mubr.bf16.gmra.mxu0 %v1060
      %v1839 = vpop.f32.mrf.mxu0
      %v1840 = vadd.f32 %v1725, %v1839
      %v1841 = vpop.f32.mrf.mxu0
      %v1842 = vpop.f32.mrf.mxu0
      %v1843 = vadd.f32 %v1728, %v1842
      %v1844 = vpop.f32.mrf.mxu0
      %1845 = vmatprep.mubr.bf16.mxu0 0
      %1846 = vmatmul.mubr.bf16.gmra.mxu0 %v1063
      %v1847 = vpop.f32.mrf.mxu0
      %v1848 = vadd.f32 %v1733, %v1847
      %v1849 = vpop.f32.mrf.mxu0
      %v1850 = vpop.f32.mrf.mxu0
      %v1851 = vadd.f32 %v1736, %v1850
      %v1852 = vpop.f32.mrf.mxu0
      %1853 = vmatprep.mubr.bf16.mxu0 0
      %1854 = vmatmul.mubr.bf16.gmra.mxu0 %v1066
      %v1855 = vpop.f32.mrf.mxu0
      %v1856 = vadd.f32 %v1741, %v1855
      %v1857 = vpop.f32.mrf.mxu0
      %v1858 = vpop.f32.mrf.mxu0
      %v1859 = vadd.f32 %v1744, %v1858
      %v1860 = vpop.f32.mrf.mxu0
      %1861 = vdwg.mxu0
      %v1862 = vxor.u32 %v1800, 2147483648
      %v1863 = vxor.u32 %v1803, 2147483648
      %v1864 = vxor.u32 %v1808, 2147483648
      %v1865 = vxor.u32 %v1811, 2147483648
      %v1866 = vmul.f32 %v1862, 1.442695
      %v1867 = vpow.pop %v1866
      %v1868 = vmul.f32 %v1863, 1.442695
      %v1869 = vpow.pop %v1868
      %v1870 = vmul.f32 %v1864, 1.442695
      %v1871 = vpow.pop %v1870
      %v1872 = vmul.f32 %v1865, 1.442695
      %v1873 = vpow.pop %v1872
      %v1874 = vadd.f32 %v1867, 1.0
      %v1875 = vadd.f32 %v1869, 1.0
      %v1876 = vadd.f32 %v1871, 1.0
      %v1877 = vadd.f32 %v1873, 1.0
      %v1878 = vrcp.pop %v1874
      %v1879 = vmul.f32 1.0, %v1878
      %v1880 = vrcp.pop %v1875
      %v1881 = vmul.f32 1.0, %v1880
      %v1882 = vrcp.pop %v1876
      %v1883 = vmul.f32 1.0, %v1882
      %v1884 = vrcp.pop %v1877
      %v1885 = vmul.f32 1.0, %v1884
      %v1886 = vxor.u32 %v1816, 2147483648
      %v1887 = vxor.u32 %v1819, 2147483648
      %v1888 = vxor.u32 %v1824, 2147483648
      %v1889 = vxor.u32 %v1827, 2147483648
      %v1890 = vmul.f32 %v1886, 1.442695
      %v1891 = vpow.pop %v1890
      %v1892 = vmul.f32 %v1887, 1.442695
      %v1893 = vpow.pop %v1892
      %v1894 = vmul.f32 %v1888, 1.442695
      %v1895 = vpow.pop %v1894
      %v1896 = vmul.f32 %v1889, 1.442695
      %v1897 = vpow.pop %v1896
      %v1898 = vadd.f32 %v1891, 1.0
      %v1899 = vadd.f32 %v1893, 1.0
      %v1900 = vadd.f32 %v1895, 1.0
      %v1901 = vadd.f32 %v1897, 1.0
      %v1902 = vrcp.pop %v1898
      %v1903 = vmul.f32 1.0, %v1902
      %v1904 = vrcp.pop %v1899
      %v1905 = vmul.f32 1.0, %v1904
      %v1906 = vrcp.pop %v1900
      %v1907 = vmul.f32 1.0, %v1906
      %v1908 = vrcp.pop %v1901
      %v1909 = vmul.f32 1.0, %v1908
      %v1910 = vtanh.pop %v1832
      %v1911 = vtanh.pop %v1835
      %v1912 = vtanh.pop %v1840
      %v1913 = vtanh.pop %v1843
      %v1914 = vxor.u32 %v1848, 2147483648
      %v1915 = vxor.u32 %v1851, 2147483648
      %v1916 = vxor.u32 %v1856, 2147483648
      %v1917 = vxor.u32 %v1859, 2147483648
      %v1918 = vmul.f32 %v1914, 1.442695
      %v1919 = vpow.pop %v1918
      %v1920 = vmul.f32 %v1915, 1.442695
      %v1921 = vpow.pop %v1920
      %v1922 = vmul.f32 %v1916, 1.442695
      %v1923 = vpow.pop %v1922
      %v1924 = vmul.f32 %v1917, 1.442695
      %v1925 = vpow.pop %v1924
      %v1926 = vadd.f32 %v1919, 1.0
      %v1927 = vadd.f32 %v1921, 1.0
      %v1928 = vadd.f32 %v1923, 1.0
      %v1929 = vadd.f32 %v1925, 1.0
      %v1930 = vrcp.pop %v1926
      %v1931 = vmul.f32 1.0, %v1930
      %v1932 = vrcp.pop %v1927
      %v1933 = vmul.f32 1.0, %v1932
      %v1934 = vrcp.pop %v1928
      %v1935 = vmul.f32 1.0, %v1934
      %v1936 = vrcp.pop %v1929
      %v1937 = vmul.f32 1.0, %v1936
      %v1938 = vmul.f32 %v1903, %v1274
      %v1939 = vmul.f32 %v1905, %v1275
      %v1940 = vmul.f32 %v1907, %v1276
      %v1941 = vmul.f32 %v1909, %v1277
      %v1942 = vmul.f32 %v1879, %v1910
      %v1943 = vmul.f32 %v1881, %v1911
      %v1944 = vmul.f32 %v1883, %v1912
      %v1945 = vmul.f32 %v1885, %v1913
      %v1946 = vadd.f32 %v1938, %v1942
      %v1947 = vadd.f32 %v1939, %v1943
      %v1948 = vadd.f32 %v1940, %v1944
      %v1949 = vadd.f32 %v1941, %v1945
      %v1950 = vtanh.pop %v1946
      %v1951 = vtanh.pop %v1947
      %v1952 = vtanh.pop %v1948
      %v1953 = vtanh.pop %v1949
      %v1954 = vmul.f32 %v1931, %v1950
      %v1955 = vmul.f32 %v1933, %v1951
      %v1956 = vmul.f32 %v1935, %v1952
      %v1957 = vmul.f32 %v1937, %v1953
      %v1958 = vsel %vm1311, 1, 0
      %v1959 = vlaneseq
      %v1960 = vshrl.u32 %v1959, 7
      %v1961 = vsub.s32 0, %v1960
      %v1962 = vrot.slane %v1958, %v1961
      %vm1963 = vcmp.eq.s32.totalorder %v1962, 1
      %v1964 = vsel %vm1963, %v1954, %v1270
      %v1965 = vsel %vm1963, %v1955, %v1271
      %v1966 = vsel %vm1963, %v1956, %v1272
      %v1967 = vsel %vm1963, %v1957, %v1273
      %v1968 = vsel %vm1963, %v1946, %v1274
      %v1969 = vsel %vm1963, %v1947, %v1275
      %v1970 = vsel %vm1963, %v1948, %v1276
      %v1971 = vsel %vm1963, %v1949, %v1277
      %vm1972 = vcmp.ne.f32.partialorder %v1624, 0.0
      %vm1973 = vcmp.ne.f32.partialorder %v1625, 0.0
      %vm1974 = vcmp.ne.f32.partialorder %v1626, 0.0
      %vm1975 = vcmp.ne.f32.partialorder %v1627, 0.0
      %vm1976 = vmand %vm1633, %vm1972
      %vm1977 = vmand %vm1633, %vm1973
      %vm1978 = vmand %vm1633, %vm1974
      %vm1979 = vmand %vm1633, %vm1975
      %v1980 = vsel %vm1976, %v1624, -1e+09
      %v1981 = vsel %vm1977, %v1625, -1e+09
      %v1982 = vsel %vm1978, %v1626, -1e+09
      %v1983 = vsel %vm1979, %v1627, -1e+09
      %v1984 = vmax.f32 %v1290, %v1980
      %v1985 = vmax.f32 %v1291, %v1981
      %v1986 = vmax.f32 %v1292, %v1982
      %v1987 = vmax.f32 %v1293, %v1983
      %vm1988 = vcmp.ne.f32.partialorder %v1954, 0.0
      %vm1989 = vcmp.ne.f32.partialorder %v1955, 0.0
      %vm1990 = vcmp.ne.f32.partialorder %v1956, 0.0
      %vm1991 = vcmp.ne.f32.partialorder %v1957, 0.0
      %vm1992 = vmand %vm1963, %vm1988
      %vm1993 = vmand %vm1963, %vm1989
      %vm1994 = vmand %vm1963, %vm1990
      %vm1995 = vmand %vm1963, %vm1991
      %v1996 = vsel %vm1992, %v1954, -1e+09
      %v1997 = vsel %vm1993, %v1955, -1e+09
      %v1998 = vsel %vm1994, %v1956, -1e+09
      %v1999 = vsel %vm1995, %v1957, -1e+09
      %v2000 = vmax.f32 %v1306, %v1996
      %v2001 = vmax.f32 %v1307, %v1997
      %v2002 = vmax.f32 %v1308, %v1998
      %v2003 = vmax.f32 %v1309, %v1999
      %vm2004 = vcmp.gt.s32.totalorder %v359, 2
      %vm2005 = vcmp.gt.s32.totalorder %v359, 5
      %s2006 = scalar_lea.vmem %s269, 40
      %v2007 = vld [vmem:[%s2006] sm:$0xf]
      %v2008 = vld [vmem:[%s2006 + $0x4] sm:$0xf]
      %v2009 = vld [vmem:[%s2006 + $0x8] sm:$0xf]
      %v2010 = vld [vmem:[%s2006 + $0xc] sm:$0xf]
      %v2011 = vld [vmem:[%s2006 + $0x10] sm:$0x1]
      %v2012 = vpack.c.bf16 %v1635, %v1634
      %v2013 = vpack.c.bf16 %v1637, %v1636
      %2014 = vmatprep.subr.bf16.mxu0 0
      %2015 = vmatpush1.bf16.msra.mxu0 0
      %2016 = vmatprep.subr.bf16.mxu0 0
      %2017 = vmatpush1.bf16.msra.mxu0 0
      %2018 = vmatprep.subr.bf16.mxu0 0
      %2019 = vmatpush1.bf16.msra.mxu0 0
      %2020 = vmatprep.subr.bf16.mxu0 0
      %2021 = vmatpush1.bf16.msra.mxu0 0
      %2022 = vmatprep.subr.bf16.mxu0 0
      %2023 = vmatpush1.bf16.msra.mxu0 0
      %2024 = vmatprep.subr.bf16.mxu0 0
      %2025 = vmatpush1.bf16.msra.mxu0 0
      %2026 = vmatprep.subr.bf16.mxu0 0
      %2027 = vmatpush1.bf16.msra.mxu0 %v2013
      %2028 = vmatprep.subr.bf16.mxu0 0
      %2029 = vmatpush1.bf16.msra.mxu0 %v2012
      %2030 = vmatprep.subr.bf16.mxu0 0
      %2031 = vmatpush2.bf16.msra.mxu0 0
      %2032 = vmatprep.subr.bf16.mxu0 0
      %2033 = vmatpush2.bf16.msra.mxu0 0
      %2034 = vmatprep.subr.bf16.mxu0 0
      %2035 = vmatpush2.bf16.msra.mxu0 0
      %2036 = vmatprep.subr.bf16.mxu0 0
      %2037 = vmatpush2.bf16.msra.mxu0 0
      %2038 = vmatprep.subr.bf16.mxu0 0
      %2039 = vmatpush2.bf16.msra.mxu0 0
      %2040 = vmatprep.subr.bf16.mxu0 0
      %2041 = vmatpush2.bf16.msra.mxu0 0
      %2042 = vmatprep.subr.bf16.mxu0 0
      %2043 = vmatpush2.bf16.msra.mxu0 0
      %2044 = vmatprep.subr.bf16.mxu0 0
      %2045 = vmatpush2.bf16.msra.mxu0 0
      %2046 = vmatprep.mubr.bf16.mxu0 0
      %2047 = vmatmul.mubr.bf16.gmra.mxu0 %v409
      %v2048 = vpop.f32.mrf.mxu0
      %v2049 = vadd.f32 0.0, %v2048
      %v2050 = vpop.f32.mrf.mxu0
      %v2051 = vpop.f32.mrf.mxu0
      %v2052 = vadd.f32 0.0, %v2051
      %v2053 = vpop.f32.mrf.mxu0
      %2054 = vmatprep.mubr.bf16.mxu0 0
      %2055 = vmatmul.mubr.bf16.gmra.mxu0 %v412
      %v2056 = vpop.f32.mrf.mxu0
      %v2057 = vadd.f32 0.0, %v2056
      %v2058 = vpop.f32.mrf.mxu0
      %v2059 = vpop.f32.mrf.mxu0
      %v2060 = vadd.f32 0.0, %v2059
      %v2061 = vpop.f32.mrf.mxu0
      %2062 = vmatprep.mubr.bf16.mxu0 0
      %2063 = vmatmul.mubr.bf16.gmra.mxu0 %v415
      %v2064 = vpop.f32.mrf.mxu0
      %v2065 = vadd.f32 0.0, %v2064
      %v2066 = vpop.f32.mrf.mxu0
      %v2067 = vpop.f32.mrf.mxu0
      %v2068 = vadd.f32 0.0, %v2067
      %v2069 = vpop.f32.mrf.mxu0
      %2070 = vmatprep.mubr.bf16.mxu0 0
      %2071 = vmatmul.mubr.bf16.gmra.mxu0 %v418
      %v2072 = vpop.f32.mrf.mxu0
      %v2073 = vadd.f32 0.0, %v2072
      %v2074 = vpop.f32.mrf.mxu0
      %v2075 = vpop.f32.mrf.mxu0
      %v2076 = vadd.f32 0.0, %v2075
      %v2077 = vpop.f32.mrf.mxu0
      %2078 = vmatprep.mubr.bf16.mxu0 0
      %2079 = vmatmul.mubr.bf16.gmra.mxu0 %v421
      %v2080 = vpop.f32.mrf.mxu0
      %v2081 = vadd.f32 0.0, %v2080
      %v2082 = vpop.f32.mrf.mxu0
      %v2083 = vpop.f32.mrf.mxu0
      %v2084 = vadd.f32 0.0, %v2083
      %v2085 = vpop.f32.mrf.mxu0
      %2086 = vmatprep.mubr.bf16.mxu0 0
      %2087 = vmatmul.mubr.bf16.gmra.mxu0 %v424
      %v2088 = vpop.f32.mrf.mxu0
      %v2089 = vadd.f32 0.0, %v2088
      %v2090 = vpop.f32.mrf.mxu0
      %v2091 = vpop.f32.mrf.mxu0
      %v2092 = vadd.f32 0.0, %v2091
      %v2093 = vpop.f32.mrf.mxu0
      %2094 = vmatprep.mubr.bf16.mxu0 0
      %2095 = vmatmul.mubr.bf16.gmra.mxu0 %v427
      %v2096 = vpop.f32.mrf.mxu0
      %v2097 = vadd.f32 0.0, %v2096
      %v2098 = vpop.f32.mrf.mxu0
      %v2099 = vpop.f32.mrf.mxu0
      %v2100 = vadd.f32 0.0, %v2099
      %v2101 = vpop.f32.mrf.mxu0
      %2102 = vmatprep.mubr.bf16.mxu0 0
      %2103 = vmatmul.mubr.bf16.gmra.mxu0 %v430
      %v2104 = vpop.f32.mrf.mxu0
      %v2105 = vadd.f32 0.0, %v2104
      %v2106 = vpop.f32.mrf.mxu0
      %v2107 = vpop.f32.mrf.mxu0
      %v2108 = vadd.f32 0.0, %v2107
      %v2109 = vpop.f32.mrf.mxu0
      %2110 = vdwg.mxu0
      %v2116 = vunpack.c.l.b16 %v2007
      %v2117 = vunpack.c.l.b16 %v2008
      %v2118 = vunpack.c.l.b16 %v2009
      %v2119 = vunpack.c.l.b16 %v2010
      %v2120 = vunpack.c.l.b16 %v2011
      %v2121 = vpack.c.b16 %v2117, %v2116
      %v2122 = vpack.c.b16 %v2119, %v2118
      %v2123 = vpack.c.b16 %v2120, %v2120
      %v2127 = vand.u32 %v2123, %v611
      %2129 = vmatprep.subr.bf16.mxu0 0
      %2130 = vmatpush1.bf16.msra.mxu0 0
      %2131 = vmatprep.subr.bf16.mxu0 0
      %2132 = vmatpush1.bf16.msra.mxu0 0
      %2133 = vmatprep.subr.bf16.mxu0 0
      %2134 = vmatpush1.bf16.msra.mxu0 0
      %2135 = vmatprep.subr.bf16.mxu0 0
      %2136 = vmatpush1.bf16.msra.mxu0 0
      %2137 = vmatprep.subr.bf16.mxu0 0
      %2138 = vmatpush1.bf16.msra.mxu0 0
      %2139 = vmatprep.subr.bf16.mxu0 0
      %2140 = vmatpush1.bf16.msra.mxu0 %v2127
      %2141 = vmatprep.subr.bf16.mxu0 0
      %2142 = vmatpush1.bf16.msra.mxu0 %v2122
      %2143 = vmatprep.subr.bf16.mxu0 0
      %2144 = vmatpush1.bf16.msra.mxu0 %v2121
      %2145 = vmatprep.subr.bf16.mxu0 0
      %2146 = vmatpush2.bf16.msra.mxu0 0
      %2147 = vmatprep.subr.bf16.mxu0 0
      %2148 = vmatpush2.bf16.msra.mxu0 0
      %2149 = vmatprep.subr.bf16.mxu0 0
      %2150 = vmatpush2.bf16.msra.mxu0 0
      %2151 = vmatprep.subr.bf16.mxu0 0
      %2152 = vmatpush2.bf16.msra.mxu0 0
      %2153 = vmatprep.subr.bf16.mxu0 0
      %2154 = vmatpush2.bf16.msra.mxu0 0
      %2155 = vmatprep.subr.bf16.mxu0 0
      %2156 = vmatpush2.bf16.msra.mxu0 0
      %2157 = vmatprep.subr.bf16.mxu0 0
      %2158 = vmatpush2.bf16.msra.mxu0 0
      %2159 = vmatprep.subr.bf16.mxu0 0
      %2160 = vmatpush2.bf16.msra.mxu0 0
      %2161 = vmatprep.mubr.bf16.mxu0 0
      %2162 = vmatmul.mubr.bf16.gmra.mxu0 %v586
      %v2163 = vpop.f32.mrf.mxu0
      %v2164 = vadd.f32 %v2049, %v2163
      %v2165 = vpop.f32.mrf.mxu0
      %v2166 = vpop.f32.mrf.mxu0
      %v2167 = vadd.f32 %v2052, %v2166
      %v2168 = vpop.f32.mrf.mxu0
      %2169 = vmatprep.mubr.bf16.mxu0 0
      %2170 = vmatmul.mubr.bf16.gmra.mxu0 %v589
      %v2171 = vpop.f32.mrf.mxu0
      %v2172 = vadd.f32 %v2057, %v2171
      %v2173 = vpop.f32.mrf.mxu0
      %v2174 = vpop.f32.mrf.mxu0
      %v2175 = vadd.f32 %v2060, %v2174
      %v2176 = vpop.f32.mrf.mxu0
      %2177 = vmatprep.mubr.bf16.mxu0 0
      %2178 = vmatmul.mubr.bf16.gmra.mxu0 %v592
      %v2179 = vpop.f32.mrf.mxu0
      %v2180 = vadd.f32 %v2065, %v2179
      %v2181 = vpop.f32.mrf.mxu0
      %v2182 = vpop.f32.mrf.mxu0
      %v2183 = vadd.f32 %v2068, %v2182
      %v2184 = vpop.f32.mrf.mxu0
      %2185 = vmatprep.mubr.bf16.mxu0 0
      %2186 = vmatmul.mubr.bf16.gmra.mxu0 %v595
      %v2187 = vpop.f32.mrf.mxu0
      %v2188 = vadd.f32 %v2073, %v2187
      %v2189 = vpop.f32.mrf.mxu0
      %v2190 = vpop.f32.mrf.mxu0
      %v2191 = vadd.f32 %v2076, %v2190
      %v2192 = vpop.f32.mrf.mxu0
      %2193 = vmatprep.mubr.bf16.mxu0 0
      %2194 = vmatmul.mubr.bf16.gmra.mxu0 %v598
      %v2195 = vpop.f32.mrf.mxu0
      %v2196 = vadd.f32 %v2081, %v2195
      %v2197 = vpop.f32.mrf.mxu0
      %v2198 = vpop.f32.mrf.mxu0
      %v2199 = vadd.f32 %v2084, %v2198
      %v2200 = vpop.f32.mrf.mxu0
      %2201 = vmatprep.mubr.bf16.mxu0 0
      %2202 = vmatmul.mubr.bf16.gmra.mxu0 %v601
      %v2203 = vpop.f32.mrf.mxu0
      %v2204 = vadd.f32 %v2089, %v2203
      %v2205 = vpop.f32.mrf.mxu0
      %v2206 = vpop.f32.mrf.mxu0
      %v2207 = vadd.f32 %v2092, %v2206
      %v2208 = vpop.f32.mrf.mxu0
      %2209 = vmatprep.mubr.bf16.mxu0 0
      %2210 = vmatmul.mubr.bf16.gmra.mxu0 %v604
      %v2211 = vpop.f32.mrf.mxu0
      %v2212 = vadd.f32 %v2097, %v2211
      %v2213 = vpop.f32.mrf.mxu0
      %v2214 = vpop.f32.mrf.mxu0
      %v2215 = vadd.f32 %v2100, %v2214
      %v2216 = vpop.f32.mrf.mxu0
      %2217 = vmatprep.mubr.bf16.mxu0 0
      %2218 = vmatmul.mubr.bf16.gmra.mxu0 %v607
      %v2219 = vpop.f32.mrf.mxu0
      %v2220 = vadd.f32 %v2105, %v2219
      %v2221 = vpop.f32.mrf.mxu0
      %v2222 = vpop.f32.mrf.mxu0
      %v2223 = vadd.f32 %v2108, %v2222
      %v2224 = vpop.f32.mrf.mxu0
      %2225 = vdwg.mxu0
      %v2226 = vxor.u32 %v2164, 2147483648
      %v2227 = vxor.u32 %v2167, 2147483648
      %v2228 = vxor.u32 %v2172, 2147483648
      %v2229 = vxor.u32 %v2175, 2147483648
      %v2230 = vmul.f32 %v2226, 1.442695
      %v2231 = vpow.pop %v2230
      %v2232 = vmul.f32 %v2227, 1.442695
      %v2233 = vpow.pop %v2232
      %v2234 = vmul.f32 %v2228, 1.442695
      %v2235 = vpow.pop %v2234
      %v2236 = vmul.f32 %v2229, 1.442695
      %v2237 = vpow.pop %v2236
      %v2238 = vadd.f32 %v2231, 1.0
      %v2239 = vadd.f32 %v2233, 1.0
      %v2240 = vadd.f32 %v2235, 1.0
      %v2241 = vadd.f32 %v2237, 1.0
      %v2242 = vrcp.pop %v2238
      %v2243 = vmul.f32 1.0, %v2242
      %v2244 = vrcp.pop %v2239
      %v2245 = vmul.f32 1.0, %v2244
      %v2246 = vrcp.pop %v2240
      %v2247 = vmul.f32 1.0, %v2246
      %v2248 = vrcp.pop %v2241
      %v2249 = vmul.f32 1.0, %v2248
      %v2250 = vxor.u32 %v2180, 2147483648
      %v2251 = vxor.u32 %v2183, 2147483648
      %v2252 = vxor.u32 %v2188, 2147483648
      %v2253 = vxor.u32 %v2191, 2147483648
      %v2254 = vmul.f32 %v2250, 1.442695
      %v2255 = vpow.pop %v2254
      %v2256 = vmul.f32 %v2251, 1.442695
      %v2257 = vpow.pop %v2256
      %v2258 = vmul.f32 %v2252, 1.442695
      %v2259 = vpow.pop %v2258
      %v2260 = vmul.f32 %v2253, 1.442695
      %v2261 = vpow.pop %v2260
      %v2262 = vadd.f32 %v2255, 1.0
      %v2263 = vadd.f32 %v2257, 1.0
      %v2264 = vadd.f32 %v2259, 1.0
      %v2265 = vadd.f32 %v2261, 1.0
      %v2266 = vrcp.pop %v2262
      %v2267 = vmul.f32 1.0, %v2266
      %v2268 = vrcp.pop %v2263
      %v2269 = vmul.f32 1.0, %v2268
      %v2270 = vrcp.pop %v2264
      %v2271 = vmul.f32 1.0, %v2270
      %v2272 = vrcp.pop %v2265
      %v2273 = vmul.f32 1.0, %v2272
      %v2274 = vtanh.pop %v2196
      %v2275 = vtanh.pop %v2199
      %v2276 = vtanh.pop %v2204
      %v2277 = vtanh.pop %v2207
      %v2278 = vxor.u32 %v2212, 2147483648
      %v2279 = vxor.u32 %v2215, 2147483648
      %v2280 = vxor.u32 %v2220, 2147483648
      %v2281 = vxor.u32 %v2223, 2147483648
      %v2282 = vmul.f32 %v2278, 1.442695
      %v2283 = vpow.pop %v2282
      %v2284 = vmul.f32 %v2279, 1.442695
      %v2285 = vpow.pop %v2284
      %v2286 = vmul.f32 %v2280, 1.442695
      %v2287 = vpow.pop %v2286
      %v2288 = vmul.f32 %v2281, 1.442695
      %v2289 = vpow.pop %v2288
      %v2290 = vadd.f32 %v2283, 1.0
      %v2291 = vadd.f32 %v2285, 1.0
      %v2292 = vadd.f32 %v2287, 1.0
      %v2293 = vadd.f32 %v2289, 1.0
      %v2294 = vrcp.pop %v2290
      %v2295 = vmul.f32 1.0, %v2294
      %v2296 = vrcp.pop %v2291
      %v2297 = vmul.f32 1.0, %v2296
      %v2298 = vrcp.pop %v2292
      %v2299 = vmul.f32 1.0, %v2298
      %v2300 = vrcp.pop %v2293
      %v2301 = vmul.f32 1.0, %v2300
      %v2302 = vmul.f32 %v2267, %v1638
      %v2303 = vmul.f32 %v2269, %v1639
      %v2304 = vmul.f32 %v2271, %v1640
      %v2305 = vmul.f32 %v2273, %v1641
      %v2306 = vmul.f32 %v2243, %v2274
      %v2307 = vmul.f32 %v2245, %v2275
      %v2308 = vmul.f32 %v2247, %v2276
      %v2309 = vmul.f32 %v2249, %v2277
      %v2310 = vadd.f32 %v2302, %v2306
      %v2311 = vadd.f32 %v2303, %v2307
      %v2312 = vadd.f32 %v2304, %v2308
      %v2313 = vadd.f32 %v2305, %v2309
      %v2314 = vtanh.pop %v2310
      %v2315 = vtanh.pop %v2311
      %v2316 = vtanh.pop %v2312
      %v2317 = vtanh.pop %v2313
      %v2318 = vmul.f32 %v2295, %v2314
      %v2319 = vmul.f32 %v2297, %v2315
      %v2320 = vmul.f32 %v2299, %v2316
      %v2321 = vmul.f32 %v2301, %v2317
      %v2322 = vsel %vm2004, 1, 0
      %v2323 = vlaneseq
      %v2324 = vshrl.u32 %v2323, 7
      %v2325 = vsub.s32 0, %v2324
      %v2326 = vrot.slane %v2322, %v2325
      %vm2327 = vcmp.eq.s32.totalorder %v2326, 1
      %v2328 = vsel %vm2327, %v2318, %v1634
      %v2329 = vsel %vm2327, %v2319, %v1635
      %v2330 = vsel %vm2327, %v2320, %v1636
      %v2331 = vsel %vm2327, %v2321, %v1637
      %v2332 = vsel %vm2327, %v2310, %v1638
      %v2333 = vsel %vm2327, %v2311, %v1639
      %v2334 = vsel %vm2327, %v2312, %v1640
      %v2335 = vsel %vm2327, %v2313, %v1641
      %s2336 = scalar_lea.vmem %s269, 100
      %v2337 = vld [vmem:[%s2336] sm:$0xf]
      %v2338 = vld [vmem:[%s2336 + $0x4] sm:$0xf]
      %v2339 = vld [vmem:[%s2336 + $0x8] sm:$0xf]
      %v2340 = vld [vmem:[%s2336 + $0xc] sm:$0xf]
      %v2341 = vld [vmem:[%s2336 + $0x10] sm:$0x1]
      %v2342 = vpack.c.bf16 %v1965, %v1964
      %v2343 = vpack.c.bf16 %v1967, %v1966
      %2344 = vmatprep.subr.bf16.mxu0 0
      %2345 = vmatpush1.bf16.msra.mxu0 0
      %2346 = vmatprep.subr.bf16.mxu0 0
      %2347 = vmatpush1.bf16.msra.mxu0 0
      %2348 = vmatprep.subr.bf16.mxu0 0
      %2349 = vmatpush1.bf16.msra.mxu0 0
      %2350 = vmatprep.subr.bf16.mxu0 0
      %2351 = vmatpush1.bf16.msra.mxu0 0
      %2352 = vmatprep.subr.bf16.mxu0 0
      %2353 = vmatpush1.bf16.msra.mxu0 0
      %2354 = vmatprep.subr.bf16.mxu0 0
      %2355 = vmatpush1.bf16.msra.mxu0 0
      %2356 = vmatprep.subr.bf16.mxu0 0
      %2357 = vmatpush1.bf16.msra.mxu0 %v2343
      %2358 = vmatprep.subr.bf16.mxu0 0
      %2359 = vmatpush1.bf16.msra.mxu0 %v2342
      %2360 = vmatprep.subr.bf16.mxu0 0
      %2361 = vmatpush2.bf16.msra.mxu0 0
      %2362 = vmatprep.subr.bf16.mxu0 0
      %2363 = vmatpush2.bf16.msra.mxu0 0
      %2364 = vmatprep.subr.bf16.mxu0 0
      %2365 = vmatpush2.bf16.msra.mxu0 0
      %2366 = vmatprep.subr.bf16.mxu0 0
      %2367 = vmatpush2.bf16.msra.mxu0 0
      %2368 = vmatprep.subr.bf16.mxu0 0
      %2369 = vmatpush2.bf16.msra.mxu0 0
      %2370 = vmatprep.subr.bf16.mxu0 0
      %2371 = vmatpush2.bf16.msra.mxu0 0
      %2372 = vmatprep.subr.bf16.mxu0 0
      %2373 = vmatpush2.bf16.msra.mxu0 0
      %2374 = vmatprep.subr.bf16.mxu0 0
      %2375 = vmatpush2.bf16.msra.mxu0 0
      %2376 = vmatprep.mubr.bf16.mxu0 0
      %2377 = vmatmul.mubr.bf16.gmra.mxu0 %v869
      %v2378 = vpop.f32.mrf.mxu0
      %v2379 = vadd.f32 0.0, %v2378
      %v2380 = vpop.f32.mrf.mxu0
      %v2381 = vpop.f32.mrf.mxu0
      %v2382 = vadd.f32 0.0, %v2381
      %v2383 = vpop.f32.mrf.mxu0
      %2384 = vmatprep.mubr.bf16.mxu0 0
      %2385 = vmatmul.mubr.bf16.gmra.mxu0 %v872
      %v2386 = vpop.f32.mrf.mxu0
      %v2387 = vadd.f32 0.0, %v2386
      %v2388 = vpop.f32.mrf.mxu0
      %v2389 = vpop.f32.mrf.mxu0
      %v2390 = vadd.f32 0.0, %v2389
      %v2391 = vpop.f32.mrf.mxu0
      %2392 = vmatprep.mubr.bf16.mxu0 0
      %2393 = vmatmul.mubr.bf16.gmra.mxu0 %v875
      %v2394 = vpop.f32.mrf.mxu0
      %v2395 = vadd.f32 0.0, %v2394
      %v2396 = vpop.f32.mrf.mxu0
      %v2397 = vpop.f32.mrf.mxu0
      %v2398 = vadd.f32 0.0, %v2397
      %v2399 = vpop.f32.mrf.mxu0
      %2400 = vmatprep.mubr.bf16.mxu0 0
      %2401 = vmatmul.mubr.bf16.gmra.mxu0 %v878
      %v2402 = vpop.f32.mrf.mxu0
      %v2403 = vadd.f32 0.0, %v2402
      %v2404 = vpop.f32.mrf.mxu0
      %v2405 = vpop.f32.mrf.mxu0
      %v2406 = vadd.f32 0.0, %v2405
      %v2407 = vpop.f32.mrf.mxu0
      %2408 = vmatprep.mubr.bf16.mxu0 0
      %2409 = vmatmul.mubr.bf16.gmra.mxu0 %v881
      %v2410 = vpop.f32.mrf.mxu0
      %v2411 = vadd.f32 0.0, %v2410
      %v2412 = vpop.f32.mrf.mxu0
      %v2413 = vpop.f32.mrf.mxu0
      %v2414 = vadd.f32 0.0, %v2413
      %v2415 = vpop.f32.mrf.mxu0
      %2416 = vmatprep.mubr.bf16.mxu0 0
      %2417 = vmatmul.mubr.bf16.gmra.mxu0 %v884
      %v2418 = vpop.f32.mrf.mxu0
      %v2419 = vadd.f32 0.0, %v2418
      %v2420 = vpop.f32.mrf.mxu0
      %v2421 = vpop.f32.mrf.mxu0
      %v2422 = vadd.f32 0.0, %v2421
      %v2423 = vpop.f32.mrf.mxu0
      %2424 = vmatprep.mubr.bf16.mxu0 0
      %2425 = vmatmul.mubr.bf16.gmra.mxu0 %v887
      %v2426 = vpop.f32.mrf.mxu0
      %v2427 = vadd.f32 0.0, %v2426
      %v2428 = vpop.f32.mrf.mxu0
      %v2429 = vpop.f32.mrf.mxu0
      %v2430 = vadd.f32 0.0, %v2429
      %v2431 = vpop.f32.mrf.mxu0
      %2432 = vmatprep.mubr.bf16.mxu0 0
      %2433 = vmatmul.mubr.bf16.gmra.mxu0 %v890
      %v2434 = vpop.f32.mrf.mxu0
      %v2435 = vadd.f32 0.0, %v2434
      %v2436 = vpop.f32.mrf.mxu0
      %v2437 = vpop.f32.mrf.mxu0
      %v2438 = vadd.f32 0.0, %v2437
      %v2439 = vpop.f32.mrf.mxu0
      %2440 = vdwg.mxu0
      %v2446 = vunpack.c.l.b16 %v2337
      %v2447 = vunpack.c.l.b16 %v2338
      %v2448 = vunpack.c.l.b16 %v2339
      %v2449 = vunpack.c.l.b16 %v2340
      %v2450 = vunpack.c.l.b16 %v2341
      %v2451 = vpack.c.b16 %v2447, %v2446
      %v2452 = vpack.c.b16 %v2449, %v2448
      %v2453 = vpack.c.b16 %v2450, %v2450
      %v2457 = vand.u32 %v2453, %v611
      %2459 = vmatprep.subr.bf16.mxu0 0
      %2460 = vmatpush1.bf16.msra.mxu0 0
      %2461 = vmatprep.subr.bf16.mxu0 0
      %2462 = vmatpush1.bf16.msra.mxu0 0
      %2463 = vmatprep.subr.bf16.mxu0 0
      %2464 = vmatpush1.bf16.msra.mxu0 0
      %2465 = vmatprep.subr.bf16.mxu0 0
      %2466 = vmatpush1.bf16.msra.mxu0 0
      %2467 = vmatprep.subr.bf16.mxu0 0
      %2468 = vmatpush1.bf16.msra.mxu0 0
      %2469 = vmatprep.subr.bf16.mxu0 0
      %2470 = vmatpush1.bf16.msra.mxu0 %v2457
      %2471 = vmatprep.subr.bf16.mxu0 0
      %2472 = vmatpush1.bf16.msra.mxu0 %v2452
      %2473 = vmatprep.subr.bf16.mxu0 0
      %2474 = vmatpush1.bf16.msra.mxu0 %v2451
      %2475 = vmatprep.subr.bf16.mxu0 0
      %2476 = vmatpush2.bf16.msra.mxu0 0
      %2477 = vmatprep.subr.bf16.mxu0 0
      %2478 = vmatpush2.bf16.msra.mxu0 0
      %2479 = vmatprep.subr.bf16.mxu0 0
      %2480 = vmatpush2.bf16.msra.mxu0 0
      %2481 = vmatprep.subr.bf16.mxu0 0
      %2482 = vmatpush2.bf16.msra.mxu0 0
      %2483 = vmatprep.subr.bf16.mxu0 0
      %2484 = vmatpush2.bf16.msra.mxu0 0
      %2485 = vmatprep.subr.bf16.mxu0 0
      %2486 = vmatpush2.bf16.msra.mxu0 0
      %2487 = vmatprep.subr.bf16.mxu0 0
      %2488 = vmatpush2.bf16.msra.mxu0 0
      %2489 = vmatprep.subr.bf16.mxu0 0
      %2490 = vmatpush2.bf16.msra.mxu0 0
      %2491 = vmatprep.mubr.bf16.mxu0 0
      %2492 = vmatmul.mubr.bf16.gmra.mxu0 %v1045
      %v2493 = vpop.f32.mrf.mxu0
      %v2494 = vadd.f32 %v2379, %v2493
      %v2495 = vpop.f32.mrf.mxu0
      %v2496 = vpop.f32.mrf.mxu0
      %v2497 = vadd.f32 %v2382, %v2496
      %v2498 = vpop.f32.mrf.mxu0
      %2499 = vmatprep.mubr.bf16.mxu0 0
      %2500 = vmatmul.mubr.bf16.gmra.mxu0 %v1048
      %v2501 = vpop.f32.mrf.mxu0
      %v2502 = vadd.f32 %v2387, %v2501
      %v2503 = vpop.f32.mrf.mxu0
      %v2504 = vpop.f32.mrf.mxu0
      %v2505 = vadd.f32 %v2390, %v2504
      %v2506 = vpop.f32.mrf.mxu0
      %2507 = vmatprep.mubr.bf16.mxu0 0
      %2508 = vmatmul.mubr.bf16.gmra.mxu0 %v1051
      %v2509 = vpop.f32.mrf.mxu0
      %v2510 = vadd.f32 %v2395, %v2509
      %v2511 = vpop.f32.mrf.mxu0
      %v2512 = vpop.f32.mrf.mxu0
      %v2513 = vadd.f32 %v2398, %v2512
      %v2514 = vpop.f32.mrf.mxu0
      %2515 = vmatprep.mubr.bf16.mxu0 0
      %2516 = vmatmul.mubr.bf16.gmra.mxu0 %v1054
      %v2517 = vpop.f32.mrf.mxu0
      %v2518 = vadd.f32 %v2403, %v2517
      %v2519 = vpop.f32.mrf.mxu0
      %v2520 = vpop.f32.mrf.mxu0
      %v2521 = vadd.f32 %v2406, %v2520
      %v2522 = vpop.f32.mrf.mxu0
      %2523 = vmatprep.mubr.bf16.mxu0 0
      %2524 = vmatmul.mubr.bf16.gmra.mxu0 %v1057
      %v2525 = vpop.f32.mrf.mxu0
      %v2526 = vadd.f32 %v2411, %v2525
      %v2527 = vpop.f32.mrf.mxu0
      %v2528 = vpop.f32.mrf.mxu0
      %v2529 = vadd.f32 %v2414, %v2528
      %v2530 = vpop.f32.mrf.mxu0
      %2531 = vmatprep.mubr.bf16.mxu0 0
      %2532 = vmatmul.mubr.bf16.gmra.mxu0 %v1060
      %v2533 = vpop.f32.mrf.mxu0
      %v2534 = vadd.f32 %v2419, %v2533
      %v2535 = vpop.f32.mrf.mxu0
      %v2536 = vpop.f32.mrf.mxu0
      %v2537 = vadd.f32 %v2422, %v2536
      %v2538 = vpop.f32.mrf.mxu0
      %2539 = vmatprep.mubr.bf16.mxu0 0
      %2540 = vmatmul.mubr.bf16.gmra.mxu0 %v1063
      %v2541 = vpop.f32.mrf.mxu0
      %v2542 = vadd.f32 %v2427, %v2541
      %v2543 = vpop.f32.mrf.mxu0
      %v2544 = vpop.f32.mrf.mxu0
      %v2545 = vadd.f32 %v2430, %v2544
      %v2546 = vpop.f32.mrf.mxu0
      %2547 = vmatprep.mubr.bf16.mxu0 0
      %2548 = vmatmul.mubr.bf16.gmra.mxu0 %v1066
      %v2549 = vpop.f32.mrf.mxu0
      %v2550 = vadd.f32 %v2435, %v2549
      %v2551 = vpop.f32.mrf.mxu0
      %v2552 = vpop.f32.mrf.mxu0
      %v2553 = vadd.f32 %v2438, %v2552
      %v2554 = vpop.f32.mrf.mxu0
      %2555 = vdwg.mxu0
      %v2556 = vxor.u32 %v2494, 2147483648
      %v2557 = vxor.u32 %v2497, 2147483648
      %v2558 = vxor.u32 %v2502, 2147483648
      %v2559 = vxor.u32 %v2505, 2147483648
      %v2560 = vmul.f32 %v2556, 1.442695
      %v2561 = vpow.pop %v2560
      %v2562 = vmul.f32 %v2557, 1.442695
      %v2563 = vpow.pop %v2562
      %v2564 = vmul.f32 %v2558, 1.442695
      %v2565 = vpow.pop %v2564
      %v2566 = vmul.f32 %v2559, 1.442695
      %v2567 = vpow.pop %v2566
      %v2568 = vadd.f32 %v2561, 1.0
      %v2569 = vadd.f32 %v2563, 1.0
      %v2570 = vadd.f32 %v2565, 1.0
      %v2571 = vadd.f32 %v2567, 1.0
      %v2572 = vrcp.pop %v2568
      %v2573 = vmul.f32 1.0, %v2572
      %v2574 = vrcp.pop %v2569
      %v2575 = vmul.f32 1.0, %v2574
      %v2576 = vrcp.pop %v2570
      %v2577 = vmul.f32 1.0, %v2576
      %v2578 = vrcp.pop %v2571
      %v2579 = vmul.f32 1.0, %v2578
      %v2580 = vxor.u32 %v2510, 2147483648
      %v2581 = vxor.u32 %v2513, 2147483648
      %v2582 = vxor.u32 %v2518, 2147483648
      %v2583 = vxor.u32 %v2521, 2147483648
      %v2584 = vmul.f32 %v2580, 1.442695
      %v2585 = vpow.pop %v2584
      %v2586 = vmul.f32 %v2581, 1.442695
      %v2587 = vpow.pop %v2586
      %v2588 = vmul.f32 %v2582, 1.442695
      %v2589 = vpow.pop %v2588
      %v2590 = vmul.f32 %v2583, 1.442695
      %v2591 = vpow.pop %v2590
      %v2592 = vadd.f32 %v2585, 1.0
      %v2593 = vadd.f32 %v2587, 1.0
      %v2594 = vadd.f32 %v2589, 1.0
      %v2595 = vadd.f32 %v2591, 1.0
      %v2596 = vrcp.pop %v2592
      %v2597 = vmul.f32 1.0, %v2596
      %v2598 = vrcp.pop %v2593
      %v2599 = vmul.f32 1.0, %v2598
      %v2600 = vrcp.pop %v2594
      %v2601 = vmul.f32 1.0, %v2600
      %v2602 = vrcp.pop %v2595
      %v2603 = vmul.f32 1.0, %v2602
      %v2604 = vtanh.pop %v2526
      %v2605 = vtanh.pop %v2529
      %v2606 = vtanh.pop %v2534
      %v2607 = vtanh.pop %v2537
      %v2608 = vxor.u32 %v2542, 2147483648
      %v2609 = vxor.u32 %v2545, 2147483648
      %v2610 = vxor.u32 %v2550, 2147483648
      %v2611 = vxor.u32 %v2553, 2147483648
      %v2612 = vmul.f32 %v2608, 1.442695
      %v2613 = vpow.pop %v2612
      %v2614 = vmul.f32 %v2609, 1.442695
      %v2615 = vpow.pop %v2614
      %v2616 = vmul.f32 %v2610, 1.442695
      %v2617 = vpow.pop %v2616
      %v2618 = vmul.f32 %v2611, 1.442695
      %v2619 = vpow.pop %v2618
      %v2620 = vadd.f32 %v2613, 1.0
      %v2621 = vadd.f32 %v2615, 1.0
      %v2622 = vadd.f32 %v2617, 1.0
      %v2623 = vadd.f32 %v2619, 1.0
      %v2624 = vrcp.pop %v2620
      %v2625 = vmul.f32 1.0, %v2624
      %v2626 = vrcp.pop %v2621
      %v2627 = vmul.f32 1.0, %v2626
      %v2628 = vrcp.pop %v2622
      %v2629 = vmul.f32 1.0, %v2628
      %v2630 = vrcp.pop %v2623
      %v2631 = vmul.f32 1.0, %v2630
      %v2632 = vmul.f32 %v2597, %v1968
      %v2633 = vmul.f32 %v2599, %v1969
      %v2634 = vmul.f32 %v2601, %v1970
      %v2635 = vmul.f32 %v2603, %v1971
      %v2636 = vmul.f32 %v2573, %v2604
      %v2637 = vmul.f32 %v2575, %v2605
      %v2638 = vmul.f32 %v2577, %v2606
      %v2639 = vmul.f32 %v2579, %v2607
      %v2640 = vadd.f32 %v2632, %v2636
      %v2641 = vadd.f32 %v2633, %v2637
      %v2642 = vadd.f32 %v2634, %v2638
      %v2643 = vadd.f32 %v2635, %v2639
      %v2644 = vtanh.pop %v2640
      %v2645 = vtanh.pop %v2641
      %v2646 = vtanh.pop %v2642
      %v2647 = vtanh.pop %v2643
      %v2648 = vmul.f32 %v2625, %v2644
      %v2649 = vmul.f32 %v2627, %v2645
      %v2650 = vmul.f32 %v2629, %v2646
      %v2651 = vmul.f32 %v2631, %v2647
      %v2652 = vsel %vm2005, 1, 0
      %v2653 = vlaneseq
      %v2654 = vshrl.u32 %v2653, 7
      %v2655 = vsub.s32 0, %v2654
      %v2656 = vrot.slane %v2652, %v2655
      %vm2657 = vcmp.eq.s32.totalorder %v2656, 1
      %v2658 = vsel %vm2657, %v2648, %v1964
      %v2659 = vsel %vm2657, %v2649, %v1965
      %v2660 = vsel %vm2657, %v2650, %v1966
      %v2661 = vsel %vm2657, %v2651, %v1967
      %v2662 = vsel %vm2657, %v2640, %v1968
      %v2663 = vsel %vm2657, %v2641, %v1969
      %v2664 = vsel %vm2657, %v2642, %v1970
      %v2665 = vsel %vm2657, %v2643, %v1971
      %vm2666 = vcmp.ne.f32.partialorder %v2318, 0.0
      %vm2667 = vcmp.ne.f32.partialorder %v2319, 0.0
      %vm2668 = vcmp.ne.f32.partialorder %v2320, 0.0
      %vm2669 = vcmp.ne.f32.partialorder %v2321, 0.0
      %vm2670 = vmand %vm2327, %vm2666
      %vm2671 = vmand %vm2327, %vm2667
      %vm2672 = vmand %vm2327, %vm2668
      %vm2673 = vmand %vm2327, %vm2669
      %v2674 = vsel %vm2670, %v2318, -1e+09
      %v2675 = vsel %vm2671, %v2319, -1e+09
      %v2676 = vsel %vm2672, %v2320, -1e+09
      %v2677 = vsel %vm2673, %v2321, -1e+09
      %v2678 = vmax.f32 %v1984, %v2674
      %v2679 = vmax.f32 %v1985, %v2675
      %v2680 = vmax.f32 %v1986, %v2676
      %v2681 = vmax.f32 %v1987, %v2677
      %vm2682 = vcmp.ne.f32.partialorder %v2648, 0.0
      %vm2683 = vcmp.ne.f32.partialorder %v2649, 0.0
      %vm2684 = vcmp.ne.f32.partialorder %v2650, 0.0
      %vm2685 = vcmp.ne.f32.partialorder %v2651, 0.0
      %vm2686 = vmand %vm2657, %vm2682
      %vm2687 = vmand %vm2657, %vm2683
      %vm2688 = vmand %vm2657, %vm2684
      %vm2689 = vmand %vm2657, %vm2685
      %v2690 = vsel %vm2686, %v2648, -1e+09
      %v2691 = vsel %vm2687, %v2649, -1e+09
      %v2692 = vsel %vm2688, %v2650, -1e+09
      %v2693 = vsel %vm2689, %v2651, -1e+09
      %v2694 = vmax.f32 %v2000, %v2690
      %v2695 = vmax.f32 %v2001, %v2691
      %v2696 = vmax.f32 %v2002, %v2692
      %v2697 = vmax.f32 %v2003, %v2693
      %vm2698 = vcmp.gt.s32.totalorder %v359, 3
      %vm2699 = vcmp.gt.s32.totalorder %v359, 4
      %s2700 = scalar_lea.vmem %s269, 60
      %v2701 = vld [vmem:[%s2700] sm:$0xf]
      %v2702 = vld [vmem:[%s2700 + $0x4] sm:$0xf]
      %v2703 = vld [vmem:[%s2700 + $0x8] sm:$0xf]
      %v2704 = vld [vmem:[%s2700 + $0xc] sm:$0xf]
      %v2705 = vld [vmem:[%s2700 + $0x10] sm:$0x1]
      %v2706 = vpack.c.bf16 %v2329, %v2328
      %v2707 = vpack.c.bf16 %v2331, %v2330
      %2708 = vmatprep.subr.bf16.mxu0 0
      %2709 = vmatpush1.bf16.msra.mxu0 0
      %2710 = vmatprep.subr.bf16.mxu0 0
      %2711 = vmatpush1.bf16.msra.mxu0 0
      %2712 = vmatprep.subr.bf16.mxu0 0
      %2713 = vmatpush1.bf16.msra.mxu0 0
      %2714 = vmatprep.subr.bf16.mxu0 0
      %2715 = vmatpush1.bf16.msra.mxu0 0
      %2716 = vmatprep.subr.bf16.mxu0 0
      %2717 = vmatpush1.bf16.msra.mxu0 0
      %2718 = vmatprep.subr.bf16.mxu0 0
      %2719 = vmatpush1.bf16.msra.mxu0 0
      %2720 = vmatprep.subr.bf16.mxu0 0
      %2721 = vmatpush1.bf16.msra.mxu0 %v2707
      %2722 = vmatprep.subr.bf16.mxu0 0
      %2723 = vmatpush1.bf16.msra.mxu0 %v2706
      %2724 = vmatprep.subr.bf16.mxu0 0
      %2725 = vmatpush2.bf16.msra.mxu0 0
      %2726 = vmatprep.subr.bf16.mxu0 0
      %2727 = vmatpush2.bf16.msra.mxu0 0
      %2728 = vmatprep.subr.bf16.mxu0 0
      %2729 = vmatpush2.bf16.msra.mxu0 0
      %2730 = vmatprep.subr.bf16.mxu0 0
      %2731 = vmatpush2.bf16.msra.mxu0 0
      %2732 = vmatprep.subr.bf16.mxu0 0
      %2733 = vmatpush2.bf16.msra.mxu0 0
      %2734 = vmatprep.subr.bf16.mxu0 0
      %2735 = vmatpush2.bf16.msra.mxu0 0
      %2736 = vmatprep.subr.bf16.mxu0 0
      %2737 = vmatpush2.bf16.msra.mxu0 0
      %2738 = vmatprep.subr.bf16.mxu0 0
      %2739 = vmatpush2.bf16.msra.mxu0 0
      %2740 = vmatprep.mubr.bf16.mxu0 0
      %2741 = vmatmul.mubr.bf16.gmra.mxu0 %v409
      %v2742 = vpop.f32.mrf.mxu0
      %v2743 = vadd.f32 0.0, %v2742
      %v2744 = vpop.f32.mrf.mxu0
      %v2745 = vpop.f32.mrf.mxu0
      %v2746 = vadd.f32 0.0, %v2745
      %v2747 = vpop.f32.mrf.mxu0
      %2748 = vmatprep.mubr.bf16.mxu0 0
      %2749 = vmatmul.mubr.bf16.gmra.mxu0 %v412
      %v2750 = vpop.f32.mrf.mxu0
      %v2751 = vadd.f32 0.0, %v2750
      %v2752 = vpop.f32.mrf.mxu0
      %v2753 = vpop.f32.mrf.mxu0
      %v2754 = vadd.f32 0.0, %v2753
      %v2755 = vpop.f32.mrf.mxu0
      %2756 = vmatprep.mubr.bf16.mxu0 0
      %2757 = vmatmul.mubr.bf16.gmra.mxu0 %v415
      %v2758 = vpop.f32.mrf.mxu0
      %v2759 = vadd.f32 0.0, %v2758
      %v2760 = vpop.f32.mrf.mxu0
      %v2761 = vpop.f32.mrf.mxu0
      %v2762 = vadd.f32 0.0, %v2761
      %v2763 = vpop.f32.mrf.mxu0
      %2764 = vmatprep.mubr.bf16.mxu0 0
      %2765 = vmatmul.mubr.bf16.gmra.mxu0 %v418
      %v2766 = vpop.f32.mrf.mxu0
      %v2767 = vadd.f32 0.0, %v2766
      %v2768 = vpop.f32.mrf.mxu0
      %v2769 = vpop.f32.mrf.mxu0
      %v2770 = vadd.f32 0.0, %v2769
      %v2771 = vpop.f32.mrf.mxu0
      %2772 = vmatprep.mubr.bf16.mxu0 0
      %2773 = vmatmul.mubr.bf16.gmra.mxu0 %v421
      %v2774 = vpop.f32.mrf.mxu0
      %v2775 = vadd.f32 0.0, %v2774
      %v2776 = vpop.f32.mrf.mxu0
      %v2777 = vpop.f32.mrf.mxu0
      %v2778 = vadd.f32 0.0, %v2777
      %v2779 = vpop.f32.mrf.mxu0
      %2780 = vmatprep.mubr.bf16.mxu0 0
      %2781 = vmatmul.mubr.bf16.gmra.mxu0 %v424
      %v2782 = vpop.f32.mrf.mxu0
      %v2783 = vadd.f32 0.0, %v2782
      %v2784 = vpop.f32.mrf.mxu0
      %v2785 = vpop.f32.mrf.mxu0
      %v2786 = vadd.f32 0.0, %v2785
      %v2787 = vpop.f32.mrf.mxu0
      %2788 = vmatprep.mubr.bf16.mxu0 0
      %2789 = vmatmul.mubr.bf16.gmra.mxu0 %v427
      %v2790 = vpop.f32.mrf.mxu0
      %v2791 = vadd.f32 0.0, %v2790
      %v2792 = vpop.f32.mrf.mxu0
      %v2793 = vpop.f32.mrf.mxu0
      %v2794 = vadd.f32 0.0, %v2793
      %v2795 = vpop.f32.mrf.mxu0
      %2796 = vmatprep.mubr.bf16.mxu0 0
      %2797 = vmatmul.mubr.bf16.gmra.mxu0 %v430
      %v2798 = vpop.f32.mrf.mxu0
      %v2799 = vadd.f32 0.0, %v2798
      %v2800 = vpop.f32.mrf.mxu0
      %v2801 = vpop.f32.mrf.mxu0
      %v2802 = vadd.f32 0.0, %v2801
      %v2803 = vpop.f32.mrf.mxu0
      %2804 = vdwg.mxu0
      %v2810 = vunpack.c.l.b16 %v2701
      %v2811 = vunpack.c.l.b16 %v2702
      %v2812 = vunpack.c.l.b16 %v2703
      %v2813 = vunpack.c.l.b16 %v2704
      %v2814 = vunpack.c.l.b16 %v2705
      %v2815 = vpack.c.b16 %v2811, %v2810
      %v2816 = vpack.c.b16 %v2813, %v2812
      %v2817 = vpack.c.b16 %v2814, %v2814
      %v2821 = vand.u32 %v2817, %v611
      %2823 = vmatprep.subr.bf16.mxu0 0
      %2824 = vmatpush1.bf16.msra.mxu0 0
      %2825 = vmatprep.subr.bf16.mxu0 0
      %2826 = vmatpush1.bf16.msra.mxu0 0
      %2827 = vmatprep.subr.bf16.mxu0 0
      %2828 = vmatpush1.bf16.msra.mxu0 0
      %2829 = vmatprep.subr.bf16.mxu0 0
      %2830 = vmatpush1.bf16.msra.mxu0 0
      %2831 = vmatprep.subr.bf16.mxu0 0
      %2832 = vmatpush1.bf16.msra.mxu0 0
      %2833 = vmatprep.subr.bf16.mxu0 0
      %2834 = vmatpush1.bf16.msra.mxu0 %v2821
      %2835 = vmatprep.subr.bf16.mxu0 0
      %2836 = vmatpush1.bf16.msra.mxu0 %v2816
      %2837 = vmatprep.subr.bf16.mxu0 0
      %2838 = vmatpush1.bf16.msra.mxu0 %v2815
      %2839 = vmatprep.subr.bf16.mxu0 0
      %2840 = vmatpush2.bf16.msra.mxu0 0
      %2841 = vmatprep.subr.bf16.mxu0 0
      %2842 = vmatpush2.bf16.msra.mxu0 0
      %2843 = vmatprep.subr.bf16.mxu0 0
      %2844 = vmatpush2.bf16.msra.mxu0 0
      %2845 = vmatprep.subr.bf16.mxu0 0
      %2846 = vmatpush2.bf16.msra.mxu0 0
      %2847 = vmatprep.subr.bf16.mxu0 0
      %2848 = vmatpush2.bf16.msra.mxu0 0
      %2849 = vmatprep.subr.bf16.mxu0 0
      %2850 = vmatpush2.bf16.msra.mxu0 0
      %2851 = vmatprep.subr.bf16.mxu0 0
      %2852 = vmatpush2.bf16.msra.mxu0 0
      %2853 = vmatprep.subr.bf16.mxu0 0
      %2854 = vmatpush2.bf16.msra.mxu0 0
      %2855 = vmatprep.mubr.bf16.mxu0 0
      %2856 = vmatmul.mubr.bf16.gmra.mxu0 %v586
      %v2857 = vpop.f32.mrf.mxu0
      %v2858 = vadd.f32 %v2743, %v2857
      %v2859 = vpop.f32.mrf.mxu0
      %v2860 = vpop.f32.mrf.mxu0
      %v2861 = vadd.f32 %v2746, %v2860
      %v2862 = vpop.f32.mrf.mxu0
      %2863 = vmatprep.mubr.bf16.mxu0 0
      %2864 = vmatmul.mubr.bf16.gmra.mxu0 %v589
      %v2865 = vpop.f32.mrf.mxu0
      %v2866 = vadd.f32 %v2751, %v2865
      %v2867 = vpop.f32.mrf.mxu0
      %v2868 = vpop.f32.mrf.mxu0
      %v2869 = vadd.f32 %v2754, %v2868
      %v2870 = vpop.f32.mrf.mxu0
      %2871 = vmatprep.mubr.bf16.mxu0 0
      %2872 = vmatmul.mubr.bf16.gmra.mxu0 %v592
      %v2873 = vpop.f32.mrf.mxu0
      %v2874 = vadd.f32 %v2759, %v2873
      %v2875 = vpop.f32.mrf.mxu0
      %v2876 = vpop.f32.mrf.mxu0
      %v2877 = vadd.f32 %v2762, %v2876
      %v2878 = vpop.f32.mrf.mxu0
      %2879 = vmatprep.mubr.bf16.mxu0 0
      %2880 = vmatmul.mubr.bf16.gmra.mxu0 %v595
      %v2881 = vpop.f32.mrf.mxu0
      %v2882 = vadd.f32 %v2767, %v2881
      %v2883 = vpop.f32.mrf.mxu0
      %v2884 = vpop.f32.mrf.mxu0
      %v2885 = vadd.f32 %v2770, %v2884
      %v2886 = vpop.f32.mrf.mxu0
      %2887 = vmatprep.mubr.bf16.mxu0 0
      %2888 = vmatmul.mubr.bf16.gmra.mxu0 %v598
      %v2889 = vpop.f32.mrf.mxu0
      %v2890 = vadd.f32 %v2775, %v2889
      %v2891 = vpop.f32.mrf.mxu0
      %v2892 = vpop.f32.mrf.mxu0
      %v2893 = vadd.f32 %v2778, %v2892
      %v2894 = vpop.f32.mrf.mxu0
      %2895 = vmatprep.mubr.bf16.mxu0 0
      %2896 = vmatmul.mubr.bf16.gmra.mxu0 %v601
      %v2897 = vpop.f32.mrf.mxu0
      %v2898 = vadd.f32 %v2783, %v2897
      %v2899 = vpop.f32.mrf.mxu0
      %v2900 = vpop.f32.mrf.mxu0
      %v2901 = vadd.f32 %v2786, %v2900
      %v2902 = vpop.f32.mrf.mxu0
      %2903 = vmatprep.mubr.bf16.mxu0 0
      %2904 = vmatmul.mubr.bf16.gmra.mxu0 %v604
      %v2905 = vpop.f32.mrf.mxu0
      %v2906 = vadd.f32 %v2791, %v2905
      %v2907 = vpop.f32.mrf.mxu0
      %v2908 = vpop.f32.mrf.mxu0
      %v2909 = vadd.f32 %v2794, %v2908
      %v2910 = vpop.f32.mrf.mxu0
      %2911 = vmatprep.mubr.bf16.mxu0 0
      %2912 = vmatmul.mubr.bf16.gmra.mxu0 %v607
      %v2913 = vpop.f32.mrf.mxu0
      %v2914 = vadd.f32 %v2799, %v2913
      %v2915 = vpop.f32.mrf.mxu0
      %v2916 = vpop.f32.mrf.mxu0
      %v2917 = vadd.f32 %v2802, %v2916
      %v2918 = vpop.f32.mrf.mxu0
      %2919 = vdwg.mxu0
      %v2920 = vxor.u32 %v2858, 2147483648
      %v2921 = vxor.u32 %v2861, 2147483648
      %v2922 = vxor.u32 %v2866, 2147483648
      %v2923 = vxor.u32 %v2869, 2147483648
      %v2924 = vmul.f32 %v2920, 1.442695
      %v2925 = vpow.pop %v2924
      %v2926 = vmul.f32 %v2921, 1.442695
      %v2927 = vpow.pop %v2926
      %v2928 = vmul.f32 %v2922, 1.442695
      %v2929 = vpow.pop %v2928
      %v2930 = vmul.f32 %v2923, 1.442695
      %v2931 = vpow.pop %v2930
      %v2932 = vadd.f32 %v2925, 1.0
      %v2933 = vadd.f32 %v2927, 1.0
      %v2934 = vadd.f32 %v2929, 1.0
      %v2935 = vadd.f32 %v2931, 1.0
      %v2936 = vrcp.pop %v2932
      %v2937 = vmul.f32 1.0, %v2936
      %v2938 = vrcp.pop %v2933
      %v2939 = vmul.f32 1.0, %v2938
      %v2940 = vrcp.pop %v2934
      %v2941 = vmul.f32 1.0, %v2940
      %v2942 = vrcp.pop %v2935
      %v2943 = vmul.f32 1.0, %v2942
      %v2944 = vxor.u32 %v2874, 2147483648
      %v2945 = vxor.u32 %v2877, 2147483648
      %v2946 = vxor.u32 %v2882, 2147483648
      %v2947 = vxor.u32 %v2885, 2147483648
      %v2948 = vmul.f32 %v2944, 1.442695
      %v2949 = vpow.pop %v2948
      %v2950 = vmul.f32 %v2945, 1.442695
      %v2951 = vpow.pop %v2950
      %v2952 = vmul.f32 %v2946, 1.442695
      %v2953 = vpow.pop %v2952
      %v2954 = vmul.f32 %v2947, 1.442695
      %v2955 = vpow.pop %v2954
      %v2956 = vadd.f32 %v2949, 1.0
      %v2957 = vadd.f32 %v2951, 1.0
      %v2958 = vadd.f32 %v2953, 1.0
      %v2959 = vadd.f32 %v2955, 1.0
      %v2960 = vrcp.pop %v2956
      %v2961 = vmul.f32 1.0, %v2960
      %v2962 = vrcp.pop %v2957
      %v2963 = vmul.f32 1.0, %v2962
      %v2964 = vrcp.pop %v2958
      %v2965 = vmul.f32 1.0, %v2964
      %v2966 = vrcp.pop %v2959
      %v2967 = vmul.f32 1.0, %v2966
      %v2968 = vtanh.pop %v2890
      %v2969 = vtanh.pop %v2893
      %v2970 = vtanh.pop %v2898
      %v2971 = vtanh.pop %v2901
      %v2972 = vxor.u32 %v2906, 2147483648
      %v2973 = vxor.u32 %v2909, 2147483648
      %v2974 = vxor.u32 %v2914, 2147483648
      %v2975 = vxor.u32 %v2917, 2147483648
      %v2976 = vmul.f32 %v2972, 1.442695
      %v2977 = vpow.pop %v2976
      %v2978 = vmul.f32 %v2973, 1.442695
      %v2979 = vpow.pop %v2978
      %v2980 = vmul.f32 %v2974, 1.442695
      %v2981 = vpow.pop %v2980
      %v2982 = vmul.f32 %v2975, 1.442695
      %v2983 = vpow.pop %v2982
      %v2984 = vadd.f32 %v2977, 1.0
      %v2985 = vadd.f32 %v2979, 1.0
      %v2986 = vadd.f32 %v2981, 1.0
      %v2987 = vadd.f32 %v2983, 1.0
      %v2988 = vrcp.pop %v2984
      %v2989 = vmul.f32 1.0, %v2988
      %v2990 = vrcp.pop %v2985
      %v2991 = vmul.f32 1.0, %v2990
      %v2992 = vrcp.pop %v2986
      %v2993 = vmul.f32 1.0, %v2992
      %v2994 = vrcp.pop %v2987
      %v2995 = vmul.f32 1.0, %v2994
      %v2996 = vmul.f32 %v2961, %v2332
      %v2997 = vmul.f32 %v2963, %v2333
      %v2998 = vmul.f32 %v2965, %v2334
      %v2999 = vmul.f32 %v2967, %v2335
      %v3000 = vmul.f32 %v2937, %v2968
      %v3001 = vmul.f32 %v2939, %v2969
      %v3002 = vmul.f32 %v2941, %v2970
      %v3003 = vmul.f32 %v2943, %v2971
      %v3004 = vadd.f32 %v2996, %v3000
      %v3005 = vadd.f32 %v2997, %v3001
      %v3006 = vadd.f32 %v2998, %v3002
      %v3007 = vadd.f32 %v2999, %v3003
      %v3008 = vtanh.pop %v3004
      %v3009 = vtanh.pop %v3005
      %v3010 = vtanh.pop %v3006
      %v3011 = vtanh.pop %v3007
      %v3012 = vmul.f32 %v2989, %v3008
      %v3013 = vmul.f32 %v2991, %v3009
      %v3014 = vmul.f32 %v2993, %v3010
      %v3015 = vmul.f32 %v2995, %v3011
      %v3016 = vsel %vm2698, 1, 0
      %v3017 = vlaneseq
      %v3018 = vshrl.u32 %v3017, 7
      %v3019 = vsub.s32 0, %v3018
      %v3020 = vrot.slane %v3016, %v3019
      %vm3021 = vcmp.eq.s32.totalorder %v3020, 1
      %v3022 = vsel %vm3021, %v3012, %v2328
      %v3023 = vsel %vm3021, %v3013, %v2329
      %v3024 = vsel %vm3021, %v3014, %v2330
      %v3025 = vsel %vm3021, %v3015, %v2331
      %v3026 = vsel %vm3021, %v3004, %v2332
      %v3027 = vsel %vm3021, %v3005, %v2333
      %v3028 = vsel %vm3021, %v3006, %v2334
      %v3029 = vsel %vm3021, %v3007, %v2335
      %s3030 = scalar_lea.vmem %s269, 80
      %v3031 = vld [vmem:[%s3030] sm:$0xf]
      %v3032 = vld [vmem:[%s3030 + $0x4] sm:$0xf]
      %v3033 = vld [vmem:[%s3030 + $0x8] sm:$0xf]
      %v3034 = vld [vmem:[%s3030 + $0xc] sm:$0xf]
      %v3035 = vld [vmem:[%s3030 + $0x10] sm:$0x1]
      %v3036 = vpack.c.bf16 %v2659, %v2658
      %v3037 = vpack.c.bf16 %v2661, %v2660
      %3038 = vmatprep.subr.bf16.mxu0 0
      %3039 = vmatpush1.bf16.msra.mxu0 0
      %3040 = vmatprep.subr.bf16.mxu0 0
      %3041 = vmatpush1.bf16.msra.mxu0 0
      %3042 = vmatprep.subr.bf16.mxu0 0
      %3043 = vmatpush1.bf16.msra.mxu0 0
      %3044 = vmatprep.subr.bf16.mxu0 0
      %3045 = vmatpush1.bf16.msra.mxu0 0
      %3046 = vmatprep.subr.bf16.mxu0 0
      %3047 = vmatpush1.bf16.msra.mxu0 0
      %3048 = vmatprep.subr.bf16.mxu0 0
      %3049 = vmatpush1.bf16.msra.mxu0 0
      %3050 = vmatprep.subr.bf16.mxu0 0
      %3051 = vmatpush1.bf16.msra.mxu0 %v3037
      %3052 = vmatprep.subr.bf16.mxu0 0
      %3053 = vmatpush1.bf16.msra.mxu0 %v3036
      %3054 = vmatprep.subr.bf16.mxu0 0
      %3055 = vmatpush2.bf16.msra.mxu0 0
      %3056 = vmatprep.subr.bf16.mxu0 0
      %3057 = vmatpush2.bf16.msra.mxu0 0
      %3058 = vmatprep.subr.bf16.mxu0 0
      %3059 = vmatpush2.bf16.msra.mxu0 0
      %3060 = vmatprep.subr.bf16.mxu0 0
      %3061 = vmatpush2.bf16.msra.mxu0 0
      %3062 = vmatprep.subr.bf16.mxu0 0
      %3063 = vmatpush2.bf16.msra.mxu0 0
      %3064 = vmatprep.subr.bf16.mxu0 0
      %3065 = vmatpush2.bf16.msra.mxu0 0
      %3066 = vmatprep.subr.bf16.mxu0 0
      %3067 = vmatpush2.bf16.msra.mxu0 0
      %3068 = vmatprep.subr.bf16.mxu0 0
      %3069 = vmatpush2.bf16.msra.mxu0 0
      %3070 = vmatprep.mubr.bf16.mxu0 0
      %3071 = vmatmul.mubr.bf16.gmra.mxu0 %v869
      %v3072 = vpop.f32.mrf.mxu0
      %v3073 = vadd.f32 0.0, %v3072
      %v3074 = vpop.f32.mrf.mxu0
      %v3075 = vpop.f32.mrf.mxu0
      %v3076 = vadd.f32 0.0, %v3075
      %v3077 = vpop.f32.mrf.mxu0
      %3078 = vmatprep.mubr.bf16.mxu0 0
      %3079 = vmatmul.mubr.bf16.gmra.mxu0 %v872
      %v3080 = vpop.f32.mrf.mxu0
      %v3081 = vadd.f32 0.0, %v3080
      %v3082 = vpop.f32.mrf.mxu0
      %v3083 = vpop.f32.mrf.mxu0
      %v3084 = vadd.f32 0.0, %v3083
      %v3085 = vpop.f32.mrf.mxu0
      %3086 = vmatprep.mubr.bf16.mxu0 0
      %3087 = vmatmul.mubr.bf16.gmra.mxu0 %v875
      %v3088 = vpop.f32.mrf.mxu0
      %v3089 = vadd.f32 0.0, %v3088
      %v3090 = vpop.f32.mrf.mxu0
      %v3091 = vpop.f32.mrf.mxu0
      %v3092 = vadd.f32 0.0, %v3091
      %v3093 = vpop.f32.mrf.mxu0
      %3094 = vmatprep.mubr.bf16.mxu0 0
      %3095 = vmatmul.mubr.bf16.gmra.mxu0 %v878
      %v3096 = vpop.f32.mrf.mxu0
      %v3097 = vadd.f32 0.0, %v3096
      %v3098 = vpop.f32.mrf.mxu0
      %v3099 = vpop.f32.mrf.mxu0
      %v3100 = vadd.f32 0.0, %v3099
      %v3101 = vpop.f32.mrf.mxu0
      %3102 = vmatprep.mubr.bf16.mxu0 0
      %3103 = vmatmul.mubr.bf16.gmra.mxu0 %v881
      %v3104 = vpop.f32.mrf.mxu0
      %v3105 = vadd.f32 0.0, %v3104
      %v3106 = vpop.f32.mrf.mxu0
      %v3107 = vpop.f32.mrf.mxu0
      %v3108 = vadd.f32 0.0, %v3107
      %v3109 = vpop.f32.mrf.mxu0
      %3110 = vmatprep.mubr.bf16.mxu0 0
      %3111 = vmatmul.mubr.bf16.gmra.mxu0 %v884
      %v3112 = vpop.f32.mrf.mxu0
      %v3113 = vadd.f32 0.0, %v3112
      %v3114 = vpop.f32.mrf.mxu0
      %v3115 = vpop.f32.mrf.mxu0
      %v3116 = vadd.f32 0.0, %v3115
      %v3117 = vpop.f32.mrf.mxu0
      %3118 = vmatprep.mubr.bf16.mxu0 0
      %3119 = vmatmul.mubr.bf16.gmra.mxu0 %v887
      %v3120 = vpop.f32.mrf.mxu0
      %v3121 = vadd.f32 0.0, %v3120
      %v3122 = vpop.f32.mrf.mxu0
      %v3123 = vpop.f32.mrf.mxu0
      %v3124 = vadd.f32 0.0, %v3123
      %v3125 = vpop.f32.mrf.mxu0
      %3126 = vmatprep.mubr.bf16.mxu0 0
      %3127 = vmatmul.mubr.bf16.gmra.mxu0 %v890
      %v3128 = vpop.f32.mrf.mxu0
      %v3129 = vadd.f32 0.0, %v3128
      %v3130 = vpop.f32.mrf.mxu0
      %v3131 = vpop.f32.mrf.mxu0
      %v3132 = vadd.f32 0.0, %v3131
      %v3133 = vpop.f32.mrf.mxu0
      %3134 = vdwg.mxu0
      %v3140 = vunpack.c.l.b16 %v3031
      %v3141 = vunpack.c.l.b16 %v3032
      %v3142 = vunpack.c.l.b16 %v3033
      %v3143 = vunpack.c.l.b16 %v3034
      %v3144 = vunpack.c.l.b16 %v3035
      %v3145 = vpack.c.b16 %v3141, %v3140
      %v3146 = vpack.c.b16 %v3143, %v3142
      %v3147 = vpack.c.b16 %v3144, %v3144
      %v3151 = vand.u32 %v3147, %v611
      %3153 = vmatprep.subr.bf16.mxu0 0
      %3154 = vmatpush1.bf16.msra.mxu0 0
      %3155 = vmatprep.subr.bf16.mxu0 0
      %3156 = vmatpush1.bf16.msra.mxu0 0
      %3157 = vmatprep.subr.bf16.mxu0 0
      %3158 = vmatpush1.bf16.msra.mxu0 0
      %3159 = vmatprep.subr.bf16.mxu0 0
      %3160 = vmatpush1.bf16.msra.mxu0 0
      %3161 = vmatprep.subr.bf16.mxu0 0
      %3162 = vmatpush1.bf16.msra.mxu0 0
      %3163 = vmatprep.subr.bf16.mxu0 0
      %3164 = vmatpush1.bf16.msra.mxu0 %v3151
      %3165 = vmatprep.subr.bf16.mxu0 0
      %3166 = vmatpush1.bf16.msra.mxu0 %v3146
      %3167 = vmatprep.subr.bf16.mxu0 0
      %3168 = vmatpush1.bf16.msra.mxu0 %v3145
      %3169 = vmatprep.subr.bf16.mxu0 0
      %3170 = vmatpush2.bf16.msra.mxu0 0
      %3171 = vmatprep.subr.bf16.mxu0 0
      %3172 = vmatpush2.bf16.msra.mxu0 0
      %3173 = vmatprep.subr.bf16.mxu0 0
      %3174 = vmatpush2.bf16.msra.mxu0 0
      %3175 = vmatprep.subr.bf16.mxu0 0
      %3176 = vmatpush2.bf16.msra.mxu0 0
      %3177 = vmatprep.subr.bf16.mxu0 0
      %3178 = vmatpush2.bf16.msra.mxu0 0
      %3179 = vmatprep.subr.bf16.mxu0 0
      %3180 = vmatpush2.bf16.msra.mxu0 0
      %3181 = vmatprep.subr.bf16.mxu0 0
      %3182 = vmatpush2.bf16.msra.mxu0 0
      %3183 = vmatprep.subr.bf16.mxu0 0
      %3184 = vmatpush2.bf16.msra.mxu0 0
      %3185 = vmatprep.mubr.bf16.mxu0 0
      %3186 = vmatmul.mubr.bf16.gmra.mxu0 %v1045
      %v3187 = vpop.f32.mrf.mxu0
      %v3188 = vadd.f32 %v3073, %v3187
      %v3189 = vpop.f32.mrf.mxu0
      %v3190 = vpop.f32.mrf.mxu0
      %v3191 = vadd.f32 %v3076, %v3190
      %v3192 = vpop.f32.mrf.mxu0
      %3193 = vmatprep.mubr.bf16.mxu0 0
      %3194 = vmatmul.mubr.bf16.gmra.mxu0 %v1048
      %v3195 = vpop.f32.mrf.mxu0
      %v3196 = vadd.f32 %v3081, %v3195
      %v3197 = vpop.f32.mrf.mxu0
      %v3198 = vpop.f32.mrf.mxu0
      %v3199 = vadd.f32 %v3084, %v3198
      %v3200 = vpop.f32.mrf.mxu0
      %3201 = vmatprep.mubr.bf16.mxu0 0
      %3202 = vmatmul.mubr.bf16.gmra.mxu0 %v1051
      %v3203 = vpop.f32.mrf.mxu0
      %v3204 = vadd.f32 %v3089, %v3203
      %v3205 = vpop.f32.mrf.mxu0
      %v3206 = vpop.f32.mrf.mxu0
      %v3207 = vadd.f32 %v3092, %v3206
      %v3208 = vpop.f32.mrf.mxu0
      %3209 = vmatprep.mubr.bf16.mxu0 0
      %3210 = vmatmul.mubr.bf16.gmra.mxu0 %v1054
      %v3211 = vpop.f32.mrf.mxu0
      %v3212 = vadd.f32 %v3097, %v3211
      %v3213 = vpop.f32.mrf.mxu0
      %v3214 = vpop.f32.mrf.mxu0
      %v3215 = vadd.f32 %v3100, %v3214
      %v3216 = vpop.f32.mrf.mxu0
      %3217 = vmatprep.mubr.bf16.mxu0 0
      %3218 = vmatmul.mubr.bf16.gmra.mxu0 %v1057
      %v3219 = vpop.f32.mrf.mxu0
      %v3220 = vadd.f32 %v3105, %v3219
      %v3221 = vpop.f32.mrf.mxu0
      %v3222 = vpop.f32.mrf.mxu0
      %v3223 = vadd.f32 %v3108, %v3222
      %v3224 = vpop.f32.mrf.mxu0
      %3225 = vmatprep.mubr.bf16.mxu0 0
      %3226 = vmatmul.mubr.bf16.gmra.mxu0 %v1060
      %v3227 = vpop.f32.mrf.mxu0
      %v3228 = vadd.f32 %v3113, %v3227
      %v3229 = vpop.f32.mrf.mxu0
      %v3230 = vpop.f32.mrf.mxu0
      %v3231 = vadd.f32 %v3116, %v3230
      %v3232 = vpop.f32.mrf.mxu0
      %3233 = vmatprep.mubr.bf16.mxu0 0
      %3234 = vmatmul.mubr.bf16.gmra.mxu0 %v1063
      %v3235 = vpop.f32.mrf.mxu0
      %v3236 = vadd.f32 %v3121, %v3235
      %v3237 = vpop.f32.mrf.mxu0
      %v3238 = vpop.f32.mrf.mxu0
      %v3239 = vadd.f32 %v3124, %v3238
      %v3240 = vpop.f32.mrf.mxu0
      %3241 = vmatprep.mubr.bf16.mxu0 0
      %3242 = vmatmul.mubr.bf16.gmra.mxu0 %v1066
      %v3243 = vpop.f32.mrf.mxu0
      %v3244 = vadd.f32 %v3129, %v3243
      %v3245 = vpop.f32.mrf.mxu0
      %v3246 = vpop.f32.mrf.mxu0
      %v3247 = vadd.f32 %v3132, %v3246
      %v3248 = vpop.f32.mrf.mxu0
      %3249 = vdwg.mxu0
      %v3250 = vxor.u32 %v3188, 2147483648
      %v3251 = vxor.u32 %v3191, 2147483648
      %v3252 = vxor.u32 %v3196, 2147483648
      %v3253 = vxor.u32 %v3199, 2147483648
      %v3254 = vmul.f32 %v3250, 1.442695
      %v3255 = vpow.pop %v3254
      %v3256 = vmul.f32 %v3251, 1.442695
      %v3257 = vpow.pop %v3256
      %v3258 = vmul.f32 %v3252, 1.442695
      %v3259 = vpow.pop %v3258
      %v3260 = vmul.f32 %v3253, 1.442695
      %v3261 = vpow.pop %v3260
      %v3262 = vadd.f32 %v3255, 1.0
      %v3263 = vadd.f32 %v3257, 1.0
      %v3264 = vadd.f32 %v3259, 1.0
      %v3265 = vadd.f32 %v3261, 1.0
      %v3266 = vrcp.pop %v3262
      %v3267 = vmul.f32 1.0, %v3266
      %v3268 = vrcp.pop %v3263
      %v3269 = vmul.f32 1.0, %v3268
      %v3270 = vrcp.pop %v3264
      %v3271 = vmul.f32 1.0, %v3270
      %v3272 = vrcp.pop %v3265
      %v3273 = vmul.f32 1.0, %v3272
      %v3274 = vxor.u32 %v3204, 2147483648
      %v3275 = vxor.u32 %v3207, 2147483648
      %v3276 = vxor.u32 %v3212, 2147483648
      %v3277 = vxor.u32 %v3215, 2147483648
      %v3278 = vmul.f32 %v3274, 1.442695
      %v3279 = vpow.pop %v3278
      %v3280 = vmul.f32 %v3275, 1.442695
      %v3281 = vpow.pop %v3280
      %v3282 = vmul.f32 %v3276, 1.442695
      %v3283 = vpow.pop %v3282
      %v3284 = vmul.f32 %v3277, 1.442695
      %v3285 = vpow.pop %v3284
      %v3286 = vadd.f32 %v3279, 1.0
      %v3287 = vadd.f32 %v3281, 1.0
      %v3288 = vadd.f32 %v3283, 1.0
      %v3289 = vadd.f32 %v3285, 1.0
      %v3290 = vrcp.pop %v3286
      %v3291 = vmul.f32 1.0, %v3290
      %v3292 = vrcp.pop %v3287
      %v3293 = vmul.f32 1.0, %v3292
      %v3294 = vrcp.pop %v3288
      %v3295 = vmul.f32 1.0, %v3294
      %v3296 = vrcp.pop %v3289
      %v3297 = vmul.f32 1.0, %v3296
      %v3298 = vtanh.pop %v3220
      %v3299 = vtanh.pop %v3223
      %v3300 = vtanh.pop %v3228
      %v3301 = vtanh.pop %v3231
      %v3302 = vxor.u32 %v3236, 2147483648
      %v3303 = vxor.u32 %v3239, 2147483648
      %v3304 = vxor.u32 %v3244, 2147483648
      %v3305 = vxor.u32 %v3247, 2147483648
      %v3306 = vmul.f32 %v3302, 1.442695
      %v3307 = vpow.pop %v3306
      %v3308 = vmul.f32 %v3303, 1.442695
      %v3309 = vpow.pop %v3308
      %v3310 = vmul.f32 %v3304, 1.442695
      %v3311 = vpow.pop %v3310
      %v3312 = vmul.f32 %v3305, 1.442695
      %v3313 = vpow.pop %v3312
      %v3314 = vadd.f32 %v3307, 1.0
      %v3315 = vadd.f32 %v3309, 1.0
      %v3316 = vadd.f32 %v3311, 1.0
      %v3317 = vadd.f32 %v3313, 1.0
      %v3318 = vrcp.pop %v3314
      %v3319 = vmul.f32 1.0, %v3318
      %v3320 = vrcp.pop %v3315
      %v3321 = vmul.f32 1.0, %v3320
      %v3322 = vrcp.pop %v3316
      %v3323 = vmul.f32 1.0, %v3322
      %v3324 = vrcp.pop %v3317
      %v3325 = vmul.f32 1.0, %v3324
      %v3326 = vmul.f32 %v3291, %v2662
      %v3327 = vmul.f32 %v3293, %v2663
      %v3328 = vmul.f32 %v3295, %v2664
      %v3329 = vmul.f32 %v3297, %v2665
      %v3330 = vmul.f32 %v3267, %v3298
      %v3331 = vmul.f32 %v3269, %v3299
      %v3332 = vmul.f32 %v3271, %v3300
      %v3333 = vmul.f32 %v3273, %v3301
      %v3334 = vadd.f32 %v3326, %v3330
      %v3335 = vadd.f32 %v3327, %v3331
      %v3336 = vadd.f32 %v3328, %v3332
      %v3337 = vadd.f32 %v3329, %v3333
      %v3338 = vtanh.pop %v3334
      %v3339 = vtanh.pop %v3335
      %v3340 = vtanh.pop %v3336
      %v3341 = vtanh.pop %v3337
      %v3342 = vmul.f32 %v3319, %v3338
      %v3343 = vmul.f32 %v3321, %v3339
      %v3344 = vmul.f32 %v3323, %v3340
      %v3345 = vmul.f32 %v3325, %v3341
      %v3346 = vsel %vm2699, 1, 0
      %v3347 = vlaneseq
      %v3348 = vshrl.u32 %v3347, 7
      %v3349 = vsub.s32 0, %v3348
      %v3350 = vrot.slane %v3346, %v3349
      %vm3351 = vcmp.eq.s32.totalorder %v3350, 1
      %v3352 = vsel %vm3351, %v3342, %v2658
      %v3353 = vsel %vm3351, %v3343, %v2659
      %v3354 = vsel %vm3351, %v3344, %v2660
      %v3355 = vsel %vm3351, %v3345, %v2661
      %v3356 = vsel %vm3351, %v3334, %v2662
      %v3357 = vsel %vm3351, %v3335, %v2663
      %v3358 = vsel %vm3351, %v3336, %v2664
      %v3359 = vsel %vm3351, %v3337, %v2665
      %vm3360 = vcmp.ne.f32.partialorder %v3012, 0.0
      %vm3361 = vcmp.ne.f32.partialorder %v3013, 0.0
      %vm3362 = vcmp.ne.f32.partialorder %v3014, 0.0
      %vm3363 = vcmp.ne.f32.partialorder %v3015, 0.0
      %vm3364 = vmand %vm3021, %vm3360
      %vm3365 = vmand %vm3021, %vm3361
      %vm3366 = vmand %vm3021, %vm3362
      %vm3367 = vmand %vm3021, %vm3363
      %v3368 = vsel %vm3364, %v3012, -1e+09
      %v3369 = vsel %vm3365, %v3013, -1e+09
      %v3370 = vsel %vm3366, %v3014, -1e+09
      %v3371 = vsel %vm3367, %v3015, -1e+09
      %v3372 = vmax.f32 %v2678, %v3368
      %v3373 = vmax.f32 %v2679, %v3369
      %v3374 = vmax.f32 %v2680, %v3370
      %v3375 = vmax.f32 %v2681, %v3371
      %vm3376 = vcmp.ne.f32.partialorder %v3342, 0.0
      %vm3377 = vcmp.ne.f32.partialorder %v3343, 0.0
      %vm3378 = vcmp.ne.f32.partialorder %v3344, 0.0
      %vm3379 = vcmp.ne.f32.partialorder %v3345, 0.0
      %vm3380 = vmand %vm3351, %vm3376
      %vm3381 = vmand %vm3351, %vm3377
      %vm3382 = vmand %vm3351, %vm3378
      %vm3383 = vmand %vm3351, %vm3379
      %v3384 = vsel %vm3380, %v3342, -1e+09
      %v3385 = vsel %vm3381, %v3343, -1e+09
      %v3386 = vsel %vm3382, %v3344, -1e+09
      %v3387 = vsel %vm3383, %v3345, -1e+09
      %v3388 = vmax.f32 %v2694, %v3384
      %v3389 = vmax.f32 %v2695, %v3385
      %v3390 = vmax.f32 %v2696, %v3386
      %v3391 = vmax.f32 %v2697, %v3387
      %v3392 = vpack.c.bf16 %v3023, %v3022
      %v3393 = vpack.c.bf16 %v3025, %v3024
      %3394 = vmatprep.subr.bf16.mxu0 0
      %3395 = vmatpush1.bf16.msra.mxu0 0
      %3396 = vmatprep.subr.bf16.mxu0 0
      %3397 = vmatpush1.bf16.msra.mxu0 0
      %3398 = vmatprep.subr.bf16.mxu0 0
      %3399 = vmatpush1.bf16.msra.mxu0 0
      %3400 = vmatprep.subr.bf16.mxu0 0
      %3401 = vmatpush1.bf16.msra.mxu0 0
      %3402 = vmatprep.subr.bf16.mxu0 0
      %3403 = vmatpush1.bf16.msra.mxu0 0
      %3404 = vmatprep.subr.bf16.mxu0 0
      %3405 = vmatpush1.bf16.msra.mxu0 0
      %3406 = vmatprep.subr.bf16.mxu0 0
      %3407 = vmatpush1.bf16.msra.mxu0 %v3393
      %3408 = vmatprep.subr.bf16.mxu0 0
      %3409 = vmatpush1.bf16.msra.mxu0 %v3392
      %3410 = vmatprep.subr.bf16.mxu0 0
      %3411 = vmatpush2.bf16.msra.mxu0 0
      %3412 = vmatprep.subr.bf16.mxu0 0
      %3413 = vmatpush2.bf16.msra.mxu0 0
      %3414 = vmatprep.subr.bf16.mxu0 0
      %3415 = vmatpush2.bf16.msra.mxu0 0
      %3416 = vmatprep.subr.bf16.mxu0 0
      %3417 = vmatpush2.bf16.msra.mxu0 0
      %3418 = vmatprep.subr.bf16.mxu0 0
      %3419 = vmatpush2.bf16.msra.mxu0 0
      %3420 = vmatprep.subr.bf16.mxu0 0
      %3421 = vmatpush2.bf16.msra.mxu0 0
      %3422 = vmatprep.subr.bf16.mxu0 0
      %3423 = vmatpush2.bf16.msra.mxu0 0
      %3424 = vmatprep.subr.bf16.mxu0 0
      %3425 = vmatpush2.bf16.msra.mxu0 0
      %3426 = vmatprep.mubr.bf16.mxu0 0
      %3427 = vmatmul.mubr.bf16.gmra.mxu0 %v409
      %v3428 = vpop.f32.mrf.mxu0
      %v3429 = vadd.f32 0.0, %v3428
      %v3430 = vpop.f32.mrf.mxu0
      %v3431 = vpop.f32.mrf.mxu0
      %v3432 = vadd.f32 0.0, %v3431
      %v3433 = vpop.f32.mrf.mxu0
      %3434 = vmatprep.mubr.bf16.mxu0 0
      %3435 = vmatmul.mubr.bf16.gmra.mxu0 %v412
      %v3436 = vpop.f32.mrf.mxu0
      %v3437 = vadd.f32 0.0, %v3436
      %v3438 = vpop.f32.mrf.mxu0
      %v3439 = vpop.f32.mrf.mxu0
      %v3440 = vadd.f32 0.0, %v3439
      %v3441 = vpop.f32.mrf.mxu0
      %3442 = vmatprep.mubr.bf16.mxu0 0
      %3443 = vmatmul.mubr.bf16.gmra.mxu0 %v415
      %v3444 = vpop.f32.mrf.mxu0
      %v3445 = vadd.f32 0.0, %v3444
      %v3446 = vpop.f32.mrf.mxu0
      %v3447 = vpop.f32.mrf.mxu0
      %v3448 = vadd.f32 0.0, %v3447
      %v3449 = vpop.f32.mrf.mxu0
      %3450 = vmatprep.mubr.bf16.mxu0 0
      %3451 = vmatmul.mubr.bf16.gmra.mxu0 %v418
      %v3452 = vpop.f32.mrf.mxu0
      %v3453 = vadd.f32 0.0, %v3452
      %v3454 = vpop.f32.mrf.mxu0
      %v3455 = vpop.f32.mrf.mxu0
      %v3456 = vadd.f32 0.0, %v3455
      %v3457 = vpop.f32.mrf.mxu0
      %3458 = vmatprep.mubr.bf16.mxu0 0
      %3459 = vmatmul.mubr.bf16.gmra.mxu0 %v421
      %v3460 = vpop.f32.mrf.mxu0
      %v3461 = vadd.f32 0.0, %v3460
      %v3462 = vpop.f32.mrf.mxu0
      %v3463 = vpop.f32.mrf.mxu0
      %v3464 = vadd.f32 0.0, %v3463
      %v3465 = vpop.f32.mrf.mxu0
      %3466 = vmatprep.mubr.bf16.mxu0 0
      %3467 = vmatmul.mubr.bf16.gmra.mxu0 %v424
      %v3468 = vpop.f32.mrf.mxu0
      %v3469 = vadd.f32 0.0, %v3468
      %v3470 = vpop.f32.mrf.mxu0
      %v3471 = vpop.f32.mrf.mxu0
      %v3472 = vadd.f32 0.0, %v3471
      %v3473 = vpop.f32.mrf.mxu0
      %3474 = vmatprep.mubr.bf16.mxu0 0
      %3475 = vmatmul.mubr.bf16.gmra.mxu0 %v427
      %v3476 = vpop.f32.mrf.mxu0
      %v3477 = vadd.f32 0.0, %v3476
      %v3478 = vpop.f32.mrf.mxu0
      %v3479 = vpop.f32.mrf.mxu0
      %v3480 = vadd.f32 0.0, %v3479
      %v3481 = vpop.f32.mrf.mxu0
      %3482 = vmatprep.mubr.bf16.mxu0 0
      %3483 = vmatmul.mubr.bf16.gmra.mxu0 %v430
      %v3484 = vpop.f32.mrf.mxu0
      %v3485 = vadd.f32 0.0, %v3484
      %v3486 = vpop.f32.mrf.mxu0
      %v3487 = vpop.f32.mrf.mxu0
      %v3488 = vadd.f32 0.0, %v3487
      %v3489 = vpop.f32.mrf.mxu0
      %3490 = vdwg.mxu0
      %3491 = vmatprep.subr.bf16.mxu0 0
      %3492 = vmatpush1.bf16.msra.mxu0 0
      %3493 = vmatprep.subr.bf16.mxu0 0
      %3494 = vmatpush1.bf16.msra.mxu0 0
      %3495 = vmatprep.subr.bf16.mxu0 0
      %3496 = vmatpush1.bf16.msra.mxu0 0
      %3497 = vmatprep.subr.bf16.mxu0 0
      %3498 = vmatpush1.bf16.msra.mxu0 0
      %3499 = vmatprep.subr.bf16.mxu0 0
      %3500 = vmatpush1.bf16.msra.mxu0 0
      %3501 = vmatprep.subr.bf16.mxu0 0
      %3502 = vmatpush1.bf16.msra.mxu0 %v3151
      %3503 = vmatprep.subr.bf16.mxu0 0
      %3504 = vmatpush1.bf16.msra.mxu0 %v3146
      %3505 = vmatprep.subr.bf16.mxu0 0
      %3506 = vmatpush1.bf16.msra.mxu0 %v3145
      %3507 = vmatprep.subr.bf16.mxu0 0
      %3508 = vmatpush2.bf16.msra.mxu0 0
      %3509 = vmatprep.subr.bf16.mxu0 0
      %3510 = vmatpush2.bf16.msra.mxu0 0
      %3511 = vmatprep.subr.bf16.mxu0 0
      %3512 = vmatpush2.bf16.msra.mxu0 0
      %3513 = vmatprep.subr.bf16.mxu0 0
      %3514 = vmatpush2.bf16.msra.mxu0 0
      %3515 = vmatprep.subr.bf16.mxu0 0
      %3516 = vmatpush2.bf16.msra.mxu0 0
      %3517 = vmatprep.subr.bf16.mxu0 0
      %3518 = vmatpush2.bf16.msra.mxu0 0
      %3519 = vmatprep.subr.bf16.mxu0 0
      %3520 = vmatpush2.bf16.msra.mxu0 0
      %3521 = vmatprep.subr.bf16.mxu0 0
      %3522 = vmatpush2.bf16.msra.mxu0 0
      %3523 = vmatprep.mubr.bf16.mxu0 0
      %3524 = vmatmul.mubr.bf16.gmra.mxu0 %v586
      %v3525 = vpop.f32.mrf.mxu0
      %v3526 = vadd.f32 %v3429, %v3525
      %v3527 = vpop.f32.mrf.mxu0
      %v3528 = vpop.f32.mrf.mxu0
      %v3529 = vadd.f32 %v3432, %v3528
      %v3530 = vpop.f32.mrf.mxu0
      %3531 = vmatprep.mubr.bf16.mxu0 0
      %3532 = vmatmul.mubr.bf16.gmra.mxu0 %v589
      %v3533 = vpop.f32.mrf.mxu0
      %v3534 = vadd.f32 %v3437, %v3533
      %v3535 = vpop.f32.mrf.mxu0
      %v3536 = vpop.f32.mrf.mxu0
      %v3537 = vadd.f32 %v3440, %v3536
      %v3538 = vpop.f32.mrf.mxu0
      %3539 = vmatprep.mubr.bf16.mxu0 0
      %3540 = vmatmul.mubr.bf16.gmra.mxu0 %v592
      %v3541 = vpop.f32.mrf.mxu0
      %v3542 = vadd.f32 %v3445, %v3541
      %v3543 = vpop.f32.mrf.mxu0
      %v3544 = vpop.f32.mrf.mxu0
      %v3545 = vadd.f32 %v3448, %v3544
      %v3546 = vpop.f32.mrf.mxu0
      %3547 = vmatprep.mubr.bf16.mxu0 0
      %3548 = vmatmul.mubr.bf16.gmra.mxu0 %v595
      %v3549 = vpop.f32.mrf.mxu0
      %v3550 = vadd.f32 %v3453, %v3549
      %v3551 = vpop.f32.mrf.mxu0
      %v3552 = vpop.f32.mrf.mxu0
      %v3553 = vadd.f32 %v3456, %v3552
      %v3554 = vpop.f32.mrf.mxu0
      %3555 = vmatprep.mubr.bf16.mxu0 0
      %3556 = vmatmul.mubr.bf16.gmra.mxu0 %v598
      %v3557 = vpop.f32.mrf.mxu0
      %v3558 = vadd.f32 %v3461, %v3557
      %v3559 = vpop.f32.mrf.mxu0
      %v3560 = vpop.f32.mrf.mxu0
      %v3561 = vadd.f32 %v3464, %v3560
      %v3562 = vpop.f32.mrf.mxu0
      %3563 = vmatprep.mubr.bf16.mxu0 0
      %3564 = vmatmul.mubr.bf16.gmra.mxu0 %v601
      %v3565 = vpop.f32.mrf.mxu0
      %v3566 = vadd.f32 %v3469, %v3565
      %v3567 = vpop.f32.mrf.mxu0
      %v3568 = vpop.f32.mrf.mxu0
      %v3569 = vadd.f32 %v3472, %v3568
      %v3570 = vpop.f32.mrf.mxu0
      %3571 = vmatprep.mubr.bf16.mxu0 0
      %3572 = vmatmul.mubr.bf16.gmra.mxu0 %v604
      %v3573 = vpop.f32.mrf.mxu0
      %v3574 = vadd.f32 %v3477, %v3573
      %v3575 = vpop.f32.mrf.mxu0
      %v3576 = vpop.f32.mrf.mxu0
      %v3577 = vadd.f32 %v3480, %v3576
      %v3578 = vpop.f32.mrf.mxu0
      %3579 = vmatprep.mubr.bf16.mxu0 0
      %3580 = vmatmul.mubr.bf16.gmra.mxu0 %v607
      %v3581 = vpop.f32.mrf.mxu0
      %v3582 = vadd.f32 %v3485, %v3581
      %v3583 = vpop.f32.mrf.mxu0
      %v3584 = vpop.f32.mrf.mxu0
      %v3585 = vadd.f32 %v3488, %v3584
      %v3586 = vpop.f32.mrf.mxu0
      %3587 = vdwg.mxu0
      %v3588 = vxor.u32 %v3526, 2147483648
      %v3589 = vxor.u32 %v3529, 2147483648
      %v3590 = vxor.u32 %v3534, 2147483648
      %v3591 = vxor.u32 %v3537, 2147483648
      %v3592 = vmul.f32 %v3588, 1.442695
      %v3593 = vpow.pop %v3592
      %v3594 = vmul.f32 %v3589, 1.442695
      %v3595 = vpow.pop %v3594
      %v3596 = vmul.f32 %v3590, 1.442695
      %v3597 = vpow.pop %v3596
      %v3598 = vmul.f32 %v3591, 1.442695
      %v3599 = vpow.pop %v3598
      %v3600 = vadd.f32 %v3593, 1.0
      %v3601 = vadd.f32 %v3595, 1.0
      %v3602 = vadd.f32 %v3597, 1.0
      %v3603 = vadd.f32 %v3599, 1.0
      %v3604 = vrcp.pop %v3600
      %v3605 = vmul.f32 1.0, %v3604
      %v3606 = vrcp.pop %v3601
      %v3607 = vmul.f32 1.0, %v3606
      %v3608 = vrcp.pop %v3602
      %v3609 = vmul.f32 1.0, %v3608
      %v3610 = vrcp.pop %v3603
      %v3611 = vmul.f32 1.0, %v3610
      %v3612 = vxor.u32 %v3542, 2147483648
      %v3613 = vxor.u32 %v3545, 2147483648
      %v3614 = vxor.u32 %v3550, 2147483648
      %v3615 = vxor.u32 %v3553, 2147483648
      %v3616 = vmul.f32 %v3612, 1.442695
      %v3617 = vpow.pop %v3616
      %v3618 = vmul.f32 %v3613, 1.442695
      %v3619 = vpow.pop %v3618
      %v3620 = vmul.f32 %v3614, 1.442695
      %v3621 = vpow.pop %v3620
      %v3622 = vmul.f32 %v3615, 1.442695
      %v3623 = vpow.pop %v3622
      %v3624 = vadd.f32 %v3617, 1.0
      %v3625 = vadd.f32 %v3619, 1.0
      %v3626 = vadd.f32 %v3621, 1.0
      %v3627 = vadd.f32 %v3623, 1.0
      %v3628 = vrcp.pop %v3624
      %v3629 = vmul.f32 1.0, %v3628
      %v3630 = vrcp.pop %v3625
      %v3631 = vmul.f32 1.0, %v3630
      %v3632 = vrcp.pop %v3626
      %v3633 = vmul.f32 1.0, %v3632
      %v3634 = vrcp.pop %v3627
      %v3635 = vmul.f32 1.0, %v3634
      %v3636 = vtanh.pop %v3558
      %v3637 = vtanh.pop %v3561
      %v3638 = vtanh.pop %v3566
      %v3639 = vtanh.pop %v3569
      %v3640 = vxor.u32 %v3574, 2147483648
      %v3641 = vxor.u32 %v3577, 2147483648
      %v3642 = vxor.u32 %v3582, 2147483648
      %v3643 = vxor.u32 %v3585, 2147483648
      %v3644 = vmul.f32 %v3640, 1.442695
      %v3645 = vpow.pop %v3644
      %v3646 = vmul.f32 %v3641, 1.442695
      %v3647 = vpow.pop %v3646
      %v3648 = vmul.f32 %v3642, 1.442695
      %v3649 = vpow.pop %v3648
      %v3650 = vmul.f32 %v3643, 1.442695
      %v3651 = vpow.pop %v3650
      %v3652 = vadd.f32 %v3645, 1.0
      %v3653 = vadd.f32 %v3647, 1.0
      %v3654 = vadd.f32 %v3649, 1.0
      %v3655 = vadd.f32 %v3651, 1.0
      %v3656 = vrcp.pop %v3652
      %v3657 = vmul.f32 1.0, %v3656
      %v3658 = vrcp.pop %v3653
      %v3659 = vmul.f32 1.0, %v3658
      %v3660 = vrcp.pop %v3654
      %v3661 = vmul.f32 1.0, %v3660
      %v3662 = vrcp.pop %v3655
      %v3663 = vmul.f32 1.0, %v3662
      %v3664 = vmul.f32 %v3629, %v3026
      %v3665 = vmul.f32 %v3631, %v3027
      %v3666 = vmul.f32 %v3633, %v3028
      %v3667 = vmul.f32 %v3635, %v3029
      %v3668 = vmul.f32 %v3605, %v3636
      %v3669 = vmul.f32 %v3607, %v3637
      %v3670 = vmul.f32 %v3609, %v3638
      %v3671 = vmul.f32 %v3611, %v3639
      %v3672 = vadd.f32 %v3664, %v3668
      %v3673 = vadd.f32 %v3665, %v3669
      %v3674 = vadd.f32 %v3666, %v3670
      %v3675 = vadd.f32 %v3667, %v3671
      %v3676 = vtanh.pop %v3672
      %v3677 = vtanh.pop %v3673
      %v3678 = vtanh.pop %v3674
      %v3679 = vtanh.pop %v3675
      %v3680 = vmul.f32 %v3657, %v3676
      %v3681 = vmul.f32 %v3659, %v3677
      %v3682 = vmul.f32 %v3661, %v3678
      %v3683 = vmul.f32 %v3663, %v3679
      %v3684 = vsel %vm3351, %v3680, %v3022
      %v3685 = vsel %vm3351, %v3681, %v3023
      %v3686 = vsel %vm3351, %v3682, %v3024
      %v3687 = vsel %vm3351, %v3683, %v3025
      %v3688 = vsel %vm3351, %v3672, %v3026
      %v3689 = vsel %vm3351, %v3673, %v3027
      %v3690 = vsel %vm3351, %v3674, %v3028
      %v3691 = vsel %vm3351, %v3675, %v3029
      %v3692 = vpack.c.bf16 %v3353, %v3352
      %v3693 = vpack.c.bf16 %v3355, %v3354
      %3694 = vmatprep.subr.bf16.mxu0 0
      %3695 = vmatpush1.bf16.msra.mxu0 0
      %3696 = vmatprep.subr.bf16.mxu0 0
      %3697 = vmatpush1.bf16.msra.mxu0 0
      %3698 = vmatprep.subr.bf16.mxu0 0
      %3699 = vmatpush1.bf16.msra.mxu0 0
      %3700 = vmatprep.subr.bf16.mxu0 0
      %3701 = vmatpush1.bf16.msra.mxu0 0
      %3702 = vmatprep.subr.bf16.mxu0 0
      %3703 = vmatpush1.bf16.msra.mxu0 0
      %3704 = vmatprep.subr.bf16.mxu0 0
      %3705 = vmatpush1.bf16.msra.mxu0 0
      %3706 = vmatprep.subr.bf16.mxu0 0
      %3707 = vmatpush1.bf16.msra.mxu0 %v3693
      %3708 = vmatprep.subr.bf16.mxu0 0
      %3709 = vmatpush1.bf16.msra.mxu0 %v3692
      %3710 = vmatprep.subr.bf16.mxu0 0
      %3711 = vmatpush2.bf16.msra.mxu0 0
      %3712 = vmatprep.subr.bf16.mxu0 0
      %3713 = vmatpush2.bf16.msra.mxu0 0
      %3714 = vmatprep.subr.bf16.mxu0 0
      %3715 = vmatpush2.bf16.msra.mxu0 0
      %3716 = vmatprep.subr.bf16.mxu0 0
      %3717 = vmatpush2.bf16.msra.mxu0 0
      %3718 = vmatprep.subr.bf16.mxu0 0
      %3719 = vmatpush2.bf16.msra.mxu0 0
      %3720 = vmatprep.subr.bf16.mxu0 0
      %3721 = vmatpush2.bf16.msra.mxu0 0
      %3722 = vmatprep.subr.bf16.mxu0 0
      %3723 = vmatpush2.bf16.msra.mxu0 0
      %3724 = vmatprep.subr.bf16.mxu0 0
      %3725 = vmatpush2.bf16.msra.mxu0 0
      %3726 = vmatprep.mubr.bf16.mxu0 0
      %3727 = vmatmul.mubr.bf16.gmra.mxu0 %v869
      %v3728 = vpop.f32.mrf.mxu0
      %v3729 = vadd.f32 0.0, %v3728
      %v3730 = vpop.f32.mrf.mxu0
      %v3731 = vpop.f32.mrf.mxu0
      %v3732 = vadd.f32 0.0, %v3731
      %v3733 = vpop.f32.mrf.mxu0
      %3734 = vmatprep.mubr.bf16.mxu0 0
      %3735 = vmatmul.mubr.bf16.gmra.mxu0 %v872
      %v3736 = vpop.f32.mrf.mxu0
      %v3737 = vadd.f32 0.0, %v3736
      %v3738 = vpop.f32.mrf.mxu0
      %v3739 = vpop.f32.mrf.mxu0
      %v3740 = vadd.f32 0.0, %v3739
      %v3741 = vpop.f32.mrf.mxu0
      %3742 = vmatprep.mubr.bf16.mxu0 0
      %3743 = vmatmul.mubr.bf16.gmra.mxu0 %v875
      %v3744 = vpop.f32.mrf.mxu0
      %v3745 = vadd.f32 0.0, %v3744
      %v3746 = vpop.f32.mrf.mxu0
      %v3747 = vpop.f32.mrf.mxu0
      %v3748 = vadd.f32 0.0, %v3747
      %v3749 = vpop.f32.mrf.mxu0
      %3750 = vmatprep.mubr.bf16.mxu0 0
      %3751 = vmatmul.mubr.bf16.gmra.mxu0 %v878
      %v3752 = vpop.f32.mrf.mxu0
      %v3753 = vadd.f32 0.0, %v3752
      %v3754 = vpop.f32.mrf.mxu0
      %v3755 = vpop.f32.mrf.mxu0
      %v3756 = vadd.f32 0.0, %v3755
      %v3757 = vpop.f32.mrf.mxu0
      %3758 = vmatprep.mubr.bf16.mxu0 0
      %3759 = vmatmul.mubr.bf16.gmra.mxu0 %v881
      %v3760 = vpop.f32.mrf.mxu0
      %v3761 = vadd.f32 0.0, %v3760
      %v3762 = vpop.f32.mrf.mxu0
      %v3763 = vpop.f32.mrf.mxu0
      %v3764 = vadd.f32 0.0, %v3763
      %v3765 = vpop.f32.mrf.mxu0
      %3766 = vmatprep.mubr.bf16.mxu0 0
      %3767 = vmatmul.mubr.bf16.gmra.mxu0 %v884
      %v3768 = vpop.f32.mrf.mxu0
      %v3769 = vadd.f32 0.0, %v3768
      %v3770 = vpop.f32.mrf.mxu0
      %v3771 = vpop.f32.mrf.mxu0
      %v3772 = vadd.f32 0.0, %v3771
      %v3773 = vpop.f32.mrf.mxu0
      %3774 = vmatprep.mubr.bf16.mxu0 0
      %3775 = vmatmul.mubr.bf16.gmra.mxu0 %v887
      %v3776 = vpop.f32.mrf.mxu0
      %v3777 = vadd.f32 0.0, %v3776
      %v3778 = vpop.f32.mrf.mxu0
      %v3779 = vpop.f32.mrf.mxu0
      %v3780 = vadd.f32 0.0, %v3779
      %v3781 = vpop.f32.mrf.mxu0
      %3782 = vmatprep.mubr.bf16.mxu0 0
      %3783 = vmatmul.mubr.bf16.gmra.mxu0 %v890
      %v3784 = vpop.f32.mrf.mxu0
      %v3785 = vadd.f32 0.0, %v3784
      %v3786 = vpop.f32.mrf.mxu0
      %v3787 = vpop.f32.mrf.mxu0
      %v3788 = vadd.f32 0.0, %v3787
      %v3789 = vpop.f32.mrf.mxu0
      %3790 = vdwg.mxu0
      %3791 = vmatprep.subr.bf16.mxu0 0
      %3792 = vmatpush1.bf16.msra.mxu0 0
      %3793 = vmatprep.subr.bf16.mxu0 0
      %3794 = vmatpush1.bf16.msra.mxu0 0
      %3795 = vmatprep.subr.bf16.mxu0 0
      %3796 = vmatpush1.bf16.msra.mxu0 0
      %3797 = vmatprep.subr.bf16.mxu0 0
      %3798 = vmatpush1.bf16.msra.mxu0 0
      %3799 = vmatprep.subr.bf16.mxu0 0
      %3800 = vmatpush1.bf16.msra.mxu0 0
      %3801 = vmatprep.subr.bf16.mxu0 0
      %3802 = vmatpush1.bf16.msra.mxu0 %v2821
      %3803 = vmatprep.subr.bf16.mxu0 0
      %3804 = vmatpush1.bf16.msra.mxu0 %v2816
      %3805 = vmatprep.subr.bf16.mxu0 0
      %3806 = vmatpush1.bf16.msra.mxu0 %v2815
      %3807 = vmatprep.subr.bf16.mxu0 0
      %3808 = vmatpush2.bf16.msra.mxu0 0
      %3809 = vmatprep.subr.bf16.mxu0 0
      %3810 = vmatpush2.bf16.msra.mxu0 0
      %3811 = vmatprep.subr.bf16.mxu0 0
      %3812 = vmatpush2.bf16.msra.mxu0 0
      %3813 = vmatprep.subr.bf16.mxu0 0
      %3814 = vmatpush2.bf16.msra.mxu0 0
      %3815 = vmatprep.subr.bf16.mxu0 0
      %3816 = vmatpush2.bf16.msra.mxu0 0
      %3817 = vmatprep.subr.bf16.mxu0 0
      %3818 = vmatpush2.bf16.msra.mxu0 0
      %3819 = vmatprep.subr.bf16.mxu0 0
      %3820 = vmatpush2.bf16.msra.mxu0 0
      %3821 = vmatprep.subr.bf16.mxu0 0
      %3822 = vmatpush2.bf16.msra.mxu0 0
      %3823 = vmatprep.mubr.bf16.mxu0 0
      %3824 = vmatmul.mubr.bf16.gmra.mxu0 %v1045
      %v3825 = vpop.f32.mrf.mxu0
      %v3826 = vadd.f32 %v3729, %v3825
      %v3827 = vpop.f32.mrf.mxu0
      %v3828 = vpop.f32.mrf.mxu0
      %v3829 = vadd.f32 %v3732, %v3828
      %v3830 = vpop.f32.mrf.mxu0
      %3831 = vmatprep.mubr.bf16.mxu0 0
      %3832 = vmatmul.mubr.bf16.gmra.mxu0 %v1048
      %v3833 = vpop.f32.mrf.mxu0
      %v3834 = vadd.f32 %v3737, %v3833
      %v3835 = vpop.f32.mrf.mxu0
      %v3836 = vpop.f32.mrf.mxu0
      %v3837 = vadd.f32 %v3740, %v3836
      %v3838 = vpop.f32.mrf.mxu0
      %3839 = vmatprep.mubr.bf16.mxu0 0
      %3840 = vmatmul.mubr.bf16.gmra.mxu0 %v1051
      %v3841 = vpop.f32.mrf.mxu0
      %v3842 = vadd.f32 %v3745, %v3841
      %v3843 = vpop.f32.mrf.mxu0
      %v3844 = vpop.f32.mrf.mxu0
      %v3845 = vadd.f32 %v3748, %v3844
      %v3846 = vpop.f32.mrf.mxu0
      %3847 = vmatprep.mubr.bf16.mxu0 0
      %3848 = vmatmul.mubr.bf16.gmra.mxu0 %v1054
      %v3849 = vpop.f32.mrf.mxu0
      %v3850 = vadd.f32 %v3753, %v3849
      %v3851 = vpop.f32.mrf.mxu0
      %v3852 = vpop.f32.mrf.mxu0
      %v3853 = vadd.f32 %v3756, %v3852
      %v3854 = vpop.f32.mrf.mxu0
      %3855 = vmatprep.mubr.bf16.mxu0 0
      %3856 = vmatmul.mubr.bf16.gmra.mxu0 %v1057
      %v3857 = vpop.f32.mrf.mxu0
      %v3858 = vadd.f32 %v3761, %v3857
      %v3859 = vpop.f32.mrf.mxu0
      %v3860 = vpop.f32.mrf.mxu0
      %v3861 = vadd.f32 %v3764, %v3860
      %v3862 = vpop.f32.mrf.mxu0
      %3863 = vmatprep.mubr.bf16.mxu0 0
      %3864 = vmatmul.mubr.bf16.gmra.mxu0 %v1060
      %v3865 = vpop.f32.mrf.mxu0
      %v3866 = vadd.f32 %v3769, %v3865
      %v3867 = vpop.f32.mrf.mxu0
      %v3868 = vpop.f32.mrf.mxu0
      %v3869 = vadd.f32 %v3772, %v3868
      %v3870 = vpop.f32.mrf.mxu0
      %3871 = vmatprep.mubr.bf16.mxu0 0
      %3872 = vmatmul.mubr.bf16.gmra.mxu0 %v1063
      %v3873 = vpop.f32.mrf.mxu0
      %v3874 = vadd.f32 %v3777, %v3873
      %v3875 = vpop.f32.mrf.mxu0
      %v3876 = vpop.f32.mrf.mxu0
      %v3877 = vadd.f32 %v3780, %v3876
      %v3878 = vpop.f32.mrf.mxu0
      %3879 = vmatprep.mubr.bf16.mxu0 0
      %3880 = vmatmul.mubr.bf16.gmra.mxu0 %v1066
      %v3881 = vpop.f32.mrf.mxu0
      %v3882 = vadd.f32 %v3785, %v3881
      %v3883 = vpop.f32.mrf.mxu0
      %v3884 = vpop.f32.mrf.mxu0
      %v3885 = vadd.f32 %v3788, %v3884
      %v3886 = vpop.f32.mrf.mxu0
      %3887 = vdwg.mxu0
      %v3888 = vxor.u32 %v3826, 2147483648
      %v3889 = vxor.u32 %v3829, 2147483648
      %v3890 = vxor.u32 %v3834, 2147483648
      %v3891 = vxor.u32 %v3837, 2147483648
      %v3892 = vmul.f32 %v3888, 1.442695
      %v3893 = vpow.pop %v3892
      %v3894 = vmul.f32 %v3889, 1.442695
      %v3895 = vpow.pop %v3894
      %v3896 = vmul.f32 %v3890, 1.442695
      %v3897 = vpow.pop %v3896
      %v3898 = vmul.f32 %v3891, 1.442695
      %v3899 = vpow.pop %v3898
      %v3900 = vadd.f32 %v3893, 1.0
      %v3901 = vadd.f32 %v3895, 1.0
      %v3902 = vadd.f32 %v3897, 1.0
      %v3903 = vadd.f32 %v3899, 1.0
      %v3904 = vrcp.pop %v3900
      %v3905 = vmul.f32 1.0, %v3904
      %v3906 = vrcp.pop %v3901
      %v3907 = vmul.f32 1.0, %v3906
      %v3908 = vrcp.pop %v3902
      %v3909 = vmul.f32 1.0, %v3908
      %v3910 = vrcp.pop %v3903
      %v3911 = vmul.f32 1.0, %v3910
      %v3912 = vxor.u32 %v3842, 2147483648
      %v3913 = vxor.u32 %v3845, 2147483648
      %v3914 = vxor.u32 %v3850, 2147483648
      %v3915 = vxor.u32 %v3853, 2147483648
      %v3916 = vmul.f32 %v3912, 1.442695
      %v3917 = vpow.pop %v3916
      %v3918 = vmul.f32 %v3913, 1.442695
      %v3919 = vpow.pop %v3918
      %v3920 = vmul.f32 %v3914, 1.442695
      %v3921 = vpow.pop %v3920
      %v3922 = vmul.f32 %v3915, 1.442695
      %v3923 = vpow.pop %v3922
      %v3924 = vadd.f32 %v3917, 1.0
      %v3925 = vadd.f32 %v3919, 1.0
      %v3926 = vadd.f32 %v3921, 1.0
      %v3927 = vadd.f32 %v3923, 1.0
      %v3928 = vrcp.pop %v3924
      %v3929 = vmul.f32 1.0, %v3928
      %v3930 = vrcp.pop %v3925
      %v3931 = vmul.f32 1.0, %v3930
      %v3932 = vrcp.pop %v3926
      %v3933 = vmul.f32 1.0, %v3932
      %v3934 = vrcp.pop %v3927
      %v3935 = vmul.f32 1.0, %v3934
      %v3936 = vtanh.pop %v3858
      %v3937 = vtanh.pop %v3861
      %v3938 = vtanh.pop %v3866
      %v3939 = vtanh.pop %v3869
      %v3940 = vxor.u32 %v3874, 2147483648
      %v3941 = vxor.u32 %v3877, 2147483648
      %v3942 = vxor.u32 %v3882, 2147483648
      %v3943 = vxor.u32 %v3885, 2147483648
      %v3944 = vmul.f32 %v3940, 1.442695
      %v3945 = vpow.pop %v3944
      %v3946 = vmul.f32 %v3941, 1.442695
      %v3947 = vpow.pop %v3946
      %v3948 = vmul.f32 %v3942, 1.442695
      %v3949 = vpow.pop %v3948
      %v3950 = vmul.f32 %v3943, 1.442695
      %v3951 = vpow.pop %v3950
      %v3952 = vadd.f32 %v3945, 1.0
      %v3953 = vadd.f32 %v3947, 1.0
      %v3954 = vadd.f32 %v3949, 1.0
      %v3955 = vadd.f32 %v3951, 1.0
      %v3956 = vrcp.pop %v3952
      %v3957 = vmul.f32 1.0, %v3956
      %v3958 = vrcp.pop %v3953
      %v3959 = vmul.f32 1.0, %v3958
      %v3960 = vrcp.pop %v3954
      %v3961 = vmul.f32 1.0, %v3960
      %v3962 = vrcp.pop %v3955
      %v3963 = vmul.f32 1.0, %v3962
      %v3964 = vmul.f32 %v3929, %v3356
      %v3965 = vmul.f32 %v3931, %v3357
      %v3966 = vmul.f32 %v3933, %v3358
      %v3967 = vmul.f32 %v3935, %v3359
      %v3968 = vmul.f32 %v3905, %v3936
      %v3969 = vmul.f32 %v3907, %v3937
      %v3970 = vmul.f32 %v3909, %v3938
      %v3971 = vmul.f32 %v3911, %v3939
      %v3972 = vadd.f32 %v3964, %v3968
      %v3973 = vadd.f32 %v3965, %v3969
      %v3974 = vadd.f32 %v3966, %v3970
      %v3975 = vadd.f32 %v3967, %v3971
      %v3976 = vtanh.pop %v3972
      %v3977 = vtanh.pop %v3973
      %v3978 = vtanh.pop %v3974
      %v3979 = vtanh.pop %v3975
      %v3980 = vmul.f32 %v3957, %v3976
      %v3981 = vmul.f32 %v3959, %v3977
      %v3982 = vmul.f32 %v3961, %v3978
      %v3983 = vmul.f32 %v3963, %v3979
      %v3984 = vsel %vm3021, %v3980, %v3352
      %v3985 = vsel %vm3021, %v3981, %v3353
      %v3986 = vsel %vm3021, %v3982, %v3354
      %v3987 = vsel %vm3021, %v3983, %v3355
      %v3988 = vsel %vm3021, %v3972, %v3356
      %v3989 = vsel %vm3021, %v3973, %v3357
      %v3990 = vsel %vm3021, %v3974, %v3358
      %v3991 = vsel %vm3021, %v3975, %v3359
      %vm3992 = vcmp.ne.f32.partialorder %v3680, 0.0
      %vm3993 = vcmp.ne.f32.partialorder %v3681, 0.0
      %vm3994 = vcmp.ne.f32.partialorder %v3682, 0.0
      %vm3995 = vcmp.ne.f32.partialorder %v3683, 0.0
      %vm3996 = vmand %vm3351, %vm3992
      %vm3997 = vmand %vm3351, %vm3993
      %vm3998 = vmand %vm3351, %vm3994
      %vm3999 = vmand %vm3351, %vm3995
      %v4000 = vsel %vm3996, %v3680, -1e+09
      %v4001 = vsel %vm3997, %v3681, -1e+09
      %v4002 = vsel %vm3998, %v3682, -1e+09
      %v4003 = vsel %vm3999, %v3683, -1e+09
      %v4004 = vmax.f32 %v3372, %v4000
      %v4005 = vmax.f32 %v3373, %v4001
      %v4006 = vmax.f32 %v3374, %v4002
      %v4007 = vmax.f32 %v3375, %v4003
      %vm4008 = vcmp.ne.f32.partialorder %v3980, 0.0
      %vm4009 = vcmp.ne.f32.partialorder %v3981, 0.0
      %vm4010 = vcmp.ne.f32.partialorder %v3982, 0.0
      %vm4011 = vcmp.ne.f32.partialorder %v3983, 0.0
      %vm4012 = vmand %vm3021, %vm4008
      %vm4013 = vmand %vm3021, %vm4009
      %vm4014 = vmand %vm3021, %vm4010
      %vm4015 = vmand %vm3021, %vm4011
      %v4016 = vsel %vm4012, %v3980, -1e+09
      %v4017 = vsel %vm4013, %v3981, -1e+09
      %v4018 = vsel %vm4014, %v3982, -1e+09
      %v4019 = vsel %vm4015, %v3983, -1e+09
      %v4020 = vmax.f32 %v3388, %v4016
      %v4021 = vmax.f32 %v3389, %v4017
      %v4022 = vmax.f32 %v3390, %v4018
      %v4023 = vmax.f32 %v3391, %v4019
      %v4024 = vpack.c.bf16 %v3685, %v3684
      %v4025 = vpack.c.bf16 %v3687, %v3686
      %4026 = vmatprep.subr.bf16.mxu0 0
      %4027 = vmatpush1.bf16.msra.mxu0 0
      %4028 = vmatprep.subr.bf16.mxu0 0
      %4029 = vmatpush1.bf16.msra.mxu0 0
      %4030 = vmatprep.subr.bf16.mxu0 0
      %4031 = vmatpush1.bf16.msra.mxu0 0
      %4032 = vmatprep.subr.bf16.mxu0 0
      %4033 = vmatpush1.bf16.msra.mxu0 0
      %4034 = vmatprep.subr.bf16.mxu0 0
      %4035 = vmatpush1.bf16.msra.mxu0 0
      %4036 = vmatprep.subr.bf16.mxu0 0
      %4037 = vmatpush1.bf16.msra.mxu0 0
      %4038 = vmatprep.subr.bf16.mxu0 0
      %4039 = vmatpush1.bf16.msra.mxu0 %v4025
      %4040 = vmatprep.subr.bf16.mxu0 0
      %4041 = vmatpush1.bf16.msra.mxu0 %v4024
      %4042 = vmatprep.subr.bf16.mxu0 0
      %4043 = vmatpush2.bf16.msra.mxu0 0
      %4044 = vmatprep.subr.bf16.mxu0 0
      %4045 = vmatpush2.bf16.msra.mxu0 0
      %4046 = vmatprep.subr.bf16.mxu0 0
      %4047 = vmatpush2.bf16.msra.mxu0 0
      %4048 = vmatprep.subr.bf16.mxu0 0
      %4049 = vmatpush2.bf16.msra.mxu0 0
      %4050 = vmatprep.subr.bf16.mxu0 0
      %4051 = vmatpush2.bf16.msra.mxu0 0
      %4052 = vmatprep.subr.bf16.mxu0 0
      %4053 = vmatpush2.bf16.msra.mxu0 0
      %4054 = vmatprep.subr.bf16.mxu0 0
      %4055 = vmatpush2.bf16.msra.mxu0 0
      %4056 = vmatprep.subr.bf16.mxu0 0
      %4057 = vmatpush2.bf16.msra.mxu0 0
      %4058 = vmatprep.mubr.bf16.mxu0 0
      %4059 = vmatmul.mubr.bf16.gmra.mxu0 %v409
      %v4060 = vpop.f32.mrf.mxu0
      %v4061 = vadd.f32 0.0, %v4060
      %v4062 = vpop.f32.mrf.mxu0
      %v4063 = vpop.f32.mrf.mxu0
      %v4064 = vadd.f32 0.0, %v4063
      %v4065 = vpop.f32.mrf.mxu0
      %4066 = vmatprep.mubr.bf16.mxu0 0
      %4067 = vmatmul.mubr.bf16.gmra.mxu0 %v412
      %v4068 = vpop.f32.mrf.mxu0
      %v4069 = vadd.f32 0.0, %v4068
      %v4070 = vpop.f32.mrf.mxu0
      %v4071 = vpop.f32.mrf.mxu0
      %v4072 = vadd.f32 0.0, %v4071
      %v4073 = vpop.f32.mrf.mxu0
      %4074 = vmatprep.mubr.bf16.mxu0 0
      %4075 = vmatmul.mubr.bf16.gmra.mxu0 %v415
      %v4076 = vpop.f32.mrf.mxu0
      %v4077 = vadd.f32 0.0, %v4076
      %v4078 = vpop.f32.mrf.mxu0
      %v4079 = vpop.f32.mrf.mxu0
      %v4080 = vadd.f32 0.0, %v4079
      %v4081 = vpop.f32.mrf.mxu0
      %4082 = vmatprep.mubr.bf16.mxu0 0
      %4083 = vmatmul.mubr.bf16.gmra.mxu0 %v418
      %v4084 = vpop.f32.mrf.mxu0
      %v4085 = vadd.f32 0.0, %v4084
      %v4086 = vpop.f32.mrf.mxu0
      %v4087 = vpop.f32.mrf.mxu0
      %v4088 = vadd.f32 0.0, %v4087
      %v4089 = vpop.f32.mrf.mxu0
      %4090 = vmatprep.mubr.bf16.mxu0 0
      %4091 = vmatmul.mubr.bf16.gmra.mxu0 %v421
      %v4092 = vpop.f32.mrf.mxu0
      %v4093 = vadd.f32 0.0, %v4092
      %v4094 = vpop.f32.mrf.mxu0
      %v4095 = vpop.f32.mrf.mxu0
      %v4096 = vadd.f32 0.0, %v4095
      %v4097 = vpop.f32.mrf.mxu0
      %4098 = vmatprep.mubr.bf16.mxu0 0
      %4099 = vmatmul.mubr.bf16.gmra.mxu0 %v424
      %v4100 = vpop.f32.mrf.mxu0
      %v4101 = vadd.f32 0.0, %v4100
      %v4102 = vpop.f32.mrf.mxu0
      %v4103 = vpop.f32.mrf.mxu0
      %v4104 = vadd.f32 0.0, %v4103
      %v4105 = vpop.f32.mrf.mxu0
      %4106 = vmatprep.mubr.bf16.mxu0 0
      %4107 = vmatmul.mubr.bf16.gmra.mxu0 %v427
      %v4108 = vpop.f32.mrf.mxu0
      %v4109 = vadd.f32 0.0, %v4108
      %v4110 = vpop.f32.mrf.mxu0
      %v4111 = vpop.f32.mrf.mxu0
      %v4112 = vadd.f32 0.0, %v4111
      %v4113 = vpop.f32.mrf.mxu0
      %4114 = vmatprep.mubr.bf16.mxu0 0
      %4115 = vmatmul.mubr.bf16.gmra.mxu0 %v430
      %v4116 = vpop.f32.mrf.mxu0
      %v4117 = vadd.f32 0.0, %v4116
      %v4118 = vpop.f32.mrf.mxu0
      %v4119 = vpop.f32.mrf.mxu0
      %v4120 = vadd.f32 0.0, %v4119
      %v4121 = vpop.f32.mrf.mxu0
      %4122 = vdwg.mxu0
      %4123 = vmatprep.subr.bf16.mxu0 0
      %4124 = vmatpush1.bf16.msra.mxu0 0
      %4125 = vmatprep.subr.bf16.mxu0 0
      %4126 = vmatpush1.bf16.msra.mxu0 0
      %4127 = vmatprep.subr.bf16.mxu0 0
      %4128 = vmatpush1.bf16.msra.mxu0 0
      %4129 = vmatprep.subr.bf16.mxu0 0
      %4130 = vmatpush1.bf16.msra.mxu0 0
      %4131 = vmatprep.subr.bf16.mxu0 0
      %4132 = vmatpush1.bf16.msra.mxu0 0
      %4133 = vmatprep.subr.bf16.mxu0 0
      %4134 = vmatpush1.bf16.msra.mxu0 %v2457
      %4135 = vmatprep.subr.bf16.mxu0 0
      %4136 = vmatpush1.bf16.msra.mxu0 %v2452
      %4137 = vmatprep.subr.bf16.mxu0 0
      %4138 = vmatpush1.bf16.msra.mxu0 %v2451
      %4139 = vmatprep.subr.bf16.mxu0 0
      %4140 = vmatpush2.bf16.msra.mxu0 0
      %4141 = vmatprep.subr.bf16.mxu0 0
      %4142 = vmatpush2.bf16.msra.mxu0 0
      %4143 = vmatprep.subr.bf16.mxu0 0
      %4144 = vmatpush2.bf16.msra.mxu0 0
      %4145 = vmatprep.subr.bf16.mxu0 0
      %4146 = vmatpush2.bf16.msra.mxu0 0
      %4147 = vmatprep.subr.bf16.mxu0 0
      %4148 = vmatpush2.bf16.msra.mxu0 0
      %4149 = vmatprep.subr.bf16.mxu0 0
      %4150 = vmatpush2.bf16.msra.mxu0 0
      %4151 = vmatprep.subr.bf16.mxu0 0
      %4152 = vmatpush2.bf16.msra.mxu0 0
      %4153 = vmatprep.subr.bf16.mxu0 0
      %4154 = vmatpush2.bf16.msra.mxu0 0
      %4155 = vmatprep.mubr.bf16.mxu0 0
      %4156 = vmatmul.mubr.bf16.gmra.mxu0 %v586
      %v4157 = vpop.f32.mrf.mxu0
      %v4158 = vadd.f32 %v4061, %v4157
      %v4159 = vpop.f32.mrf.mxu0
      %v4160 = vpop.f32.mrf.mxu0
      %v4161 = vadd.f32 %v4064, %v4160
      %v4162 = vpop.f32.mrf.mxu0
      %4163 = vmatprep.mubr.bf16.mxu0 0
      %4164 = vmatmul.mubr.bf16.gmra.mxu0 %v589
      %v4165 = vpop.f32.mrf.mxu0
      %v4166 = vadd.f32 %v4069, %v4165
      %v4167 = vpop.f32.mrf.mxu0
      %v4168 = vpop.f32.mrf.mxu0
      %v4169 = vadd.f32 %v4072, %v4168
      %v4170 = vpop.f32.mrf.mxu0
      %4171 = vmatprep.mubr.bf16.mxu0 0
      %4172 = vmatmul.mubr.bf16.gmra.mxu0 %v592
      %v4173 = vpop.f32.mrf.mxu0
      %v4174 = vadd.f32 %v4077, %v4173
      %v4175 = vpop.f32.mrf.mxu0
      %v4176 = vpop.f32.mrf.mxu0
      %v4177 = vadd.f32 %v4080, %v4176
      %v4178 = vpop.f32.mrf.mxu0
      %4179 = vmatprep.mubr.bf16.mxu0 0
      %4180 = vmatmul.mubr.bf16.gmra.mxu0 %v595
      %v4181 = vpop.f32.mrf.mxu0
      %v4182 = vadd.f32 %v4085, %v4181
      %v4183 = vpop.f32.mrf.mxu0
      %v4184 = vpop.f32.mrf.mxu0
      %v4185 = vadd.f32 %v4088, %v4184
      %v4186 = vpop.f32.mrf.mxu0
      %4187 = vmatprep.mubr.bf16.mxu0 0
      %4188 = vmatmul.mubr.bf16.gmra.mxu0 %v598
      %v4189 = vpop.f32.mrf.mxu0
      %v4190 = vadd.f32 %v4093, %v4189
      %v4191 = vpop.f32.mrf.mxu0
      %v4192 = vpop.f32.mrf.mxu0
      %v4193 = vadd.f32 %v4096, %v4192
      %v4194 = vpop.f32.mrf.mxu0
      %4195 = vmatprep.mubr.bf16.mxu0 0
      %4196 = vmatmul.mubr.bf16.gmra.mxu0 %v601
      %v4197 = vpop.f32.mrf.mxu0
      %v4198 = vadd.f32 %v4101, %v4197
      %v4199 = vpop.f32.mrf.mxu0
      %v4200 = vpop.f32.mrf.mxu0
      %v4201 = vadd.f32 %v4104, %v4200
      %v4202 = vpop.f32.mrf.mxu0
      %4203 = vmatprep.mubr.bf16.mxu0 0
      %4204 = vmatmul.mubr.bf16.gmra.mxu0 %v604
      %v4205 = vpop.f32.mrf.mxu0
      %v4206 = vadd.f32 %v4109, %v4205
      %v4207 = vpop.f32.mrf.mxu0
      %v4208 = vpop.f32.mrf.mxu0
      %v4209 = vadd.f32 %v4112, %v4208
      %v4210 = vpop.f32.mrf.mxu0
      %4211 = vmatprep.mubr.bf16.mxu0 0
      %4212 = vmatmul.mubr.bf16.gmra.mxu0 %v607
      %v4213 = vpop.f32.mrf.mxu0
      %v4214 = vadd.f32 %v4117, %v4213
      %v4215 = vpop.f32.mrf.mxu0
      %v4216 = vpop.f32.mrf.mxu0
      %v4217 = vadd.f32 %v4120, %v4216
      %v4218 = vpop.f32.mrf.mxu0
      %4219 = vdwg.mxu0
      %v4220 = vxor.u32 %v4158, 2147483648
      %v4221 = vxor.u32 %v4161, 2147483648
      %v4222 = vxor.u32 %v4166, 2147483648
      %v4223 = vxor.u32 %v4169, 2147483648
      %v4224 = vmul.f32 %v4220, 1.442695
      %v4225 = vpow.pop %v4224
      %v4226 = vmul.f32 %v4221, 1.442695
      %v4227 = vpow.pop %v4226
      %v4228 = vmul.f32 %v4222, 1.442695
      %v4229 = vpow.pop %v4228
      %v4230 = vmul.f32 %v4223, 1.442695
      %v4231 = vpow.pop %v4230
      %v4232 = vadd.f32 %v4225, 1.0
      %v4233 = vadd.f32 %v4227, 1.0
      %v4234 = vadd.f32 %v4229, 1.0
      %v4235 = vadd.f32 %v4231, 1.0
      %v4236 = vrcp.pop %v4232
      %v4237 = vmul.f32 1.0, %v4236
      %v4238 = vrcp.pop %v4233
      %v4239 = vmul.f32 1.0, %v4238
      %v4240 = vrcp.pop %v4234
      %v4241 = vmul.f32 1.0, %v4240
      %v4242 = vrcp.pop %v4235
      %v4243 = vmul.f32 1.0, %v4242
      %v4244 = vxor.u32 %v4174, 2147483648
      %v4245 = vxor.u32 %v4177, 2147483648
      %v4246 = vxor.u32 %v4182, 2147483648
      %v4247 = vxor.u32 %v4185, 2147483648
      %v4248 = vmul.f32 %v4244, 1.442695
      %v4249 = vpow.pop %v4248
      %v4250 = vmul.f32 %v4245, 1.442695
      %v4251 = vpow.pop %v4250
      %v4252 = vmul.f32 %v4246, 1.442695
      %v4253 = vpow.pop %v4252
      %v4254 = vmul.f32 %v4247, 1.442695
      %v4255 = vpow.pop %v4254
      %v4256 = vadd.f32 %v4249, 1.0
      %v4257 = vadd.f32 %v4251, 1.0
      %v4258 = vadd.f32 %v4253, 1.0
      %v4259 = vadd.f32 %v4255, 1.0
      %v4260 = vrcp.pop %v4256
      %v4261 = vmul.f32 1.0, %v4260
      %v4262 = vrcp.pop %v4257
      %v4263 = vmul.f32 1.0, %v4262
      %v4264 = vrcp.pop %v4258
      %v4265 = vmul.f32 1.0, %v4264
      %v4266 = vrcp.pop %v4259
      %v4267 = vmul.f32 1.0, %v4266
      %v4268 = vtanh.pop %v4190
      %v4269 = vtanh.pop %v4193
      %v4270 = vtanh.pop %v4198
      %v4271 = vtanh.pop %v4201
      %v4272 = vxor.u32 %v4206, 2147483648
      %v4273 = vxor.u32 %v4209, 2147483648
      %v4274 = vxor.u32 %v4214, 2147483648
      %v4275 = vxor.u32 %v4217, 2147483648
      %v4276 = vmul.f32 %v4272, 1.442695
      %v4277 = vpow.pop %v4276
      %v4278 = vmul.f32 %v4273, 1.442695
      %v4279 = vpow.pop %v4278
      %v4280 = vmul.f32 %v4274, 1.442695
      %v4281 = vpow.pop %v4280
      %v4282 = vmul.f32 %v4275, 1.442695
      %v4283 = vpow.pop %v4282
      %v4284 = vadd.f32 %v4277, 1.0
      %v4285 = vadd.f32 %v4279, 1.0
      %v4286 = vadd.f32 %v4281, 1.0
      %v4287 = vadd.f32 %v4283, 1.0
      %v4288 = vrcp.pop %v4284
      %v4289 = vmul.f32 1.0, %v4288
      %v4290 = vrcp.pop %v4285
      %v4291 = vmul.f32 1.0, %v4290
      %v4292 = vrcp.pop %v4286
      %v4293 = vmul.f32 1.0, %v4292
      %v4294 = vrcp.pop %v4287
      %v4295 = vmul.f32 1.0, %v4294
      %v4296 = vmul.f32 %v4261, %v3688
      %v4297 = vmul.f32 %v4263, %v3689
      %v4298 = vmul.f32 %v4265, %v3690
      %v4299 = vmul.f32 %v4267, %v3691
      %v4300 = vmul.f32 %v4237, %v4268
      %v4301 = vmul.f32 %v4239, %v4269
      %v4302 = vmul.f32 %v4241, %v4270
      %v4303 = vmul.f32 %v4243, %v4271
      %v4304 = vadd.f32 %v4296, %v4300
      %v4305 = vadd.f32 %v4297, %v4301
      %v4306 = vadd.f32 %v4298, %v4302
      %v4307 = vadd.f32 %v4299, %v4303
      %v4308 = vtanh.pop %v4304
      %v4309 = vtanh.pop %v4305
      %v4310 = vtanh.pop %v4306
      %v4311 = vtanh.pop %v4307
      %v4312 = vmul.f32 %v4289, %v4308
      %v4313 = vmul.f32 %v4291, %v4309
      %v4314 = vmul.f32 %v4293, %v4310
      %v4315 = vmul.f32 %v4295, %v4311
      %v4316 = vsel %vm2657, %v4312, %v3684
      %v4317 = vsel %vm2657, %v4313, %v3685
      %v4318 = vsel %vm2657, %v4314, %v3686
      %v4319 = vsel %vm2657, %v4315, %v3687
      %v4320 = vsel %vm2657, %v4304, %v3688
      %v4321 = vsel %vm2657, %v4305, %v3689
      %v4322 = vsel %vm2657, %v4306, %v3690
      %v4323 = vsel %vm2657, %v4307, %v3691
      %v4324 = vpack.c.bf16 %v3985, %v3984
      %v4325 = vpack.c.bf16 %v3987, %v3986
      %4326 = vmatprep.subr.bf16.mxu0 0
      %4327 = vmatpush1.bf16.msra.mxu0 0
      %4328 = vmatprep.subr.bf16.mxu0 0
      %4329 = vmatpush1.bf16.msra.mxu0 0
      %4330 = vmatprep.subr.bf16.mxu0 0
      %4331 = vmatpush1.bf16.msra.mxu0 0
      %4332 = vmatprep.subr.bf16.mxu0 0
      %4333 = vmatpush1.bf16.msra.mxu0 0
      %4334 = vmatprep.subr.bf16.mxu0 0
      %4335 = vmatpush1.bf16.msra.mxu0 0
      %4336 = vmatprep.subr.bf16.mxu0 0
      %4337 = vmatpush1.bf16.msra.mxu0 0
      %4338 = vmatprep.subr.bf16.mxu0 0
      %4339 = vmatpush1.bf16.msra.mxu0 %v4325
      %4340 = vmatprep.subr.bf16.mxu0 0
      %4341 = vmatpush1.bf16.msra.mxu0 %v4324
      %4342 = vmatprep.subr.bf16.mxu0 0
      %4343 = vmatpush2.bf16.msra.mxu0 0
      %4344 = vmatprep.subr.bf16.mxu0 0
      %4345 = vmatpush2.bf16.msra.mxu0 0
      %4346 = vmatprep.subr.bf16.mxu0 0
      %4347 = vmatpush2.bf16.msra.mxu0 0
      %4348 = vmatprep.subr.bf16.mxu0 0
      %4349 = vmatpush2.bf16.msra.mxu0 0
      %4350 = vmatprep.subr.bf16.mxu0 0
      %4351 = vmatpush2.bf16.msra.mxu0 0
      %4352 = vmatprep.subr.bf16.mxu0 0
      %4353 = vmatpush2.bf16.msra.mxu0 0
      %4354 = vmatprep.subr.bf16.mxu0 0
      %4355 = vmatpush2.bf16.msra.mxu0 0
      %4356 = vmatprep.subr.bf16.mxu0 0
      %4357 = vmatpush2.bf16.msra.mxu0 0
      %4358 = vmatprep.mubr.bf16.mxu0 0
      %4359 = vmatmul.mubr.bf16.gmra.mxu0 %v869
      %v4360 = vpop.f32.mrf.mxu0
      %v4361 = vadd.f32 0.0, %v4360
      %v4362 = vpop.f32.mrf.mxu0
      %v4363 = vpop.f32.mrf.mxu0
      %v4364 = vadd.f32 0.0, %v4363
      %v4365 = vpop.f32.mrf.mxu0
      %4366 = vmatprep.mubr.bf16.mxu0 0
      %4367 = vmatmul.mubr.bf16.gmra.mxu0 %v872
      %v4368 = vpop.f32.mrf.mxu0
      %v4369 = vadd.f32 0.0, %v4368
      %v4370 = vpop.f32.mrf.mxu0
      %v4371 = vpop.f32.mrf.mxu0
      %v4372 = vadd.f32 0.0, %v4371
      %v4373 = vpop.f32.mrf.mxu0
      %4374 = vmatprep.mubr.bf16.mxu0 0
      %4375 = vmatmul.mubr.bf16.gmra.mxu0 %v875
      %v4376 = vpop.f32.mrf.mxu0
      %v4377 = vadd.f32 0.0, %v4376
      %v4378 = vpop.f32.mrf.mxu0
      %v4379 = vpop.f32.mrf.mxu0
      %v4380 = vadd.f32 0.0, %v4379
      %v4381 = vpop.f32.mrf.mxu0
      %4382 = vmatprep.mubr.bf16.mxu0 0
      %4383 = vmatmul.mubr.bf16.gmra.mxu0 %v878
      %v4384 = vpop.f32.mrf.mxu0
      %v4385 = vadd.f32 0.0, %v4384
      %v4386 = vpop.f32.mrf.mxu0
      %v4387 = vpop.f32.mrf.mxu0
      %v4388 = vadd.f32 0.0, %v4387
      %v4389 = vpop.f32.mrf.mxu0
      %4390 = vmatprep.mubr.bf16.mxu0 0
      %4391 = vmatmul.mubr.bf16.gmra.mxu0 %v881
      %v4392 = vpop.f32.mrf.mxu0
      %v4393 = vadd.f32 0.0, %v4392
      %v4394 = vpop.f32.mrf.mxu0
      %v4395 = vpop.f32.mrf.mxu0
      %v4396 = vadd.f32 0.0, %v4395
      %v4397 = vpop.f32.mrf.mxu0
      %4398 = vmatprep.mubr.bf16.mxu0 0
      %4399 = vmatmul.mubr.bf16.gmra.mxu0 %v884
      %v4400 = vpop.f32.mrf.mxu0
      %v4401 = vadd.f32 0.0, %v4400
      %v4402 = vpop.f32.mrf.mxu0
      %v4403 = vpop.f32.mrf.mxu0
      %v4404 = vadd.f32 0.0, %v4403
      %v4405 = vpop.f32.mrf.mxu0
      %4406 = vmatprep.mubr.bf16.mxu0 0
      %4407 = vmatmul.mubr.bf16.gmra.mxu0 %v887
      %v4408 = vpop.f32.mrf.mxu0
      %v4409 = vadd.f32 0.0, %v4408
      %v4410 = vpop.f32.mrf.mxu0
      %v4411 = vpop.f32.mrf.mxu0
      %v4412 = vadd.f32 0.0, %v4411
      %v4413 = vpop.f32.mrf.mxu0
      %4414 = vmatprep.mubr.bf16.mxu0 0
      %4415 = vmatmul.mubr.bf16.gmra.mxu0 %v890
      %v4416 = vpop.f32.mrf.mxu0
      %v4417 = vadd.f32 0.0, %v4416
      %v4418 = vpop.f32.mrf.mxu0
      %v4419 = vpop.f32.mrf.mxu0
      %v4420 = vadd.f32 0.0, %v4419
      %v4421 = vpop.f32.mrf.mxu0
      %4422 = vdwg.mxu0
      %4423 = vmatprep.subr.bf16.mxu0 0
      %4424 = vmatpush1.bf16.msra.mxu0 0
      %4425 = vmatprep.subr.bf16.mxu0 0
      %4426 = vmatpush1.bf16.msra.mxu0 0
      %4427 = vmatprep.subr.bf16.mxu0 0
      %4428 = vmatpush1.bf16.msra.mxu0 0
      %4429 = vmatprep.subr.bf16.mxu0 0
      %4430 = vmatpush1.bf16.msra.mxu0 0
      %4431 = vmatprep.subr.bf16.mxu0 0
      %4432 = vmatpush1.bf16.msra.mxu0 0
      %4433 = vmatprep.subr.bf16.mxu0 0
      %4434 = vmatpush1.bf16.msra.mxu0 %v2127
      %4435 = vmatprep.subr.bf16.mxu0 0
      %4436 = vmatpush1.bf16.msra.mxu0 %v2122
      %4437 = vmatprep.subr.bf16.mxu0 0
      %4438 = vmatpush1.bf16.msra.mxu0 %v2121
      %4439 = vmatprep.subr.bf16.mxu0 0
      %4440 = vmatpush2.bf16.msra.mxu0 0
      %4441 = vmatprep.subr.bf16.mxu0 0
      %4442 = vmatpush2.bf16.msra.mxu0 0
      %4443 = vmatprep.subr.bf16.mxu0 0
      %4444 = vmatpush2.bf16.msra.mxu0 0
      %4445 = vmatprep.subr.bf16.mxu0 0
      %4446 = vmatpush2.bf16.msra.mxu0 0
      %4447 = vmatprep.subr.bf16.mxu0 0
      %4448 = vmatpush2.bf16.msra.mxu0 0
      %4449 = vmatprep.subr.bf16.mxu0 0
      %4450 = vmatpush2.bf16.msra.mxu0 0
      %4451 = vmatprep.subr.bf16.mxu0 0
      %4452 = vmatpush2.bf16.msra.mxu0 0
      %4453 = vmatprep.subr.bf16.mxu0 0
      %4454 = vmatpush2.bf16.msra.mxu0 0
      %4455 = vmatprep.mubr.bf16.mxu0 0
      %4456 = vmatmul.mubr.bf16.gmra.mxu0 %v1045
      %v4457 = vpop.f32.mrf.mxu0
      %v4458 = vadd.f32 %v4361, %v4457
      %v4459 = vpop.f32.mrf.mxu0
      %v4460 = vpop.f32.mrf.mxu0
      %v4461 = vadd.f32 %v4364, %v4460
      %v4462 = vpop.f32.mrf.mxu0
      %4463 = vmatprep.mubr.bf16.mxu0 0
      %4464 = vmatmul.mubr.bf16.gmra.mxu0 %v1048
      %v4465 = vpop.f32.mrf.mxu0
      %v4466 = vadd.f32 %v4369, %v4465
      %v4467 = vpop.f32.mrf.mxu0
      %v4468 = vpop.f32.mrf.mxu0
      %v4469 = vadd.f32 %v4372, %v4468
      %v4470 = vpop.f32.mrf.mxu0
      %4471 = vmatprep.mubr.bf16.mxu0 0
      %4472 = vmatmul.mubr.bf16.gmra.mxu0 %v1051
      %v4473 = vpop.f32.mrf.mxu0
      %v4474 = vadd.f32 %v4377, %v4473
      %v4475 = vpop.f32.mrf.mxu0
      %v4476 = vpop.f32.mrf.mxu0
      %v4477 = vadd.f32 %v4380, %v4476
      %v4478 = vpop.f32.mrf.mxu0
      %4479 = vmatprep.mubr.bf16.mxu0 0
      %4480 = vmatmul.mubr.bf16.gmra.mxu0 %v1054
      %v4481 = vpop.f32.mrf.mxu0
      %v4482 = vadd.f32 %v4385, %v4481
      %v4483 = vpop.f32.mrf.mxu0
      %v4484 = vpop.f32.mrf.mxu0
      %v4485 = vadd.f32 %v4388, %v4484
      %v4486 = vpop.f32.mrf.mxu0
      %4487 = vmatprep.mubr.bf16.mxu0 0
      %4488 = vmatmul.mubr.bf16.gmra.mxu0 %v1057
      %v4489 = vpop.f32.mrf.mxu0
      %v4490 = vadd.f32 %v4393, %v4489
      %v4491 = vpop.f32.mrf.mxu0
      %v4492 = vpop.f32.mrf.mxu0
      %v4493 = vadd.f32 %v4396, %v4492
      %v4494 = vpop.f32.mrf.mxu0
      %4495 = vmatprep.mubr.bf16.mxu0 0
      %4496 = vmatmul.mubr.bf16.gmra.mxu0 %v1060
      %v4497 = vpop.f32.mrf.mxu0
      %v4498 = vadd.f32 %v4401, %v4497
      %v4499 = vpop.f32.mrf.mxu0
      %v4500 = vpop.f32.mrf.mxu0
      %v4501 = vadd.f32 %v4404, %v4500
      %v4502 = vpop.f32.mrf.mxu0
      %4503 = vmatprep.mubr.bf16.mxu0 0
      %4504 = vmatmul.mubr.bf16.gmra.mxu0 %v1063
      %v4505 = vpop.f32.mrf.mxu0
      %v4506 = vadd.f32 %v4409, %v4505
      %v4507 = vpop.f32.mrf.mxu0
      %v4508 = vpop.f32.mrf.mxu0
      %v4509 = vadd.f32 %v4412, %v4508
      %v4510 = vpop.f32.mrf.mxu0
      %4511 = vmatprep.mubr.bf16.mxu0 0
      %4512 = vmatmul.mubr.bf16.gmra.mxu0 %v1066
      %v4513 = vpop.f32.mrf.mxu0
      %v4514 = vadd.f32 %v4417, %v4513
      %v4515 = vpop.f32.mrf.mxu0
      %v4516 = vpop.f32.mrf.mxu0
      %v4517 = vadd.f32 %v4420, %v4516
      %v4518 = vpop.f32.mrf.mxu0
      %4519 = vdwg.mxu0
      %v4520 = vxor.u32 %v4458, 2147483648
      %v4521 = vxor.u32 %v4461, 2147483648
      %v4522 = vxor.u32 %v4466, 2147483648
      %v4523 = vxor.u32 %v4469, 2147483648
      %v4524 = vmul.f32 %v4520, 1.442695
      %v4525 = vpow.pop %v4524
      %v4526 = vmul.f32 %v4521, 1.442695
      %v4527 = vpow.pop %v4526
      %v4528 = vmul.f32 %v4522, 1.442695
      %v4529 = vpow.pop %v4528
      %v4530 = vmul.f32 %v4523, 1.442695
      %v4531 = vpow.pop %v4530
      %v4532 = vadd.f32 %v4525, 1.0
      %v4533 = vadd.f32 %v4527, 1.0
      %v4534 = vadd.f32 %v4529, 1.0
      %v4535 = vadd.f32 %v4531, 1.0
      %v4536 = vrcp.pop %v4532
      %v4537 = vmul.f32 1.0, %v4536
      %v4538 = vrcp.pop %v4533
      %v4539 = vmul.f32 1.0, %v4538
      %v4540 = vrcp.pop %v4534
      %v4541 = vmul.f32 1.0, %v4540
      %v4542 = vrcp.pop %v4535
      %v4543 = vmul.f32 1.0, %v4542
      %v4544 = vxor.u32 %v4474, 2147483648
      %v4545 = vxor.u32 %v4477, 2147483648
      %v4546 = vxor.u32 %v4482, 2147483648
      %v4547 = vxor.u32 %v4485, 2147483648
      %v4548 = vmul.f32 %v4544, 1.442695
      %v4549 = vpow.pop %v4548
      %v4550 = vmul.f32 %v4545, 1.442695
      %v4551 = vpow.pop %v4550
      %v4552 = vmul.f32 %v4546, 1.442695
      %v4553 = vpow.pop %v4552
      %v4554 = vmul.f32 %v4547, 1.442695
      %v4555 = vpow.pop %v4554
      %v4556 = vadd.f32 %v4549, 1.0
      %v4557 = vadd.f32 %v4551, 1.0
      %v4558 = vadd.f32 %v4553, 1.0
      %v4559 = vadd.f32 %v4555, 1.0
      %v4560 = vrcp.pop %v4556
      %v4561 = vmul.f32 1.0, %v4560
      %v4562 = vrcp.pop %v4557
      %v4563 = vmul.f32 1.0, %v4562
      %v4564 = vrcp.pop %v4558
      %v4565 = vmul.f32 1.0, %v4564
      %v4566 = vrcp.pop %v4559
      %v4567 = vmul.f32 1.0, %v4566
      %v4568 = vtanh.pop %v4490
      %v4569 = vtanh.pop %v4493
      %v4570 = vtanh.pop %v4498
      %v4571 = vtanh.pop %v4501
      %v4572 = vxor.u32 %v4506, 2147483648
      %v4573 = vxor.u32 %v4509, 2147483648
      %v4574 = vxor.u32 %v4514, 2147483648
      %v4575 = vxor.u32 %v4517, 2147483648
      %v4576 = vmul.f32 %v4572, 1.442695
      %v4577 = vpow.pop %v4576
      %v4578 = vmul.f32 %v4573, 1.442695
      %v4579 = vpow.pop %v4578
      %v4580 = vmul.f32 %v4574, 1.442695
      %v4581 = vpow.pop %v4580
      %v4582 = vmul.f32 %v4575, 1.442695
      %v4583 = vpow.pop %v4582
      %v4584 = vadd.f32 %v4577, 1.0
      %v4585 = vadd.f32 %v4579, 1.0
      %v4586 = vadd.f32 %v4581, 1.0
      %v4587 = vadd.f32 %v4583, 1.0
      %v4588 = vrcp.pop %v4584
      %v4589 = vmul.f32 1.0, %v4588
      %v4590 = vrcp.pop %v4585
      %v4591 = vmul.f32 1.0, %v4590
      %v4592 = vrcp.pop %v4586
      %v4593 = vmul.f32 1.0, %v4592
      %v4594 = vrcp.pop %v4587
      %v4595 = vmul.f32 1.0, %v4594
      %v4596 = vmul.f32 %v4561, %v3988
      %v4597 = vmul.f32 %v4563, %v3989
      %v4598 = vmul.f32 %v4565, %v3990
      %v4599 = vmul.f32 %v4567, %v3991
      %v4600 = vmul.f32 %v4537, %v4568
      %v4601 = vmul.f32 %v4539, %v4569
      %v4602 = vmul.f32 %v4541, %v4570
      %v4603 = vmul.f32 %v4543, %v4571
      %v4604 = vadd.f32 %v4596, %v4600
      %v4605 = vadd.f32 %v4597, %v4601
      %v4606 = vadd.f32 %v4598, %v4602
      %v4607 = vadd.f32 %v4599, %v4603
      %v4608 = vtanh.pop %v4604
      %v4609 = vtanh.pop %v4605
      %v4610 = vtanh.pop %v4606
      %v4611 = vtanh.pop %v4607
      %v4612 = vmul.f32 %v4589, %v4608
      %v4613 = vmul.f32 %v4591, %v4609
      %v4614 = vmul.f32 %v4593, %v4610
      %v4615 = vmul.f32 %v4595, %v4611
      %v4616 = vsel %vm2327, %v4612, %v3984
      %v4617 = vsel %vm2327, %v4613, %v3985
      %v4618 = vsel %vm2327, %v4614, %v3986
      %v4619 = vsel %vm2327, %v4615, %v3987
      %v4620 = vsel %vm2327, %v4604, %v3988
      %v4621 = vsel %vm2327, %v4605, %v3989
      %v4622 = vsel %vm2327, %v4606, %v3990
      %v4623 = vsel %vm2327, %v4607, %v3991
      %vm4624 = vcmp.ne.f32.partialorder %v4312, 0.0
      %vm4625 = vcmp.ne.f32.partialorder %v4313, 0.0
      %vm4626 = vcmp.ne.f32.partialorder %v4314, 0.0
      %vm4627 = vcmp.ne.f32.partialorder %v4315, 0.0
      %vm4628 = vmand %vm2657, %vm4624
      %vm4629 = vmand %vm2657, %vm4625
      %vm4630 = vmand %vm2657, %vm4626
      %vm4631 = vmand %vm2657, %vm4627
      %v4632 = vsel %vm4628, %v4312, -1e+09
      %v4633 = vsel %vm4629, %v4313, -1e+09
      %v4634 = vsel %vm4630, %v4314, -1e+09
      %v4635 = vsel %vm4631, %v4315, -1e+09
      %v4636 = vmax.f32 %v4004, %v4632
      %v4637 = vmax.f32 %v4005, %v4633
      %v4638 = vmax.f32 %v4006, %v4634
      %v4639 = vmax.f32 %v4007, %v4635
      %vm4640 = vcmp.ne.f32.partialorder %v4612, 0.0
      %vm4641 = vcmp.ne.f32.partialorder %v4613, 0.0
      %vm4642 = vcmp.ne.f32.partialorder %v4614, 0.0
      %vm4643 = vcmp.ne.f32.partialorder %v4615, 0.0
      %vm4644 = vmand %vm2327, %vm4640
      %vm4645 = vmand %vm2327, %vm4641
      %vm4646 = vmand %vm2327, %vm4642
      %vm4647 = vmand %vm2327, %vm4643
      %v4648 = vsel %vm4644, %v4612, -1e+09
      %v4649 = vsel %vm4645, %v4613, -1e+09
      %v4650 = vsel %vm4646, %v4614, -1e+09
      %v4651 = vsel %vm4647, %v4615, -1e+09
      %v4652 = vmax.f32 %v4020, %v4648
      %v4653 = vmax.f32 %v4021, %v4649
      %v4654 = vmax.f32 %v4022, %v4650
      %v4655 = vmax.f32 %v4023, %v4651
      %v4656 = vpack.c.bf16 %v4317, %v4316
      %v4657 = vpack.c.bf16 %v4319, %v4318
      %4658 = vmatprep.subr.bf16.mxu0 0
      %4659 = vmatpush1.bf16.msra.mxu0 0
      %4660 = vmatprep.subr.bf16.mxu0 0
      %4661 = vmatpush1.bf16.msra.mxu0 0
      %4662 = vmatprep.subr.bf16.mxu0 0
      %4663 = vmatpush1.bf16.msra.mxu0 0
      %4664 = vmatprep.subr.bf16.mxu0 0
      %4665 = vmatpush1.bf16.msra.mxu0 0
      %4666 = vmatprep.subr.bf16.mxu0 0
      %4667 = vmatpush1.bf16.msra.mxu0 0
      %4668 = vmatprep.subr.bf16.mxu0 0
      %4669 = vmatpush1.bf16.msra.mxu0 0
      %4670 = vmatprep.subr.bf16.mxu0 0
      %4671 = vmatpush1.bf16.msra.mxu0 %v4657
      %4672 = vmatprep.subr.bf16.mxu0 0
      %4673 = vmatpush1.bf16.msra.mxu0 %v4656
      %4674 = vmatprep.subr.bf16.mxu0 0
      %4675 = vmatpush2.bf16.msra.mxu0 0
      %4676 = vmatprep.subr.bf16.mxu0 0
      %4677 = vmatpush2.bf16.msra.mxu0 0
      %4678 = vmatprep.subr.bf16.mxu0 0
      %4679 = vmatpush2.bf16.msra.mxu0 0
      %4680 = vmatprep.subr.bf16.mxu0 0
      %4681 = vmatpush2.bf16.msra.mxu0 0
      %4682 = vmatprep.subr.bf16.mxu0 0
      %4683 = vmatpush2.bf16.msra.mxu0 0
      %4684 = vmatprep.subr.bf16.mxu0 0
      %4685 = vmatpush2.bf16.msra.mxu0 0
      %4686 = vmatprep.subr.bf16.mxu0 0
      %4687 = vmatpush2.bf16.msra.mxu0 0
      %4688 = vmatprep.subr.bf16.mxu0 0
      %4689 = vmatpush2.bf16.msra.mxu0 0
      %4690 = vmatprep.mubr.bf16.mxu0 0
      %4691 = vmatmul.mubr.bf16.gmra.mxu0 %v409
      %v4692 = vpop.f32.mrf.mxu0
      %v4693 = vadd.f32 0.0, %v4692
      %v4694 = vpop.f32.mrf.mxu0
      %v4695 = vpop.f32.mrf.mxu0
      %v4696 = vadd.f32 0.0, %v4695
      %v4697 = vpop.f32.mrf.mxu0
      %4698 = vmatprep.mubr.bf16.mxu0 0
      %4699 = vmatmul.mubr.bf16.gmra.mxu0 %v412
      %v4700 = vpop.f32.mrf.mxu0
      %v4701 = vadd.f32 0.0, %v4700
      %v4702 = vpop.f32.mrf.mxu0
      %v4703 = vpop.f32.mrf.mxu0
      %v4704 = vadd.f32 0.0, %v4703
      %v4705 = vpop.f32.mrf.mxu0
      %4706 = vmatprep.mubr.bf16.mxu0 0
      %4707 = vmatmul.mubr.bf16.gmra.mxu0 %v415
      %v4708 = vpop.f32.mrf.mxu0
      %v4709 = vadd.f32 0.0, %v4708
      %v4710 = vpop.f32.mrf.mxu0
      %v4711 = vpop.f32.mrf.mxu0
      %v4712 = vadd.f32 0.0, %v4711
      %v4713 = vpop.f32.mrf.mxu0
      %4714 = vmatprep.mubr.bf16.mxu0 0
      %4715 = vmatmul.mubr.bf16.gmra.mxu0 %v418
      %v4716 = vpop.f32.mrf.mxu0
      %v4717 = vadd.f32 0.0, %v4716
      %v4718 = vpop.f32.mrf.mxu0
      %v4719 = vpop.f32.mrf.mxu0
      %v4720 = vadd.f32 0.0, %v4719
      %v4721 = vpop.f32.mrf.mxu0
      %4722 = vmatprep.mubr.bf16.mxu0 0
      %4723 = vmatmul.mubr.bf16.gmra.mxu0 %v421
      %v4724 = vpop.f32.mrf.mxu0
      %v4725 = vadd.f32 0.0, %v4724
      %v4726 = vpop.f32.mrf.mxu0
      %v4727 = vpop.f32.mrf.mxu0
      %v4728 = vadd.f32 0.0, %v4727
      %v4729 = vpop.f32.mrf.mxu0
      %4730 = vmatprep.mubr.bf16.mxu0 0
      %4731 = vmatmul.mubr.bf16.gmra.mxu0 %v424
      %v4732 = vpop.f32.mrf.mxu0
      %v4733 = vadd.f32 0.0, %v4732
      %v4734 = vpop.f32.mrf.mxu0
      %v4735 = vpop.f32.mrf.mxu0
      %v4736 = vadd.f32 0.0, %v4735
      %v4737 = vpop.f32.mrf.mxu0
      %4738 = vmatprep.mubr.bf16.mxu0 0
      %4739 = vmatmul.mubr.bf16.gmra.mxu0 %v427
      %v4740 = vpop.f32.mrf.mxu0
      %v4741 = vadd.f32 0.0, %v4740
      %v4742 = vpop.f32.mrf.mxu0
      %v4743 = vpop.f32.mrf.mxu0
      %v4744 = vadd.f32 0.0, %v4743
      %v4745 = vpop.f32.mrf.mxu0
      %4746 = vmatprep.mubr.bf16.mxu0 0
      %4747 = vmatmul.mubr.bf16.gmra.mxu0 %v430
      %v4748 = vpop.f32.mrf.mxu0
      %v4749 = vadd.f32 0.0, %v4748
      %v4750 = vpop.f32.mrf.mxu0
      %v4751 = vpop.f32.mrf.mxu0
      %v4752 = vadd.f32 0.0, %v4751
      %v4753 = vpop.f32.mrf.mxu0
      %4754 = vdwg.mxu0
      %4755 = vmatprep.subr.bf16.mxu0 0
      %4756 = vmatpush1.bf16.msra.mxu0 0
      %4757 = vmatprep.subr.bf16.mxu0 0
      %4758 = vmatpush1.bf16.msra.mxu0 0
      %4759 = vmatprep.subr.bf16.mxu0 0
      %4760 = vmatpush1.bf16.msra.mxu0 0
      %4761 = vmatprep.subr.bf16.mxu0 0
      %4762 = vmatpush1.bf16.msra.mxu0 0
      %4763 = vmatprep.subr.bf16.mxu0 0
      %4764 = vmatpush1.bf16.msra.mxu0 0
      %4765 = vmatprep.subr.bf16.mxu0 0
      %4766 = vmatpush1.bf16.msra.mxu0 %v1763
      %4767 = vmatprep.subr.bf16.mxu0 0
      %4768 = vmatpush1.bf16.msra.mxu0 %v1758
      %4769 = vmatprep.subr.bf16.mxu0 0
      %4770 = vmatpush1.bf16.msra.mxu0 %v1757
      %4771 = vmatprep.subr.bf16.mxu0 0
      %4772 = vmatpush2.bf16.msra.mxu0 0
      %4773 = vmatprep.subr.bf16.mxu0 0
      %4774 = vmatpush2.bf16.msra.mxu0 0
      %4775 = vmatprep.subr.bf16.mxu0 0
      %4776 = vmatpush2.bf16.msra.mxu0 0
      %4777 = vmatprep.subr.bf16.mxu0 0
      %4778 = vmatpush2.bf16.msra.mxu0 0
      %4779 = vmatprep.subr.bf16.mxu0 0
      %4780 = vmatpush2.bf16.msra.mxu0 0
      %4781 = vmatprep.subr.bf16.mxu0 0
      %4782 = vmatpush2.bf16.msra.mxu0 0
      %4783 = vmatprep.subr.bf16.mxu0 0
      %4784 = vmatpush2.bf16.msra.mxu0 0
      %4785 = vmatprep.subr.bf16.mxu0 0
      %4786 = vmatpush2.bf16.msra.mxu0 0
      %4787 = vmatprep.mubr.bf16.mxu0 0
      %4788 = vmatmul.mubr.bf16.gmra.mxu0 %v586
      %v4789 = vpop.f32.mrf.mxu0
      %v4790 = vadd.f32 %v4693, %v4789
      %v4791 = vpop.f32.mrf.mxu0
      %v4792 = vpop.f32.mrf.mxu0
      %v4793 = vadd.f32 %v4696, %v4792
      %v4794 = vpop.f32.mrf.mxu0
      %4795 = vmatprep.mubr.bf16.mxu0 0
      %4796 = vmatmul.mubr.bf16.gmra.mxu0 %v589
      %v4797 = vpop.f32.mrf.mxu0
      %v4798 = vadd.f32 %v4701, %v4797
      %v4799 = vpop.f32.mrf.mxu0
      %v4800 = vpop.f32.mrf.mxu0
      %v4801 = vadd.f32 %v4704, %v4800
      %v4802 = vpop.f32.mrf.mxu0
      %4803 = vmatprep.mubr.bf16.mxu0 0
      %4804 = vmatmul.mubr.bf16.gmra.mxu0 %v592
      %v4805 = vpop.f32.mrf.mxu0
      %v4806 = vadd.f32 %v4709, %v4805
      %v4807 = vpop.f32.mrf.mxu0
      %v4808 = vpop.f32.mrf.mxu0
      %v4809 = vadd.f32 %v4712, %v4808
      %v4810 = vpop.f32.mrf.mxu0
      %4811 = vmatprep.mubr.bf16.mxu0 0
      %4812 = vmatmul.mubr.bf16.gmra.mxu0 %v595
      %v4813 = vpop.f32.mrf.mxu0
      %v4814 = vadd.f32 %v4717, %v4813
      %v4815 = vpop.f32.mrf.mxu0
      %v4816 = vpop.f32.mrf.mxu0
      %v4817 = vadd.f32 %v4720, %v4816
      %v4818 = vpop.f32.mrf.mxu0
      %4819 = vmatprep.mubr.bf16.mxu0 0
      %4820 = vmatmul.mubr.bf16.gmra.mxu0 %v598
      %v4821 = vpop.f32.mrf.mxu0
      %v4822 = vadd.f32 %v4725, %v4821
      %v4823 = vpop.f32.mrf.mxu0
      %v4824 = vpop.f32.mrf.mxu0
      %v4825 = vadd.f32 %v4728, %v4824
      %v4826 = vpop.f32.mrf.mxu0
      %4827 = vmatprep.mubr.bf16.mxu0 0
      %4828 = vmatmul.mubr.bf16.gmra.mxu0 %v601
      %v4829 = vpop.f32.mrf.mxu0
      %v4830 = vadd.f32 %v4733, %v4829
      %v4831 = vpop.f32.mrf.mxu0
      %v4832 = vpop.f32.mrf.mxu0
      %v4833 = vadd.f32 %v4736, %v4832
      %v4834 = vpop.f32.mrf.mxu0
      %4835 = vmatprep.mubr.bf16.mxu0 0
      %4836 = vmatmul.mubr.bf16.gmra.mxu0 %v604
      %v4837 = vpop.f32.mrf.mxu0
      %v4838 = vadd.f32 %v4741, %v4837
      %v4839 = vpop.f32.mrf.mxu0
      %v4840 = vpop.f32.mrf.mxu0
      %v4841 = vadd.f32 %v4744, %v4840
      %v4842 = vpop.f32.mrf.mxu0
      %4843 = vmatprep.mubr.bf16.mxu0 0
      %4844 = vmatmul.mubr.bf16.gmra.mxu0 %v607
      %v4845 = vpop.f32.mrf.mxu0
      %v4846 = vadd.f32 %v4749, %v4845
      %v4847 = vpop.f32.mrf.mxu0
      %v4848 = vpop.f32.mrf.mxu0
      %v4849 = vadd.f32 %v4752, %v4848
      %v4850 = vpop.f32.mrf.mxu0
      %4851 = vdwg.mxu0
      %v4852 = vxor.u32 %v4790, 2147483648
      %v4853 = vxor.u32 %v4793, 2147483648
      %v4854 = vxor.u32 %v4798, 2147483648
      %v4855 = vxor.u32 %v4801, 2147483648
      %v4856 = vmul.f32 %v4852, 1.442695
      %v4857 = vpow.pop %v4856
      %v4858 = vmul.f32 %v4853, 1.442695
      %v4859 = vpow.pop %v4858
      %v4860 = vmul.f32 %v4854, 1.442695
      %v4861 = vpow.pop %v4860
      %v4862 = vmul.f32 %v4855, 1.442695
      %v4863 = vpow.pop %v4862
      %v4864 = vadd.f32 %v4857, 1.0
      %v4865 = vadd.f32 %v4859, 1.0
      %v4866 = vadd.f32 %v4861, 1.0
      %v4867 = vadd.f32 %v4863, 1.0
      %v4868 = vrcp.pop %v4864
      %v4869 = vmul.f32 1.0, %v4868
      %v4870 = vrcp.pop %v4865
      %v4871 = vmul.f32 1.0, %v4870
      %v4872 = vrcp.pop %v4866
      %v4873 = vmul.f32 1.0, %v4872
      %v4874 = vrcp.pop %v4867
      %v4875 = vmul.f32 1.0, %v4874
      %v4876 = vxor.u32 %v4806, 2147483648
      %v4877 = vxor.u32 %v4809, 2147483648
      %v4878 = vxor.u32 %v4814, 2147483648
      %v4879 = vxor.u32 %v4817, 2147483648
      %v4880 = vmul.f32 %v4876, 1.442695
      %v4881 = vpow.pop %v4880
      %v4882 = vmul.f32 %v4877, 1.442695
      %v4883 = vpow.pop %v4882
      %v4884 = vmul.f32 %v4878, 1.442695
      %v4885 = vpow.pop %v4884
      %v4886 = vmul.f32 %v4879, 1.442695
      %v4887 = vpow.pop %v4886
      %v4888 = vadd.f32 %v4881, 1.0
      %v4889 = vadd.f32 %v4883, 1.0
      %v4890 = vadd.f32 %v4885, 1.0
      %v4891 = vadd.f32 %v4887, 1.0
      %v4892 = vrcp.pop %v4888
      %v4893 = vmul.f32 1.0, %v4892
      %v4894 = vrcp.pop %v4889
      %v4895 = vmul.f32 1.0, %v4894
      %v4896 = vrcp.pop %v4890
      %v4897 = vmul.f32 1.0, %v4896
      %v4898 = vrcp.pop %v4891
      %v4899 = vmul.f32 1.0, %v4898
      %v4900 = vtanh.pop %v4822
      %v4901 = vtanh.pop %v4825
      %v4902 = vtanh.pop %v4830
      %v4903 = vtanh.pop %v4833
      %v4904 = vxor.u32 %v4838, 2147483648
      %v4905 = vxor.u32 %v4841, 2147483648
      %v4906 = vxor.u32 %v4846, 2147483648
      %v4907 = vxor.u32 %v4849, 2147483648
      %v4908 = vmul.f32 %v4904, 1.442695
      %v4909 = vpow.pop %v4908
      %v4910 = vmul.f32 %v4905, 1.442695
      %v4911 = vpow.pop %v4910
      %v4912 = vmul.f32 %v4906, 1.442695
      %v4913 = vpow.pop %v4912
      %v4914 = vmul.f32 %v4907, 1.442695
      %v4915 = vpow.pop %v4914
      %v4916 = vadd.f32 %v4909, 1.0
      %v4917 = vadd.f32 %v4911, 1.0
      %v4918 = vadd.f32 %v4913, 1.0
      %v4919 = vadd.f32 %v4915, 1.0
      %v4920 = vrcp.pop %v4916
      %v4921 = vmul.f32 1.0, %v4920
      %v4922 = vrcp.pop %v4917
      %v4923 = vmul.f32 1.0, %v4922
      %v4924 = vrcp.pop %v4918
      %v4925 = vmul.f32 1.0, %v4924
      %v4926 = vrcp.pop %v4919
      %v4927 = vmul.f32 1.0, %v4926
      %v4928 = vmul.f32 %v4893, %v4320
      %v4929 = vmul.f32 %v4895, %v4321
      %v4930 = vmul.f32 %v4897, %v4322
      %v4931 = vmul.f32 %v4899, %v4323
      %v4932 = vmul.f32 %v4869, %v4900
      %v4933 = vmul.f32 %v4871, %v4901
      %v4934 = vmul.f32 %v4873, %v4902
      %v4935 = vmul.f32 %v4875, %v4903
      %v4936 = vadd.f32 %v4928, %v4932
      %v4937 = vadd.f32 %v4929, %v4933
      %v4938 = vadd.f32 %v4930, %v4934
      %v4939 = vadd.f32 %v4931, %v4935
      %v4940 = vtanh.pop %v4936
      %v4941 = vtanh.pop %v4937
      %v4942 = vtanh.pop %v4938
      %v4943 = vtanh.pop %v4939
      %v4944 = vmul.f32 %v4921, %v4940
      %v4945 = vmul.f32 %v4923, %v4941
      %v4946 = vmul.f32 %v4925, %v4942
      %v4947 = vmul.f32 %v4927, %v4943
      %v4948 = vsel %vm1963, %v4944, %v4316
      %v4949 = vsel %vm1963, %v4945, %v4317
      %v4950 = vsel %vm1963, %v4946, %v4318
      %v4951 = vsel %vm1963, %v4947, %v4319
      %v4952 = vsel %vm1963, %v4936, %v4320
      %v4953 = vsel %vm1963, %v4937, %v4321
      %v4954 = vsel %vm1963, %v4938, %v4322
      %v4955 = vsel %vm1963, %v4939, %v4323
      %v4956 = vpack.c.bf16 %v4617, %v4616
      %v4957 = vpack.c.bf16 %v4619, %v4618
      %4958 = vmatprep.subr.bf16.mxu0 0
      %4959 = vmatpush1.bf16.msra.mxu0 0
      %4960 = vmatprep.subr.bf16.mxu0 0
      %4961 = vmatpush1.bf16.msra.mxu0 0
      %4962 = vmatprep.subr.bf16.mxu0 0
      %4963 = vmatpush1.bf16.msra.mxu0 0
      %4964 = vmatprep.subr.bf16.mxu0 0
      %4965 = vmatpush1.bf16.msra.mxu0 0
      %4966 = vmatprep.subr.bf16.mxu0 0
      %4967 = vmatpush1.bf16.msra.mxu0 0
      %4968 = vmatprep.subr.bf16.mxu0 0
      %4969 = vmatpush1.bf16.msra.mxu0 0
      %4970 = vmatprep.subr.bf16.mxu0 0
      %4971 = vmatpush1.bf16.msra.mxu0 %v4957
      %4972 = vmatprep.subr.bf16.mxu0 0
      %4973 = vmatpush1.bf16.msra.mxu0 %v4956
      %4974 = vmatprep.subr.bf16.mxu0 0
      %4975 = vmatpush2.bf16.msra.mxu0 0
      %4976 = vmatprep.subr.bf16.mxu0 0
      %4977 = vmatpush2.bf16.msra.mxu0 0
      %4978 = vmatprep.subr.bf16.mxu0 0
      %4979 = vmatpush2.bf16.msra.mxu0 0
      %4980 = vmatprep.subr.bf16.mxu0 0
      %4981 = vmatpush2.bf16.msra.mxu0 0
      %4982 = vmatprep.subr.bf16.mxu0 0
      %4983 = vmatpush2.bf16.msra.mxu0 0
      %4984 = vmatprep.subr.bf16.mxu0 0
      %4985 = vmatpush2.bf16.msra.mxu0 0
      %4986 = vmatprep.subr.bf16.mxu0 0
      %4987 = vmatpush2.bf16.msra.mxu0 0
      %4988 = vmatprep.subr.bf16.mxu0 0
      %4989 = vmatpush2.bf16.msra.mxu0 0
      %4990 = vmatprep.mubr.bf16.mxu0 0
      %4991 = vmatmul.mubr.bf16.gmra.mxu0 %v869
      %v4992 = vpop.f32.mrf.mxu0
      %v4993 = vadd.f32 0.0, %v4992
      %v4994 = vpop.f32.mrf.mxu0
      %v4995 = vpop.f32.mrf.mxu0
      %v4996 = vadd.f32 0.0, %v4995
      %v4997 = vpop.f32.mrf.mxu0
      %4998 = vmatprep.mubr.bf16.mxu0 0
      %4999 = vmatmul.mubr.bf16.gmra.mxu0 %v872
      %v5000 = vpop.f32.mrf.mxu0
      %v5001 = vadd.f32 0.0, %v5000
      %v5002 = vpop.f32.mrf.mxu0
      %v5003 = vpop.f32.mrf.mxu0
      %v5004 = vadd.f32 0.0, %v5003
      %v5005 = vpop.f32.mrf.mxu0
      %5006 = vmatprep.mubr.bf16.mxu0 0
      %5007 = vmatmul.mubr.bf16.gmra.mxu0 %v875
      %v5008 = vpop.f32.mrf.mxu0
      %v5009 = vadd.f32 0.0, %v5008
      %v5010 = vpop.f32.mrf.mxu0
      %v5011 = vpop.f32.mrf.mxu0
      %v5012 = vadd.f32 0.0, %v5011
      %v5013 = vpop.f32.mrf.mxu0
      %5014 = vmatprep.mubr.bf16.mxu0 0
      %5015 = vmatmul.mubr.bf16.gmra.mxu0 %v878
      %v5016 = vpop.f32.mrf.mxu0
      %v5017 = vadd.f32 0.0, %v5016
      %v5018 = vpop.f32.mrf.mxu0
      %v5019 = vpop.f32.mrf.mxu0
      %v5020 = vadd.f32 0.0, %v5019
      %v5021 = vpop.f32.mrf.mxu0
      %5022 = vmatprep.mubr.bf16.mxu0 0
      %5023 = vmatmul.mubr.bf16.gmra.mxu0 %v881
      %v5024 = vpop.f32.mrf.mxu0
      %v5025 = vadd.f32 0.0, %v5024
      %v5026 = vpop.f32.mrf.mxu0
      %v5027 = vpop.f32.mrf.mxu0
      %v5028 = vadd.f32 0.0, %v5027
      %v5029 = vpop.f32.mrf.mxu0
      %5030 = vmatprep.mubr.bf16.mxu0 0
      %5031 = vmatmul.mubr.bf16.gmra.mxu0 %v884
      %v5032 = vpop.f32.mrf.mxu0
      %v5033 = vadd.f32 0.0, %v5032
      %v5034 = vpop.f32.mrf.mxu0
      %v5035 = vpop.f32.mrf.mxu0
      %v5036 = vadd.f32 0.0, %v5035
      %v5037 = vpop.f32.mrf.mxu0
      %5038 = vmatprep.mubr.bf16.mxu0 0
      %5039 = vmatmul.mubr.bf16.gmra.mxu0 %v887
      %v5040 = vpop.f32.mrf.mxu0
      %v5041 = vadd.f32 0.0, %v5040
      %v5042 = vpop.f32.mrf.mxu0
      %v5043 = vpop.f32.mrf.mxu0
      %v5044 = vadd.f32 0.0, %v5043
      %v5045 = vpop.f32.mrf.mxu0
      %5046 = vmatprep.mubr.bf16.mxu0 0
      %5047 = vmatmul.mubr.bf16.gmra.mxu0 %v890
      %v5048 = vpop.f32.mrf.mxu0
      %v5049 = vadd.f32 0.0, %v5048
      %v5050 = vpop.f32.mrf.mxu0
      %v5051 = vpop.f32.mrf.mxu0
      %v5052 = vadd.f32 0.0, %v5051
      %v5053 = vpop.f32.mrf.mxu0
      %5054 = vdwg.mxu0
      %5055 = vmatprep.subr.bf16.mxu0 0
      %5056 = vmatpush1.bf16.msra.mxu0 0
      %5057 = vmatprep.subr.bf16.mxu0 0
      %5058 = vmatpush1.bf16.msra.mxu0 0
      %5059 = vmatprep.subr.bf16.mxu0 0
      %5060 = vmatpush1.bf16.msra.mxu0 0
      %5061 = vmatprep.subr.bf16.mxu0 0
      %5062 = vmatpush1.bf16.msra.mxu0 0
      %5063 = vmatprep.subr.bf16.mxu0 0
      %5064 = vmatpush1.bf16.msra.mxu0 0
      %5065 = vmatprep.subr.bf16.mxu0 0
      %5066 = vmatpush1.bf16.msra.mxu0 %v1433
      %5067 = vmatprep.subr.bf16.mxu0 0
      %5068 = vmatpush1.bf16.msra.mxu0 %v1428
      %5069 = vmatprep.subr.bf16.mxu0 0
      %5070 = vmatpush1.bf16.msra.mxu0 %v1427
      %5071 = vmatprep.subr.bf16.mxu0 0
      %5072 = vmatpush2.bf16.msra.mxu0 0
      %5073 = vmatprep.subr.bf16.mxu0 0
      %5074 = vmatpush2.bf16.msra.mxu0 0
      %5075 = vmatprep.subr.bf16.mxu0 0
      %5076 = vmatpush2.bf16.msra.mxu0 0
      %5077 = vmatprep.subr.bf16.mxu0 0
      %5078 = vmatpush2.bf16.msra.mxu0 0
      %5079 = vmatprep.subr.bf16.mxu0 0
      %5080 = vmatpush2.bf16.msra.mxu0 0
      %5081 = vmatprep.subr.bf16.mxu0 0
      %5082 = vmatpush2.bf16.msra.mxu0 0
      %5083 = vmatprep.subr.bf16.mxu0 0
      %5084 = vmatpush2.bf16.msra.mxu0 0
      %5085 = vmatprep.subr.bf16.mxu0 0
      %5086 = vmatpush2.bf16.msra.mxu0 0
      %5087 = vmatprep.mubr.bf16.mxu0 0
      %5088 = vmatmul.mubr.bf16.gmra.mxu0 %v1045
      %v5089 = vpop.f32.mrf.mxu0
      %v5090 = vadd.f32 %v4993, %v5089
      %v5091 = vpop.f32.mrf.mxu0
      %v5092 = vpop.f32.mrf.mxu0
      %v5093 = vadd.f32 %v4996, %v5092
      %v5094 = vpop.f32.mrf.mxu0
      %5095 = vmatprep.mubr.bf16.mxu0 0
      %5096 = vmatmul.mubr.bf16.gmra.mxu0 %v1048
      %v5097 = vpop.f32.mrf.mxu0
      %v5098 = vadd.f32 %v5001, %v5097
      %v5099 = vpop.f32.mrf.mxu0
      %v5100 = vpop.f32.mrf.mxu0
      %v5101 = vadd.f32 %v5004, %v5100
      %v5102 = vpop.f32.mrf.mxu0
      %5103 = vmatprep.mubr.bf16.mxu0 0
      %5104 = vmatmul.mubr.bf16.gmra.mxu0 %v1051
      %v5105 = vpop.f32.mrf.mxu0
      %v5106 = vadd.f32 %v5009, %v5105
      %v5107 = vpop.f32.mrf.mxu0
      %v5108 = vpop.f32.mrf.mxu0
      %v5109 = vadd.f32 %v5012, %v5108
      %v5110 = vpop.f32.mrf.mxu0
      %5111 = vmatprep.mubr.bf16.mxu0 0
      %5112 = vmatmul.mubr.bf16.gmra.mxu0 %v1054
      %v5113 = vpop.f32.mrf.mxu0
      %v5114 = vadd.f32 %v5017, %v5113
      %v5115 = vpop.f32.mrf.mxu0
      %v5116 = vpop.f32.mrf.mxu0
      %v5117 = vadd.f32 %v5020, %v5116
      %v5118 = vpop.f32.mrf.mxu0
      %5119 = vmatprep.mubr.bf16.mxu0 0
      %5120 = vmatmul.mubr.bf16.gmra.mxu0 %v1057
      %v5121 = vpop.f32.mrf.mxu0
      %v5122 = vadd.f32 %v5025, %v5121
      %v5123 = vpop.f32.mrf.mxu0
      %v5124 = vpop.f32.mrf.mxu0
      %v5125 = vadd.f32 %v5028, %v5124
      %v5126 = vpop.f32.mrf.mxu0
      %5127 = vmatprep.mubr.bf16.mxu0 0
      %5128 = vmatmul.mubr.bf16.gmra.mxu0 %v1060
      %v5129 = vpop.f32.mrf.mxu0
      %v5130 = vadd.f32 %v5033, %v5129
      %v5131 = vpop.f32.mrf.mxu0
      %v5132 = vpop.f32.mrf.mxu0
      %v5133 = vadd.f32 %v5036, %v5132
      %v5134 = vpop.f32.mrf.mxu0
      %5135 = vmatprep.mubr.bf16.mxu0 0
      %5136 = vmatmul.mubr.bf16.gmra.mxu0 %v1063
      %v5137 = vpop.f32.mrf.mxu0
      %v5138 = vadd.f32 %v5041, %v5137
      %v5139 = vpop.f32.mrf.mxu0
      %v5140 = vpop.f32.mrf.mxu0
      %v5141 = vadd.f32 %v5044, %v5140
      %v5142 = vpop.f32.mrf.mxu0
      %5143 = vmatprep.mubr.bf16.mxu0 0
      %5144 = vmatmul.mubr.bf16.gmra.mxu0 %v1066
      %v5145 = vpop.f32.mrf.mxu0
      %v5146 = vadd.f32 %v5049, %v5145
      %v5147 = vpop.f32.mrf.mxu0
      %v5148 = vpop.f32.mrf.mxu0
      %v5149 = vadd.f32 %v5052, %v5148
      %v5150 = vpop.f32.mrf.mxu0
      %5151 = vdwg.mxu0
      %v5152 = vxor.u32 %v5090, 2147483648
      %v5153 = vxor.u32 %v5093, 2147483648
      %v5154 = vxor.u32 %v5098, 2147483648
      %v5155 = vxor.u32 %v5101, 2147483648
      %v5156 = vmul.f32 %v5152, 1.442695
      %v5157 = vpow.pop %v5156
      %v5158 = vmul.f32 %v5153, 1.442695
      %v5159 = vpow.pop %v5158
      %v5160 = vmul.f32 %v5154, 1.442695
      %v5161 = vpow.pop %v5160
      %v5162 = vmul.f32 %v5155, 1.442695
      %v5163 = vpow.pop %v5162
      %v5164 = vadd.f32 %v5157, 1.0
      %v5165 = vadd.f32 %v5159, 1.0
      %v5166 = vadd.f32 %v5161, 1.0
      %v5167 = vadd.f32 %v5163, 1.0
      %v5168 = vrcp.pop %v5164
      %v5169 = vmul.f32 1.0, %v5168
      %v5170 = vrcp.pop %v5165
      %v5171 = vmul.f32 1.0, %v5170
      %v5172 = vrcp.pop %v5166
      %v5173 = vmul.f32 1.0, %v5172
      %v5174 = vrcp.pop %v5167
      %v5175 = vmul.f32 1.0, %v5174
      %v5176 = vxor.u32 %v5106, 2147483648
      %v5177 = vxor.u32 %v5109, 2147483648
      %v5178 = vxor.u32 %v5114, 2147483648
      %v5179 = vxor.u32 %v5117, 2147483648
      %v5180 = vmul.f32 %v5176, 1.442695
      %v5181 = vpow.pop %v5180
      %v5182 = vmul.f32 %v5177, 1.442695
      %v5183 = vpow.pop %v5182
      %v5184 = vmul.f32 %v5178, 1.442695
      %v5185 = vpow.pop %v5184
      %v5186 = vmul.f32 %v5179, 1.442695
      %v5187 = vpow.pop %v5186
      %v5188 = vadd.f32 %v5181, 1.0
      %v5189 = vadd.f32 %v5183, 1.0
      %v5190 = vadd.f32 %v5185, 1.0
      %v5191 = vadd.f32 %v5187, 1.0
      %v5192 = vrcp.pop %v5188
      %v5193 = vmul.f32 1.0, %v5192
      %v5194 = vrcp.pop %v5189
      %v5195 = vmul.f32 1.0, %v5194
      %v5196 = vrcp.pop %v5190
      %v5197 = vmul.f32 1.0, %v5196
      %v5198 = vrcp.pop %v5191
      %v5199 = vmul.f32 1.0, %v5198
      %v5200 = vtanh.pop %v5122
      %v5201 = vtanh.pop %v5125
      %v5202 = vtanh.pop %v5130
      %v5203 = vtanh.pop %v5133
      %v5204 = vxor.u32 %v5138, 2147483648
      %v5205 = vxor.u32 %v5141, 2147483648
      %v5206 = vxor.u32 %v5146, 2147483648
      %v5207 = vxor.u32 %v5149, 2147483648
      %v5208 = vmul.f32 %v5204, 1.442695
      %v5209 = vpow.pop %v5208
      %v5210 = vmul.f32 %v5205, 1.442695
      %v5211 = vpow.pop %v5210
      %v5212 = vmul.f32 %v5206, 1.442695
      %v5213 = vpow.pop %v5212
      %v5214 = vmul.f32 %v5207, 1.442695
      %v5215 = vpow.pop %v5214
      %v5216 = vadd.f32 %v5209, 1.0
      %v5217 = vadd.f32 %v5211, 1.0
      %v5218 = vadd.f32 %v5213, 1.0
      %v5219 = vadd.f32 %v5215, 1.0
      %v5220 = vrcp.pop %v5216
      %v5221 = vmul.f32 1.0, %v5220
      %v5222 = vrcp.pop %v5217
      %v5223 = vmul.f32 1.0, %v5222
      %v5224 = vrcp.pop %v5218
      %v5225 = vmul.f32 1.0, %v5224
      %v5226 = vrcp.pop %v5219
      %v5227 = vmul.f32 1.0, %v5226
      %v5228 = vmul.f32 %v5193, %v4620
      %v5229 = vmul.f32 %v5195, %v4621
      %v5230 = vmul.f32 %v5197, %v4622
      %v5231 = vmul.f32 %v5199, %v4623
      %v5232 = vmul.f32 %v5169, %v5200
      %v5233 = vmul.f32 %v5171, %v5201
      %v5234 = vmul.f32 %v5173, %v5202
      %v5235 = vmul.f32 %v5175, %v5203
      %v5236 = vadd.f32 %v5228, %v5232
      %v5237 = vadd.f32 %v5229, %v5233
      %v5238 = vadd.f32 %v5230, %v5234
      %v5239 = vadd.f32 %v5231, %v5235
      %v5240 = vtanh.pop %v5236
      %v5241 = vtanh.pop %v5237
      %v5242 = vtanh.pop %v5238
      %v5243 = vtanh.pop %v5239
      %v5244 = vmul.f32 %v5221, %v5240
      %v5245 = vmul.f32 %v5223, %v5241
      %v5246 = vmul.f32 %v5225, %v5242
      %v5247 = vmul.f32 %v5227, %v5243
      %v5248 = vsel %vm1633, %v5244, %v4616
      %v5249 = vsel %vm1633, %v5245, %v4617
      %v5250 = vsel %vm1633, %v5246, %v4618
      %v5251 = vsel %vm1633, %v5247, %v4619
      %v5252 = vsel %vm1633, %v5236, %v4620
      %v5253 = vsel %vm1633, %v5237, %v4621
      %v5254 = vsel %vm1633, %v5238, %v4622
      %v5255 = vsel %vm1633, %v5239, %v4623
      %vm5256 = vcmp.ne.f32.partialorder %v4944, 0.0
      %vm5257 = vcmp.ne.f32.partialorder %v4945, 0.0
      %vm5258 = vcmp.ne.f32.partialorder %v4946, 0.0
      %vm5259 = vcmp.ne.f32.partialorder %v4947, 0.0
      %vm5260 = vmand %vm1963, %vm5256
      %vm5261 = vmand %vm1963, %vm5257
      %vm5262 = vmand %vm1963, %vm5258
      %vm5263 = vmand %vm1963, %vm5259
      %v5264 = vsel %vm5260, %v4944, -1e+09
      %v5265 = vsel %vm5261, %v4945, -1e+09
      %v5266 = vsel %vm5262, %v4946, -1e+09
      %v5267 = vsel %vm5263, %v4947, -1e+09
      %v5268 = vmax.f32 %v4636, %v5264
      %v5269 = vmax.f32 %v4637, %v5265
      %v5270 = vmax.f32 %v4638, %v5266
      %v5271 = vmax.f32 %v4639, %v5267
      %vm5272 = vcmp.ne.f32.partialorder %v5244, 0.0
      %vm5273 = vcmp.ne.f32.partialorder %v5245, 0.0
      %vm5274 = vcmp.ne.f32.partialorder %v5246, 0.0
      %vm5275 = vcmp.ne.f32.partialorder %v5247, 0.0
      %vm5276 = vmand %vm1633, %vm5272
      %vm5277 = vmand %vm1633, %vm5273
      %vm5278 = vmand %vm1633, %vm5274
      %vm5279 = vmand %vm1633, %vm5275
      %v5280 = vsel %vm5276, %v5244, -1e+09
      %v5281 = vsel %vm5277, %v5245, -1e+09
      %v5282 = vsel %vm5278, %v5246, -1e+09
      %v5283 = vsel %vm5279, %v5247, -1e+09
      %v5284 = vmax.f32 %v4652, %v5280
      %v5285 = vmax.f32 %v4653, %v5281
      %v5286 = vmax.f32 %v4654, %v5282
      %v5287 = vmax.f32 %v4655, %v5283
      %v5288 = vpack.c.bf16 %v4949, %v4948
      %v5289 = vpack.c.bf16 %v4951, %v4950
      %5290 = vmatprep.subr.bf16.mxu0 0
      %5291 = vmatpush1.bf16.msra.mxu0 0
      %5292 = vmatprep.subr.bf16.mxu0 0
      %5293 = vmatpush1.bf16.msra.mxu0 0
      %5294 = vmatprep.subr.bf16.mxu0 0
      %5295 = vmatpush1.bf16.msra.mxu0 0
      %5296 = vmatprep.subr.bf16.mxu0 0
      %5297 = vmatpush1.bf16.msra.mxu0 0
      %5298 = vmatprep.subr.bf16.mxu0 0
      %5299 = vmatpush1.bf16.msra.mxu0 0
      %5300 = vmatprep.subr.bf16.mxu0 0
      %5301 = vmatpush1.bf16.msra.mxu0 0
      %5302 = vmatprep.subr.bf16.mxu0 0
      %5303 = vmatpush1.bf16.msra.mxu0 %v5289
      %5304 = vmatprep.subr.bf16.mxu0 0
      %5305 = vmatpush1.bf16.msra.mxu0 %v5288
      %5306 = vmatprep.subr.bf16.mxu0 0
      %5307 = vmatpush2.bf16.msra.mxu0 0
      %5308 = vmatprep.subr.bf16.mxu0 0
      %5309 = vmatpush2.bf16.msra.mxu0 0
      %5310 = vmatprep.subr.bf16.mxu0 0
      %5311 = vmatpush2.bf16.msra.mxu0 0
      %5312 = vmatprep.subr.bf16.mxu0 0
      %5313 = vmatpush2.bf16.msra.mxu0 0
      %5314 = vmatprep.subr.bf16.mxu0 0
      %5315 = vmatpush2.bf16.msra.mxu0 0
      %5316 = vmatprep.subr.bf16.mxu0 0
      %5317 = vmatpush2.bf16.msra.mxu0 0
      %5318 = vmatprep.subr.bf16.mxu0 0
      %5319 = vmatpush2.bf16.msra.mxu0 0
      %5320 = vmatprep.subr.bf16.mxu0 0
      %5321 = vmatpush2.bf16.msra.mxu0 0
      %5322 = vmatprep.mubr.bf16.mxu0 0
      %5323 = vmatmul.mubr.bf16.gmra.mxu0 %v409
      %v5324 = vpop.f32.mrf.mxu0
      %v5325 = vadd.f32 0.0, %v5324
      %v5326 = vpop.f32.mrf.mxu0
      %v5327 = vpop.f32.mrf.mxu0
      %v5328 = vadd.f32 0.0, %v5327
      %v5329 = vpop.f32.mrf.mxu0
      %5330 = vmatprep.mubr.bf16.mxu0 0
      %5331 = vmatmul.mubr.bf16.gmra.mxu0 %v412
      %v5332 = vpop.f32.mrf.mxu0
      %v5333 = vadd.f32 0.0, %v5332
      %v5334 = vpop.f32.mrf.mxu0
      %v5335 = vpop.f32.mrf.mxu0
      %v5336 = vadd.f32 0.0, %v5335
      %v5337 = vpop.f32.mrf.mxu0
      %5338 = vmatprep.mubr.bf16.mxu0 0
      %5339 = vmatmul.mubr.bf16.gmra.mxu0 %v415
      %v5340 = vpop.f32.mrf.mxu0
      %v5341 = vadd.f32 0.0, %v5340
      %v5342 = vpop.f32.mrf.mxu0
      %v5343 = vpop.f32.mrf.mxu0
      %v5344 = vadd.f32 0.0, %v5343
      %v5345 = vpop.f32.mrf.mxu0
      %5346 = vmatprep.mubr.bf16.mxu0 0
      %5347 = vmatmul.mubr.bf16.gmra.mxu0 %v418
      %v5348 = vpop.f32.mrf.mxu0
      %v5349 = vadd.f32 0.0, %v5348
      %v5350 = vpop.f32.mrf.mxu0
      %v5351 = vpop.f32.mrf.mxu0
      %v5352 = vadd.f32 0.0, %v5351
      %v5353 = vpop.f32.mrf.mxu0
      %5354 = vmatprep.mubr.bf16.mxu0 0
      %5355 = vmatmul.mubr.bf16.gmra.mxu0 %v421
      %v5356 = vpop.f32.mrf.mxu0
      %v5357 = vadd.f32 0.0, %v5356
      %v5358 = vpop.f32.mrf.mxu0
      %v5359 = vpop.f32.mrf.mxu0
      %v5360 = vadd.f32 0.0, %v5359
      %v5361 = vpop.f32.mrf.mxu0
      %5362 = vmatprep.mubr.bf16.mxu0 0
      %5363 = vmatmul.mubr.bf16.gmra.mxu0 %v424
      %v5364 = vpop.f32.mrf.mxu0
      %v5365 = vadd.f32 0.0, %v5364
      %v5366 = vpop.f32.mrf.mxu0
      %v5367 = vpop.f32.mrf.mxu0
      %v5368 = vadd.f32 0.0, %v5367
      %v5369 = vpop.f32.mrf.mxu0
      %5370 = vmatprep.mubr.bf16.mxu0 0
      %5371 = vmatmul.mubr.bf16.gmra.mxu0 %v427
      %v5372 = vpop.f32.mrf.mxu0
      %v5373 = vadd.f32 0.0, %v5372
      %v5374 = vpop.f32.mrf.mxu0
      %v5375 = vpop.f32.mrf.mxu0
      %v5376 = vadd.f32 0.0, %v5375
      %v5377 = vpop.f32.mrf.mxu0
      %5378 = vmatprep.mubr.bf16.mxu0 0
      %5379 = vmatmul.mubr.bf16.gmra.mxu0 %v430
      %v5380 = vpop.f32.mrf.mxu0
      %v5381 = vadd.f32 0.0, %v5380
      %v5382 = vpop.f32.mrf.mxu0
      %v5383 = vpop.f32.mrf.mxu0
      %v5384 = vadd.f32 0.0, %v5383
      %v5385 = vpop.f32.mrf.mxu0
      %5386 = vdwg.mxu0
      %5387 = vmatprep.subr.bf16.mxu0 0
      %5388 = vmatpush1.bf16.msra.mxu0 0
      %5389 = vmatprep.subr.bf16.mxu0 0
      %5390 = vmatpush1.bf16.msra.mxu0 0
      %5391 = vmatprep.subr.bf16.mxu0 0
      %5392 = vmatpush1.bf16.msra.mxu0 0
      %5393 = vmatprep.subr.bf16.mxu0 0
      %5394 = vmatpush1.bf16.msra.mxu0 0
      %5395 = vmatprep.subr.bf16.mxu0 0
      %5396 = vmatpush1.bf16.msra.mxu0 0
      %5397 = vmatprep.subr.bf16.mxu0 0
      %5398 = vmatpush1.bf16.msra.mxu0 %v1069
      %5399 = vmatprep.subr.bf16.mxu0 0
      %5400 = vmatpush1.bf16.msra.mxu0 %v1040
      %5401 = vmatprep.subr.bf16.mxu0 0
      %5402 = vmatpush1.bf16.msra.mxu0 %v1039
      %5403 = vmatprep.subr.bf16.mxu0 0
      %5404 = vmatpush2.bf16.msra.mxu0 0
      %5405 = vmatprep.subr.bf16.mxu0 0
      %5406 = vmatpush2.bf16.msra.mxu0 0
      %5407 = vmatprep.subr.bf16.mxu0 0
      %5408 = vmatpush2.bf16.msra.mxu0 0
      %5409 = vmatprep.subr.bf16.mxu0 0
      %5410 = vmatpush2.bf16.msra.mxu0 0
      %5411 = vmatprep.subr.bf16.mxu0 0
      %5412 = vmatpush2.bf16.msra.mxu0 0
      %5413 = vmatprep.subr.bf16.mxu0 0
      %5414 = vmatpush2.bf16.msra.mxu0 0
      %5415 = vmatprep.subr.bf16.mxu0 0
      %5416 = vmatpush2.bf16.msra.mxu0 0
      %5417 = vmatprep.subr.bf16.mxu0 0
      %5418 = vmatpush2.bf16.msra.mxu0 0
      %5419 = vmatprep.mubr.bf16.mxu0 0
      %5420 = vmatmul.mubr.bf16.gmra.mxu0 %v586
      %v5421 = vpop.f32.mrf.mxu0
      %v5422 = vadd.f32 %v5325, %v5421
      %v5423 = vpop.f32.mrf.mxu0
      %v5424 = vpop.f32.mrf.mxu0
      %v5425 = vadd.f32 %v5328, %v5424
      %v5426 = vpop.f32.mrf.mxu0
      %5427 = vmatprep.mubr.bf16.mxu0 0
      %5428 = vmatmul.mubr.bf16.gmra.mxu0 %v589
      %v5429 = vpop.f32.mrf.mxu0
      %v5430 = vadd.f32 %v5333, %v5429
      %v5431 = vpop.f32.mrf.mxu0
      %v5432 = vpop.f32.mrf.mxu0
      %v5433 = vadd.f32 %v5336, %v5432
      %v5434 = vpop.f32.mrf.mxu0
      %5435 = vmatprep.mubr.bf16.mxu0 0
      %5436 = vmatmul.mubr.bf16.gmra.mxu0 %v592
      %v5437 = vpop.f32.mrf.mxu0
      %v5438 = vadd.f32 %v5341, %v5437
      %v5439 = vpop.f32.mrf.mxu0
      %v5440 = vpop.f32.mrf.mxu0
      %v5441 = vadd.f32 %v5344, %v5440
      %v5442 = vpop.f32.mrf.mxu0
      %5443 = vmatprep.mubr.bf16.mxu0 0
      %5444 = vmatmul.mubr.bf16.gmra.mxu0 %v595
      %v5445 = vpop.f32.mrf.mxu0
      %v5446 = vadd.f32 %v5349, %v5445
      %v5447 = vpop.f32.mrf.mxu0
      %v5448 = vpop.f32.mrf.mxu0
      %v5449 = vadd.f32 %v5352, %v5448
      %v5450 = vpop.f32.mrf.mxu0
      %5451 = vmatprep.mubr.bf16.mxu0 0
      %5452 = vmatmul.mubr.bf16.gmra.mxu0 %v598
      %v5453 = vpop.f32.mrf.mxu0
      %v5454 = vadd.f32 %v5357, %v5453
      %v5455 = vpop.f32.mrf.mxu0
      %v5456 = vpop.f32.mrf.mxu0
      %v5457 = vadd.f32 %v5360, %v5456
      %v5458 = vpop.f32.mrf.mxu0
      %5459 = vmatprep.mubr.bf16.mxu0 0
      %5460 = vmatmul.mubr.bf16.gmra.mxu0 %v601
      %v5461 = vpop.f32.mrf.mxu0
      %v5462 = vadd.f32 %v5365, %v5461
      %v5463 = vpop.f32.mrf.mxu0
      %v5464 = vpop.f32.mrf.mxu0
      %v5465 = vadd.f32 %v5368, %v5464
      %v5466 = vpop.f32.mrf.mxu0
      %5467 = vmatprep.mubr.bf16.mxu0 0
      %5468 = vmatmul.mubr.bf16.gmra.mxu0 %v604
      %v5469 = vpop.f32.mrf.mxu0
      %v5470 = vadd.f32 %v5373, %v5469
      %v5471 = vpop.f32.mrf.mxu0
      %v5472 = vpop.f32.mrf.mxu0
      %v5473 = vadd.f32 %v5376, %v5472
      %v5474 = vpop.f32.mrf.mxu0
      %5475 = vmatprep.mubr.bf16.mxu0 0
      %5476 = vmatmul.mubr.bf16.gmra.mxu0 %v607
      %v5477 = vpop.f32.mrf.mxu0
      %v5478 = vadd.f32 %v5381, %v5477
      %v5479 = vpop.f32.mrf.mxu0
      %v5480 = vpop.f32.mrf.mxu0
      %v5481 = vadd.f32 %v5384, %v5480
      %v5482 = vpop.f32.mrf.mxu0
      %5483 = vdwg.mxu0
      %v5484 = vxor.u32 %v5422, 2147483648
      %v5485 = vxor.u32 %v5425, 2147483648
      %v5486 = vxor.u32 %v5430, 2147483648
      %v5487 = vxor.u32 %v5433, 2147483648
      %v5488 = vmul.f32 %v5484, 1.442695
      %v5489 = vpow.pop %v5488
      %v5490 = vmul.f32 %v5485, 1.442695
      %v5491 = vpow.pop %v5490
      %v5492 = vmul.f32 %v5486, 1.442695
      %v5493 = vpow.pop %v5492
      %v5494 = vmul.f32 %v5487, 1.442695
      %v5495 = vpow.pop %v5494
      %v5496 = vadd.f32 %v5489, 1.0
      %v5497 = vadd.f32 %v5491, 1.0
      %v5498 = vadd.f32 %v5493, 1.0
      %v5499 = vadd.f32 %v5495, 1.0
      %v5500 = vrcp.pop %v5496
      %v5501 = vmul.f32 1.0, %v5500
      %v5502 = vrcp.pop %v5497
      %v5503 = vmul.f32 1.0, %v5502
      %v5504 = vrcp.pop %v5498
      %v5505 = vmul.f32 1.0, %v5504
      %v5506 = vrcp.pop %v5499
      %v5507 = vmul.f32 1.0, %v5506
      %v5508 = vxor.u32 %v5438, 2147483648
      %v5509 = vxor.u32 %v5441, 2147483648
      %v5510 = vxor.u32 %v5446, 2147483648
      %v5511 = vxor.u32 %v5449, 2147483648
      %v5512 = vmul.f32 %v5508, 1.442695
      %v5513 = vpow.pop %v5512
      %v5514 = vmul.f32 %v5509, 1.442695
      %v5515 = vpow.pop %v5514
      %v5516 = vmul.f32 %v5510, 1.442695
      %v5517 = vpow.pop %v5516
      %v5518 = vmul.f32 %v5511, 1.442695
      %v5519 = vpow.pop %v5518
      %v5520 = vadd.f32 %v5513, 1.0
      %v5521 = vadd.f32 %v5515, 1.0
      %v5522 = vadd.f32 %v5517, 1.0
      %v5523 = vadd.f32 %v5519, 1.0
      %v5524 = vrcp.pop %v5520
      %v5525 = vmul.f32 1.0, %v5524
      %v5526 = vrcp.pop %v5521
      %v5527 = vmul.f32 1.0, %v5526
      %v5528 = vrcp.pop %v5522
      %v5529 = vmul.f32 1.0, %v5528
      %v5530 = vrcp.pop %v5523
      %v5531 = vmul.f32 1.0, %v5530
      %v5532 = vtanh.pop %v5454
      %v5533 = vtanh.pop %v5457
      %v5534 = vtanh.pop %v5462
      %v5535 = vtanh.pop %v5465
      %v5536 = vxor.u32 %v5470, 2147483648
      %v5537 = vxor.u32 %v5473, 2147483648
      %v5538 = vxor.u32 %v5478, 2147483648
      %v5539 = vxor.u32 %v5481, 2147483648
      %v5540 = vmul.f32 %v5536, 1.442695
      %v5541 = vpow.pop %v5540
      %v5542 = vmul.f32 %v5537, 1.442695
      %v5543 = vpow.pop %v5542
      %v5544 = vmul.f32 %v5538, 1.442695
      %v5545 = vpow.pop %v5544
      %v5546 = vmul.f32 %v5539, 1.442695
      %v5547 = vpow.pop %v5546
      %v5548 = vadd.f32 %v5541, 1.0
      %v5549 = vadd.f32 %v5543, 1.0
      %v5550 = vadd.f32 %v5545, 1.0
      %v5551 = vadd.f32 %v5547, 1.0
      %v5552 = vrcp.pop %v5548
      %v5553 = vmul.f32 1.0, %v5552
      %v5554 = vrcp.pop %v5549
      %v5555 = vmul.f32 1.0, %v5554
      %v5556 = vrcp.pop %v5550
      %v5557 = vmul.f32 1.0, %v5556
      %v5558 = vrcp.pop %v5551
      %v5559 = vmul.f32 1.0, %v5558
      %v5560 = vmul.f32 %v5525, %v4952
      %v5561 = vmul.f32 %v5527, %v4953
      %v5562 = vmul.f32 %v5529, %v4954
      %v5563 = vmul.f32 %v5531, %v4955
      %v5564 = vmul.f32 %v5501, %v5532
      %v5565 = vmul.f32 %v5503, %v5533
      %v5566 = vmul.f32 %v5505, %v5534
      %v5567 = vmul.f32 %v5507, %v5535
      %v5568 = vadd.f32 %v5560, %v5564
      %v5569 = vadd.f32 %v5561, %v5565
      %v5570 = vadd.f32 %v5562, %v5566
      %v5571 = vadd.f32 %v5563, %v5567
      %v5572 = vtanh.pop %v5568
      %v5573 = vtanh.pop %v5569
      %v5574 = vtanh.pop %v5570
      %v5575 = vtanh.pop %v5571
      %v5576 = vmul.f32 %v5553, %v5572
      %v5577 = vmul.f32 %v5555, %v5573
      %v5578 = vmul.f32 %v5557, %v5574
      %v5579 = vmul.f32 %v5559, %v5575
      %v5580 = vpack.c.bf16 %v5249, %v5248
      %v5581 = vpack.c.bf16 %v5251, %v5250
      %5582 = vmatprep.subr.bf16.mxu0 0
      %5583 = vmatpush1.bf16.msra.mxu0 0
      %5584 = vmatprep.subr.bf16.mxu0 0
      %5585 = vmatpush1.bf16.msra.mxu0 0
      %5586 = vmatprep.subr.bf16.mxu0 0
      %5587 = vmatpush1.bf16.msra.mxu0 0
      %5588 = vmatprep.subr.bf16.mxu0 0
      %5589 = vmatpush1.bf16.msra.mxu0 0
      %5590 = vmatprep.subr.bf16.mxu0 0
      %5591 = vmatpush1.bf16.msra.mxu0 0
      %5592 = vmatprep.subr.bf16.mxu0 0
      %5593 = vmatpush1.bf16.msra.mxu0 0
      %5594 = vmatprep.subr.bf16.mxu0 0
      %5595 = vmatpush1.bf16.msra.mxu0 %v5581
      %5596 = vmatprep.subr.bf16.mxu0 0
      %5597 = vmatpush1.bf16.msra.mxu0 %v5580
      %5598 = vmatprep.subr.bf16.mxu0 0
      %5599 = vmatpush2.bf16.msra.mxu0 0
      %5600 = vmatprep.subr.bf16.mxu0 0
      %5601 = vmatpush2.bf16.msra.mxu0 0
      %5602 = vmatprep.subr.bf16.mxu0 0
      %5603 = vmatpush2.bf16.msra.mxu0 0
      %5604 = vmatprep.subr.bf16.mxu0 0
      %5605 = vmatpush2.bf16.msra.mxu0 0
      %5606 = vmatprep.subr.bf16.mxu0 0
      %5607 = vmatpush2.bf16.msra.mxu0 0
      %5608 = vmatprep.subr.bf16.mxu0 0
      %5609 = vmatpush2.bf16.msra.mxu0 0
      %5610 = vmatprep.subr.bf16.mxu0 0
      %5611 = vmatpush2.bf16.msra.mxu0 0
      %5612 = vmatprep.subr.bf16.mxu0 0
      %5613 = vmatpush2.bf16.msra.mxu0 0
      %5614 = vmatprep.mubr.bf16.mxu0 0
      %5615 = vmatmul.mubr.bf16.gmra.mxu0 %v869
      %v5616 = vpop.f32.mrf.mxu0
      %v5617 = vadd.f32 0.0, %v5616
      %v5618 = vpop.f32.mrf.mxu0
      %v5619 = vpop.f32.mrf.mxu0
      %v5620 = vadd.f32 0.0, %v5619
      %v5621 = vpop.f32.mrf.mxu0
      %5622 = vmatprep.mubr.bf16.mxu0 0
      %5623 = vmatmul.mubr.bf16.gmra.mxu0 %v872
      %v5624 = vpop.f32.mrf.mxu0
      %v5625 = vadd.f32 0.0, %v5624
      %v5626 = vpop.f32.mrf.mxu0
      %v5627 = vpop.f32.mrf.mxu0
      %v5628 = vadd.f32 0.0, %v5627
      %v5629 = vpop.f32.mrf.mxu0
      %5630 = vmatprep.mubr.bf16.mxu0 0
      %5631 = vmatmul.mubr.bf16.gmra.mxu0 %v875
      %v5632 = vpop.f32.mrf.mxu0
      %v5633 = vadd.f32 0.0, %v5632
      %v5634 = vpop.f32.mrf.mxu0
      %v5635 = vpop.f32.mrf.mxu0
      %v5636 = vadd.f32 0.0, %v5635
      %v5637 = vpop.f32.mrf.mxu0
      %5638 = vmatprep.mubr.bf16.mxu0 0
      %5639 = vmatmul.mubr.bf16.gmra.mxu0 %v878
      %v5640 = vpop.f32.mrf.mxu0
      %v5641 = vadd.f32 0.0, %v5640
      %v5642 = vpop.f32.mrf.mxu0
      %v5643 = vpop.f32.mrf.mxu0
      %v5644 = vadd.f32 0.0, %v5643
      %v5645 = vpop.f32.mrf.mxu0
      %5646 = vmatprep.mubr.bf16.mxu0 0
      %5647 = vmatmul.mubr.bf16.gmra.mxu0 %v881
      %v5648 = vpop.f32.mrf.mxu0
      %v5649 = vadd.f32 0.0, %v5648
      %v5650 = vpop.f32.mrf.mxu0
      %v5651 = vpop.f32.mrf.mxu0
      %v5652 = vadd.f32 0.0, %v5651
      %v5653 = vpop.f32.mrf.mxu0
      %5654 = vmatprep.mubr.bf16.mxu0 0
      %5655 = vmatmul.mubr.bf16.gmra.mxu0 %v884
      %v5656 = vpop.f32.mrf.mxu0
      %v5657 = vadd.f32 0.0, %v5656
      %v5658 = vpop.f32.mrf.mxu0
      %v5659 = vpop.f32.mrf.mxu0
      %v5660 = vadd.f32 0.0, %v5659
      %v5661 = vpop.f32.mrf.mxu0
      %5662 = vmatprep.mubr.bf16.mxu0 0
      %5663 = vmatmul.mubr.bf16.gmra.mxu0 %v887
      %v5664 = vpop.f32.mrf.mxu0
      %v5665 = vadd.f32 0.0, %v5664
      %v5666 = vpop.f32.mrf.mxu0
      %v5667 = vpop.f32.mrf.mxu0
      %v5668 = vadd.f32 0.0, %v5667
      %v5669 = vpop.f32.mrf.mxu0
      %5670 = vmatprep.mubr.bf16.mxu0 0
      %5671 = vmatmul.mubr.bf16.gmra.mxu0 %v890
      %v5672 = vpop.f32.mrf.mxu0
      %v5673 = vadd.f32 0.0, %v5672
      %v5674 = vpop.f32.mrf.mxu0
      %v5675 = vpop.f32.mrf.mxu0
      %v5676 = vadd.f32 0.0, %v5675
      %v5677 = vpop.f32.mrf.mxu0
      %5678 = vdwg.mxu0
      %5679 = vmatprep.subr.bf16.mxu0 0
      %5680 = vmatpush1.bf16.msra.mxu0 0
      %5681 = vmatprep.subr.bf16.mxu0 0
      %5682 = vmatpush1.bf16.msra.mxu0 0
      %5683 = vmatprep.subr.bf16.mxu0 0
      %5684 = vmatpush1.bf16.msra.mxu0 0
      %5685 = vmatprep.subr.bf16.mxu0 0
      %5686 = vmatpush1.bf16.msra.mxu0 0
      %5687 = vmatprep.subr.bf16.mxu0 0
      %5688 = vmatpush1.bf16.msra.mxu0 0
      %5689 = vmatprep.subr.bf16.mxu0 0
      %5690 = vmatpush1.bf16.msra.mxu0 %v613
      %5691 = vmatprep.subr.bf16.mxu0 0
      %5692 = vmatpush1.bf16.msra.mxu0 %v580
      %5693 = vmatprep.subr.bf16.mxu0 0
      %5694 = vmatpush1.bf16.msra.mxu0 %v579
      %5695 = vmatprep.subr.bf16.mxu0 0
      %5696 = vmatpush2.bf16.msra.mxu0 0
      %5697 = vmatprep.subr.bf16.mxu0 0
      %5698 = vmatpush2.bf16.msra.mxu0 0
      %5699 = vmatprep.subr.bf16.mxu0 0
      %5700 = vmatpush2.bf16.msra.mxu0 0
      %5701 = vmatprep.subr.bf16.mxu0 0
      %5702 = vmatpush2.bf16.msra.mxu0 0
      %5703 = vmatprep.subr.bf16.mxu0 0
      %5704 = vmatpush2.bf16.msra.mxu0 0
      %5705 = vmatprep.subr.bf16.mxu0 0
      %5706 = vmatpush2.bf16.msra.mxu0 0
      %5707 = vmatprep.subr.bf16.mxu0 0
      %5708 = vmatpush2.bf16.msra.mxu0 0
      %5709 = vmatprep.subr.bf16.mxu0 0
      %5710 = vmatpush2.bf16.msra.mxu0 0
      %5711 = vmatprep.mubr.bf16.mxu0 0
      %5712 = vmatmul.mubr.bf16.gmra.mxu0 %v1045
      %v5713 = vpop.f32.mrf.mxu0
      %v5714 = vadd.f32 %v5617, %v5713
      %v5715 = vpop.f32.mrf.mxu0
      %v5716 = vpop.f32.mrf.mxu0
      %v5717 = vadd.f32 %v5620, %v5716
      %v5718 = vpop.f32.mrf.mxu0
      %5719 = vmatprep.mubr.bf16.mxu0 0
      %5720 = vmatmul.mubr.bf16.gmra.mxu0 %v1048
      %v5721 = vpop.f32.mrf.mxu0
      %v5722 = vadd.f32 %v5625, %v5721
      %v5723 = vpop.f32.mrf.mxu0
      %v5724 = vpop.f32.mrf.mxu0
      %v5725 = vadd.f32 %v5628, %v5724
      %v5726 = vpop.f32.mrf.mxu0
      %5727 = vmatprep.mubr.bf16.mxu0 0
      %5728 = vmatmul.mubr.bf16.gmra.mxu0 %v1051
      %v5729 = vpop.f32.mrf.mxu0
      %v5730 = vadd.f32 %v5633, %v5729
      %v5731 = vpop.f32.mrf.mxu0
      %v5732 = vpop.f32.mrf.mxu0
      %v5733 = vadd.f32 %v5636, %v5732
      %v5734 = vpop.f32.mrf.mxu0
      %5735 = vmatprep.mubr.bf16.mxu0 0
      %5736 = vmatmul.mubr.bf16.gmra.mxu0 %v1054
      %v5737 = vpop.f32.mrf.mxu0
      %v5738 = vadd.f32 %v5641, %v5737
      %v5739 = vpop.f32.mrf.mxu0
      %v5740 = vpop.f32.mrf.mxu0
      %v5741 = vadd.f32 %v5644, %v5740
      %v5742 = vpop.f32.mrf.mxu0
      %5743 = vmatprep.mubr.bf16.mxu0 0
      %5744 = vmatmul.mubr.bf16.gmra.mxu0 %v1057
      %v5745 = vpop.f32.mrf.mxu0
      %v5746 = vadd.f32 %v5649, %v5745
      %v5747 = vpop.f32.mrf.mxu0
      %v5748 = vpop.f32.mrf.mxu0
      %v5749 = vadd.f32 %v5652, %v5748
      %v5750 = vpop.f32.mrf.mxu0
      %5751 = vmatprep.mubr.bf16.mxu0 0
      %5752 = vmatmul.mubr.bf16.gmra.mxu0 %v1060
      %v5753 = vpop.f32.mrf.mxu0
      %v5754 = vadd.f32 %v5657, %v5753
      %v5755 = vpop.f32.mrf.mxu0
      %v5756 = vpop.f32.mrf.mxu0
      %v5757 = vadd.f32 %v5660, %v5756
      %v5758 = vpop.f32.mrf.mxu0
      %5759 = vmatprep.mubr.bf16.mxu0 0
      %5760 = vmatmul.mubr.bf16.gmra.mxu0 %v1063
      %v5761 = vpop.f32.mrf.mxu0
      %v5762 = vadd.f32 %v5665, %v5761
      %v5763 = vpop.f32.mrf.mxu0
      %v5764 = vpop.f32.mrf.mxu0
      %v5765 = vadd.f32 %v5668, %v5764
      %v5766 = vpop.f32.mrf.mxu0
      %5767 = vmatprep.mubr.bf16.mxu0 0
      %5768 = vmatmul.mubr.bf16.gmra.mxu0 %v1066
      %v5769 = vpop.f32.mrf.mxu0
      %v5770 = vadd.f32 %v5673, %v5769
      %v5771 = vpop.f32.mrf.mxu0
      %v5772 = vpop.f32.mrf.mxu0
      %v5773 = vadd.f32 %v5676, %v5772
      %v5774 = vpop.f32.mrf.mxu0
      %5775 = vdwg.mxu0
      %v5776 = vxor.u32 %v5714, 2147483648
      %v5777 = vxor.u32 %v5717, 2147483648
      %v5778 = vxor.u32 %v5722, 2147483648
      %v5779 = vxor.u32 %v5725, 2147483648
      %v5780 = vmul.f32 %v5776, 1.442695
      %v5781 = vpow.pop %v5780
      %v5782 = vmul.f32 %v5777, 1.442695
      %v5783 = vpow.pop %v5782
      %v5784 = vmul.f32 %v5778, 1.442695
      %v5785 = vpow.pop %v5784
      %v5786 = vmul.f32 %v5779, 1.442695
      %v5787 = vpow.pop %v5786
      %v5788 = vadd.f32 %v5781, 1.0
      %v5789 = vadd.f32 %v5783, 1.0
      %v5790 = vadd.f32 %v5785, 1.0
      %v5791 = vadd.f32 %v5787, 1.0
      %v5792 = vrcp.pop %v5788
      %v5793 = vmul.f32 1.0, %v5792
      %v5794 = vrcp.pop %v5789
      %v5795 = vmul.f32 1.0, %v5794
      %v5796 = vrcp.pop %v5790
      %v5797 = vmul.f32 1.0, %v5796
      %v5798 = vrcp.pop %v5791
      %v5799 = vmul.f32 1.0, %v5798
      %v5800 = vxor.u32 %v5730, 2147483648
      %v5801 = vxor.u32 %v5733, 2147483648
      %v5802 = vxor.u32 %v5738, 2147483648
      %v5803 = vxor.u32 %v5741, 2147483648
      %v5804 = vmul.f32 %v5800, 1.442695
      %v5805 = vpow.pop %v5804
      %v5806 = vmul.f32 %v5801, 1.442695
      %v5807 = vpow.pop %v5806
      %v5808 = vmul.f32 %v5802, 1.442695
      %v5809 = vpow.pop %v5808
      %v5810 = vmul.f32 %v5803, 1.442695
      %v5811 = vpow.pop %v5810
      %v5812 = vadd.f32 %v5805, 1.0
      %v5813 = vadd.f32 %v5807, 1.0
      %v5814 = vadd.f32 %v5809, 1.0
      %v5815 = vadd.f32 %v5811, 1.0
      %v5816 = vrcp.pop %v5812
      %v5817 = vmul.f32 1.0, %v5816
      %v5818 = vrcp.pop %v5813
      %v5819 = vmul.f32 1.0, %v5818
      %v5820 = vrcp.pop %v5814
      %v5821 = vmul.f32 1.0, %v5820
      %v5822 = vrcp.pop %v5815
      %v5823 = vmul.f32 1.0, %v5822
      %v5824 = vtanh.pop %v5746
      %v5825 = vtanh.pop %v5749
      %v5826 = vtanh.pop %v5754
      %v5827 = vtanh.pop %v5757
      %v5828 = vxor.u32 %v5762, 2147483648
      %v5829 = vxor.u32 %v5765, 2147483648
      %v5830 = vxor.u32 %v5770, 2147483648
      %v5831 = vxor.u32 %v5773, 2147483648
      %v5832 = vmul.f32 %v5828, 1.442695
      %v5833 = vpow.pop %v5832
      %v5834 = vmul.f32 %v5829, 1.442695
      %v5835 = vpow.pop %v5834
      %v5836 = vmul.f32 %v5830, 1.442695
      %v5837 = vpow.pop %v5836
      %v5838 = vmul.f32 %v5831, 1.442695
      %v5839 = vpow.pop %v5838
      %v5840 = vadd.f32 %v5833, 1.0
      %v5841 = vadd.f32 %v5835, 1.0
      %v5842 = vadd.f32 %v5837, 1.0
      %v5843 = vadd.f32 %v5839, 1.0
      %v5844 = vrcp.pop %v5840
      %v5845 = vmul.f32 1.0, %v5844
      %v5846 = vrcp.pop %v5841
      %v5847 = vmul.f32 1.0, %v5846
      %v5848 = vrcp.pop %v5842
      %v5849 = vmul.f32 1.0, %v5848
      %v5850 = vrcp.pop %v5843
      %v5851 = vmul.f32 1.0, %v5850
      %v5852 = vmul.f32 %v5817, %v5252
      %v5853 = vmul.f32 %v5819, %v5253
      %v5854 = vmul.f32 %v5821, %v5254
      %v5855 = vmul.f32 %v5823, %v5255
      %v5856 = vmul.f32 %v5793, %v5824
      %v5857 = vmul.f32 %v5795, %v5825
      %v5858 = vmul.f32 %v5797, %v5826
      %v5859 = vmul.f32 %v5799, %v5827
      %v5860 = vadd.f32 %v5852, %v5856
      %v5861 = vadd.f32 %v5853, %v5857
      %v5862 = vadd.f32 %v5854, %v5858
      %v5863 = vadd.f32 %v5855, %v5859
      %v5864 = vtanh.pop %v5860
      %v5865 = vtanh.pop %v5861
      %v5866 = vtanh.pop %v5862
      %v5867 = vtanh.pop %v5863
      %v5868 = vmul.f32 %v5845, %v5864
      %v5869 = vmul.f32 %v5847, %v5865
      %v5870 = vmul.f32 %v5849, %v5866
      %v5871 = vmul.f32 %v5851, %v5867
      %vm5872 = vcmp.ne.f32.partialorder %v5576, 0.0
      %vm5873 = vcmp.ne.f32.partialorder %v5577, 0.0
      %vm5874 = vcmp.ne.f32.partialorder %v5578, 0.0
      %vm5875 = vcmp.ne.f32.partialorder %v5579, 0.0
      %vm5876 = vmand %vm1269, %vm5872
      %vm5877 = vmand %vm1269, %vm5873
      %vm5878 = vmand %vm1269, %vm5874
      %vm5879 = vmand %vm1269, %vm5875
      %v5880 = vsel %vm5876, %v5576, -1e+09
      %v5881 = vsel %vm5877, %v5577, -1e+09
      %v5882 = vsel %vm5878, %v5578, -1e+09
      %v5883 = vsel %vm5879, %v5579, -1e+09
      %v5884 = vmax.f32 %v5268, %v5880
      %v5885 = vmax.f32 %v5269, %v5881
      %v5886 = vmax.f32 %v5270, %v5882
      %v5887 = vmax.f32 %v5271, %v5883
      %vm5888 = vcmp.ne.f32.partialorder %v5868, 0.0
      %vm5889 = vcmp.ne.f32.partialorder %v5869, 0.0
      %vm5890 = vcmp.ne.f32.partialorder %v5870, 0.0
      %vm5891 = vcmp.ne.f32.partialorder %v5871, 0.0
      %vm5892 = vmand %vm813, %vm5888
      %vm5893 = vmand %vm813, %vm5889
      %vm5894 = vmand %vm813, %vm5890
      %vm5895 = vmand %vm813, %vm5891
      %v5896 = vsel %vm5892, %v5868, -1e+09
      %v5897 = vsel %vm5893, %v5869, -1e+09
      %v5898 = vsel %vm5894, %v5870, -1e+09
      %v5899 = vsel %vm5895, %v5871, -1e+09
      %v5900 = vmax.f32 %v5284, %v5896
      %v5901 = vmax.f32 %v5285, %v5897
      %v5902 = vmax.f32 %v5286, %v5898
      %v5903 = vmax.f32 %v5287, %v5899
      %5904 = vst [vmem:[%s293] sm:$0xff] %v5884
      %5905 = vst [vmem:[%s293 + $0x8] sm:$0xff] %v5885
      %5906 = vst [vmem:[%s293 + $0x10] sm:$0xff] %v5886
      %5907 = vst [vmem:[%s293 + $0x18] sm:$0xff] %v5887
      %5908 = vst [vmem:[%s293 + $0x20] sm:$0xff] %v5900
      %5909 = vst [vmem:[%s293 + $0x28] sm:$0xff] %v5901
      %5910 = vst [vmem:[%s293 + $0x30] sm:$0xff] %v5902
      %5911 = vst [vmem:[%s293 + $0x38] sm:$0xff] %v5903
      %p5912 = scmp.lt.s32.totalorder %s19, 1
      %s5913 = scalar_select %p5912, %s19, 1
      %p5914 = scmp.lt.s32.totalorder %s20, 0
      %s5915 = scalar_select %p5914, %s20, 0
      %s5916 = smul.addr %s5913, 8
      %s5917 = sadd.s32 %s5915, %s5916
      %s5918 = smul.addr %s5917, 8
      %s5919 = scalar_lea.vmem %s4, %s5918
      // Predicated region
      $region37: #{_unreferenced_metric.2} parent=35 // pred_check
        %p5920 = pneg %p155
      $region38: #{_unreferenced_metric.2} parent=35 // pred_check_branch
        %5922 = sbr.rel (%p5920) target = $region40
      $region39: #{_unreferenced_metric.2} parent=35 // pred_region
        _
      $region40: #{_unreferenced_metric.2} parent=35 // pred_fallthru
        _
    $region36: #{_unreferenced_metric.2} parent=5 // pred_fallthru
      _
    %p5923 = scmp.le.s32.totalorder 2, %s10
    // Predicated region
    $region41: #{_unreferenced_metric.2} parent=5 // pred_check
      %p5924 = pneg %p5923
    $region42: #{_unreferenced_metric.2} parent=5 // pred_check_branch
      %5926 = sbr.rel (%p5924) target = $region44
    $region43: #{_unreferenced_metric.2} parent=5 // pred_region
      %s5927 = ssub.s32 %s10, 2
      // Predicated region
      $region45: #{_unreferenced_metric.2} parent=43 // pred_check
        %p5928 = pneg %p161
      $region46: #{_unreferenced_metric.2} parent=43 // pred_check_branch
        %5930 = sbr.rel (%p5928) target = $region48
      $region47: #{_unreferenced_metric.2} parent=43 // pred_region
        %p5931 = scmp.lt.s32.totalorder %s21, 1
        %s5932 = scalar_select %p5931, %s21, 1
        %p5933 = scmp.lt.s32.totalorder %s22, 0
        %s5934 = scalar_select %p5933, %s22, 0
        %s5935 = smul.addr %s5932, 8
        %s5936 = sadd.s32 %s5934, %s5935
        %s5937 = smul.addr %s5936, 8
        %s5938 = scalar_lea.vmem %s4, %s5937
      $region48: #{_unreferenced_metric.2} parent=43 // pred_fallthru
        _
    $region44: #{_unreferenced_metric.2} parent=5 // pred_fallthru
      _
  $region6: #{_unreferenced_metric.2} parent=0 // loop_footer
    %s14 = sadd.s32 1, %s10
  $region7: #{_unreferenced_metric.2} parent=0 // loop_footer_branch
    %9 = sbr.rel target = $region3
  $region8: #{_unreferenced_metric.2} parent=0 // loop_exit
    _

</llo_original>
